<compile_context>
chip_gen: v7x
topology: tpu7x:2x2x1
jax: 0.10.0
libtpu: 0.0.40
codegen_flags: <defaults>
</compile_context>

<pallas_src>
import functools

import jax
import jax.numpy as jnp
from jax import lax
from jax.experimental import pallas as pl
from jax.experimental.pallas import tpu as pltpu

# ---- model constants (match the PyTorch module) -----------------------------
A = 30
ED = EMBEDDING_DIM = 300
HD = HIDDEN_DIM = 100          # real hidden dim
HDP = 128                      # lane-padded hidden dim
GP = 4 * HDP                   # padded gate width (512)
NUM_LAYERS = 2
P_STAR_DIM = 2 * HIDDEN_DIM + 2 * EMBEDDING_DIM   # 800


def _round_up(x, m):
    return ((x + m - 1) // m) * m


def _pad_blocks(x, axis, real, padded, nblocks):
    """Split `axis` into nblocks of size `real`, zero-pad each to `padded`."""
    parts = jnp.split(x, nblocks, axis=axis)
    pads = [(0, 0)] * x.ndim
    pads[axis] = (0, padded - real)
    return jnp.concatenate([jnp.pad(p, pads) for p in parts], axis=axis)


# =============================================================================
# Row-tiled linear (bf16 MXU operands, f32 accumulate)
# =============================================================================
def _linear_kernel(x_ref, w_ref, b_ref, o_ref, *, relu):
    x = x_ref[...].astype(jnp.bfloat16)
    w = w_ref[...].astype(jnp.bfloat16)
    y = jnp.dot(x, w, preferred_element_type=jnp.float32) + b_ref[...]
    if relu:
        y = jnp.maximum(y, 0.0)
    o_ref[...] = y


def linear_pallas(x2d, w, b, relu=False, block_rows=256):
    """y = (relu)(x2d @ w + b); rows tiled, weights resident per block."""
    R, IN = x2d.shape
    OUT = w.shape[1]
    tm = min(block_rows, _round_up(R, 8))
    rp = _round_up(R, tm)
    if rp != R:
        x2d = jnp.pad(x2d, ((0, rp - R), (0, 0)))
    out = pl.pallas_call(
        functools.partial(_linear_kernel, relu=relu),
        out_shape=jax.ShapeDtypeStruct((rp, OUT), jnp.float32),
        grid=(rp // tm,),
        in_specs=[
            pl.BlockSpec((tm, IN), lambda i: (i, 0)),
            pl.BlockSpec((IN, OUT), lambda i: (0, 0)),
            pl.BlockSpec((1, OUT), lambda i: (0, 0)),
        ],
        out_specs=pl.BlockSpec((tm, OUT), lambda i: (i, 0)),
        compiler_params=pltpu.CompilerParams(dimension_semantics=("parallel",)),
    )(x2d, w, b.reshape(1, OUT))
    return out[:R] if rp != R else out


# =============================================================================
# Aligned-question attention:  softmax(p_ff q_ff^T) @ q_emd   (per batch)
# =============================================================================
def _align_kernel(pff_ref, qff_ref, qemd_ref, out_ref):
    p = pff_ref[0].astype(jnp.bfloat16)                        # (L, HDP)
    qf = qff_ref[0].astype(jnp.bfloat16)                       # (M, HDP)
    s = lax.dot_general(p, qf, (((1,), (1,)), ((), ())),
                        preferred_element_type=jnp.float32)    # (L, M)
    m = jnp.max(s, axis=-1, keepdims=True)
    e = jnp.exp(s - m)
    a = e * pl.reciprocal(jnp.sum(e, axis=-1, keepdims=True), approx=True)
    out_ref[0] = jnp.dot(a.astype(jnp.bfloat16),
                         qemd_ref[0].astype(jnp.bfloat16),
                         preferred_element_type=jnp.float32)   # (L, ED)


def align_pallas(p_ff, q_ff, q_emd):
    N, L, _ = p_ff.shape
    _, M, _ = q_ff.shape
    return pl.pallas_call(
        _align_kernel,
        out_shape=jax.ShapeDtypeStruct((N, L, ED), jnp.float32),
        grid=(N,),
        in_specs=[
            pl.BlockSpec((1, L, HDP), lambda b: (b, 0, 0)),
            pl.BlockSpec((1, M, HDP), lambda b: (b, 0, 0)),
            pl.BlockSpec((1, M, ED), lambda b: (b, 0, 0)),
        ],
        out_specs=pl.BlockSpec((1, L, ED), lambda b: (b, 0, 0)),
        compiler_params=pltpu.CompilerParams(dimension_semantics=("parallel",)),
    )(p_ff, q_ff, q_emd)


# =============================================================================
# Question-independent attention:  softmax(w_q(q_dash_ff)) @ q_dash  (per batch)
# =============================================================================
def _qindep_kernel(qff_ref, qdash_ref, wq_ref, bq_ref, out_ref):
    s = jnp.sum(qff_ref[0] * wq_ref[...], axis=-1, keepdims=True) + bq_ref[...]
    m = jnp.max(s, axis=0, keepdims=True)
    e = jnp.exp(s - m)
    a = e * pl.reciprocal(jnp.sum(e, axis=0, keepdims=True), approx=True)
    out_ref[0] = jnp.sum(a * qdash_ref[0], axis=0, keepdims=True)   # (1, 2*HDP)


def qindep_pallas(q_dash_ff, q_dash, wq_row, bq):
    N, M, _ = q_dash_ff.shape
    H2 = q_dash.shape[2]
    return pl.pallas_call(
        _qindep_kernel,
        out_shape=jax.ShapeDtypeStruct((N, 1, H2), jnp.float32),
        grid=(N,),
        in_specs=[
            pl.BlockSpec((1, M, HDP), lambda b: (b, 0, 0)),
            pl.BlockSpec((1, M, H2), lambda b: (b, 0, 0)),
            pl.BlockSpec((1, HDP), lambda b: (0, 0)),
            pl.BlockSpec((1, 1), lambda b: (0, 0)),
        ],
        out_specs=pl.BlockSpec((1, 1, H2), lambda b: (b, 0, 0)),
        compiler_params=pltpu.CompilerParams(dimension_semantics=("parallel",)),
    )(q_dash_ff, q_dash, wq_row, bq.reshape(1, 1))


# =============================================================================
# Fused BiLSTM layer: whole time loop in one kernel, direction = grid axis
#   gx_ref : precomputed x@Wih + b for both directions, (T, N, 2*GP)
#   output : (T, N, 2*HDP) with fwd in lanes [:HDP], bwd in lanes [HDP:]
# =============================================================================
def _lstm_layer_kernel(gx_ref, whh_ref, h0_ref, c0_ref, lens_ref, y_ref,
                       h_sc, c_sc):
    d = pl.program_id(0)                       # 0 = forward, 1 = backward
    T = gx_ref.shape[0]
    h_sc[...] = h0_ref[...]
    c_sc[...] = c0_ref[...]
    whh = whh_ref[...].astype(jnp.bfloat16)    # (HDP, GP), resident
    lens = lens_ref[...]                       # (N, 1) int32

    def step(s, carry):
        t = jnp.where(d == 0, s, T - 1 - s)
        gx = gx_ref[t]                         # (N, GP)
        h = h_sc[...]
        c = c_sc[...]
        gates = gx + jnp.dot(h.astype(jnp.bfloat16), whh,
                             preferred_element_type=jnp.float32)
        i_g = jax.nn.sigmoid(gates[:, 0 * HDP:1 * HDP])
        f_g = jax.nn.sigmoid(gates[:, 1 * HDP:2 * HDP])
        g_g = jnp.tanh(gates[:, 2 * HDP:3 * HDP])
        o_g = jax.nn.sigmoid(gates[:, 3 * HDP:4 * HDP])
        c_new = f_g * c + i_g * g_g
        h_new = o_g * jnp.tanh(c_new)
        m = (t < lens).astype(jnp.float32)     # (N, 1) packed-seq mask
        h_sc[...] = m * h_new + (1.0 - m) * h
        c_sc[...] = m * c_new + (1.0 - m) * c
        y_ref[t] = m * h_new                   # zero past each length
        return carry

    lax.fori_loop(0, T, step, 0)


def lstm_layer_pallas(gx, whh, h0, c0, lens_col):
    T, N, _ = gx.shape
    return pl.pallas_call(
        _lstm_layer_kernel,
        out_shape=jax.ShapeDtypeStruct((T, N, 2 * HDP), jnp.float32),
        grid=(2,),
        in_specs=[
            pl.BlockSpec((T, N, GP), lambda d: (0, 0, d)),       # gates half
            pl.BlockSpec((None, HDP, GP), lambda d: (d, 0, 0)),  # Whh
            pl.BlockSpec((None, N, HDP), lambda d: (d, 0, 0)),   # h0
            pl.BlockSpec((None, N, HDP), lambda d: (d, 0, 0)),   # c0
            pl.BlockSpec((N, 1), lambda d: (0, 0)),              # lengths
        ],
        out_specs=pl.BlockSpec((T, N, HDP), lambda d: (0, 0, d)),
        scratch_shapes=[pltpu.VMEM((N, HDP), jnp.float32),
                        pltpu.VMEM((N, HDP), jnp.float32)],
        compiler_params=pltpu.CompilerParams(dimension_semantics=("parallel",)),
    )(gx, whh, h0, c0, lens_col)


def bilstm_fused(gx0, lens, lstm_params, hidden):
    """gx0: precomputed layer-0 gates (T,N,2*GP). Returns (T, N, 2*HDP)."""
    T, N, _ = gx0.shape
    lens_col = lens.astype(jnp.int32).reshape(N, 1)
    h_all, c_all = hidden                       # (2*layers, N, HDP)
    gx = gx0
    out = None
    for layer in range(NUM_LAYERS):
        lp = lstm_params[layer]
        if layer > 0:
            gx = linear_pallas(out.reshape(T * N, 2 * HDP), lp["wih"],
                               lp["b"]).reshape(T, N, 2 * GP)
        out = lstm_layer_pallas(gx, lp["whh"],
                                h_all[2 * layer:2 * layer + 2],
                                c_all[2 * layer:2 * layer + 2], lens_col)
    return out


# =============================================================================
# Span scores: in-VMEM (start, answer-length) expansion + relu + w_a + mask
#              + log_softmax over all L*A spans                    (per batch)
# =============================================================================
def _span_kernel(plens_ref, stt_ref, end_ref, wa_ref, ba_ref, out_ref):
    b = pl.program_id(0)
    L = stt_ref.shape[1]
    p_len = plens_ref[b]
    stt = stt_ref[0]                            # (L, HDP)
    w = wa_ref[...]                             # (1, HDP)
    cols = []
    for a in range(A):                          # static unroll, data stays in VMEM
        v = jnp.maximum(stt + end_ref[0, a:a + L, :], 0.0)       # (L, HDP)
        cols.append(jnp.sum(v * w, axis=-1, keepdims=True))      # (L, 1)
    scores = jnp.concatenate(cols, axis=-1) + ba_ref[...]        # (L, A)
    l_idx = lax.broadcasted_iota(jnp.int32, (L, A), 0)
    a_idx = lax.broadcasted_iota(jnp.int32, (L, A), 1)
    mask = ((l_idx + a_idx) < p_len).astype(jnp.float32)
    masked = scores * mask                      # multiplicative, torch-faithful
    m = jnp.max(jnp.max(masked, axis=-1, keepdims=True), axis=0, keepdims=True)
    e = jnp.exp(masked - m)
    denom = jnp.sum(jnp.sum(e, axis=-1, keepdims=True), axis=0, keepdims=True)
    out_ref[0] = masked - m - jnp.log(denom)


def span_scores_pallas(p_lens, stt_n, end_padded, wa_row, ba):
    N, L, _ = stt_n.shape
    out = pl.pallas_call(
        _span_kernel,
        out_shape=jax.ShapeDtypeStruct((N, L, A), jnp.float32),
        grid_spec=pltpu.PrefetchScalarGridSpec(
            num_scalar_prefetch=1,
            grid=(N,),
            in_specs=[
                pl.BlockSpec((1, L, HDP), lambda b, pl_: (b, 0, 0)),
                pl.BlockSpec((1, L + A - 1, HDP), lambda b, pl_: (b, 0, 0)),
                pl.BlockSpec((1, HDP), lambda b, pl_: (0, 0)),
                pl.BlockSpec((1, 1), lambda b, pl_: (0, 0)),
            ],
            out_specs=pl.BlockSpec((1, L, A), lambda b, pl_: (b, 0, 0)),
        ),
        compiler_params=pltpu.CompilerParams(dimension_semantics=("parallel",)),
    )(p_lens.astype(jnp.int32), stt_n, end_padded, wa_row, ba.reshape(1, 1))
    return out.reshape(N, L * A)


# =============================================================================
# Parameters (generated at the real 100-dim sizes, embedded in 128-padded
# zero blocks so padded lanes are exact zeros throughout the network)
# =============================================================================
def init_params(key, num_emd):
    keys = iter(jax.random.split(key, 64))

    def w(shape):
        return (0.1 * jax.random.normal(next(keys), shape)).astype(jnp.float32)

    pad_gate_cols = lambda x: _pad_blocks(x, x.ndim - 1, HD, HDP, 4)
    pad_h_cols = lambda x: _pad_blocks(x, x.ndim - 1, HD, HDP, 1)
    pad_h_rows = lambda x: _pad_blocks(x, 0, HD, HDP, 1)
    pad_2h_rows = lambda x: _pad_blocks(x, 0, HD, HDP, 2)

    def lstm_dir(in_dim_real, rows_are_bilstm_out):
        wih = pad_gate_cols(w((in_dim_real, 4 * HD)))
        if rows_are_bilstm_out:
            wih = pad_2h_rows(wih)
        whh = pad_h_rows(pad_gate_cols(w((HD, 4 * HD))))
        b = pad_gate_cols(w((4 * HD,)))          # b_ih + b_hh fused
        return wih, whh, b

    def bilstm_layer(in_dim_real, rows_are_bilstm_out):
        wf, hf, bf = lstm_dir(in_dim_real, rows_are_bilstm_out)
        wb, hb, bb = lstm_dir(in_dim_real, rows_are_bilstm_out)
        return {"wih": jnp.concatenate([wf, wb], axis=1),     # (IN, 2*GP)
                "whh": jnp.stack([hf, hb], axis=0),           # (2, HDP, GP)
                "b": jnp.concatenate([bf, bb], axis=0)}       # (2*GP,)

    def pstar_layer0():
        # split Wih rows into the [p_emd | q_i_align] part (600) and the
        # q_indep part (200 -> padded 256) so q_indep's gate contribution can
        # be added once instead of broadcasting it over L.
        pqs, qis, hhs, bs = [], [], [], []
        for _ in range(2):
            wih = pad_gate_cols(w((P_STAR_DIM, 4 * HD)))       # (800, GP)
            pqs.append(wih[:2 * ED])                           # (600, GP)
            qis.append(pad_2h_rows(wih[2 * ED:]))              # (256, GP)
            hhs.append(pad_h_rows(pad_gate_cols(w((HD, 4 * HD)))))
            bs.append(pad_gate_cols(w((4 * HD,))))
        return {"wih_pq": jnp.concatenate(pqs, axis=1),
                "wih_qi": jnp.concatenate(qis, axis=1),
                "whh": jnp.stack(hhs, axis=0),
                "b": jnp.concatenate(bs, axis=0)}

    w_start = pad_h_cols(pad_2h_rows(w((2 * HD, HD))))
    b_start = pad_h_cols(w((HD,)))
    w_end = pad_h_cols(pad_2h_rows(w((2 * HD, HD))))
    b_end = pad_h_cols(w((HD,)))

    params = {
        "emb": w((num_emd, ED)),
        "ffnn_p_q": {"w": pad_h_cols(w((ED, HD))), "b": pad_h_cols(w((HD,)))},
        "ffnn_q_dash": {"w": pad_h_cols(pad_2h_rows(w((2 * HD, HD)))),
                        "b": pad_h_cols(w((HD,)))},
        "w_q": {"w_row": pad_h_cols(w((1, HD))), "b": w((1,))},
        "ffnn_se": {"w": jnp.concatenate([w_start, w_end], axis=1),   # fused start|end
                    "b": jnp.concatenate([b_start, b_end], axis=0)},
        "w_a": {"w_row": pad_h_cols(w((1, HD))), "b": w((1,))},
        "bilstm_q": [bilstm_layer(ED, False), bilstm_layer(2 * HD, True)],
        "bilstm_pstar": [pstar_layer0(), bilstm_layer(2 * HD, True)],
        # NOTE: ffnn_ha exists in the torch __init__ but is unused in forward.
    }
    return params


def _pad_hidden(hidden):
    h, c = hidden                                   # (2*layers, N, HD)
    pads = ((0, 0), (0, 0), (0, HDP - HD))
    return jnp.pad(h, pads), jnp.pad(c, pads)


# =============================================================================
# Forward
# =============================================================================
def net_forward(params, p, p_lens, q, q_lens, p_hidden, q_hidden):
    N, L = p.shape
    _, M = q.shape

    # --- embeddings (gather = glue) ---
    p_emd = params["emb"][p]                                   # (N, L, ED)
    q_emd = params["emb"][q]                                   # (N, M, ED)

    # --- shared ffnn_p_q + ReLU, one fused call over p and q rows ---
    pq_rows = jnp.concatenate([p_emd.reshape(N * L, ED),
                               q_emd.reshape(N * M, ED)], axis=0)
    pq_ff = linear_pallas(pq_rows, params["ffnn_p_q"]["w"],
                          params["ffnn_p_q"]["b"], relu=True)
    p_ff = pq_ff[:N * L].reshape(N, L, HDP)
    q_ff = pq_ff[N * L:].reshape(N, M, HDP)
    p_mask = (jnp.arange(L)[None, :] < p_lens[:, None]).astype(jnp.float32)
    q_mask = (jnp.arange(M)[None, :] < q_lens[:, None]).astype(jnp.float32)
    p_ff = p_ff * p_mask[:, :, None]
    q_ff = q_ff * q_mask[:, :, None]

    # --- aligned question representation ---
    q_i_align = align_pallas(p_ff, q_ff, q_emd)                # (N, L, ED)

    # --- question BiLSTM (fused per-layer kernels, hoisted input projection) ---
    lp_q = params["bilstm_q"]
    q_emd_tm = jnp.transpose(q_emd, (1, 0, 2))                 # (M, N, ED)
    gx0_q = linear_pallas(q_emd_tm.reshape(M * N, ED), lp_q[0]["wih"],
                          lp_q[0]["b"]).reshape(M, N, 2 * GP)
    q_dash_tm = bilstm_fused(gx0_q, q_lens, lp_q, _pad_hidden(q_hidden))
    q_dash = jnp.transpose(q_dash_tm, (1, 0, 2))               # (N, M, 2*HDP)

    q_dash_ff = linear_pallas(q_dash.reshape(N * M, 2 * HDP),
                              params["ffnn_q_dash"]["w"],
                              params["ffnn_q_dash"]["b"],
                              relu=True).reshape(N, M, HDP)
    q_dash_ff = q_dash_ff * q_mask[:, :, None]

    # --- question-independent representation (single row per batch) ---
    q_indep = qindep_pallas(q_dash_ff, q_dash, params["w_q"]["w_row"],
                            params["w_q"]["b"])[:, 0, :]       # (N, 2*HDP)

    # --- p_star BiLSTM: gates from [p_emd|q_i_align] + constant q_indep term ---
    lp_p = params["bilstm_pstar"]
    x_pa_tm = jnp.transpose(jnp.concatenate([p_emd, q_i_align], axis=2),
                            (1, 0, 2))                         # (L, N, 2*ED)
    base = linear_pallas(x_pa_tm.reshape(L * N, 2 * ED), lp_p[0]["wih_pq"],
                         jnp.zeros((2 * GP,), jnp.float32)).reshape(L, N, 2 * GP)
    const = linear_pallas(q_indep, lp_p[0]["wih_qi"], lp_p[0]["b"])  # (N, 2*GP)
    gx0_p = base + const[None, :, :]
    p_star_dash_tm = bilstm_fused(gx0_p, p_lens, lp_p, _pad_hidden(p_hidden))

    # --- fused ffnn_start|ffnn_end + ReLU ---
    se = linear_pallas(p_star_dash_tm.reshape(L * N, 2 * HDP),
                       params["ffnn_se"]["w"], params["ffnn_se"]["b"],
                       relu=True).reshape(L, N, 2 * HDP)
    se_n = jnp.transpose(se, (1, 0, 2))                        # (N, L, 2*HDP)
    stt_n = se_n[:, :, :HDP]
    end_n = se_n[:, :, HDP:]
    end_padded = jnp.concatenate(
        [end_n, jnp.zeros((N, A - 1, HDP), jnp.float32)], axis=1)

    # --- span sums + w_a + mask + log_softmax, expanded in-VMEM ---
    return span_scores_pallas(p_lens, stt_n, end_padded,
                              params["w_a"]["w_row"], params["w_a"]["b"])


if __name__ == "__main__":
    key = jax.random.PRNGKey(0)
    N, L, M = 2, 8, 6
    NUM_EMD = 50

    k_params, k_p, k_q = jax.random.split(key, 3)
    params = init_params(k_params, NUM_EMD)

    p = jax.random.randint(k_p, (N, L), 0, NUM_EMD, dtype=jnp.int32)
    q = jax.random.randint(k_q, (N, M), 0, NUM_EMD, dtype=jnp.int32)
    p_lens = jnp.array([L, 5], dtype=jnp.int32)   # max == L
    q_lens = jnp.array([M, 4], dtype=jnp.int32)   # max == M

    hzeros = jnp.zeros((NUM_LAYERS * 2, N, HIDDEN_DIM), jnp.float32)
    p_hidden = (hzeros, hzeros)
    q_hidden = (hzeros, hzeros)

    fwd = jax.jit(net_forward)
    out = jax.block_until_ready(fwd(params, p, p_lens, q, q_lens,
                                    p_hidden, q_hidden))

    assert out.shape == (N, L * A), out.shape
    assert bool(jnp.all(jnp.isfinite(out)))
    print("KERNEL_OK")
</pallas_src>

<mosaic_0001>
module attributes {stable_mosaic.version = 11 : i64} {
  func.func @_linear_kernel(%arg0: i32, %arg1: memref<16x300xf32, #tpu.memory_space<vmem>>, %arg2: memref<300x1024xf32, #tpu.memory_space<vmem>>, %arg3: memref<1x1024xf32, #tpu.memory_space<vmem>>, %arg4: memref<16x1024xf32, #tpu.memory_space<vmem>>) attributes {dimension_semantics = [#tpu.dimension_semantics<parallel>], iteration_bounds = array<i64: 1>, scalar_prefetch = 0 : i64, scratch_operands = 0 : i64, tpu.core_type = #tpu.core_type<tc>, window_params = [{transform_indices = @transform_0, window_bounds = array<i64: 16, 300>}, {pipeline_mode = #tpu.pipeline_mode<synchronous>, transform_indices = @transform_1, window_bounds = array<i64: 300, 1024>}, {pipeline_mode = #tpu.pipeline_mode<synchronous>, transform_indices = @transform_2, window_bounds = array<i64: 1, 1024>}, {transform_indices = @transform_3, window_bounds = array<i64: 16, 1024>}]} {
    %c0 = arith.constant 0 : index
    %c0_0 = arith.constant 0 : index
    %0 = vector.load %arg1[%c0, %c0_0] : memref<16x300xf32, #tpu.memory_space<vmem>>, vector<16x300xf32>
    %1 = arith.truncf %0 : vector<16x300xf32> to vector<16x300xbf16>
    %c0_1 = arith.constant 0 : index
    %c0_2 = arith.constant 0 : index
    %2 = vector.load %arg2[%c0_1, %c0_2] : memref<300x1024xf32, #tpu.memory_space<vmem>>, vector<300x1024xf32>
    %3 = arith.truncf %2 : vector<300x1024xf32> to vector<300x1024xbf16>
    %cst = arith.constant dense<0.000000e+00> : vector<16x1024xf32>
    %4 = tpu.matmul %1, %3, %cst {dimension_numbers = #tpu.dot_dimension_numbers<[1], [0], [0], [1], [0, 0, 1, 1], [], []>} : vector<16x300xbf16>, vector<300x1024xbf16>, vector<16x1024xf32> -> vector<16x1024xf32>
    %c0_3 = arith.constant 0 : index
    %c0_4 = arith.constant 0 : index
    %5 = vector.load %arg3[%c0_3, %c0_4] : memref<1x1024xf32, #tpu.memory_space<vmem>>, vector<1x1024xf32>
    %6 = vector.broadcast %5 : vector<1x1024xf32> to vector<16x1024xf32>
    %7 = arith.addf %4, %6 : vector<16x1024xf32>
    %c0_5 = arith.constant 0 : index
    %c0_6 = arith.constant 0 : index
    %8 = vector.load %arg4[%c0_5, %c0_6] : memref<16x1024xf32, #tpu.memory_space<vmem>>, vector<16x1024xf32>
    tpu.vector_store %arg4[%c0_5, %c0_6], %7 {strides = array<i32>} : memref<16x1024xf32, #tpu.memory_space<vmem>>, vector<16x1024xf32>,
    return
  }
  func.func @transform_0(%arg0: i32) -> (i32, i32) {
    %c0_i32 = arith.constant 0 : i32
    %c0_i32_0 = arith.constant 0 : i32
    return %arg0, %c0_i32 : i32, i32
  }
  func.func @transform_1(%arg0: i32) -> (i32, i32) {
    %c0_i32 = arith.constant 0 : i32
    %c0_i32_0 = arith.constant 0 : i32
    %c0_i32_1 = arith.constant 0 : i32
    return %c0_i32, %c0_i32_0 : i32, i32
  }
  func.func @transform_2(%arg0: i32) -> (i32, i32) {
    %c0_i32 = arith.constant 0 : i32
    %c0_i32_0 = arith.constant 0 : i32
    %c0_i32_1 = arith.constant 0 : i32
    return %c0_i32, %c0_i32_0 : i32, i32
  }
  func.func @transform_3(%arg0: i32) -> (i32, i32) {
    %c0_i32 = arith.constant 0 : i32
    %c0_i32_0 = arith.constant 0 : i32
    return %arg0, %c0_i32 : i32, i32
  }
}

module attributes {stable_mosaic.version = 11 : i64} {
  func.func @_lstm_layer_kernel(%arg0: i32, %arg1: memref<6x2x512xf32, #tpu.memory_space<vmem>>, %arg2: memref<1x128x512xf32, #tpu.memory_space<vmem>>, %arg3: memref<1x2x128xf32, #tpu.memory_space<vmem>>, %arg4: memref<1x2x128xf32, #tpu.memory_space<vmem>>, %arg5: memref<2x1xi32, #tpu.memory_space<vmem>>, %arg6: memref<6x2x128xf32, #tpu.memory_space<vmem>>, %arg7: memref<2x128xf32, #tpu.memory_space<vmem>>, %arg8: memref<2x128xf32, #tpu.memory_space<vmem>>) attributes {dimension_semantics = [#tpu.dimension_semantics<parallel>], iteration_bounds = array<i64: 2>, scalar_prefetch = 0 : i64, scratch_operands = 2 : i64, tpu.core_type = #tpu.core_type<tc>, window_params = [{transform_indices = @transform_0, window_bounds = array<i64: 6, 2, 512>}, {transform_indices = @transform_1, window_bounds = array<i64: 1, 128, 512>}, {transform_indices = @transform_2, window_bounds = array<i64: 1, 2, 128>}, {transform_indices = @transform_3, window_bounds = array<i64: 1, 2, 128>}, {pipeline_mode = #tpu.pipeline_mode<synchronous>, transform_indices = @transform_4, window_bounds = array<i64: 2, 1>}, {transform_indices = @transform_5, window_bounds = array<i64: 6, 2, 128>}]} {
    %c0 = arith.constant 0 : index
    %c0_0 = arith.constant 0 : index
    %c0_1 = arith.constant 0 : index
    %0 = vector.load %arg3[%c0, %c0_0, %c0_1] : memref<1x2x128xf32, #tpu.memory_space<vmem>>, vector<1x2x128xf32>
    %1 = vector.shape_cast %0 : vector<1x2x128xf32> to vector<2x128xf32>
    %c0_2 = arith.constant 0 : index
    %c0_3 = arith.constant 0 : index
    %2 = vector.load %arg7[%c0_2, %c0_3] : memref<2x128xf32, #tpu.memory_space<vmem>>, vector<2x128xf32>
    tpu.vector_store %arg7[%c0_2, %c0_3], %1 {strides = array<i32>} : memref<2x128xf32, #tpu.memory_space<vmem>>, vector<2x128xf32>,
    %c0_4 = arith.constant 0 : index
    %c0_5 = arith.constant 0 : index
    %c0_6 = arith.constant 0 : index
    %3 = vector.load %arg4[%c0_4, %c0_5, %c0_6] : memref<1x2x128xf32, #tpu.memory_space<vmem>>, vector<1x2x128xf32>
    %4 = vector.shape_cast %3 : vector<1x2x128xf32> to vector<2x128xf32>
    %c0_7 = arith.constant 0 : index
    %c0_8 = arith.constant 0 : index
    %5 = vector.load %arg8[%c0_7, %c0_8] : memref<2x128xf32, #tpu.memory_space<vmem>>, vector<2x128xf32>
    tpu.vector_store %arg8[%c0_7, %c0_8], %4 {strides = array<i32>} : memref<2x128xf32, #tpu.memory_space<vmem>>, vector<2x128xf32>,
    %c0_9 = arith.constant 0 : index
    %c0_10 = arith.constant 0 : index
    %c0_11 = arith.constant 0 : index
    %6 = vector.load %arg2[%c0_9, %c0_10, %c0_11] : memref<1x128x512xf32, #tpu.memory_space<vmem>>, vector<1x128x512xf32>
    %7 = vector.shape_cast %6 : vector<1x128x512xf32> to vector<128x512xf32>
    %8 = arith.truncf %7 : vector<128x512xf32> to vector<128x512xbf16>
    %c0_12 = arith.constant 0 : index
    %c0_13 = arith.constant 0 : index
    %9 = vector.load %arg5[%c0_12, %c0_13] : memref<2x1xi32, #tpu.memory_space<vmem>>, vector<2x1xi32>
    %c0_i32 = arith.constant 0 : i32
    %c6_i32 = arith.constant 6 : i32
    %10 = arith.addi %c0_i32, %c6_i32 : i32
    %c1_i32 = arith.constant 1 : i32
    scf.for %arg9 = %c0_i32 to %10 step %c1_i32  : i32 {
      %c0_i32_15 = arith.constant 0 : i32
      %11 = arith.cmpi eq, %arg0, %c0_i32_15 : i32
      %c5_i32 = arith.constant 5 : i32
      %12 = arith.subi %c5_i32, %arg9 : i32
      %13 = arith.select %11, %arg9, %12 : i32
      %14 = arith.index_cast %13 : i32 to index
      %c0_16 = arith.constant 0 : index
      %c0_17 = arith.constant 0 : index
      %15 = vector.load %arg1[%14, %c0_16, %c0_17] : memref<6x2x512xf32, #tpu.memory_space<vmem>>, vector<1x2x512xf32>
      %16 = vector.shape_cast %15 : vector<1x2x512xf32> to vector<2x512xf32>
      %c0_18 = arith.constant 0 : index
      %c0_19 = arith.constant 0 : index
      %17 = vector.load %arg7[%c0_18, %c0_19] : memref<2x128xf32, #tpu.memory_space<vmem>>, vector<2x128xf32>
      %c0_20 = arith.constant 0 : index
      %c0_21 = arith.constant 0 : index
      %18 = vector.load %arg8[%c0_20, %c0_21] : memref<2x128xf32, #tpu.memory_space<vmem>>, vector<2x128xf32>
      %19 = arith.truncf %17 : vector<2x128xf32> to vector<2x128xbf16>
      %cst = arith.constant dense<0.000000e+00> : vector<2x512xf32>
      %20 = tpu.matmul %19, %8, %cst {dimension_numbers = #tpu.dot_dimension_numbers<[1], [0], [0], [1], [0, 0, 1, 1], [], []>} : vector<2x128xbf16>, vector<128x512xbf16>, vector<2x512xf32> -> vector<2x512xf32>
      %21 = arith.addf %16, %20 : vector<2x512xf32>
      %22 = vector.extract_strided_slice %21 {offsets = [0, 0], sizes = [2, 128], strides = [1, 1]} : vector<2x512xf32> to vector<2x128xf32>
      %23 = arith.negf %22 : vector<2x128xf32>
      %24 = math.exp %23 : vector<2x128xf32>
      %cst_22 = arith.constant 1.000000e+00 : f32
      %25 = vector.broadcast %cst_22 : f32 to vector<2x128xf32>
      %26 = arith.addf %25, %24 : vector<2x128xf32>
      %27 = arith.divf %25, %26 : vector<2x128xf32>
      %28 = vector.extract_strided_slice %21 {offsets = [0, 128], sizes = [2, 128], strides = [1, 1]} : vector<2x512xf32> to vector<2x128xf32>
      %29 = arith.negf %28 : vector<2x128xf32>
      %30 = math.exp %29 : vector<2x128xf32>
      %cst_23 = arith.constant 1.000000e+00 : f32
      %31 = vector.broadcast %cst_23 : f32 to vector<2x128xf32>
      %32 = arith.addf %31, %30 : vector<2x128xf32>
      %33 = arith.divf %31, %32 : vector<2x128xf32>
      %34 = vector.extract_strided_slice %21 {offsets = [0, 256], sizes = [2, 128], strides = [1, 1]} : vector<2x512xf32> to vector<2x128xf32>
      %35 = math.tanh %34 : vector<2x128xf32>
      %36 = vector.extract_strided_slice %21 {offsets = [0, 384], sizes = [2, 128], strides = [1, 1]} : vector<2x512xf32> to vector<2x128xf32>
      %37 = arith.negf %36 : vector<2x128xf32>
      %38 = math.exp %37 : vector<2x128xf32>
      %cst_24 = arith.constant 1.000000e+00 : f32
      %39 = vector.broadcast %cst_24 : f32 to vector<2x128xf32>
      %40 = arith.addf %39, %38 : vector<2x128xf32>
      %41 = arith.divf %39, %40 : vector<2x128xf32>
      %42 = arith.mulf %33, %18 : vector<2x128xf32>
      %43 = arith.mulf %27, %35 : vector<2x128xf32>
      %44 = arith.addf %42, %43 : vector<2x128xf32>
      %45 = math.tanh %44 : vector<2x128xf32>
      %46 = arith.mulf %41, %45 : vector<2x128xf32>
      %47 = vector.broadcast %13 : i32 to vector<2x1xi32>
      %48 = arith.cmpi slt, %47, %9 : vector<2x1xi32>
      %49 = arith.extui %48 : vector<2x1xi1> to vector<2x1xi32>
      %50 = arith.sitofp %49 : vector<2x1xi32> to vector<2x1xf32>
      %51 = vector.broadcast %50 : vector<2x1xf32> to vector<2x128xf32>
      %52 = arith.mulf %51, %46 : vector<2x128xf32>
      %cst_25 = arith.constant 1.000000e+00 : f32
      %53 = vector.broadcast %cst_25 : f32 to vector<2x1xf32>
      %54 = arith.subf %53, %50 : vector<2x1xf32>
      %55 = vector.broadcast %54 : vector<2x1xf32> to vector<2x128xf32>
      %56 = arith.mulf %55, %17 : vector<2x128xf32>
      %57 = arith.addf %52, %56 : vector<2x128xf32>
      %c0_26 = arith.constant 0 : index
      %c0_27 = arith.constant 0 : index
      %58 = vector.load %arg7[%c0_26, %c0_27] : memref<2x128xf32, #tpu.memory_space<vmem>>, vector<2x128xf32>
      tpu.vector_store %arg7[%c0_26, %c0_27], %57 {strides = array<i32>} : memref<2x128xf32, #tpu.memory_space<vmem>>, vector<2x128xf32>,
      %59 = vector.broadcast %50 : vector<2x1xf32> to vector<2x128xf32>
      %60 = arith.mulf %59, %44 : vector<2x128xf32>
      %cst_28 = arith.constant 1.000000e+00 : f32
      %61 = vector.broadcast %cst_28 : f32 to vector<2x1xf32>
      %62 = arith.subf %61, %50 : vector<2x1xf32>
      %63 = vector.broadcast %62 : vector<2x1xf32> to vector<2x128xf32>
      %64 = arith.mulf %63, %18 : vector<2x128xf32>
      %65 = arith.addf %60, %64 : vector<2x128xf32>
      %c0_29 = arith.constant 0 : index
      %c0_30 = arith.constant 0 : index
      %66 = vector.load %arg8[%c0_29, %c0_30] : memref<2x128xf32, #tpu.memory_space<vmem>>, vector<2x128xf32>
      tpu.vector_store %arg8[%c0_29, %c0_30], %65 {strides = array<i32>} : memref<2x128xf32, #tpu.memory_space<vmem>>, vector<2x128xf32>,
      %67 = vector.broadcast %50 : vector<2x1xf32> to vector<2x128xf32>
      %68 = arith.mulf %67, %46 : vector<2x128xf32>
      %69 = arith.index_cast %13 : i32 to index
      %c0_31 = arith.constant 0 : index
      %c0_32 = arith.constant 0 : index
      %70 = vector.load %arg6[%69, %c0_31, %c0_32] : memref<6x2x128xf32, #tpu.memory_space<vmem>>, vector<1x2x128xf32>
      %71 = vector.shape_cast %70 : vector<1x2x128xf32> to vector<2x128xf32>
      %72 = vector.shape_cast %68 : vector<2x128xf32> to vector<1x2x128xf32>
      tpu.vector_store %arg6[%69, %c0_31, %c0_32], %72 {strides = array<i32>} : memref<6x2x128xf32, #tpu.memory_space<vmem>>, vector<1x2x128xf32>,
    }
    %c6_i32_14 = arith.constant 6 : i32
    return
  }
  func.func @transform_0(%arg0: i32) -> (i32, i32, i32) {
    %c0_i32 = arith.constant 0 : i32
    %c0_i32_0 = arith.constant 0 : i32
    %c0_i32_1 = arith.constant 0 : i32
    return %c0_i32, %c0_i32_0, %arg0 : i32, i32, i32
  }
  func.func @transform_1(%arg0: i32) -> (i32, i32, i32) {
    %c0_i32 = arith.constant 0 : i32
    %c0_i32_0 = arith.constant 0 : i32
    %c0_i32_1 = arith.constant 0 : i32
    return %arg0, %c0_i32, %c0_i32_0 : i32, i32, i32
  }
  func.func @transform_2(%arg0: i32) -> (i32, i32, i32) {
    %c0_i32 = arith.constant 0 : i32
    %c0_i32_0 = arith.constant 0 : i32
    %c0_i32_1 = arith.constant 0 : i32
    return %arg0, %c0_i32, %c0_i32_0 : i32, i32, i32
  }
  func.func @transform_3(%arg0: i32) -> (i32, i32, i32) {
    %c0_i32 = arith.constant 0 : i32
    %c0_i32_0 = arith.constant 0 : i32
    %c0_i32_1 = arith.constant 0 : i32
    return %arg0, %c0_i32, %c0_i32_0 : i32, i32, i32
  }
  func.func @transform_4(%arg0: i32) -> (i32, i32) {
    %c0_i32 = arith.constant 0 : i32
    %c0_i32_0 = arith.constant 0 : i32
    %c0_i32_1 = arith.constant 0 : i32
    return %c0_i32, %c0_i32_0 : i32, i32
  }
  func.func @transform_5(%arg0: i32) -> (i32, i32, i32) {
    %c0_i32 = arith.constant 0 : i32
    %c0_i32_0 = arith.constant 0 : i32
    %c0_i32_1 = arith.constant 0 : i32
    return %c0_i32, %c0_i32_0, %arg0 : i32, i32, i32
  }
}

module attributes {stable_mosaic.version = 11 : i64} {
  func.func @_lstm_layer_kernel(%arg0: i32, %arg1: memref<6x2x512xf32, #tpu.memory_space<vmem>>, %arg2: memref<1x128x512xf32, #tpu.memory_space<vmem>>, %arg3: memref<1x2x128xf32, #tpu.memory_space<vmem>>, %arg4: memref<1x2x128xf32, #tpu.memory_space<vmem>>, %arg5: memref<2x1xi32, #tpu.memory_space<vmem>>, %arg6: memref<6x2x128xf32, #tpu.memory_space<vmem>>, %arg7: memref<2x128xf32, #tpu.memory_space<vmem>>, %arg8: memref<2x128xf32, #tpu.memory_space<vmem>>) attributes {dimension_semantics = [#tpu.dimension_semantics<parallel>], iteration_bounds = array<i64: 2>, scalar_prefetch = 0 : i64, scratch_operands = 2 : i64, tpu.core_type = #tpu.core_type<tc>, window_params = [{transform_indices = @transform_0, window_bounds = array<i64: 6, 2, 512>}, {transform_indices = @transform_1, window_bounds = array<i64: 1, 128, 512>}, {transform_indices = @transform_2, window_bounds = array<i64: 1, 2, 128>}, {transform_indices = @transform_3, window_bounds = array<i64: 1, 2, 128>}, {pipeline_mode = #tpu.pipeline_mode<synchronous>, transform_indices = @transform_4, window_bounds = array<i64: 2, 1>}, {transform_indices = @transform_5, window_bounds = array<i64: 6, 2, 128>}]} {
    %c0 = arith.constant 0 : index
    %c0_0 = arith.constant 0 : index
    %c0_1 = arith.constant 0 : index
    %0 = vector.load %arg3[%c0, %c0_0, %c0_1] : memref<1x2x128xf32, #tpu.memory_space<vmem>>, vector<1x2x128xf32>
    %1 = vector.shape_cast %0 : vector<1x2x128xf32> to vector<2x128xf32>
    %c0_2 = arith.constant 0 : index
    %c0_3 = arith.constant 0 : index
    %2 = vector.load %arg7[%c0_2, %c0_3] : memref<2x128xf32, #tpu.memory_space<vmem>>, vector<2x128xf32>
    tpu.vector_store %arg7[%c0_2, %c0_3], %1 {strides = array<i32>} : memref<2x128xf32, #tpu.memory_space<vmem>>, vector<2x128xf32>,
    %c0_4 = arith.constant 0 : index
    %c0_5 = arith.constant 0 : index
    %c0_6 = arith.constant 0 : index
    %3 = vector.load %arg4[%c0_4, %c0_5, %c0_6] : memref<1x2x128xf32, #tpu.memory_space<vmem>>, vector<1x2x128xf32>
    %4 = vector.shape_cast %3 : vector<1x2x128xf32> to vector<2x128xf32>
    %c0_7 = arith.constant 0 : index
    %c0_8 = arith.constant 0 : index
    %5 = vector.load %arg8[%c0_7, %c0_8] : memref<2x128xf32, #tpu.memory_space<vmem>>, vector<2x128xf32>
    tpu.vector_store %arg8[%c0_7, %c0_8], %4 {strides = array<i32>} : memref<2x128xf32, #tpu.memory_space<vmem>>, vector<2x128xf32>,
    %c0_9 = arith.constant 0 : index
    %c0_10 = arith.constant 0 : index
    %c0_11 = arith.constant 0 : index
    %6 = vector.load %arg2[%c0_9, %c0_10, %c0_11] : memref<1x128x512xf32, #tpu.memory_space<vmem>>, vector<1x128x512xf32>
    %7 = vector.shape_cast %6 : vector<1x128x512xf32> to vector<128x512xf32>
    %8 = arith.truncf %7 : vector<128x512xf32> to vector<128x512xbf16>
    %c0_12 = arith.constant 0 : index
    %c0_13 = arith.constant 0 : index
    %9 = vector.load %arg5[%c0_12, %c0_13] : memref<2x1xi32, #tpu.memory_space<vmem>>, vector<2x1xi32>
    %c0_i32 = arith.constant 0 : i32
    %c6_i32 = arith.constant 6 : i32
    %10 = arith.addi %c0_i32, %c6_i32 : i32
    %c1_i32 = arith.constant 1 : i32
    scf.for %arg9 = %c0_i32 to %10 step %c1_i32  : i32 {
      %c0_i32_15 = arith.constant 0 : i32
      %11 = arith.cmpi eq, %arg0, %c0_i32_15 : i32
      %c5_i32 = arith.constant 5 : i32
      %12 = arith.subi %c5_i32, %arg9 : i32
      %13 = arith.select %11, %arg9, %12 : i32
      %14 = arith.index_cast %13 : i32 to index
      %c0_16 = arith.constant 0 : index
      %c0_17 = arith.constant 0 : index
      %15 = vector.load %arg1[%14, %c0_16, %c0_17] : memref<6x2x512xf32, #tpu.memory_space<vmem>>, vector<1x2x512xf32>
      %16 = vector.shape_cast %15 : vector<1x2x512xf32> to vector<2x512xf32>
      %c0_18 = arith.constant 0 : index
      %c0_19 = arith.constant 0 : index
      %17 = vector.load %arg7[%c0_18, %c0_19] : memref<2x128xf32, #tpu.memory_space<vmem>>, vector<2x128xf32>
      %c0_20 = arith.constant 0 : index
      %c0_21 = arith.constant 0 : index
      %18 = vector.load %arg8[%c0_20, %c0_21] : memref<2x128xf32, #tpu.memory_space<vmem>>, vector<2x128xf32>
      %19 = arith.truncf %17 : vector<2x128xf32> to vector<2x128xbf16>
      %cst = arith.constant dense<0.000000e+00> : vector<2x512xf32>
      %20 = tpu.matmul %19, %8, %cst {dimension_numbers = #tpu.dot_dimension_numbers<[1], [0], [0], [1], [0, 0, 1, 1], [], []>} : vector<2x128xbf16>, vector<128x512xbf16>, vector<2x512xf32> -> vector<2x512xf32>
      %21 = arith.addf %16, %20 : vector<2x512xf32>
      %22 = vector.extract_strided_slice %21 {offsets = [0, 0], sizes = [2, 128], strides = [1, 1]} : vector<2x512xf32> to vector<2x128xf32>
      %23 = arith.negf %22 : vector<2x128xf32>
      %24 = math.exp %23 : vector<2x128xf32>
      %cst_22 = arith.constant 1.000000e+00 : f32
      %25 = vector.broadcast %cst_22 : f32 to vector<2x128xf32>
      %26 = arith.addf %25, %24 : vector<2x128xf32>
      %27 = arith.divf %25, %26 : vector<2x128xf32>
      %28 = vector.extract_strided_slice %21 {offsets = [0, 128], sizes = [2, 128], strides = [1, 1]} : vector<2x512xf32> to vector<2x128xf32>
      %29 = arith.negf %28 : vector<2x128xf32>
      %30 = math.exp %29 : vector<2x128xf32>
      %cst_23 = arith.constant 1.000000e+00 : f32
      %31 = vector.broadcast %cst_23 : f32 to vector<2x128xf32>
      %32 = arith.addf %31, %30 : vector<2x128xf32>
      %33 = arith.divf %31, %32 : vector<2x128xf32>
      %34 = vector.extract_strided_slice %21 {offsets = [0, 256], sizes = [2, 128], strides = [1, 1]} : vector<2x512xf32> to vector<2x128xf32>
      %35 = math.tanh %34 : vector<2x128xf32>
      %36 = vector.extract_strided_slice %21 {offsets = [0, 384], sizes = [2, 128], strides = [1, 1]} : vector<2x512xf32> to vector<2x128xf32>
      %37 = arith.negf %36 : vector<2x128xf32>
      %38 = math.exp %37 : vector<2x128xf32>
      %cst_24 = arith.constant 1.000000e+00 : f32
      %39 = vector.broadcast %cst_24 : f32 to vector<2x128xf32>
      %40 = arith.addf %39, %38 : vector<2x128xf32>
      %41 = arith.divf %39, %40 : vector<2x128xf32>
      %42 = arith.mulf %33, %18 : vector<2x128xf32>
      %43 = arith.mulf %27, %35 : vector<2x128xf32>
      %44 = arith.addf %42, %43 : vector<2x128xf32>
      %45 = math.tanh %44 : vector<2x128xf32>
      %46 = arith.mulf %41, %45 : vector<2x128xf32>
      %47 = vector.broadcast %13 : i32 to vector<2x1xi32>
      %48 = arith.cmpi slt, %47, %9 : vector<2x1xi32>
      %49 = arith.extui %48 : vector<2x1xi1> to vector<2x1xi32>
      %50 = arith.sitofp %49 : vector<2x1xi32> to vector<2x1xf32>
      %51 = vector.broadcast %50 : vector<2x1xf32> to vector<2x128xf32>
      %52 = arith.mulf %51, %46 : vector<2x128xf32>
      %cst_25 = arith.constant 1.000000e+00 : f32
      %53 = vector.broadcast %cst_25 : f32 to vector<2x1xf32>
      %54 = arith.subf %53, %50 : vector<2x1xf32>
      %55 = vector.broadcast %54 : vector<2x1xf32> to vector<2x128xf32>
      %56 = arith.mulf %55, %17 : vector<2x128xf32>
      %57 = arith.addf %52, %56 : vector<2x128xf32>
      %c0_26 = arith.constant 0 : index
      %c0_27 = arith.constant 0 : index
      %58 = vector.load %arg7[%c0_26, %c0_27] : memref<2x128xf32, #tpu.memory_space<vmem>>, vector<2x128xf32>
      tpu.vector_store %arg7[%c0_26, %c0_27], %57 {strides = array<i32>} : memref<2x128xf32, #tpu.memory_space<vmem>>, vector<2x128xf32>,
      %59 = vector.broadcast %50 : vector<2x1xf32> to vector<2x128xf32>
      %60 = arith.mulf %59, %44 : vector<2x128xf32>
      %cst_28 = arith.constant 1.000000e+00 : f32
      %61 = vector.broadcast %cst_28 : f32 to vector<2x1xf32>
      %62 = arith.subf %61, %50 : vector<2x1xf32>
      %63 = vector.broadcast %62 : vector<2x1xf32> to vector<2x128xf32>
      %64 = arith.mulf %63, %18 : vector<2x128xf32>
      %65 = arith.addf %60, %64 : vector<2x128xf32>
      %c0_29 = arith.constant 0 : index
      %c0_30 = arith.constant 0 : index
      %66 = vector.load %arg8[%c0_29, %c0_30] : memref<2x128xf32, #tpu.memory_space<vmem>>, vector<2x128xf32>
      tpu.vector_store %arg8[%c0_29, %c0_30], %65 {strides = array<i32>} : memref<2x128xf32, #tpu.memory_space<vmem>>, vector<2x128xf32>,
      %67 = vector.broadcast %50 : vector<2x1xf32> to vector<2x128xf32>
      %68 = arith.mulf %67, %46 : vector<2x128xf32>
      %69 = arith.index_cast %13 : i32 to index
      %c0_31 = arith.constant 0 : index
      %c0_32 = arith.constant 0 : index
      %70 = vector.load %arg6[%69, %c0_31, %c0_32] : memref<6x2x128xf32, #tpu.memory_space<vmem>>, vector<1x2x128xf32>
      %71 = vector.shape_cast %70 : vector<1x2x128xf32> to vector<2x128xf32>
      %72 = vector.shape_cast %68 : vector<2x128xf32> to vector<1x2x128xf32>
      tpu.vector_store %arg6[%69, %c0_31, %c0_32], %72 {strides = array<i32>} : memref<6x2x128xf32, #tpu.memory_space<vmem>>, vector<1x2x128xf32>,
    }
    %c6_i32_14 = arith.constant 6 : i32
    return
  }
  func.func @transform_0(%arg0: i32) -> (i32, i32, i32) {
    %c0_i32 = arith.constant 0 : i32
    %c0_i32_0 = arith.constant 0 : i32
    %c0_i32_1 = arith.constant 0 : i32
    return %c0_i32, %c0_i32_0, %arg0 : i32, i32, i32
  }
  func.func @transform_1(%arg0: i32) -> (i32, i32, i32) {
    %c0_i32 = arith.constant 0 : i32
    %c0_i32_0 = arith.constant 0 : i32
    %c0_i32_1 = arith.constant 0 : i32
    return %arg0, %c0_i32, %c0_i32_0 : i32, i32, i32
  }
  func.func @transform_2(%arg0: i32) -> (i32, i32, i32) {
    %c0_i32 = arith.constant 0 : i32
    %c0_i32_0 = arith.constant 0 : i32
    %c0_i32_1 = arith.constant 0 : i32
    return %arg0, %c0_i32, %c0_i32_0 : i32, i32, i32
  }
  func.func @transform_3(%arg0: i32) -> (i32, i32, i32) {
    %c0_i32 = arith.constant 0 : i32
    %c0_i32_0 = arith.constant 0 : i32
    %c0_i32_1 = arith.constant 0 : i32
    return %arg0, %c0_i32, %c0_i32_0 : i32, i32, i32
  }
  func.func @transform_4(%arg0: i32) -> (i32, i32) {
    %c0_i32 = arith.constant 0 : i32
    %c0_i32_0 = arith.constant 0 : i32
    %c0_i32_1 = arith.constant 0 : i32
    return %c0_i32, %c0_i32_0 : i32, i32
  }
  func.func @transform_5(%arg0: i32) -> (i32, i32, i32) {
    %c0_i32 = arith.constant 0 : i32
    %c0_i32_0 = arith.constant 0 : i32
    %c0_i32_1 = arith.constant 0 : i32
    return %c0_i32, %c0_i32_0, %arg0 : i32, i32, i32
  }
}

module attributes {stable_mosaic.version = 11 : i64} {
  func.func @_linear_kernel(%arg0: i32, %arg1: memref<16x256xf32, #tpu.memory_space<vmem>>, %arg2: memref<256x1024xf32, #tpu.memory_space<vmem>>, %arg3: memref<1x1024xf32, #tpu.memory_space<vmem>>, %arg4: memref<16x1024xf32, #tpu.memory_space<vmem>>) attributes {dimension_semantics = [#tpu.dimension_semantics<parallel>], iteration_bounds = array<i64: 1>, scalar_prefetch = 0 : i64, scratch_operands = 0 : i64, tpu.core_type = #tpu.core_type<tc>, window_params = [{transform_indices = @transform_0, window_bounds = array<i64: 16, 256>}, {pipeline_mode = #tpu.pipeline_mode<synchronous>, transform_indices = @transform_1, window_bounds = array<i64: 256, 1024>}, {pipeline_mode = #tpu.pipeline_mode<synchronous>, transform_indices = @transform_2, window_bounds = array<i64: 1, 1024>}, {transform_indices = @transform_3, window_bounds = array<i64: 16, 1024>}]} {
    %c0 = arith.constant 0 : index
    %c0_0 = arith.constant 0 : index
    %0 = vector.load %arg1[%c0, %c0_0] : memref<16x256xf32, #tpu.memory_space<vmem>>, vector<16x256xf32>
    %1 = arith.truncf %0 : vector<16x256xf32> to vector<16x256xbf16>
    %c0_1 = arith.constant 0 : index
    %c0_2 = arith.constant 0 : index
    %2 = vector.load %arg2[%c0_1, %c0_2] : memref<256x1024xf32, #tpu.memory_space<vmem>>, vector<256x1024xf32>
    %3 = arith.truncf %2 : vector<256x1024xf32> to vector<256x1024xbf16>
    %cst = arith.constant dense<0.000000e+00> : vector<16x1024xf32>
    %4 = tpu.matmul %1, %3, %cst {dimension_numbers = #tpu.dot_dimension_numbers<[1], [0], [0], [1], [0, 0, 1, 1], [], []>} : vector<16x256xbf16>, vector<256x1024xbf16>, vector<16x1024xf32> -> vector<16x1024xf32>
    %c0_3 = arith.constant 0 : index
    %c0_4 = arith.constant 0 : index
    %5 = vector.load %arg3[%c0_3, %c0_4] : memref<1x1024xf32, #tpu.memory_space<vmem>>, vector<1x1024xf32>
    %6 = vector.broadcast %5 : vector<1x1024xf32> to vector<16x1024xf32>
    %7 = arith.addf %4, %6 : vector<16x1024xf32>
    %c0_5 = arith.constant 0 : index
    %c0_6 = arith.constant 0 : index
    %8 = vector.load %arg4[%c0_5, %c0_6] : memref<16x1024xf32, #tpu.memory_space<vmem>>, vector<16x1024xf32>
    tpu.vector_store %arg4[%c0_5, %c0_6], %7 {strides = array<i32>} : memref<16x1024xf32, #tpu.memory_space<vmem>>, vector<16x1024xf32>,
    return
  }
  func.func @transform_0(%arg0: i32) -> (i32, i32) {
    %c0_i32 = arith.constant 0 : i32
    %c0_i32_0 = arith.constant 0 : i32
    return %arg0, %c0_i32 : i32, i32
  }
  func.func @transform_1(%arg0: i32) -> (i32, i32) {
    %c0_i32 = arith.constant 0 : i32
    %c0_i32_0 = arith.constant 0 : i32
    %c0_i32_1 = arith.constant 0 : i32
    return %c0_i32, %c0_i32_0 : i32, i32
  }
  func.func @transform_2(%arg0: i32) -> (i32, i32) {
    %c0_i32 = arith.constant 0 : i32
    %c0_i32_0 = arith.constant 0 : i32
    %c0_i32_1 = arith.constant 0 : i32
    return %c0_i32, %c0_i32_0 : i32, i32
  }
  func.func @transform_3(%arg0: i32) -> (i32, i32) {
    %c0_i32 = arith.constant 0 : i32
    %c0_i32_0 = arith.constant 0 : i32
    return %arg0, %c0_i32 : i32, i32
  }
}

module attributes {stable_mosaic.version = 11 : i64} {
  func.func @_linear_kernel(%arg0: i32, %arg1: memref<16x256xf32, #tpu.memory_space<vmem>>, %arg2: memref<256x128xf32, #tpu.memory_space<vmem>>, %arg3: memref<1x128xf32, #tpu.memory_space<vmem>>, %arg4: memref<16x128xf32, #tpu.memory_space<vmem>>) attributes {dimension_semantics = [#tpu.dimension_semantics<parallel>], iteration_bounds = array<i64: 1>, scalar_prefetch = 0 : i64, scratch_operands = 0 : i64, tpu.core_type = #tpu.core_type<tc>, window_params = [{transform_indices = @transform_0, window_bounds = array<i64: 16, 256>}, {pipeline_mode = #tpu.pipeline_mode<synchronous>, transform_indices = @transform_1, window_bounds = array<i64: 256, 128>}, {pipeline_mode = #tpu.pipeline_mode<synchronous>, transform_indices = @transform_2, window_bounds = array<i64: 1, 128>}, {transform_indices = @transform_3, window_bounds = array<i64: 16, 128>}]} {
    %c0 = arith.constant 0 : index
    %c0_0 = arith.constant 0 : index
    %0 = vector.load %arg1[%c0, %c0_0] : memref<16x256xf32, #tpu.memory_space<vmem>>, vector<16x256xf32>
    %1 = arith.truncf %0 : vector<16x256xf32> to vector<16x256xbf16>
    %c0_1 = arith.constant 0 : index
    %c0_2 = arith.constant 0 : index
    %2 = vector.load %arg2[%c0_1, %c0_2] : memref<256x128xf32, #tpu.memory_space<vmem>>, vector<256x128xf32>
    %3 = arith.truncf %2 : vector<256x128xf32> to vector<256x128xbf16>
    %cst = arith.constant dense<0.000000e+00> : vector<16x128xf32>
    %4 = tpu.matmul %1, %3, %cst {dimension_numbers = #tpu.dot_dimension_numbers<[1], [0], [0], [1], [0, 0, 1, 1], [], []>} : vector<16x256xbf16>, vector<256x128xbf16>, vector<16x128xf32> -> vector<16x128xf32>
    %c0_3 = arith.constant 0 : index
    %c0_4 = arith.constant 0 : index
    %5 = vector.load %arg3[%c0_3, %c0_4] : memref<1x128xf32, #tpu.memory_space<vmem>>, vector<1x128xf32>
    %6 = vector.broadcast %5 : vector<1x128xf32> to vector<16x128xf32>
    %7 = arith.addf %4, %6 : vector<16x128xf32>
    %cst_5 = arith.constant 0.000000e+00 : f32
    %8 = vector.broadcast %cst_5 : f32 to vector<16x128xf32>
    %9 = arith.maximumf %7, %8 : vector<16x128xf32>
    %c0_6 = arith.constant 0 : index
    %c0_7 = arith.constant 0 : index
    %10 = vector.load %arg4[%c0_6, %c0_7] : memref<16x128xf32, #tpu.memory_space<vmem>>, vector<16x128xf32>
    tpu.vector_store %arg4[%c0_6, %c0_7], %9 {strides = array<i32>} : memref<16x128xf32, #tpu.memory_space<vmem>>, vector<16x128xf32>,
    return
  }
  func.func @transform_0(%arg0: i32) -> (i32, i32) {
    %c0_i32 = arith.constant 0 : i32
    %c0_i32_0 = arith.constant 0 : i32
    return %arg0, %c0_i32 : i32, i32
  }
  func.func @transform_1(%arg0: i32) -> (i32, i32) {
    %c0_i32 = arith.constant 0 : i32
    %c0_i32_0 = arith.constant 0 : i32
    %c0_i32_1 = arith.constant 0 : i32
    return %c0_i32, %c0_i32_0 : i32, i32
  }
  func.func @transform_2(%arg0: i32) -> (i32, i32) {
    %c0_i32 = arith.constant 0 : i32
    %c0_i32_0 = arith.constant 0 : i32
    %c0_i32_1 = arith.constant 0 : i32
    return %c0_i32, %c0_i32_0 : i32, i32
  }
  func.func @transform_3(%arg0: i32) -> (i32, i32) {
    %c0_i32 = arith.constant 0 : i32
    %c0_i32_0 = arith.constant 0 : i32
    return %arg0, %c0_i32 : i32, i32
  }
}

module attributes {stable_mosaic.version = 11 : i64} {
  func.func @_qindep_kernel(%arg0: i32, %arg1: memref<1x6x128xf32, #tpu.memory_space<vmem>>, %arg2: memref<1x6x256xf32, #tpu.memory_space<vmem>>, %arg3: memref<1x128xf32, #tpu.memory_space<vmem>>, %arg4: memref<1x1xf32, #tpu.memory_space<vmem>>, %arg5: memref<1x1x256xf32, #tpu.memory_space<vmem>>) attributes {dimension_semantics = [#tpu.dimension_semantics<parallel>], iteration_bounds = array<i64: 2>, scalar_prefetch = 0 : i64, scratch_operands = 0 : i64, tpu.core_type = #tpu.core_type<tc>, window_params = [{transform_indices = @transform_0, window_bounds = array<i64: 1, 6, 128>}, {transform_indices = @transform_1, window_bounds = array<i64: 1, 6, 256>}, {pipeline_mode = #tpu.pipeline_mode<synchronous>, transform_indices = @transform_2, window_bounds = array<i64: 1, 128>}, {pipeline_mode = #tpu.pipeline_mode<synchronous>, transform_indices = @transform_3, window_bounds = array<i64: 1, 1>}, {transform_indices = @transform_4, window_bounds = array<i64: 1, 1, 256>}]} {
    %c0 = arith.constant 0 : index
    %c0_0 = arith.constant 0 : index
    %c0_1 = arith.constant 0 : index
    %0 = vector.load %arg1[%c0, %c0_0, %c0_1] : memref<1x6x128xf32, #tpu.memory_space<vmem>>, vector<1x6x128xf32>
    %1 = vector.shape_cast %0 : vector<1x6x128xf32> to vector<6x128xf32>
    %c0_2 = arith.constant 0 : index
    %c0_3 = arith.constant 0 : index
    %2 = vector.load %arg3[%c0_2, %c0_3] : memref<1x128xf32, #tpu.memory_space<vmem>>, vector<1x128xf32>
    %3 = vector.broadcast %2 : vector<1x128xf32> to vector<6x128xf32>
    %4 = arith.mulf %1, %3 : vector<6x128xf32>
    %cst = arith.constant dense<0.000000e+00> : vector<6xf32>
    %5 = vector.multi_reduction <add>, %4, %cst [1] : vector<6x128xf32> to vector<6xf32>
    %6 = vector.shape_cast %5 : vector<6xf32> to vector<6x1xf32>
    %c0_4 = arith.constant 0 : index
    %c0_5 = arith.constant 0 : index
    %7 = vector.load %arg4[%c0_4, %c0_5] : memref<1x1xf32, #tpu.memory_space<vmem>>, vector<1x1xf32>
    %8 = vector.broadcast %7 : vector<1x1xf32> to vector<6x1xf32>
    %9 = arith.addf %6, %8 : vector<6x1xf32>
    %cst_6 = arith.constant dense<0xFF800000> : vector<1xf32>
    %10 = vector.multi_reduction <maximumf>, %9, %cst_6 [0] : vector<6x1xf32> to vector<1xf32>
    %11 = vector.shape_cast %10 : vector<1xf32> to vector<1x1xf32>
    %12 = vector.broadcast %11 : vector<1x1xf32> to vector<6x1xf32>
    %13 = arith.subf %9, %12 : vector<6x1xf32>
    %14 = math.exp %13 : vector<6x1xf32>
    %cst_7 = arith.constant dense<0.000000e+00> : vector<1xf32>
    %15 = vector.multi_reduction <add>, %14, %cst_7 [0] : vector<6x1xf32> to vector<1xf32>
    %16 = vector.shape_cast %15 : vector<1xf32> to vector<1x1xf32>
    %17 = tpu.reciprocal %16 {approx = true} : vector<1x1xf32> -> vector<1x1xf32>
    %18 = vector.broadcast %17 : vector<1x1xf32> to vector<6x1xf32>
    %19 = arith.mulf %14, %18 : vector<6x1xf32>
    %c0_8 = arith.constant 0 : index
    %c0_9 = arith.constant 0 : index
    %c0_10 = arith.constant 0 : index
    %20 = vector.load %arg2[%c0_8, %c0_9, %c0_10] : memref<1x6x256xf32, #tpu.memory_space<vmem>>, vector<1x6x256xf32>
    %21 = vector.shape_cast %20 : vector<1x6x256xf32> to vector<6x256xf32>
    %22 = vector.broadcast %19 : vector<6x1xf32> to vector<6x256xf32>
    %23 = arith.mulf %22, %21 : vector<6x256xf32>
    %cst_11 = arith.constant dense<0.000000e+00> : vector<256xf32>
    %24 = vector.multi_reduction <add>, %23, %cst_11 [0] : vector<6x256xf32> to vector<256xf32>
    %25 = vector.shape_cast %24 : vector<256xf32> to vector<1x256xf32>
    %c0_12 = arith.constant 0 : index
    %c0_13 = arith.constant 0 : index
    %c0_14 = arith.constant 0 : index
    %26 = vector.load %arg5[%c0_12, %c0_13, %c0_14] : memref<1x1x256xf32, #tpu.memory_space<vmem>>, vector<1x1x256xf32>
    %27 = vector.shape_cast %26 : vector<1x1x256xf32> to vector<1x256xf32>
    %28 = vector.shape_cast %25 : vector<1x256xf32> to vector<1x1x256xf32>
    tpu.vector_store %arg5[%c0_12, %c0_13, %c0_14], %28 {strides = array<i32>} : memref<1x1x256xf32, #tpu.memory_space<vmem>>, vector<1x1x256xf32>,
    return
  }
  func.func @transform_0(%arg0: i32) -> (i32, i32, i32) {
    %c0_i32 = arith.constant 0 : i32
    %c0_i32_0 = arith.constant 0 : i32
    %c0_i32_1 = arith.constant 0 : i32
    return %arg0, %c0_i32, %c0_i32_0 : i32, i32, i32
  }
  func.func @transform_1(%arg0: i32) -> (i32, i32, i32) {
    %c0_i32 = arith.constant 0 : i32
    %c0_i32_0 = arith.constant 0 : i32
    %c0_i32_1 = arith.constant 0 : i32
    return %arg0, %c0_i32, %c0_i32_0 : i32, i32, i32
  }
  func.func @transform_2(%arg0: i32) -> (i32, i32) {
    %c0_i32 = arith.constant 0 : i32
    %c0_i32_0 = arith.constant 0 : i32
    %c0_i32_1 = arith.constant 0 : i32
    return %c0_i32, %c0_i32_0 : i32, i32
  }
  func.func @transform_3(%arg0: i32) -> (i32, i32) {
    %c0_i32 = arith.constant 0 : i32
    %c0_i32_0 = arith.constant 0 : i32
    %c0_i32_1 = arith.constant 0 : i32
    return %c0_i32, %c0_i32_0 : i32, i32
  }
  func.func @transform_4(%arg0: i32) -> (i32, i32, i32) {
    %c0_i32 = arith.constant 0 : i32
    %c0_i32_0 = arith.constant 0 : i32
    %c0_i32_1 = arith.constant 0 : i32
    return %arg0, %c0_i32, %c0_i32_0 : i32, i32, i32
  }
}

module attributes {stable_mosaic.version = 11 : i64} {
  func.func @_linear_kernel(%arg0: i32, %arg1: memref<32x300xf32, #tpu.memory_space<vmem>>, %arg2: memref<300x128xf32, #tpu.memory_space<vmem>>, %arg3: memref<1x128xf32, #tpu.memory_space<vmem>>, %arg4: memref<32x128xf32, #tpu.memory_space<vmem>>) attributes {dimension_semantics = [#tpu.dimension_semantics<parallel>], iteration_bounds = array<i64: 1>, scalar_prefetch = 0 : i64, scratch_operands = 0 : i64, tpu.core_type = #tpu.core_type<tc>, window_params = [{transform_indices = @transform_0, window_bounds = array<i64: 32, 300>}, {pipeline_mode = #tpu.pipeline_mode<synchronous>, transform_indices = @transform_1, window_bounds = array<i64: 300, 128>}, {pipeline_mode = #tpu.pipeline_mode<synchronous>, transform_indices = @transform_2, window_bounds = array<i64: 1, 128>}, {transform_indices = @transform_3, window_bounds = array<i64: 32, 128>}]} {
    %c0 = arith.constant 0 : index
    %c0_0 = arith.constant 0 : index
    %0 = vector.load %arg1[%c0, %c0_0] : memref<32x300xf32, #tpu.memory_space<vmem>>, vector<32x300xf32>
    %1 = arith.truncf %0 : vector<32x300xf32> to vector<32x300xbf16>
    %c0_1 = arith.constant 0 : index
    %c0_2 = arith.constant 0 : index
    %2 = vector.load %arg2[%c0_1, %c0_2] : memref<300x128xf32, #tpu.memory_space<vmem>>, vector<300x128xf32>
    %3 = arith.truncf %2 : vector<300x128xf32> to vector<300x128xbf16>
    %cst = arith.constant dense<0.000000e+00> : vector<32x128xf32>
    %4 = tpu.matmul %1, %3, %cst {dimension_numbers = #tpu.dot_dimension_numbers<[1], [0], [0], [1], [0, 0, 1, 1], [], []>} : vector<32x300xbf16>, vector<300x128xbf16>, vector<32x128xf32> -> vector<32x128xf32>
    %c0_3 = arith.constant 0 : index
    %c0_4 = arith.constant 0 : index
    %5 = vector.load %arg3[%c0_3, %c0_4] : memref<1x128xf32, #tpu.memory_space<vmem>>, vector<1x128xf32>
    %6 = vector.broadcast %5 : vector<1x128xf32> to vector<32x128xf32>
    %7 = arith.addf %4, %6 : vector<32x128xf32>
    %cst_5 = arith.constant 0.000000e+00 : f32
    %8 = vector.broadcast %cst_5 : f32 to vector<32x128xf32>
    %9 = arith.maximumf %7, %8 : vector<32x128xf32>
    %c0_6 = arith.constant 0 : index
    %c0_7 = arith.constant 0 : index
    %10 = vector.load %arg4[%c0_6, %c0_7] : memref<32x128xf32, #tpu.memory_space<vmem>>, vector<32x128xf32>
    tpu.vector_store %arg4[%c0_6, %c0_7], %9 {strides = array<i32>} : memref<32x128xf32, #tpu.memory_space<vmem>>, vector<32x128xf32>,
    return
  }
  func.func @transform_0(%arg0: i32) -> (i32, i32) {
    %c0_i32 = arith.constant 0 : i32
    %c0_i32_0 = arith.constant 0 : i32
    return %arg0, %c0_i32 : i32, i32
  }
  func.func @transform_1(%arg0: i32) -> (i32, i32) {
    %c0_i32 = arith.constant 0 : i32
    %c0_i32_0 = arith.constant 0 : i32
    %c0_i32_1 = arith.constant 0 : i32
    return %c0_i32, %c0_i32_0 : i32, i32
  }
  func.func @transform_2(%arg0: i32) -> (i32, i32) {
    %c0_i32 = arith.constant 0 : i32
    %c0_i32_0 = arith.constant 0 : i32
    %c0_i32_1 = arith.constant 0 : i32
    return %c0_i32, %c0_i32_0 : i32, i32
  }
  func.func @transform_3(%arg0: i32) -> (i32, i32) {
    %c0_i32 = arith.constant 0 : i32
    %c0_i32_0 = arith.constant 0 : i32
    return %arg0, %c0_i32 : i32, i32
  }
}

module attributes {stable_mosaic.version = 11 : i64} {
  func.func @_linear_kernel(%arg0: i32, %arg1: memref<8x256xf32, #tpu.memory_space<vmem>>, %arg2: memref<256x1024xf32, #tpu.memory_space<vmem>>, %arg3: memref<1x1024xf32, #tpu.memory_space<vmem>>, %arg4: memref<8x1024xf32, #tpu.memory_space<vmem>>) attributes {dimension_semantics = [#tpu.dimension_semantics<parallel>], iteration_bounds = array<i64: 1>, scalar_prefetch = 0 : i64, scratch_operands = 0 : i64, tpu.core_type = #tpu.core_type<tc>, window_params = [{transform_indices = @transform_0, window_bounds = array<i64: 8, 256>}, {pipeline_mode = #tpu.pipeline_mode<synchronous>, transform_indices = @transform_1, window_bounds = array<i64: 256, 1024>}, {pipeline_mode = #tpu.pipeline_mode<synchronous>, transform_indices = @transform_2, window_bounds = array<i64: 1, 1024>}, {transform_indices = @transform_3, window_bounds = array<i64: 8, 1024>}]} {
    %c0 = arith.constant 0 : index
    %c0_0 = arith.constant 0 : index
    %0 = vector.load %arg1[%c0, %c0_0] : memref<8x256xf32, #tpu.memory_space<vmem>>, vector<8x256xf32>
    %1 = arith.truncf %0 : vector<8x256xf32> to vector<8x256xbf16>
    %c0_1 = arith.constant 0 : index
    %c0_2 = arith.constant 0 : index
    %2 = vector.load %arg2[%c0_1, %c0_2] : memref<256x1024xf32, #tpu.memory_space<vmem>>, vector<256x1024xf32>
    %3 = arith.truncf %2 : vector<256x1024xf32> to vector<256x1024xbf16>
    %cst = arith.constant dense<0.000000e+00> : vector<8x1024xf32>
    %4 = tpu.matmul %1, %3, %cst {dimension_numbers = #tpu.dot_dimension_numbers<[1], [0], [0], [1], [0, 0, 1, 1], [], []>} : vector<8x256xbf16>, vector<256x1024xbf16>, vector<8x1024xf32> -> vector<8x1024xf32>
    %c0_3 = arith.constant 0 : index
    %c0_4 = arith.constant 0 : index
    %5 = vector.load %arg3[%c0_3, %c0_4] : memref<1x1024xf32, #tpu.memory_space<vmem>>, vector<1x1024xf32>
    %6 = vector.broadcast %5 : vector<1x1024xf32> to vector<8x1024xf32>
    %7 = arith.addf %4, %6 : vector<8x1024xf32>
    %c0_5 = arith.constant 0 : index
    %c0_6 = arith.constant 0 : index
    %8 = vector.load %arg4[%c0_5, %c0_6] : memref<8x1024xf32, #tpu.memory_space<vmem>>, vector<8x1024xf32>
    tpu.vector_store %arg4[%c0_5, %c0_6], %7 {strides = array<i32>} : memref<8x1024xf32, #tpu.memory_space<vmem>>, vector<8x1024xf32>,
    return
  }
  func.func @transform_0(%arg0: i32) -> (i32, i32) {
    %c0_i32 = arith.constant 0 : i32
    %c0_i32_0 = arith.constant 0 : i32
    return %arg0, %c0_i32 : i32, i32
  }
  func.func @transform_1(%arg0: i32) -> (i32, i32) {
    %c0_i32 = arith.constant 0 : i32
    %c0_i32_0 = arith.constant 0 : i32
    %c0_i32_1 = arith.constant 0 : i32
    return %c0_i32, %c0_i32_0 : i32, i32
  }
  func.func @transform_2(%arg0: i32) -> (i32, i32) {
    %c0_i32 = arith.constant 0 : i32
    %c0_i32_0 = arith.constant 0 : i32
    %c0_i32_1 = arith.constant 0 : i32
    return %c0_i32, %c0_i32_0 : i32, i32
  }
  func.func @transform_3(%arg0: i32) -> (i32, i32) {
    %c0_i32 = arith.constant 0 : i32
    %c0_i32_0 = arith.constant 0 : i32
    return %arg0, %c0_i32 : i32, i32
  }
}

module attributes {stable_mosaic.version = 11 : i64} {
  func.func @_align_kernel(%arg0: i32, %arg1: memref<1x8x128xf32, #tpu.memory_space<vmem>>, %arg2: memref<1x6x128xf32, #tpu.memory_space<vmem>>, %arg3: memref<1x6x300xf32, #tpu.memory_space<vmem>>, %arg4: memref<1x8x300xf32, #tpu.memory_space<vmem>>) attributes {dimension_semantics = [#tpu.dimension_semantics<parallel>], iteration_bounds = array<i64: 2>, scalar_prefetch = 0 : i64, scratch_operands = 0 : i64, tpu.core_type = #tpu.core_type<tc>, window_params = [{transform_indices = @transform_0, window_bounds = array<i64: 1, 8, 128>}, {transform_indices = @transform_1, window_bounds = array<i64: 1, 6, 128>}, {transform_indices = @transform_2, window_bounds = array<i64: 1, 6, 300>}, {transform_indices = @transform_3, window_bounds = array<i64: 1, 8, 300>}]} {
    %c0 = arith.constant 0 : index
    %c0_0 = arith.constant 0 : index
    %c0_1 = arith.constant 0 : index
    %0 = vector.load %arg1[%c0, %c0_0, %c0_1] : memref<1x8x128xf32, #tpu.memory_space<vmem>>, vector<1x8x128xf32>
    %1 = vector.shape_cast %0 : vector<1x8x128xf32> to vector<8x128xf32>
    %2 = arith.truncf %1 : vector<8x128xf32> to vector<8x128xbf16>
    %c0_2 = arith.constant 0 : index
    %c0_3 = arith.constant 0 : index
    %c0_4 = arith.constant 0 : index
    %3 = vector.load %arg2[%c0_2, %c0_3, %c0_4] : memref<1x6x128xf32, #tpu.memory_space<vmem>>, vector<1x6x128xf32>
    %4 = vector.shape_cast %3 : vector<1x6x128xf32> to vector<6x128xf32>
    %5 = arith.truncf %4 : vector<6x128xf32> to vector<6x128xbf16>
    %cst = arith.constant dense<0.000000e+00> : vector<8x6xf32>
    %6 = tpu.matmul %2, %5, %cst {dimension_numbers = #tpu.dot_dimension_numbers<[1], [1], [0], [0], [0, 0, 1, 0], [], []>} : vector<8x128xbf16>, vector<6x128xbf16>, vector<8x6xf32> -> vector<8x6xf32>
    %cst_5 = arith.constant dense<0xFF800000> : vector<8xf32>
    %7 = vector.multi_reduction <maximumf>, %6, %cst_5 [1] : vector<8x6xf32> to vector<8xf32>
    %8 = vector.shape_cast %7 : vector<8xf32> to vector<8x1xf32>
    %9 = vector.broadcast %8 : vector<8x1xf32> to vector<8x6xf32>
    %10 = arith.subf %6, %9 : vector<8x6xf32>
    %11 = math.exp %10 : vector<8x6xf32>
    %cst_6 = arith.constant dense<0.000000e+00> : vector<8xf32>
    %12 = vector.multi_reduction <add>, %11, %cst_6 [1] : vector<8x6xf32> to vector<8xf32>
    %13 = vector.shape_cast %12 : vector<8xf32> to vector<8x1xf32>
    %14 = tpu.reciprocal %13 {approx = true} : vector<8x1xf32> -> vector<8x1xf32>
    %15 = vector.broadcast %14 : vector<8x1xf32> to vector<8x6xf32>
    %16 = arith.mulf %11, %15 : vector<8x6xf32>
    %17 = arith.truncf %16 : vector<8x6xf32> to vector<8x6xbf16>
    %c0_7 = arith.constant 0 : index
    %c0_8 = arith.constant 0 : index
    %c0_9 = arith.constant 0 : index
    %18 = vector.load %arg3[%c0_7, %c0_8, %c0_9] : memref<1x6x300xf32, #tpu.memory_space<vmem>>, vector<1x6x300xf32>
    %19 = vector.shape_cast %18 : vector<1x6x300xf32> to vector<6x300xf32>
    %20 = arith.truncf %19 : vector<6x300xf32> to vector<6x300xbf16>
    %cst_10 = arith.constant dense<0.000000e+00> : vector<8x300xf32>
    %21 = tpu.matmul %17, %20, %cst_10 {dimension_numbers = #tpu.dot_dimension_numbers<[1], [0], [0], [1], [0, 0, 1, 1], [], []>} : vector<8x6xbf16>, vector<6x300xbf16>, vector<8x300xf32> -> vector<8x300xf32>
    %c0_11 = arith.constant 0 : index
    %c0_12 = arith.constant 0 : index
    %c0_13 = arith.constant 0 : index
    %22 = vector.load %arg4[%c0_11, %c0_12, %c0_13] : memref<1x8x300xf32, #tpu.memory_space<vmem>>, vector<1x8x300xf32>
    %23 = vector.shape_cast %22 : vector<1x8x300xf32> to vector<8x300xf32>
    %24 = vector.shape_cast %21 : vector<8x300xf32> to vector<1x8x300xf32>
    tpu.vector_store %arg4[%c0_11, %c0_12, %c0_13], %24 {strides = array<i32>} : memref<1x8x300xf32, #tpu.memory_space<vmem>>, vector<1x8x300xf32>,
    return
  }
  func.func @transform_0(%arg0: i32) -> (i32, i32, i32) {
    %c0_i32 = arith.constant 0 : i32
    %c0_i32_0 = arith.constant 0 : i32
    %c0_i32_1 = arith.constant 0 : i32
    return %arg0, %c0_i32, %c0_i32_0 : i32, i32, i32
  }
  func.func @transform_1(%arg0: i32) -> (i32, i32, i32) {
    %c0_i32 = arith.constant 0 : i32
    %c0_i32_0 = arith.constant 0 : i32
    %c0_i32_1 = arith.constant 0 : i32
    return %arg0, %c0_i32, %c0_i32_0 : i32, i32, i32
  }
  func.func @transform_2(%arg0: i32) -> (i32, i32, i32) {
    %c0_i32 = arith.constant 0 : i32
    %c0_i32_0 = arith.constant 0 : i32
    %c0_i32_1 = arith.constant 0 : i32
    return %arg0, %c0_i32, %c0_i32_0 : i32, i32, i32
  }
  func.func @transform_3(%arg0: i32) -> (i32, i32, i32) {
    %c0_i32 = arith.constant 0 : i32
    %c0_i32_0 = arith.constant 0 : i32
    %c0_i32_1 = arith.constant 0 : i32
    return %arg0, %c0_i32, %c0_i32_0 : i32, i32, i32
  }
}

module attributes {stable_mosaic.version = 11 : i64} {
  func.func @_linear_kernel(%arg0: i32, %arg1: memref<16x600xf32, #tpu.memory_space<vmem>>, %arg2: memref<600x1024xf32, #tpu.memory_space<vmem>>, %arg3: memref<1x1024xf32, #tpu.memory_space<vmem>>, %arg4: memref<16x1024xf32, #tpu.memory_space<vmem>>) attributes {dimension_semantics = [#tpu.dimension_semantics<parallel>], iteration_bounds = array<i64: 1>, scalar_prefetch = 0 : i64, scratch_operands = 0 : i64, tpu.core_type = #tpu.core_type<tc>, window_params = [{transform_indices = @transform_0, window_bounds = array<i64: 16, 600>}, {pipeline_mode = #tpu.pipeline_mode<synchronous>, transform_indices = @transform_1, window_bounds = array<i64: 600, 1024>}, {pipeline_mode = #tpu.pipeline_mode<synchronous>, transform_indices = @transform_2, window_bounds = array<i64: 1, 1024>}, {transform_indices = @transform_3, window_bounds = array<i64: 16, 1024>}]} {
    %c0 = arith.constant 0 : index
    %c0_0 = arith.constant 0 : index
    %0 = vector.load %arg1[%c0, %c0_0] : memref<16x600xf32, #tpu.memory_space<vmem>>, vector<16x600xf32>
    %1 = arith.truncf %0 : vector<16x600xf32> to vector<16x600xbf16>
    %c0_1 = arith.constant 0 : index
    %c0_2 = arith.constant 0 : index
    %2 = vector.load %arg2[%c0_1, %c0_2] : memref<600x1024xf32, #tpu.memory_space<vmem>>, vector<600x1024xf32>
    %3 = arith.truncf %2 : vector<600x1024xf32> to vector<600x1024xbf16>
    %cst = arith.constant dense<0.000000e+00> : vector<16x1024xf32>
    %4 = tpu.matmul %1, %3, %cst {dimension_numbers = #tpu.dot_dimension_numbers<[1], [0], [0], [1], [0, 0, 1, 1], [], []>} : vector<16x600xbf16>, vector<600x1024xbf16>, vector<16x1024xf32> -> vector<16x1024xf32>
    %c0_3 = arith.constant 0 : index
    %c0_4 = arith.constant 0 : index
    %5 = vector.load %arg3[%c0_3, %c0_4] : memref<1x1024xf32, #tpu.memory_space<vmem>>, vector<1x1024xf32>
    %6 = vector.broadcast %5 : vector<1x1024xf32> to vector<16x1024xf32>
    %7 = arith.addf %4, %6 : vector<16x1024xf32>
    %c0_5 = arith.constant 0 : index
    %c0_6 = arith.constant 0 : index
    %8 = vector.load %arg4[%c0_5, %c0_6] : memref<16x1024xf32, #tpu.memory_space<vmem>>, vector<16x1024xf32>
    tpu.vector_store %arg4[%c0_5, %c0_6], %7 {strides = array<i32>} : memref<16x1024xf32, #tpu.memory_space<vmem>>, vector<16x1024xf32>,
    return
  }
  func.func @transform_0(%arg0: i32) -> (i32, i32) {
    %c0_i32 = arith.constant 0 : i32
    %c0_i32_0 = arith.constant 0 : i32
    return %arg0, %c0_i32 : i32, i32
  }
  func.func @transform_1(%arg0: i32) -> (i32, i32) {
    %c0_i32 = arith.constant 0 : i32
    %c0_i32_0 = arith.constant 0 : i32
    %c0_i32_1 = arith.constant 0 : i32
    return %c0_i32, %c0_i32_0 : i32, i32
  }
  func.func @transform_2(%arg0: i32) -> (i32, i32) {
    %c0_i32 = arith.constant 0 : i32
    %c0_i32_0 = arith.constant 0 : i32
    %c0_i32_1 = arith.constant 0 : i32
    return %c0_i32, %c0_i32_0 : i32, i32
  }
  func.func @transform_3(%arg0: i32) -> (i32, i32) {
    %c0_i32 = arith.constant 0 : i32
    %c0_i32_0 = arith.constant 0 : i32
    return %arg0, %c0_i32 : i32, i32
  }
}

module attributes {stable_mosaic.version = 11 : i64} {
  func.func @_lstm_layer_kernel(%arg0: i32, %arg1: memref<8x2x512xf32, #tpu.memory_space<vmem>>, %arg2: memref<1x128x512xf32, #tpu.memory_space<vmem>>, %arg3: memref<1x2x128xf32, #tpu.memory_space<vmem>>, %arg4: memref<1x2x128xf32, #tpu.memory_space<vmem>>, %arg5: memref<2x1xi32, #tpu.memory_space<vmem>>, %arg6: memref<8x2x128xf32, #tpu.memory_space<vmem>>, %arg7: memref<2x128xf32, #tpu.memory_space<vmem>>, %arg8: memref<2x128xf32, #tpu.memory_space<vmem>>) attributes {dimension_semantics = [#tpu.dimension_semantics<parallel>], iteration_bounds = array<i64: 2>, scalar_prefetch = 0 : i64, scratch_operands = 2 : i64, tpu.core_type = #tpu.core_type<tc>, window_params = [{transform_indices = @transform_0, window_bounds = array<i64: 8, 2, 512>}, {transform_indices = @transform_1, window_bounds = array<i64: 1, 128, 512>}, {transform_indices = @transform_2, window_bounds = array<i64: 1, 2, 128>}, {transform_indices = @transform_3, window_bounds = array<i64: 1, 2, 128>}, {pipeline_mode = #tpu.pipeline_mode<synchronous>, transform_indices = @transform_4, window_bounds = array<i64: 2, 1>}, {transform_indices = @transform_5, window_bounds = array<i64: 8, 2, 128>}]} {
    %c0 = arith.constant 0 : index
    %c0_0 = arith.constant 0 : index
    %c0_1 = arith.constant 0 : index
    %0 = vector.load %arg3[%c0, %c0_0, %c0_1] : memref<1x2x128xf32, #tpu.memory_space<vmem>>, vector<1x2x128xf32>
    %1 = vector.shape_cast %0 : vector<1x2x128xf32> to vector<2x128xf32>
    %c0_2 = arith.constant 0 : index
    %c0_3 = arith.constant 0 : index
    %2 = vector.load %arg7[%c0_2, %c0_3] : memref<2x128xf32, #tpu.memory_space<vmem>>, vector<2x128xf32>
    tpu.vector_store %arg7[%c0_2, %c0_3], %1 {strides = array<i32>} : memref<2x128xf32, #tpu.memory_space<vmem>>, vector<2x128xf32>,
    %c0_4 = arith.constant 0 : index
    %c0_5 = arith.constant 0 : index
    %c0_6 = arith.constant 0 : index
    %3 = vector.load %arg4[%c0_4, %c0_5, %c0_6] : memref<1x2x128xf32, #tpu.memory_space<vmem>>, vector<1x2x128xf32>
    %4 = vector.shape_cast %3 : vector<1x2x128xf32> to vector<2x128xf32>
    %c0_7 = arith.constant 0 : index
    %c0_8 = arith.constant 0 : index
    %5 = vector.load %arg8[%c0_7, %c0_8] : memref<2x128xf32, #tpu.memory_space<vmem>>, vector<2x128xf32>
    tpu.vector_store %arg8[%c0_7, %c0_8], %4 {strides = array<i32>} : memref<2x128xf32, #tpu.memory_space<vmem>>, vector<2x128xf32>,
    %c0_9 = arith.constant 0 : index
    %c0_10 = arith.constant 0 : index
    %c0_11 = arith.constant 0 : index
    %6 = vector.load %arg2[%c0_9, %c0_10, %c0_11] : memref<1x128x512xf32, #tpu.memory_space<vmem>>, vector<1x128x512xf32>
    %7 = vector.shape_cast %6 : vector<1x128x512xf32> to vector<128x512xf32>
    %8 = arith.truncf %7 : vector<128x512xf32> to vector<128x512xbf16>
    %c0_12 = arith.constant 0 : index
    %c0_13 = arith.constant 0 : index
    %9 = vector.load %arg5[%c0_12, %c0_13] : memref<2x1xi32, #tpu.memory_space<vmem>>, vector<2x1xi32>
    %c0_i32 = arith.constant 0 : i32
    %c8_i32 = arith.constant 8 : i32
    %10 = arith.addi %c0_i32, %c8_i32 : i32
    %c1_i32 = arith.constant 1 : i32
    scf.for %arg9 = %c0_i32 to %10 step %c1_i32  : i32 {
      %c0_i32_15 = arith.constant 0 : i32
      %11 = arith.cmpi eq, %arg0, %c0_i32_15 : i32
      %c7_i32 = arith.constant 7 : i32
      %12 = arith.subi %c7_i32, %arg9 : i32
      %13 = arith.select %11, %arg9, %12 : i32
      %14 = arith.index_cast %13 : i32 to index
      %c0_16 = arith.constant 0 : index
      %c0_17 = arith.constant 0 : index
      %15 = vector.load %arg1[%14, %c0_16, %c0_17] : memref<8x2x512xf32, #tpu.memory_space<vmem>>, vector<1x2x512xf32>
      %16 = vector.shape_cast %15 : vector<1x2x512xf32> to vector<2x512xf32>
      %c0_18 = arith.constant 0 : index
      %c0_19 = arith.constant 0 : index
      %17 = vector.load %arg7[%c0_18, %c0_19] : memref<2x128xf32, #tpu.memory_space<vmem>>, vector<2x128xf32>
      %c0_20 = arith.constant 0 : index
      %c0_21 = arith.constant 0 : index
      %18 = vector.load %arg8[%c0_20, %c0_21] : memref<2x128xf32, #tpu.memory_space<vmem>>, vector<2x128xf32>
      %19 = arith.truncf %17 : vector<2x128xf32> to vector<2x128xbf16>
      %cst = arith.constant dense<0.000000e+00> : vector<2x512xf32>
      %20 = tpu.matmul %19, %8, %cst {dimension_numbers = #tpu.dot_dimension_numbers<[1], [0], [0], [1], [0, 0, 1, 1], [], []>} : vector<2x128xbf16>, vector<128x512xbf16>, vector<2x512xf32> -> vector<2x512xf32>
      %21 = arith.addf %16, %20 : vector<2x512xf32>
      %22 = vector.extract_strided_slice %21 {offsets = [0, 0], sizes = [2, 128], strides = [1, 1]} : vector<2x512xf32> to vector<2x128xf32>
      %23 = arith.negf %22 : vector<2x128xf32>
      %24 = math.exp %23 : vector<2x128xf32>
      %cst_22 = arith.constant 1.000000e+00 : f32
      %25 = vector.broadcast %cst_22 : f32 to vector<2x128xf32>
      %26 = arith.addf %25, %24 : vector<2x128xf32>
      %27 = arith.divf %25, %26 : vector<2x128xf32>
      %28 = vector.extract_strided_slice %21 {offsets = [0, 128], sizes = [2, 128], strides = [1, 1]} : vector<2x512xf32> to vector<2x128xf32>
      %29 = arith.negf %28 : vector<2x128xf32>
      %30 = math.exp %29 : vector<2x128xf32>
      %cst_23 = arith.constant 1.000000e+00 : f32
      %31 = vector.broadcast %cst_23 : f32 to vector<2x128xf32>
      %32 = arith.addf %31, %30 : vector<2x128xf32>
      %33 = arith.divf %31, %32 : vector<2x128xf32>
      %34 = vector.extract_strided_slice %21 {offsets = [0, 256], sizes = [2, 128], strides = [1, 1]} : vector<2x512xf32> to vector<2x128xf32>
      %35 = math.tanh %34 : vector<2x128xf32>
      %36 = vector.extract_strided_slice %21 {offsets = [0, 384], sizes = [2, 128], strides = [1, 1]} : vector<2x512xf32> to vector<2x128xf32>
      %37 = arith.negf %36 : vector<2x128xf32>
      %38 = math.exp %37 : vector<2x128xf32>
      %cst_24 = arith.constant 1.000000e+00 : f32
      %39 = vector.broadcast %cst_24 : f32 to vector<2x128xf32>
      %40 = arith.addf %39, %38 : vector<2x128xf32>
      %41 = arith.divf %39, %40 : vector<2x128xf32>
      %42 = arith.mulf %33, %18 : vector<2x128xf32>
      %43 = arith.mulf %27, %35 : vector<2x128xf32>
      %44 = arith.addf %42, %43 : vector<2x128xf32>
      %45 = math.tanh %44 : vector<2x128xf32>
      %46 = arith.mulf %41, %45 : vector<2x128xf32>
      %47 = vector.broadcast %13 : i32 to vector<2x1xi32>
      %48 = arith.cmpi slt, %47, %9 : vector<2x1xi32>
      %49 = arith.extui %48 : vector<2x1xi1> to vector<2x1xi32>
      %50 = arith.sitofp %49 : vector<2x1xi32> to vector<2x1xf32>
      %51 = vector.broadcast %50 : vector<2x1xf32> to vector<2x128xf32>
      %52 = arith.mulf %51, %46 : vector<2x128xf32>
      %cst_25 = arith.constant 1.000000e+00 : f32
      %53 = vector.broadcast %cst_25 : f32 to vector<2x1xf32>
      %54 = arith.subf %53, %50 : vector<2x1xf32>
      %55 = vector.broadcast %54 : vector<2x1xf32> to vector<2x128xf32>
      %56 = arith.mulf %55, %17 : vector<2x128xf32>
      %57 = arith.addf %52, %56 : vector<2x128xf32>
      %c0_26 = arith.constant 0 : index
      %c0_27 = arith.constant 0 : index
      %58 = vector.load %arg7[%c0_26, %c0_27] : memref<2x128xf32, #tpu.memory_space<vmem>>, vector<2x128xf32>
      tpu.vector_store %arg7[%c0_26, %c0_27], %57 {strides = array<i32>} : memref<2x128xf32, #tpu.memory_space<vmem>>, vector<2x128xf32>,
      %59 = vector.broadcast %50 : vector<2x1xf32> to vector<2x128xf32>
      %60 = arith.mulf %59, %44 : vector<2x128xf32>
      %cst_28 = arith.constant 1.000000e+00 : f32
      %61 = vector.broadcast %cst_28 : f32 to vector<2x1xf32>
      %62 = arith.subf %61, %50 : vector<2x1xf32>
      %63 = vector.broadcast %62 : vector<2x1xf32> to vector<2x128xf32>
      %64 = arith.mulf %63, %18 : vector<2x128xf32>
      %65 = arith.addf %60, %64 : vector<2x128xf32>
      %c0_29 = arith.constant 0 : index
      %c0_30 = arith.constant 0 : index
      %66 = vector.load %arg8[%c0_29, %c0_30] : memref<2x128xf32, #tpu.memory_space<vmem>>, vector<2x128xf32>
      tpu.vector_store %arg8[%c0_29, %c0_30], %65 {strides = array<i32>} : memref<2x128xf32, #tpu.memory_space<vmem>>, vector<2x128xf32>,
      %67 = vector.broadcast %50 : vector<2x1xf32> to vector<2x128xf32>
      %68 = arith.mulf %67, %46 : vector<2x128xf32>
      %69 = arith.index_cast %13 : i32 to index
      %c0_31 = arith.constant 0 : index
      %c0_32 = arith.constant 0 : index
      %70 = vector.load %arg6[%69, %c0_31, %c0_32] : memref<8x2x128xf32, #tpu.memory_space<vmem>>, vector<1x2x128xf32>
      %71 = vector.shape_cast %70 : vector<1x2x128xf32> to vector<2x128xf32>
      %72 = vector.shape_cast %68 : vector<2x128xf32> to vector<1x2x128xf32>
      tpu.vector_store %arg6[%69, %c0_31, %c0_32], %72 {strides = array<i32>} : memref<8x2x128xf32, #tpu.memory_space<vmem>>, vector<1x2x128xf32>,
    }
    %c8_i32_14 = arith.constant 8 : i32
    return
  }
  func.func @transform_0(%arg0: i32) -> (i32, i32, i32) {
    %c0_i32 = arith.constant 0 : i32
    %c0_i32_0 = arith.constant 0 : i32
    %c0_i32_1 = arith.constant 0 : i32
    return %c0_i32, %c0_i32_0, %arg0 : i32, i32, i32
  }
  func.func @transform_1(%arg0: i32) -> (i32, i32, i32) {
    %c0_i32 = arith.constant 0 : i32
    %c0_i32_0 = arith.constant 0 : i32
    %c0_i32_1 = arith.constant 0 : i32
    return %arg0, %c0_i32, %c0_i32_0 : i32, i32, i32
  }
  func.func @transform_2(%arg0: i32) -> (i32, i32, i32) {
    %c0_i32 = arith.constant 0 : i32
    %c0_i32_0 = arith.constant 0 : i32
    %c0_i32_1 = arith.constant 0 : i32
    return %arg0, %c0_i32, %c0_i32_0 : i32, i32, i32
  }
  func.func @transform_3(%arg0: i32) -> (i32, i32, i32) {
    %c0_i32 = arith.constant 0 : i32
    %c0_i32_0 = arith.constant 0 : i32
    %c0_i32_1 = arith.constant 0 : i32
    return %arg0, %c0_i32, %c0_i32_0 : i32, i32, i32
  }
  func.func @transform_4(%arg0: i32) -> (i32, i32) {
    %c0_i32 = arith.constant 0 : i32
    %c0_i32_0 = arith.constant 0 : i32
    %c0_i32_1 = arith.constant 0 : i32
    return %c0_i32, %c0_i32_0 : i32, i32
  }
  func.func @transform_5(%arg0: i32) -> (i32, i32, i32) {
    %c0_i32 = arith.constant 0 : i32
    %c0_i32_0 = arith.constant 0 : i32
    %c0_i32_1 = arith.constant 0 : i32
    return %c0_i32, %c0_i32_0, %arg0 : i32, i32, i32
  }
}

module attributes {stable_mosaic.version = 11 : i64} {
  func.func @_linear_kernel(%arg0: i32, %arg1: memref<16x256xf32, #tpu.memory_space<vmem>>, %arg2: memref<256x256xf32, #tpu.memory_space<vmem>>, %arg3: memref<1x256xf32, #tpu.memory_space<vmem>>, %arg4: memref<16x256xf32, #tpu.memory_space<vmem>>) attributes {dimension_semantics = [#tpu.dimension_semantics<parallel>], iteration_bounds = array<i64: 1>, scalar_prefetch = 0 : i64, scratch_operands = 0 : i64, tpu.core_type = #tpu.core_type<tc>, window_params = [{transform_indices = @transform_0, window_bounds = array<i64: 16, 256>}, {pipeline_mode = #tpu.pipeline_mode<synchronous>, transform_indices = @transform_1, window_bounds = array<i64: 256, 256>}, {pipeline_mode = #tpu.pipeline_mode<synchronous>, transform_indices = @transform_2, window_bounds = array<i64: 1, 256>}, {transform_indices = @transform_3, window_bounds = array<i64: 16, 256>}]} {
    %c0 = arith.constant 0 : index
    %c0_0 = arith.constant 0 : index
    %0 = vector.load %arg1[%c0, %c0_0] : memref<16x256xf32, #tpu.memory_space<vmem>>, vector<16x256xf32>
    %1 = arith.truncf %0 : vector<16x256xf32> to vector<16x256xbf16>
    %c0_1 = arith.constant 0 : index
    %c0_2 = arith.constant 0 : index
    %2 = vector.load %arg2[%c0_1, %c0_2] : memref<256x256xf32, #tpu.memory_space<vmem>>, vector<256x256xf32>
    %3 = arith.truncf %2 : vector<256x256xf32> to vector<256x256xbf16>
    %cst = arith.constant dense<0.000000e+00> : vector<16x256xf32>
    %4 = tpu.matmul %1, %3, %cst {dimension_numbers = #tpu.dot_dimension_numbers<[1], [0], [0], [1], [0, 0, 1, 1], [], []>} : vector<16x256xbf16>, vector<256x256xbf16>, vector<16x256xf32> -> vector<16x256xf32>
    %c0_3 = arith.constant 0 : index
    %c0_4 = arith.constant 0 : index
    %5 = vector.load %arg3[%c0_3, %c0_4] : memref<1x256xf32, #tpu.memory_space<vmem>>, vector<1x256xf32>
    %6 = vector.broadcast %5 : vector<1x256xf32> to vector<16x256xf32>
    %7 = arith.addf %4, %6 : vector<16x256xf32>
    %cst_5 = arith.constant 0.000000e+00 : f32
    %8 = vector.broadcast %cst_5 : f32 to vector<16x256xf32>
    %9 = arith.maximumf %7, %8 : vector<16x256xf32>
    %c0_6 = arith.constant 0 : index
    %c0_7 = arith.constant 0 : index
    %10 = vector.load %arg4[%c0_6, %c0_7] : memref<16x256xf32, #tpu.memory_space<vmem>>, vector<16x256xf32>
    tpu.vector_store %arg4[%c0_6, %c0_7], %9 {strides = array<i32>} : memref<16x256xf32, #tpu.memory_space<vmem>>, vector<16x256xf32>,
    return
  }
  func.func @transform_0(%arg0: i32) -> (i32, i32) {
    %c0_i32 = arith.constant 0 : i32
    %c0_i32_0 = arith.constant 0 : i32
    return %arg0, %c0_i32 : i32, i32
  }
  func.func @transform_1(%arg0: i32) -> (i32, i32) {
    %c0_i32 = arith.constant 0 : i32
    %c0_i32_0 = arith.constant 0 : i32
    %c0_i32_1 = arith.constant 0 : i32
    return %c0_i32, %c0_i32_0 : i32, i32
  }
  func.func @transform_2(%arg0: i32) -> (i32, i32) {
    %c0_i32 = arith.constant 0 : i32
    %c0_i32_0 = arith.constant 0 : i32
    %c0_i32_1 = arith.constant 0 : i32
    return %c0_i32, %c0_i32_0 : i32, i32
  }
  func.func @transform_3(%arg0: i32) -> (i32, i32) {
    %c0_i32 = arith.constant 0 : i32
    %c0_i32_0 = arith.constant 0 : i32
    return %arg0, %c0_i32 : i32, i32
  }
}

module attributes {stable_mosaic.version = 11 : i64} {
  func.func @_span_kernel(%arg0: i32, %arg1: memref<2xi32, #tpu.memory_space<smem>>, %arg2: memref<1x8x128xf32, #tpu.memory_space<vmem>>, %arg3: memref<1x37x128xf32, #tpu.memory_space<vmem>>, %arg4: memref<1x128xf32, #tpu.memory_space<vmem>>, %arg5: memref<1x1xf32, #tpu.memory_space<vmem>>, %arg6: memref<1x8x30xf32, #tpu.memory_space<vmem>>) attributes {dimension_semantics = [#tpu.dimension_semantics<parallel>], iteration_bounds = array<i64: 2>, scalar_prefetch = 1 : i64, scratch_operands = 0 : i64, tpu.core_type = #tpu.core_type<tc>, window_params = [{transform_indices = @transform_0, window_bounds = array<i64: 1, 8, 128>}, {transform_indices = @transform_1, window_bounds = array<i64: 1, 37, 128>}, {pipeline_mode = #tpu.pipeline_mode<synchronous>, transform_indices = @transform_2, window_bounds = array<i64: 1, 128>}, {pipeline_mode = #tpu.pipeline_mode<synchronous>, transform_indices = @transform_3, window_bounds = array<i64: 1, 1>}, {transform_indices = @transform_4, window_bounds = array<i64: 1, 8, 30>}]} {
    %0 = arith.index_cast %arg0 : i32 to index
    %1 = memref.load %arg1[%0] : memref<2xi32, #tpu.memory_space<smem>>
    %c0 = arith.constant 0 : index
    %c0_0 = arith.constant 0 : index
    %c0_1 = arith.constant 0 : index
    %2 = vector.load %arg2[%c0, %c0_0, %c0_1] : memref<1x8x128xf32, #tpu.memory_space<vmem>>, vector<1x8x128xf32>
    %3 = vector.shape_cast %2 : vector<1x8x128xf32> to vector<8x128xf32>
    %c0_2 = arith.constant 0 : index
    %c0_3 = arith.constant 0 : index
    %4 = vector.load %arg4[%c0_2, %c0_3] : memref<1x128xf32, #tpu.memory_space<vmem>>, vector<1x128xf32>
    %c0_4 = arith.constant 0 : index
    %c0_5 = arith.constant 0 : index
    %c0_6 = arith.constant 0 : index
    %5 = vector.load %arg3[%c0_4, %c0_5, %c0_6] : memref<1x37x128xf32, #tpu.memory_space<vmem>>, vector<1x8x128xf32>
    %6 = vector.shape_cast %5 : vector<1x8x128xf32> to vector<8x128xf32>
    %7 = arith.addf %3, %6 : vector<8x128xf32>
    %cst = arith.constant 0.000000e+00 : f32
    %8 = vector.broadcast %cst : f32 to vector<8x128xf32>
    %9 = arith.maximumf %7, %8 : vector<8x128xf32>
    %10 = vector.broadcast %4 : vector<1x128xf32> to vector<8x128xf32>
    %11 = arith.mulf %9, %10 : vector<8x128xf32>
    %cst_7 = arith.constant dense<0.000000e+00> : vector<8xf32>
    %12 = vector.multi_reduction <add>, %11, %cst_7 [1] : vector<8x128xf32> to vector<8xf32>
    %13 = vector.shape_cast %12 : vector<8xf32> to vector<8x1xf32>
    %c0_8 = arith.constant 0 : index
    %c1 = arith.constant 1 : index
    %c0_9 = arith.constant 0 : index
    %14 = vector.load %arg3[%c0_8, %c1, %c0_9] : memref<1x37x128xf32, #tpu.memory_space<vmem>>, vector<1x8x128xf32>
    %15 = vector.shape_cast %14 : vector<1x8x128xf32> to vector<8x128xf32>
    %16 = arith.addf %3, %15 : vector<8x128xf32>
    %cst_10 = arith.constant 0.000000e+00 : f32
    %17 = vector.broadcast %cst_10 : f32 to vector<8x128xf32>
    %18 = arith.maximumf %16, %17 : vector<8x128xf32>
    %19 = vector.broadcast %4 : vector<1x128xf32> to vector<8x128xf32>
    %20 = arith.mulf %18, %19 : vector<8x128xf32>
    %cst_11 = arith.constant dense<0.000000e+00> : vector<8xf32>
    %21 = vector.multi_reduction <add>, %20, %cst_11 [1] : vector<8x128xf32> to vector<8xf32>
    %22 = vector.shape_cast %21 : vector<8xf32> to vector<8x1xf32>
    %c0_12 = arith.constant 0 : index
    %c2 = arith.constant 2 : index
    %c0_13 = arith.constant 0 : index
    %23 = vector.load %arg3[%c0_12, %c2, %c0_13] : memref<1x37x128xf32, #tpu.memory_space<vmem>>, vector<1x8x128xf32>
    %24 = vector.shape_cast %23 : vector<1x8x128xf32> to vector<8x128xf32>
    %25 = arith.addf %3, %24 : vector<8x128xf32>
    %cst_14 = arith.constant 0.000000e+00 : f32
    %26 = vector.broadcast %cst_14 : f32 to vector<8x128xf32>
    %27 = arith.maximumf %25, %26 : vector<8x128xf32>
    %28 = vector.broadcast %4 : vector<1x128xf32> to vector<8x128xf32>
    %29 = arith.mulf %27, %28 : vector<8x128xf32>
    %cst_15 = arith.constant dense<0.000000e+00> : vector<8xf32>
    %30 = vector.multi_reduction <add>, %29, %cst_15 [1] : vector<8x128xf32> to vector<8xf32>
    %31 = vector.shape_cast %30 : vector<8xf32> to vector<8x1xf32>
    %c0_16 = arith.constant 0 : index
    %c3 = arith.constant 3 : index
    %c0_17 = arith.constant 0 : index
    %32 = vector.load %arg3[%c0_16, %c3, %c0_17] : memref<1x37x128xf32, #tpu.memory_space<vmem>>, vector<1x8x128xf32>
    %33 = vector.shape_cast %32 : vector<1x8x128xf32> to vector<8x128xf32>
    %34 = arith.addf %3, %33 : vector<8x128xf32>
    %cst_18 = arith.constant 0.000000e+00 : f32
    %35 = vector.broadcast %cst_18 : f32 to vector<8x128xf32>
    %36 = arith.maximumf %34, %35 : vector<8x128xf32>
    %37 = vector.broadcast %4 : vector<1x128xf32> to vector<8x128xf32>
    %38 = arith.mulf %36, %37 : vector<8x128xf32>
    %cst_19 = arith.constant dense<0.000000e+00> : vector<8xf32>
    %39 = vector.multi_reduction <add>, %38, %cst_19 [1] : vector<8x128xf32> to vector<8xf32>
    %40 = vector.shape_cast %39 : vector<8xf32> to vector<8x1xf32>
    %c0_20 = arith.constant 0 : index
    %c4 = arith.constant 4 : index
    %c0_21 = arith.constant 0 : index
    %41 = vector.load %arg3[%c0_20, %c4, %c0_21] : memref<1x37x128xf32, #tpu.memory_space<vmem>>, vector<1x8x128xf32>
    %42 = vector.shape_cast %41 : vector<1x8x128xf32> to vector<8x128xf32>
    %43 = arith.addf %3, %42 : vector<8x128xf32>
    %cst_22 = arith.constant 0.000000e+00 : f32
    %44 = vector.broadcast %cst_22 : f32 to vector<8x128xf32>
    %45 = arith.maximumf %43, %44 : vector<8x128xf32>
    %46 = vector.broadcast %4 : vector<1x128xf32> to vector<8x128xf32>
    %47 = arith.mulf %45, %46 : vector<8x128xf32>
    %cst_23 = arith.constant dense<0.000000e+00> : vector<8xf32>
    %48 = vector.multi_reduction <add>, %47, %cst_23 [1] : vector<8x128xf32> to vector<8xf32>
    %49 = vector.shape_cast %48 : vector<8xf32> to vector<8x1xf32>
    %c0_24 = arith.constant 0 : index
    %c5 = arith.constant 5 : index
    %c0_25 = arith.constant 0 : index
    %50 = vector.load %arg3[%c0_24, %c5, %c0_25] : memref<1x37x128xf32, #tpu.memory_space<vmem>>, vector<1x8x128xf32>
    %51 = vector.shape_cast %50 : vector<1x8x128xf32> to vector<8x128xf32>
    %52 = arith.addf %3, %51 : vector<8x128xf32>
    %cst_26 = arith.constant 0.000000e+00 : f32
    %53 = vector.broadcast %cst_26 : f32 to vector<8x128xf32>
    %54 = arith.maximumf %52, %53 : vector<8x128xf32>
    %55 = vector.broadcast %4 : vector<1x128xf32> to vector<8x128xf32>
    %56 = arith.mulf %54, %55 : vector<8x128xf32>
    %cst_27 = arith.constant dense<0.000000e+00> : vector<8xf32>
    %57 = vector.multi_reduction <add>, %56, %cst_27 [1] : vector<8x128xf32> to vector<8xf32>
    %58 = vector.shape_cast %57 : vector<8xf32> to vector<8x1xf32>
    %c0_28 = arith.constant 0 : index
    %c6 = arith.constant 6 : index
    %c0_29 = arith.constant 0 : index
    %59 = vector.load %arg3[%c0_28, %c6, %c0_29] : memref<1x37x128xf32, #tpu.memory_space<vmem>>, vector<1x8x128xf32>
    %60 = vector.shape_cast %59 : vector<1x8x128xf32> to vector<8x128xf32>
    %61 = arith.addf %3, %60 : vector<8x128xf32>
    %cst_30 = arith.constant 0.000000e+00 : f32
    %62 = vector.broadcast %cst_30 : f32 to vector<8x128xf32>
    %63 = arith.maximumf %61, %62 : vector<8x128xf32>
    %64 = vector.broadcast %4 : vector<1x128xf32> to vector<8x128xf32>
    %65 = arith.mulf %63, %64 : vector<8x128xf32>
    %cst_31 = arith.constant dense<0.000000e+00> : vector<8xf32>
    %66 = vector.multi_reduction <add>, %65, %cst_31 [1] : vector<8x128xf32> to vector<8xf32>
    %67 = vector.shape_cast %66 : vector<8xf32> to vector<8x1xf32>
    %c0_32 = arith.constant 0 : index
    %c7 = arith.constant 7 : index
    %c0_33 = arith.constant 0 : index
    %68 = vector.load %arg3[%c0_32, %c7, %c0_33] : memref<1x37x128xf32, #tpu.memory_space<vmem>>, vector<1x8x128xf32>
    %69 = vector.shape_cast %68 : vector<1x8x128xf32> to vector<8x128xf32>
    %70 = arith.addf %3, %69 : vector<8x128xf32>
    %cst_34 = arith.constant 0.000000e+00 : f32
    %71 = vector.broadcast %cst_34 : f32 to vector<8x128xf32>
    %72 = arith.maximumf %70, %71 : vector<8x128xf32>
    %73 = vector.broadcast %4 : vector<1x128xf32> to vector<8x128xf32>
    %74 = arith.mulf %72, %73 : vector<8x128xf32>
    %cst_35 = arith.constant dense<0.000000e+00> : vector<8xf32>
    %75 = vector.multi_reduction <add>, %74, %cst_35 [1] : vector<8x128xf32> to vector<8xf32>
    %76 = vector.shape_cast %75 : vector<8xf32> to vector<8x1xf32>
    %c0_36 = arith.constant 0 : index
    %c8 = arith.constant 8 : index
    %c0_37 = arith.constant 0 : index
    %77 = vector.load %arg3[%c0_36, %c8, %c0_37] : memref<1x37x128xf32, #tpu.memory_space<vmem>>, vector<1x8x128xf32>
    %78 = vector.shape_cast %77 : vector<1x8x128xf32> to vector<8x128xf32>
    %79 = arith.addf %3, %78 : vector<8x128xf32>
    %cst_38 = arith.constant 0.000000e+00 : f32
    %80 = vector.broadcast %cst_38 : f32 to vector<8x128xf32>
    %81 = arith.maximumf %79, %80 : vector<8x128xf32>
    %82 = vector.broadcast %4 : vector<1x128xf32> to vector<8x128xf32>
    %83 = arith.mulf %81, %82 : vector<8x128xf32>
    %cst_39 = arith.constant dense<0.000000e+00> : vector<8xf32>
    %84 = vector.multi_reduction <add>, %83, %cst_39 [1] : vector<8x128xf32> to vector<8xf32>
    %85 = vector.shape_cast %84 : vector<8xf32> to vector<8x1xf32>
    %c0_40 = arith.constant 0 : index
    %c9 = arith.constant 9 : index
    %c0_41 = arith.constant 0 : index
    %86 = vector.load %arg3[%c0_40, %c9, %c0_41] : memref<1x37x128xf32, #tpu.memory_space<vmem>>, vector<1x8x128xf32>
    %87 = vector.shape_cast %86 : vector<1x8x128xf32> to vector<8x128xf32>
    %88 = arith.addf %3, %87 : vector<8x128xf32>
    %cst_42 = arith.constant 0.000000e+00 : f32
    %89 = vector.broadcast %cst_42 : f32 to vector<8x128xf32>
    %90 = arith.maximumf %88, %89 : vector<8x128xf32>
    %91 = vector.broadcast %4 : vector<1x128xf32> to vector<8x128xf32>
    %92 = arith.mulf %90, %91 : vector<8x128xf32>
    %cst_43 = arith.constant dense<0.000000e+00> : vector<8xf32>
    %93 = vector.multi_reduction <add>, %92, %cst_43 [1] : vector<8x128xf32> to vector<8xf32>
    %94 = vector.shape_cast %93 : vector<8xf32> to vector<8x1xf32>
    %c0_44 = arith.constant 0 : index
    %c10 = arith.constant 10 : index
    %c0_45 = arith.constant 0 : index
    %95 = vector.load %arg3[%c0_44, %c10, %c0_45] : memref<1x37x128xf32, #tpu.memory_space<vmem>>, vector<1x8x128xf32>
    %96 = vector.shape_cast %95 : vector<1x8x128xf32> to vector<8x128xf32>
    %97 = arith.addf %3, %96 : vector<8x128xf32>
    %cst_46 = arith.constant 0.000000e+00 : f32
    %98 = vector.broadcast %cst_46 : f32 to vector<8x128xf32>
    %99 = arith.maximumf %97, %98 : vector<8x128xf32>
    %100 = vector.broadcast %4 : vector<1x128xf32> to vector<8x128xf32>
    %101 = arith.mulf %99, %100 : vector<8x128xf32>
    %cst_47 = arith.constant dense<0.000000e+00> : vector<8xf32>
    %102 = vector.multi_reduction <add>, %101, %cst_47 [1] : vector<8x128xf32> to vector<8xf32>
    %103 = vector.shape_cast %102 : vector<8xf32> to vector<8x1xf32>
    %c0_48 = arith.constant 0 : index
    %c11 = arith.constant 11 : index
    %c0_49 = arith.constant 0 : index
    %104 = vector.load %arg3[%c0_48, %c11, %c0_49] : memref<1x37x128xf32, #tpu.memory_space<vmem>>, vector<1x8x128xf32>
    %105 = vector.shape_cast %104 : vector<1x8x128xf32> to vector<8x128xf32>
    %106 = arith.addf %3, %105 : vector<8x128xf32>
    %cst_50 = arith.constant 0.000000e+00 : f32
    %107 = vector.broadcast %cst_50 : f32 to vector<8x128xf32>
    %108 = arith.maximumf %106, %107 : vector<8x128xf32>
    %109 = vector.broadcast %4 : vector<1x128xf32> to vector<8x128xf32>
    %110 = arith.mulf %108, %109 : vector<8x128xf32>
    %cst_51 = arith.constant dense<0.000000e+00> : vector<8xf32>
    %111 = vector.multi_reduction <add>, %110, %cst_51 [1] : vector<8x128xf32> to vector<8xf32>
    %112 = vector.shape_cast %111 : vector<8xf32> to vector<8x1xf32>
    %c0_52 = arith.constant 0 : index
    %c12 = arith.constant 12 : index
    %c0_53 = arith.constant 0 : index
    %113 = vector.load %arg3[%c0_52, %c12, %c0_53] : memref<1x37x128xf32, #tpu.memory_space<vmem>>, vector<1x8x128xf32>
    %114 = vector.shape_cast %113 : vector<1x8x128xf32> to vector<8x128xf32>
    %115 = arith.addf %3, %114 : vector<8x128xf32>
    %cst_54 = arith.constant 0.000000e+00 : f32
    %116 = vector.broadcast %cst_54 : f32 to vector<8x128xf32>
    %117 = arith.maximumf %115, %116 : vector<8x128xf32>
    %118 = vector.broadcast %4 : vector<1x128xf32> to vector<8x128xf32>
    %119 = arith.mulf %117, %118 : vector<8x128xf32>
    %cst_55 = arith.constant dense<0.000000e+00> : vector<8xf32>
    %120 = vector.multi_reduction <add>, %119, %cst_55 [1] : vector<8x128xf32> to vector<8xf32>
    %121 = vector.shape_cast %120 : vector<8xf32> to vector<8x1xf32>
    %c0_56 = arith.constant 0 : index
    %c13 = arith.constant 13 : index
    %c0_57 = arith.constant 0 : index
    %122 = vector.load %arg3[%c0_56, %c13, %c0_57] : memref<1x37x128xf32, #tpu.memory_space<vmem>>, vector<1x8x128xf32>
    %123 = vector.shape_cast %122 : vector<1x8x128xf32> to vector<8x128xf32>
    %124 = arith.addf %3, %123 : vector<8x128xf32>
    %cst_58 = arith.constant 0.000000e+00 : f32
    %125 = vector.broadcast %cst_58 : f32 to vector<8x128xf32>
    %126 = arith.maximumf %124, %125 : vector<8x128xf32>
    %127 = vector.broadcast %4 : vector<1x128xf32> to vector<8x128xf32>
    %128 = arith.mulf %126, %127 : vector<8x128xf32>
    %cst_59 = arith.constant dense<0.000000e+00> : vector<8xf32>
    %129 = vector.multi_reduction <add>, %128, %cst_59 [1] : vector<8x128xf32> to vector<8xf32>
    %130 = vector.shape_cast %129 : vector<8xf32> to vector<8x1xf32>
    %c0_60 = arith.constant 0 : index
    %c14 = arith.constant 14 : index
    %c0_61 = arith.constant 0 : index
    %131 = vector.load %arg3[%c0_60, %c14, %c0_61] : memref<1x37x128xf32, #tpu.memory_space<vmem>>, vector<1x8x128xf32>
    %132 = vector.shape_cast %131 : vector<1x8x128xf32> to vector<8x128xf32>
    %133 = arith.addf %3, %132 : vector<8x128xf32>
    %cst_62 = arith.constant 0.000000e+00 : f32
    %134 = vector.broadcast %cst_62 : f32 to vector<8x128xf32>
    %135 = arith.maximumf %133, %134 : vector<8x128xf32>
    %136 = vector.broadcast %4 : vector<1x128xf32> to vector<8x128xf32>
    %137 = arith.mulf %135, %136 : vector<8x128xf32>
    %cst_63 = arith.constant dense<0.000000e+00> : vector<8xf32>
    %138 = vector.multi_reduction <add>, %137, %cst_63 [1] : vector<8x128xf32> to vector<8xf32>
    %139 = vector.shape_cast %138 : vector<8xf32> to vector<8x1xf32>
    %c0_64 = arith.constant 0 : index
    %c15 = arith.constant 15 : index
    %c0_65 = arith.constant 0 : index
    %140 = vector.load %arg3[%c0_64, %c15, %c0_65] : memref<1x37x128xf32, #tpu.memory_space<vmem>>, vector<1x8x128xf32>
    %141 = vector.shape_cast %140 : vector<1x8x128xf32> to vector<8x128xf32>
    %142 = arith.addf %3, %141 : vector<8x128xf32>
    %cst_66 = arith.constant 0.000000e+00 : f32
    %143 = vector.broadcast %cst_66 : f32 to vector<8x128xf32>
    %144 = arith.maximumf %142, %143 : vector<8x128xf32>
    %145 = vector.broadcast %4 : vector<1x128xf32> to vector<8x128xf32>
    %146 = arith.mulf %144, %145 : vector<8x128xf32>
    %cst_67 = arith.constant dense<0.000000e+00> : vector<8xf32>
    %147 = vector.multi_reduction <add>, %146, %cst_67 [1] : vector<8x128xf32> to vector<8xf32>
    %148 = vector.shape_cast %147 : vector<8xf32> to vector<8x1xf32>
    %c0_68 = arith.constant 0 : index
    %c16 = arith.constant 16 : index
    %c0_69 = arith.constant 0 : index
    %149 = vector.load %arg3[%c0_68, %c16, %c0_69] : memref<1x37x128xf32, #tpu.memory_space<vmem>>, vector<1x8x128xf32>
    %150 = vector.shape_cast %149 : vector<1x8x128xf32> to vector<8x128xf32>
    %151 = arith.addf %3, %150 : vector<8x128xf32>
    %cst_70 = arith.constant 0.000000e+00 : f32
    %152 = vector.broadcast %cst_70 : f32 to vector<8x128xf32>
    %153 = arith.maximumf %151, %152 : vector<8x128xf32>
    %154 = vector.broadcast %4 : vector<1x128xf32> to vector<8x128xf32>
    %155 = arith.mulf %153, %154 : vector<8x128xf32>
    %cst_71 = arith.constant dense<0.000000e+00> : vector<8xf32>
    %156 = vector.multi_reduction <add>, %155, %cst_71 [1] : vector<8x128xf32> to vector<8xf32>
    %157 = vector.shape_cast %156 : vector<8xf32> to vector<8x1xf32>
    %c0_72 = arith.constant 0 : index
    %c17 = arith.constant 17 : index
    %c0_73 = arith.constant 0 : index
    %158 = vector.load %arg3[%c0_72, %c17, %c0_73] : memref<1x37x128xf32, #tpu.memory_space<vmem>>, vector<1x8x128xf32>
    %159 = vector.shape_cast %158 : vector<1x8x128xf32> to vector<8x128xf32>
    %160 = arith.addf %3, %159 : vector<8x128xf32>
    %cst_74 = arith.constant 0.000000e+00 : f32
    %161 = vector.broadcast %cst_74 : f32 to vector<8x128xf32>
    %162 = arith.maximumf %160, %161 : vector<8x128xf32>
    %163 = vector.broadcast %4 : vector<1x128xf32> to vector<8x128xf32>
    %164 = arith.mulf %162, %163 : vector<8x128xf32>
    %cst_75 = arith.constant dense<0.000000e+00> : vector<8xf32>
    %165 = vector.multi_reduction <add>, %164, %cst_75 [1] : vector<8x128xf32> to vector<8xf32>
    %166 = vector.shape_cast %165 : vector<8xf32> to vector<8x1xf32>
    %c0_76 = arith.constant 0 : index
    %c18 = arith.constant 18 : index
    %c0_77 = arith.constant 0 : index
    %167 = vector.load %arg3[%c0_76, %c18, %c0_77] : memref<1x37x128xf32, #tpu.memory_space<vmem>>, vector<1x8x128xf32>
    %168 = vector.shape_cast %167 : vector<1x8x128xf32> to vector<8x128xf32>
    %169 = arith.addf %3, %168 : vector<8x128xf32>
    %cst_78 = arith.constant 0.000000e+00 : f32
    %170 = vector.broadcast %cst_78 : f32 to vector<8x128xf32>
    %171 = arith.maximumf %169, %170 : vector<8x128xf32>
    %172 = vector.broadcast %4 : vector<1x128xf32> to vector<8x128xf32>
    %173 = arith.mulf %171, %172 : vector<8x128xf32>
    %cst_79 = arith.constant dense<0.000000e+00> : vector<8xf32>
    %174 = vector.multi_reduction <add>, %173, %cst_79 [1] : vector<8x128xf32> to vector<8xf32>
    %175 = vector.shape_cast %174 : vector<8xf32> to vector<8x1xf32>
    %c0_80 = arith.constant 0 : index
    %c19 = arith.constant 19 : index
    %c0_81 = arith.constant 0 : index
    %176 = vector.load %arg3[%c0_80, %c19, %c0_81] : memref<1x37x128xf32, #tpu.memory_space<vmem>>, vector<1x8x128xf32>
    %177 = vector.shape_cast %176 : vector<1x8x128xf32> to vector<8x128xf32>
    %178 = arith.addf %3, %177 : vector<8x128xf32>
    %cst_82 = arith.constant 0.000000e+00 : f32
    %179 = vector.broadcast %cst_82 : f32 to vector<8x128xf32>
    %180 = arith.maximumf %178, %179 : vector<8x128xf32>
    %181 = vector.broadcast %4 : vector<1x128xf32> to vector<8x128xf32>
    %182 = arith.mulf %180, %181 : vector<8x128xf32>
    %cst_83 = arith.constant dense<0.000000e+00> : vector<8xf32>
    %183 = vector.multi_reduction <add>, %182, %cst_83 [1] : vector<8x128xf32> to vector<8xf32>
    %184 = vector.shape_cast %183 : vector<8xf32> to vector<8x1xf32>
    %c0_84 = arith.constant 0 : index
    %c20 = arith.constant 20 : index
    %c0_85 = arith.constant 0 : index
    %185 = vector.load %arg3[%c0_84, %c20, %c0_85] : memref<1x37x128xf32, #tpu.memory_space<vmem>>, vector<1x8x128xf32>
    %186 = vector.shape_cast %185 : vector<1x8x128xf32> to vector<8x128xf32>
    %187 = arith.addf %3, %186 : vector<8x128xf32>
    %cst_86 = arith.constant 0.000000e+00 : f32
    %188 = vector.broadcast %cst_86 : f32 to vector<8x128xf32>
    %189 = arith.maximumf %187, %188 : vector<8x128xf32>
    %190 = vector.broadcast %4 : vector<1x128xf32> to vector<8x128xf32>
    %191 = arith.mulf %189, %190 : vector<8x128xf32>
    %cst_87 = arith.constant dense<0.000000e+00> : vector<8xf32>
    %192 = vector.multi_reduction <add>, %191, %cst_87 [1] : vector<8x128xf32> to vector<8xf32>
    %193 = vector.shape_cast %192 : vector<8xf32> to vector<8x1xf32>
    %c0_88 = arith.constant 0 : index
    %c21 = arith.constant 21 : index
    %c0_89 = arith.constant 0 : index
    %194 = vector.load %arg3[%c0_88, %c21, %c0_89] : memref<1x37x128xf32, #tpu.memory_space<vmem>>, vector<1x8x128xf32>
    %195 = vector.shape_cast %194 : vector<1x8x128xf32> to vector<8x128xf32>
    %196 = arith.addf %3, %195 : vector<8x128xf32>
    %cst_90 = arith.constant 0.000000e+00 : f32
    %197 = vector.broadcast %cst_90 : f32 to vector<8x128xf32>
    %198 = arith.maximumf %196, %197 : vector<8x128xf32>
    %199 = vector.broadcast %4 : vector<1x128xf32> to vector<8x128xf32>
    %200 = arith.mulf %198, %199 : vector<8x128xf32>
    %cst_91 = arith.constant dense<0.000000e+00> : vector<8xf32>
    %201 = vector.multi_reduction <add>, %200, %cst_91 [1] : vector<8x128xf32> to vector<8xf32>
    %202 = vector.shape_cast %201 : vector<8xf32> to vector<8x1xf32>
    %c0_92 = arith.constant 0 : index
    %c22 = arith.constant 22 : index
    %c0_93 = arith.constant 0 : index
    %203 = vector.load %arg3[%c0_92, %c22, %c0_93] : memref<1x37x128xf32, #tpu.memory_space<vmem>>, vector<1x8x128xf32>
    %204 = vector.shape_cast %203 : vector<1x8x128xf32> to vector<8x128xf32>
    %205 = arith.addf %3, %204 : vector<8x128xf32>
    %cst_94 = arith.constant 0.000000e+00 : f32
    %206 = vector.broadcast %cst_94 : f32 to vector<8x128xf32>
    %207 = arith.maximumf %205, %206 : vector<8x128xf32>
    %208 = vector.broadcast %4 : vector<1x128xf32> to vector<8x128xf32>
    %209 = arith.mulf %207, %208 : vector<8x128xf32>
    %cst_95 = arith.constant dense<0.000000e+00> : vector<8xf32>
    %210 = vector.multi_reduction <add>, %209, %cst_95 [1] : vector<8x128xf32> to vector<8xf32>
    %211 = vector.shape_cast %210 : vector<8xf32> to vector<8x1xf32>
    %c0_96 = arith.constant 0 : index
    %c23 = arith.constant 23 : index
    %c0_97 = arith.constant 0 : index
    %212 = vector.load %arg3[%c0_96, %c23, %c0_97] : memref<1x37x128xf32, #tpu.memory_space<vmem>>, vector<1x8x128xf32>
    %213 = vector.shape_cast %212 : vector<1x8x128xf32> to vector<8x128xf32>
    %214 = arith.addf %3, %213 : vector<8x128xf32>
    %cst_98 = arith.constant 0.000000e+00 : f32
    %215 = vector.broadcast %cst_98 : f32 to vector<8x128xf32>
    %216 = arith.maximumf %214, %215 : vector<8x128xf32>
    %217 = vector.broadcast %4 : vector<1x128xf32> to vector<8x128xf32>
    %218 = arith.mulf %216, %217 : vector<8x128xf32>
    %cst_99 = arith.constant dense<0.000000e+00> : vector<8xf32>
    %219 = vector.multi_reduction <add>, %218, %cst_99 [1] : vector<8x128xf32> to vector<8xf32>
    %220 = vector.shape_cast %219 : vector<8xf32> to vector<8x1xf32>
    %c0_100 = arith.constant 0 : index
    %c24 = arith.constant 24 : index
    %c0_101 = arith.constant 0 : index
    %221 = vector.load %arg3[%c0_100, %c24, %c0_101] : memref<1x37x128xf32, #tpu.memory_space<vmem>>, vector<1x8x128xf32>
    %222 = vector.shape_cast %221 : vector<1x8x128xf32> to vector<8x128xf32>
    %223 = arith.addf %3, %222 : vector<8x128xf32>
    %cst_102 = arith.constant 0.000000e+00 : f32
    %224 = vector.broadcast %cst_102 : f32 to vector<8x128xf32>
    %225 = arith.maximumf %223, %224 : vector<8x128xf32>
    %226 = vector.broadcast %4 : vector<1x128xf32> to vector<8x128xf32>
    %227 = arith.mulf %225, %226 : vector<8x128xf32>
    %cst_103 = arith.constant dense<0.000000e+00> : vector<8xf32>
    %228 = vector.multi_reduction <add>, %227, %cst_103 [1] : vector<8x128xf32> to vector<8xf32>
    %229 = vector.shape_cast %228 : vector<8xf32> to vector<8x1xf32>
    %c0_104 = arith.constant 0 : index
    %c25 = arith.constant 25 : index
    %c0_105 = arith.constant 0 : index
    %230 = vector.load %arg3[%c0_104, %c25, %c0_105] : memref<1x37x128xf32, #tpu.memory_space<vmem>>, vector<1x8x128xf32>
    %231 = vector.shape_cast %230 : vector<1x8x128xf32> to vector<8x128xf32>
    %232 = arith.addf %3, %231 : vector<8x128xf32>
    %cst_106 = arith.constant 0.000000e+00 : f32
    %233 = vector.broadcast %cst_106 : f32 to vector<8x128xf32>
    %234 = arith.maximumf %232, %233 : vector<8x128xf32>
    %235 = vector.broadcast %4 : vector<1x128xf32> to vector<8x128xf32>
    %236 = arith.mulf %234, %235 : vector<8x128xf32>
    %cst_107 = arith.constant dense<0.000000e+00> : vector<8xf32>
    %237 = vector.multi_reduction <add>, %236, %cst_107 [1] : vector<8x128xf32> to vector<8xf32>
    %238 = vector.shape_cast %237 : vector<8xf32> to vector<8x1xf32>
    %c0_108 = arith.constant 0 : index
    %c26 = arith.constant 26 : index
    %c0_109 = arith.constant 0 : index
    %239 = vector.load %arg3[%c0_108, %c26, %c0_109] : memref<1x37x128xf32, #tpu.memory_space<vmem>>, vector<1x8x128xf32>
    %240 = vector.shape_cast %239 : vector<1x8x128xf32> to vector<8x128xf32>
    %241 = arith.addf %3, %240 : vector<8x128xf32>
    %cst_110 = arith.constant 0.000000e+00 : f32
    %242 = vector.broadcast %cst_110 : f32 to vector<8x128xf32>
    %243 = arith.maximumf %241, %242 : vector<8x128xf32>
    %244 = vector.broadcast %4 : vector<1x128xf32> to vector<8x128xf32>
    %245 = arith.mulf %243, %244 : vector<8x128xf32>
    %cst_111 = arith.constant dense<0.000000e+00> : vector<8xf32>
    %246 = vector.multi_reduction <add>, %245, %cst_111 [1] : vector<8x128xf32> to vector<8xf32>
    %247 = vector.shape_cast %246 : vector<8xf32> to vector<8x1xf32>
    %c0_112 = arith.constant 0 : index
    %c27 = arith.constant 27 : index
    %c0_113 = arith.constant 0 : index
    %248 = vector.load %arg3[%c0_112, %c27, %c0_113] : memref<1x37x128xf32, #tpu.memory_space<vmem>>, vector<1x8x128xf32>
    %249 = vector.shape_cast %248 : vector<1x8x128xf32> to vector<8x128xf32>
    %250 = arith.addf %3, %249 : vector<8x128xf32>
    %cst_114 = arith.constant 0.000000e+00 : f32
    %251 = vector.broadcast %cst_114 : f32 to vector<8x128xf32>
    %252 = arith.maximumf %250, %251 : vector<8x128xf32>
    %253 = vector.broadcast %4 : vector<1x128xf32> to vector<8x128xf32>
    %254 = arith.mulf %252, %253 : vector<8x128xf32>
    %cst_115 = arith.constant dense<0.000000e+00> : vector<8xf32>
    %255 = vector.multi_reduction <add>, %254, %cst_115 [1] : vector<8x128xf32> to vector<8xf32>
    %256 = vector.shape_cast %255 : vector<8xf32> to vector<8x1xf32>
    %c0_116 = arith.constant 0 : index
    %c28 = arith.constant 28 : index
    %c0_117 = arith.constant 0 : index
    %257 = vector.load %arg3[%c0_116, %c28, %c0_117] : memref<1x37x128xf32, #tpu.memory_space<vmem>>, vector<1x8x128xf32>
    %258 = vector.shape_cast %257 : vector<1x8x128xf32> to vector<8x128xf32>
    %259 = arith.addf %3, %258 : vector<8x128xf32>
    %cst_118 = arith.constant 0.000000e+00 : f32
    %260 = vector.broadcast %cst_118 : f32 to vector<8x128xf32>
    %261 = arith.maximumf %259, %260 : vector<8x128xf32>
    %262 = vector.broadcast %4 : vector<1x128xf32> to vector<8x128xf32>
    %263 = arith.mulf %261, %262 : vector<8x128xf32>
    %cst_119 = arith.constant dense<0.000000e+00> : vector<8xf32>
    %264 = vector.multi_reduction <add>, %263, %cst_119 [1] : vector<8x128xf32> to vector<8xf32>
    %265 = vector.shape_cast %264 : vector<8xf32> to vector<8x1xf32>
    %c0_120 = arith.constant 0 : index
    %c29 = arith.constant 29 : index
    %c0_121 = arith.constant 0 : index
    %266 = vector.load %arg3[%c0_120, %c29, %c0_121] : memref<1x37x128xf32, #tpu.memory_space<vmem>>, vector<1x8x128xf32>
    %267 = vector.shape_cast %266 : vector<1x8x128xf32> to vector<8x128xf32>
    %268 = arith.addf %3, %267 : vector<8x128xf32>
    %cst_122 = arith.constant 0.000000e+00 : f32
    %269 = vector.broadcast %cst_122 : f32 to vector<8x128xf32>
    %270 = arith.maximumf %268, %269 : vector<8x128xf32>
    %271 = vector.broadcast %4 : vector<1x128xf32> to vector<8x128xf32>
    %272 = arith.mulf %270, %271 : vector<8x128xf32>
    %cst_123 = arith.constant dense<0.000000e+00> : vector<8xf32>
    %273 = vector.multi_reduction <add>, %272, %cst_123 [1] : vector<8x128xf32> to vector<8xf32>
    %274 = vector.shape_cast %273 : vector<8xf32> to vector<8x1xf32>
    %275 = tpu.concatenate %13, %22, %31, %40, %49, %58, %67, %76, %85, %94, %103, %112, %121, %130, %139, %148 in 1 : vector<8x1xf32>, vector<8x1xf32>, vector<8x1xf32>, vector<8x1xf32>, vector<8x1xf32>, vector<8x1xf32>, vector<8x1xf32>, vector<8x1xf32>, vector<8x1xf32>, vector<8x1xf32>, vector<8x1xf32>, vector<8x1xf32>, vector<8x1xf32>, vector<8x1xf32>, vector<8x1xf32>, vector<8x1xf32> -> vector<8x16xf32>
    %276 = tpu.concatenate %157, %166, %175, %184, %193, %202, %211, %220, %229, %238, %247, %256, %265, %274 in 1 : vector<8x1xf32>, vector<8x1xf32>, vector<8x1xf32>, vector<8x1xf32>, vector<8x1xf32>, vector<8x1xf32>, vector<8x1xf32>, vector<8x1xf32>, vector<8x1xf32>, vector<8x1xf32>, vector<8x1xf32>, vector<8x1xf32>, vector<8x1xf32>, vector<8x1xf32> -> vector<8x14xf32>
    %277 = tpu.concatenate %275, %276 in 1 : vector<8x16xf32>, vector<8x14xf32> -> vector<8x30xf32>
    %c0_124 = arith.constant 0 : index
    %c0_125 = arith.constant 0 : index
    %278 = vector.load %arg5[%c0_124, %c0_125] : memref<1x1xf32, #tpu.memory_space<vmem>>, vector<1x1xf32>
    %279 = vector.broadcast %278 : vector<1x1xf32> to vector<8x30xf32>
    %280 = arith.addf %277, %279 : vector<8x30xf32>
    %281 = tpu.iota {dimensions = array<i32: 0>} : vector<8x30xi32>
    %282 = tpu.iota {dimensions = array<i32: 1>} : vector<8x30xi32>
    %283 = arith.addi %281, %282 : vector<8x30xi32>
    %284 = vector.broadcast %1 : i32 to vector<8x30xi32>
    %285 = arith.cmpi slt, %283, %284 : vector<8x30xi32>
    %286 = arith.extui %285 : vector<8x30xi1> to vector<8x30xi32>
    %287 = arith.sitofp %286 : vector<8x30xi32> to vector<8x30xf32>
    %288 = arith.mulf %280, %287 : vector<8x30xf32>
    %cst_126 = arith.constant dense<0xFF800000> : vector<8xf32>
    %289 = vector.multi_reduction <maximumf>, %288, %cst_126 [1] : vector<8x30xf32> to vector<8xf32>
    %290 = vector.shape_cast %289 : vector<8xf32> to vector<8x1xf32>
    %cst_127 = arith.constant dense<0xFF800000> : vector<1xf32>
    %291 = vector.multi_reduction <maximumf>, %290, %cst_127 [0] : vector<8x1xf32> to vector<1xf32>
    %292 = vector.shape_cast %291 : vector<1xf32> to vector<1x1xf32>
    %293 = vector.broadcast %292 : vector<1x1xf32> to vector<8x30xf32>
    %294 = arith.subf %288, %293 : vector<8x30xf32>
    %295 = math.exp %294 : vector<8x30xf32>
    %cst_128 = arith.constant dense<0.000000e+00> : vector<8xf32>
    %296 = vector.multi_reduction <add>, %295, %cst_128 [1] : vector<8x30xf32> to vector<8xf32>
    %297 = vector.shape_cast %296 : vector<8xf32> to vector<8x1xf32>
    %cst_129 = arith.constant dense<0.000000e+00> : vector<1xf32>
    %298 = vector.multi_reduction <add>, %297, %cst_129 [0] : vector<8x1xf32> to vector<1xf32>
    %299 = vector.shape_cast %298 : vector<1xf32> to vector<1x1xf32>
    %300 = vector.broadcast %292 : vector<1x1xf32> to vector<8x30xf32>
    %301 = arith.subf %288, %300 : vector<8x30xf32>
    %302 = math.log %299 : vector<1x1xf32>
    %303 = vector.broadcast %302 : vector<1x1xf32> to vector<8x30xf32>
    %304 = arith.subf %301, %303 : vector<8x30xf32>
    %c0_130 = arith.constant 0 : index
    %c0_131 = arith.constant 0 : index
    %c0_132 = arith.constant 0 : index
    %305 = vector.load %arg6[%c0_130, %c0_131, %c0_132] : memref<1x8x30xf32, #tpu.memory_space<vmem>>, vector<1x8x30xf32>
    %306 = vector.shape_cast %305 : vector<1x8x30xf32> to vector<8x30xf32>
    %307 = vector.shape_cast %304 : vector<8x30xf32> to vector<1x8x30xf32>
    tpu.vector_store %arg6[%c0_130, %c0_131, %c0_132], %307 {strides = array<i32>} : memref<1x8x30xf32, #tpu.memory_space<vmem>>, vector<1x8x30xf32>,
    return
  }
  func.func @transform_0(%arg0: i32, %arg1: memref<2xi32, #tpu.memory_space<smem>>) -> (i32, i32, i32) {
    %c0_i32 = arith.constant 0 : i32
    %c0_i32_0 = arith.constant 0 : i32
    %c0_i32_1 = arith.constant 0 : i32
    return %arg0, %c0_i32, %c0_i32_0 : i32, i32, i32
  }
  func.func @transform_1(%arg0: i32, %arg1: memref<2xi32, #tpu.memory_space<smem>>) -> (i32, i32, i32) {
    %c0_i32 = arith.constant 0 : i32
    %c0_i32_0 = arith.constant 0 : i32
    %c0_i32_1 = arith.constant 0 : i32
    return %arg0, %c0_i32, %c0_i32_0 : i32, i32, i32
  }
  func.func @transform_2(%arg0: i32, %arg1: memref<2xi32, #tpu.memory_space<smem>>) -> (i32, i32) {
    %c0_i32 = arith.constant 0 : i32
    %c0_i32_0 = arith.constant 0 : i32
    %c0_i32_1 = arith.constant 0 : i32
    return %c0_i32, %c0_i32_0 : i32, i32
  }
  func.func @transform_3(%arg0: i32, %arg1: memref<2xi32, #tpu.memory_space<smem>>) -> (i32, i32) {
    %c0_i32 = arith.constant 0 : i32
    %c0_i32_0 = arith.constant 0 : i32
    %c0_i32_1 = arith.constant 0 : i32
    return %c0_i32, %c0_i32_0 : i32, i32
  }
  func.func @transform_4(%arg0: i32, %arg1: memref<2xi32, #tpu.memory_space<smem>>) -> (i32, i32, i32) {
    %c0_i32 = arith.constant 0 : i32
    %c0_i32_0 = arith.constant 0 : i32
    %c0_i32_1 = arith.constant 0 : i32
    return %arg0, %c0_i32, %c0_i32_0 : i32, i32, i32
  }
}

</mosaic_0001>

<llo_original>
// kernel: net_forward.20
$region0: #{net_forward.20}
  #allocation0 [shape = 'u32[]', space=smem, size = 0x4, offset = 0x4, fixed_abs, tag = 'smem constant byte address 0x4 - core index']
  #allocation1 [shape = 'u32[144,128]{1,0:T(1,128)}', space=vmem, size = 0x12000, scoped, tag = 'internal scratch']
  #allocation2 [shape = 'f32[2,128]{1,0:T(2,128)}', space=vmem, size = 0x400, scoped, tag = 'scratch operand']
  #allocation3 [shape = 'f32[2,128]{1,0:T(2,128)}', space=vmem, size = 0x400, scoped, tag = 'scratch operand']
  %s0 = inlined_call_operand.vmem [shape: f32[6,2,1024], index: 0, kind: input, shape index: {}]
  %s1 = inlined_call_operand.vmem [shape: f32[2,128,512], index: 1, kind: input, shape index: {}]
  %s2 = inlined_call_operand.vmem [shape: f32[2,2,128], index: 2, kind: input, shape index: {}]
  %s3 = inlined_call_operand.vmem [shape: f32[2,2,128], index: 3, kind: input, shape index: {}]
  %s4 = inlined_call_operand.vmem [shape: s32[2,1], index: 4, kind: input, shape index: {}]
  %s5 = inlined_call_operand.vmem [shape: f32[6,2,256], index: 5, kind: output, shape index: {}]
  %s6 = sld [smem:[#allocation0]]
  $region135: #{net_forward.20} parent=0
    _
  %s8 = ssub.s32 1, %s6
  %s9 = scalar_select 0, %s8, %s6
  $region1: #{net_forward.20} parent=0
    #allocation4 [shape = 'u8[49152]{0}', space=vmem, size = 0xc000, scoped, tag = 'input window, operand 0']
    #allocation5 [shape = 'u8[12288]{0}', space=vmem, size = 0x3000, scoped, tag = 'output window, operand 0']
    loop: start=0, step=1, limit=4
    $region2: #{net_forward.20} parent=1 // loop_pre_header
      _
    $region3: #{net_forward.20} parent=1 // loop_header
      %s11 = sphi 0, %s15
      %p12 = scmp.ge.s32.totalorder %s11, 4
      %s21 = sphi 0, %s23
      %s24 = sphi 0, %s21
      %s25 = sphi 0, %s24
      %s41 = sphi 0, %s25
      %s47 = sphi 0, %s49
      %s50 = sphi 0, %s47
      %s51 = sphi 0, %s50
      %s67 = sphi 0, %s51
      %s73 = sphi 0, %s75
      %s76 = sphi 0, %s73
      %s77 = sphi 0, %s76
      %s93 = sphi 0, %s77
      %s99 = sphi 0, %s101
      %s102 = sphi 0, %s99
      %s103 = sphi 0, %s102
      %s119 = sphi 0, %s103
      %s123 = sphi 0, %s123
      %s125 = sphi 0, %s123
      %s126 = sphi 0, %s125
      %s140 = sphi 0, %s126
      %s146 = sphi 0, %s148
      %s149 = sphi 0, %s146
      %s150 = sphi 0, %s149
      %s166 = sphi 0, %s150
    $region4: #{net_forward.20} parent=1 // loop_header_branch
      %14 = sbr.rel (%p12) target = $region8
    $region5: #{net_forward.20} parent=1 // loop_body
      %s16 = ssub.s32 %s11, 1
      %s17 = ssub.s32 %s11, 2
      %s18 = sadd.s32 %s11, 1
      %s19 = ssub.s32 %s11, %s18
      %p20 = scmp.eq.s32.totalorder %s19, 0
      %s22 = sadd.s32 %s21, 1
      %s23 = scalar_select %p20, %s21, %s22
      %p26 = pneg %p20
      %p27 = scmp.eq.s32.totalorder %s11, 1
      %p28 = por %p26, %p27
      %p29 = scmp.ne.s32.totalorder %s21, %s24
      %p30 = scmp.eq.s32.totalorder %s11, 0
      %p31 = por %p29, %p30
      %p32 = scmp.ne.s32.totalorder %s21, %s24
      %p33 = scmp.eq.s32.totalorder %s16, 1
      %p34 = por %p32, %p33
      %p35 = scmp.ne.s32.totalorder %s24, %s25
      %p36 = scmp.eq.s32.totalorder %s16, 0
      %p37 = por %p35, %p36
      %p38 = scmp.ne.s32.totalorder %s24, %s25
      %p39 = scmp.eq.s32.totalorder %s17, 1
      %p40 = por %p38, %p39
      %p42 = scmp.ne.s32.totalorder %s25, %s41
      %p43 = scmp.eq.s32.totalorder %s17, 0
      %p44 = por %p42, %p43
      %s45 = ssub.s32 %s11, %s18
      %p46 = scmp.eq.s32.totalorder %s45, 0
      %s48 = sadd.s32 %s47, 1
      %s49 = scalar_select %p46, %s47, %s48
      %p52 = pneg %p46
      %p53 = scmp.eq.s32.totalorder %s11, 1
      %p54 = por %p52, %p53
      %p55 = scmp.ne.s32.totalorder %s47, %s50
      %p56 = scmp.eq.s32.totalorder %s11, 0
      %p57 = por %p55, %p56
      %p58 = scmp.ne.s32.totalorder %s47, %s50
      %p59 = scmp.eq.s32.totalorder %s16, 1
      %p60 = por %p58, %p59
      %p61 = scmp.ne.s32.totalorder %s50, %s51
      %p62 = scmp.eq.s32.totalorder %s16, 0
      %p63 = por %p61, %p62
      %p64 = scmp.ne.s32.totalorder %s50, %s51
      %p65 = scmp.eq.s32.totalorder %s17, 1
      %p66 = por %p64, %p65
      %p68 = scmp.ne.s32.totalorder %s51, %s67
      %p69 = scmp.eq.s32.totalorder %s17, 0
      %p70 = por %p68, %p69
      %s71 = ssub.s32 %s11, %s18
      %p72 = scmp.eq.s32.totalorder %s71, 0
      %s74 = sadd.s32 %s73, 1
      %s75 = scalar_select %p72, %s73, %s74
      %p78 = pneg %p72
      %p79 = scmp.eq.s32.totalorder %s11, 1
      %p80 = por %p78, %p79
      %p81 = scmp.ne.s32.totalorder %s73, %s76
      %p82 = scmp.eq.s32.totalorder %s11, 0
      %p83 = por %p81, %p82
      %p84 = scmp.ne.s32.totalorder %s73, %s76
      %p85 = scmp.eq.s32.totalorder %s16, 1
      %p86 = por %p84, %p85
      %p87 = scmp.ne.s32.totalorder %s76, %s77
      %p88 = scmp.eq.s32.totalorder %s16, 0
      %p89 = por %p87, %p88
      %p90 = scmp.ne.s32.totalorder %s76, %s77
      %p91 = scmp.eq.s32.totalorder %s17, 1
      %p92 = por %p90, %p91
      %p94 = scmp.ne.s32.totalorder %s77, %s93
      %p95 = scmp.eq.s32.totalorder %s17, 0
      %p96 = por %p94, %p95
      %s97 = ssub.s32 %s11, %s18
      %p98 = scmp.eq.s32.totalorder %s97, 0
      %s100 = sadd.s32 %s99, 1
      %s101 = scalar_select %p98, %s99, %s100
      %p104 = pneg %p98
      %p105 = scmp.eq.s32.totalorder %s11, 1
      %p106 = por %p104, %p105
      %p107 = scmp.ne.s32.totalorder %s99, %s102
      %p108 = scmp.eq.s32.totalorder %s11, 0
      %p109 = por %p107, %p108
      %p110 = scmp.ne.s32.totalorder %s99, %s102
      %p111 = scmp.eq.s32.totalorder %s16, 1
      %p112 = por %p110, %p111
      %p113 = scmp.ne.s32.totalorder %s102, %s103
      %p114 = scmp.eq.s32.totalorder %s16, 0
      %p115 = por %p113, %p114
      %p116 = scmp.ne.s32.totalorder %s102, %s103
      %p117 = scmp.eq.s32.totalorder %s17, 1
      %p118 = por %p116, %p117
      %p120 = scmp.ne.s32.totalorder %s103, %s119
      %p121 = scmp.eq.s32.totalorder %s17, 0
      %p122 = por %p120, %p121
      %s124 = sadd.s32 %s123, 1
      %p127 = scmp.eq.s32.totalorder %s11, 1
      %p128 = scmp.ne.s32.totalorder %s123, %s125
      %p129 = scmp.eq.s32.totalorder %s11, 0
      %p130 = por %p128, %p129
      %p131 = scmp.ne.s32.totalorder %s123, %s125
      %p132 = scmp.eq.s32.totalorder %s16, 1
      %p133 = por %p131, %p132
      %p134 = scmp.ne.s32.totalorder %s125, %s126
      %p135 = scmp.eq.s32.totalorder %s16, 0
      %p136 = por %p134, %p135
      %p137 = scmp.ne.s32.totalorder %s125, %s126
      %p138 = scmp.eq.s32.totalorder %s17, 1
      %p139 = por %p137, %p138
      %p141 = scmp.ne.s32.totalorder %s126, %s140
      %p142 = scmp.eq.s32.totalorder %s17, 0
      %p143 = por %p141, %p142
      %s144 = ssub.s32 %s11, %s18
      %p145 = scmp.eq.s32.totalorder %s144, 0
      %s147 = sadd.s32 %s146, 1
      %s148 = scalar_select %p145, %s146, %s147
      %p151 = pneg %p145
      %p152 = scmp.eq.s32.totalorder %s11, 1
      %p153 = por %p151, %p152
      %p154 = scmp.ne.s32.totalorder %s146, %s149
      %p155 = scmp.eq.s32.totalorder %s11, 0
      %p156 = por %p154, %p155
      %p157 = scmp.ne.s32.totalorder %s146, %s149
      %p158 = scmp.eq.s32.totalorder %s16, 1
      %p159 = por %p157, %p158
      %p160 = scmp.ne.s32.totalorder %s149, %s150
      %p161 = scmp.eq.s32.totalorder %s16, 0
      %p162 = por %p160, %p161
      %p163 = scmp.ne.s32.totalorder %s149, %s150
      %p164 = scmp.eq.s32.totalorder %s17, 1
      %p165 = por %p163, %p164
      %p167 = scmp.ne.s32.totalorder %s150, %s166
      %p168 = scmp.eq.s32.totalorder %s17, 0
      %p169 = por %p167, %p168
      %p170 = scmp.le.s32.totalorder 1, %s11
      %p171 = scmp.lt.s32.totalorder %s11, 3
      %p172 = pnand %p170, %p171
      %p173 = pneg %p172
      // Predicated region
      $region9: #{net_forward.20} parent=5 // pred_check
        _
      $region10: #{net_forward.20} parent=5 // pred_check_branch
        %175 = sbr.rel (%p172) target = $region12
      $region11: #{net_forward.20} parent=5 // pred_region
        %s176 = ssub.s32 %s11, 1
        // Predicated region
        $region13: #{net_forward.20} parent=11 // pred_check
          %p177 = pneg %p136
        $region14: #{net_forward.20} parent=11 // pred_check_branch
          %179 = sbr.rel (%p177) target = $region16
        $region15: #{net_forward.20} parent=11 // pred_region
          _
        $region16: #{net_forward.20} parent=11 // pred_fallthru
          _
      $region12: #{net_forward.20} parent=5 // pred_fallthru
        _
      %p180 = scmp.lt.s32.totalorder %s11, 2
      // Predicated region
      $region17: #{net_forward.20} parent=5 // pred_check
        %p181 = pneg %p180
      $region18: #{net_forward.20} parent=5 // pred_check_branch
        %183 = sbr.rel (%p181) target = $region20
      $region19: #{net_forward.20} parent=5 // pred_region
        // Predicated region
        $region21: #{net_forward.20} parent=19 // pred_check
          %p184 = pneg %p31
        $region22: #{net_forward.20} parent=19 // pred_check_branch
          %186 = sbr.rel (%p184) target = $region24
        $region23: #{net_forward.20} parent=19 // pred_region
          %s187 = sand.u32 %s21, 1
          %s188 = sand.u32 %s21, 1
          %s189 = smul.addr %s188, 48
          %s190 = scalar_lea.vmem [#allocation4], %s189
          %s191 = smul.u32 4, %s11
          %s192 = smul.addr %s191, 2
          %s193 = scalar_lea.vmem %s0, %s192
          // Predicated region
          $region25: #{net_forward.20} parent=23 // pred_check
            _
          $region26: #{net_forward.20} parent=23 // pred_check_branch
            %195 = sbr.rel (0) target = $region28
          $region27: #{net_forward.20} parent=23 // pred_region
            // Predicated region
            $region29: #{net_forward.20} parent=27 // pred_check
              _
            $region30: #{net_forward.20} parent=27 // pred_check_branch
              %197 = sbr.rel (0) target = $region32
            $region31: #{net_forward.20} parent=27 // pred_region
              // Predicated region
              $region44: #{net_forward.20} parent=31 // pred_check
                _
              $region45: #{net_forward.20} parent=31 // pred_check_branch
                %222 = sbr.rel (0) target = $region47
              $region46: #{net_forward.20} parent=31 // pred_region
                loop: start=0, step=1, limit=1
                $region48: #{net_forward.20} parent=46 // loop_pre_header
                  _
                $region49: #{net_forward.20} parent=46 // loop_header
                  %s224 = sphi 0, %s228
                  %p225 = scmp.ge.s32.totalorder %s224, 1
                  %s229 = sphi %s193, %s193
                  %s230 = sphi %s190, %s190
                $region50: #{net_forward.20} parent=46 // loop_header_branch
                  %227 = sbr.rel (%p225) target = $region54
                $region51: #{net_forward.20} parent=46 // loop_body
                  %v231 = vld [vmem:[%s229] sm:$0xff]
                  %232 = vst [vmem:[%s230] sm:$0xff] %v231
                  %v233 = vld [vmem:[%s229 + $0x10] sm:$0xff]
                  %234 = vst [vmem:[%s230 + $0x8] sm:$0xff] %v233
                  %v235 = vld [vmem:[%s229 + $0x20] sm:$0xff]
                  %236 = vst [vmem:[%s230 + $0x10] sm:$0xff] %v235
                  %v237 = vld [vmem:[%s229 + $0x30] sm:$0xff]
                  %238 = vst [vmem:[%s230 + $0x18] sm:$0xff] %v237
                  %v239 = vld [vmem:[%s229 + $0x40] sm:$0xff]
                  %240 = vst [vmem:[%s230 + $0x20] sm:$0xff] %v239
                  %v241 = vld [vmem:[%s229 + $0x50] sm:$0xff]
                  %242 = vst [vmem:[%s230 + $0x28] sm:$0xff] %v241
                $region52: #{net_forward.20} parent=46 // loop_footer
                  %s228 = sadd.s32 1, %s224
                $region53: #{net_forward.20} parent=46 // loop_footer_branch
                  %223 = sbr.rel target = $region49
                $region54: #{net_forward.20} parent=46 // loop_exit
                  _
              $region47: #{net_forward.20} parent=31 // pred_fallthru
                _
              // Predicated region
              $region55: #{net_forward.20} parent=31 // pred_check
                _
              $region56: #{net_forward.20} parent=31 // pred_check_branch
                %244 = sbr.rel target = $region58
              $region57: #{net_forward.20} parent=31 // pred_region
                _
              $region58: #{net_forward.20} parent=31 // pred_fallthru
                _
            $region32: #{net_forward.20} parent=27 // pred_fallthru
              _
            // Predicated region
            $region33: #{net_forward.20} parent=27 // pred_check
              _
            $region34: #{net_forward.20} parent=27 // pred_check_branch
              %199 = sbr.rel target = $region36
            $region35: #{net_forward.20} parent=27 // pred_region
              loop: start=0, step=1, limit=1
              $region37: #{net_forward.20} parent=35 // loop_pre_header
                _
              $region38: #{net_forward.20} parent=35 // loop_header
                %s202 = sphi 0, %s206
                %p203 = scmp.ge.s32.totalorder %s202, 1
                %s207 = sphi %s193, %s193
                %s208 = sphi %s190, %s190
              $region39: #{net_forward.20} parent=35 // loop_header_branch
                %205 = sbr.rel (%p203) target = $region43
              $region40: #{net_forward.20} parent=35 // loop_body
                %v209 = vld [vmem:[%s207] sm:$0xff]
                %210 = vst [vmem:[%s208] sm:$0xff] %v209
                %v211 = vld [vmem:[%s207 + $0x10] sm:$0xff]
                %212 = vst [vmem:[%s208 + $0x8] sm:$0xff] %v211
                %v213 = vld [vmem:[%s207 + $0x20] sm:$0xff]
                %214 = vst [vmem:[%s208 + $0x10] sm:$0xff] %v213
                %v215 = vld [vmem:[%s207 + $0x30] sm:$0xff]
                %216 = vst [vmem:[%s208 + $0x18] sm:$0xff] %v215
                %v217 = vld [vmem:[%s207 + $0x40] sm:$0xff]
                %218 = vst [vmem:[%s208 + $0x20] sm:$0xff] %v217
                %v219 = vld [vmem:[%s207 + $0x50] sm:$0xff]
                %220 = vst [vmem:[%s208 + $0x28] sm:$0xff] %v219
              $region41: #{net_forward.20} parent=35 // loop_footer
                %s206 = sadd.s32 1, %s202
              $region42: #{net_forward.20} parent=35 // loop_footer_branch
                %201 = sbr.rel target = $region38
              $region43: #{net_forward.20} parent=35 // loop_exit
                _
            $region36: #{net_forward.20} parent=27 // pred_fallthru
              _
          $region28: #{net_forward.20} parent=23 // pred_fallthru
            _
          %245 = vnop
        $region24: #{net_forward.20} parent=19 // pred_fallthru
          _
        // Predicated region
        $region59: #{net_forward.20} parent=19 // pred_check
          %p246 = pneg %p57
        $region60: #{net_forward.20} parent=19 // pred_check_branch
          %248 = sbr.rel (%p246) target = $region62
        $region61: #{net_forward.20} parent=19 // pred_region
          %p249 = scmp.lt.s32.totalorder %s11, 1
          %s250 = scalar_select %p249, %s11, 1
          %s251 = smul.addr %s250, 64
          %s252 = smul.addr %s251, 8
          %s253 = scalar_lea.vmem %s1, %s252
        $region62: #{net_forward.20} parent=19 // pred_fallthru
          _
        // Predicated region
        $region63: #{net_forward.20} parent=19 // pred_check
          %p254 = pneg %p83
        $region64: #{net_forward.20} parent=19 // pred_check_branch
          %256 = sbr.rel (%p254) target = $region66
        $region65: #{net_forward.20} parent=19 // pred_region
          %p257 = scmp.lt.s32.totalorder %s11, 1
          %s258 = scalar_select %p257, %s11, 1
          %s259 = smul.addr %s258, 2
          %s260 = scalar_lea.vmem %s2, %s259
        $region66: #{net_forward.20} parent=19 // pred_fallthru
          _
        // Predicated region
        $region67: #{net_forward.20} parent=19 // pred_check
          %p261 = pneg %p109
        $region68: #{net_forward.20} parent=19 // pred_check_branch
          %263 = sbr.rel (%p261) target = $region70
        $region69: #{net_forward.20} parent=19 // pred_region
          %p264 = scmp.lt.s32.totalorder %s11, 1
          %s265 = scalar_select %p264, %s11, 1
          %s266 = smul.addr %s265, 2
          %s267 = scalar_lea.vmem %s3, %s266
        $region70: #{net_forward.20} parent=19 // pred_fallthru
          _
      $region20: #{net_forward.20} parent=5 // pred_fallthru
        _
      %p268 = scmp.le.s32.totalorder 1, %s11
      %p269 = scmp.lt.s32.totalorder %s11, 3
      %p270 = pnand %p268, %p269
      %p271 = pneg %p270
      // Predicated region
      $region71: #{net_forward.20} parent=5 // pred_check
        _
      $region72: #{net_forward.20} parent=5 // pred_check_branch
        %273 = sbr.rel (%p270) target = $region74
      $region73: #{net_forward.20} parent=5 // pred_region
        %s274 = ssub.s32 %s11, 1
        %s275 = sand.u32 %s24, 1
        %s276 = sand.u32 %s24, 1
        %s277 = smul.addr %s276, 48
        %s278 = scalar_lea.vmem [#allocation4], %s277
        // Predicated region
        $region75: #{net_forward.20} parent=73 // pred_check
          %p279 = pneg %p37
        $region76: #{net_forward.20} parent=73 // pred_check_branch
          %281 = sbr.rel (%p279) target = $region78
        $region77: #{net_forward.20} parent=73 // pred_region
          _
        $region78: #{net_forward.20} parent=73 // pred_fallthru
          _
        %s282 = sand.u32 %s24, 1
        %s283 = sand.u32 %s24, 1
        %s284 = smul.addr %s283, 48
        %s285 = scalar_lea.vmem [#allocation4], %s284
        %p286 = pneg %p37
        %p287 = pneg %p34
        %p288 = scmp.lt.s32.totalorder %s16, 1
        %s289 = scalar_select %p288, %s16, 1
        %s290 = smul.addr %s289, 64
        %s291 = smul.addr %s290, 8
        %s292 = scalar_lea.vmem %s1, %s291
        %p293 = pneg %p63
        %p294 = pneg %p60
        %p295 = scmp.lt.s32.totalorder %s16, 1
        %s296 = scalar_select %p295, %s16, 1
        %s297 = smul.addr %s296, 2
        %s298 = scalar_lea.vmem %s2, %s297
        %p299 = pneg %p89
        %p300 = pneg %p86
        %p301 = scmp.lt.s32.totalorder %s16, 1
        %s302 = scalar_select %p301, %s16, 1
        %s303 = smul.addr %s302, 2
        %s304 = scalar_lea.vmem %s3, %s303
        %p305 = pneg %p115
        %p306 = pneg %p112
        %p307 = pneg %p136
        %p308 = pneg %p133
        %p309 = pneg %p162
        %p310 = pneg %p159
        %s311 = sand.u32 %s149, 1
        %s312 = sand.u32 %s149, 1
        %s313 = smul.addr %s312, 12
        %s314 = scalar_lea.vmem [#allocation5], %s313
        %s315 = smul.u32 4, %s16
        %p316 = scmp.lt.s32.totalorder %s16, 1
        %s317 = scalar_select %p316, %s16, 1
        %s318 = smul.addr %s317, 64
        %s319 = smul.addr %s318, 8
        %s320 = scalar_lea.vmem %s1, %s319
        %p321 = scmp.lt.s32.totalorder %s16, 1
        %s322 = scalar_select %p321, %s16, 1
        %s323 = smul.addr %s322, 2
        %s324 = scalar_lea.vmem %s2, %s323
        %p325 = scmp.lt.s32.totalorder %s16, 1
        %s326 = scalar_select %p325, %s16, 1
        %s327 = smul.addr %s326, 2
        %s328 = scalar_lea.vmem %s3, %s327
        %v330 = vld [vmem:[%s324] sm:$0x3]
        %331 = vst [vmem:[#allocation2] sm:$0x3] %v330
        %v332 = vld [vmem:[%s328] sm:$0x3]
        %333 = vst [vmem:[#allocation3] sm:$0x3] %v332
        %v334 = vld [vmem:[%s320] sm:$0xff]
        %v335 = vld [vmem:[%s320 + $0x8] sm:$0xff]
        %v336 = vld [vmem:[%s320 + $0x10] sm:$0xff]
        %v337 = vld [vmem:[%s320 + $0x18] sm:$0xff]
        %v338 = vld [vmem:[%s320 + $0x20] sm:$0xff]
        %v339 = vld [vmem:[%s320 + $0x28] sm:$0xff]
        %v340 = vld [vmem:[%s320 + $0x30] sm:$0xff]
        %v341 = vld [vmem:[%s320 + $0x38] sm:$0xff]
        %v342 = vld [vmem:[%s320 + $0x40] sm:$0xff]
        %v343 = vld [vmem:[%s320 + $0x48] sm:$0xff]
        %v344 = vld [vmem:[%s320 + $0x50] sm:$0xff]
        %v345 = vld [vmem:[%s320 + $0x58] sm:$0xff]
        %v346 = vld [vmem:[%s320 + $0x60] sm:$0xff]
        %v347 = vld [vmem:[%s320 + $0x68] sm:$0xff]
        %v348 = vld [vmem:[%s320 + $0x70] sm:$0xff]
        %v349 = vld [vmem:[%s320 + $0x78] sm:$0xff]
        %v350 = vld [vmem:[%s320 + $0x80] sm:$0xff]
        %v351 = vld [vmem:[%s320 + $0x88] sm:$0xff]
        %v352 = vld [vmem:[%s320 + $0x90] sm:$0xff]
        %v353 = vld [vmem:[%s320 + $0x98] sm:$0xff]
        %v354 = vld [vmem:[%s320 + $0xa0] sm:$0xff]
        %v355 = vld [vmem:[%s320 + $0xa8] sm:$0xff]
        %v356 = vld [vmem:[%s320 + $0xb0] sm:$0xff]
        %v357 = vld [vmem:[%s320 + $0xb8] sm:$0xff]
        %v358 = vld [vmem:[%s320 + $0xc0] sm:$0xff]
        %v359 = vld [vmem:[%s320 + $0xc8] sm:$0xff]
        %v360 = vld [vmem:[%s320 + $0xd0] sm:$0xff]
        %v361 = vld [vmem:[%s320 + $0xd8] sm:$0xff]
        %v362 = vld [vmem:[%s320 + $0xe0] sm:$0xff]
        %v363 = vld [vmem:[%s320 + $0xe8] sm:$0xff]
        %v364 = vld [vmem:[%s320 + $0xf0] sm:$0xff]
        %v365 = vld [vmem:[%s320 + $0xf8] sm:$0xff]
        %v366 = vld [vmem:[%s320 + $0x100] sm:$0xff]
        %v367 = vld [vmem:[%s320 + $0x108] sm:$0xff]
        %v368 = vld [vmem:[%s320 + $0x110] sm:$0xff]
        %v369 = vld [vmem:[%s320 + $0x118] sm:$0xff]
        %v370 = vld [vmem:[%s320 + $0x120] sm:$0xff]
        %v371 = vld [vmem:[%s320 + $0x128] sm:$0xff]
        %v372 = vld [vmem:[%s320 + $0x130] sm:$0xff]
        %v373 = vld [vmem:[%s320 + $0x138] sm:$0xff]
        %v374 = vld [vmem:[%s320 + $0x140] sm:$0xff]
        %v375 = vld [vmem:[%s320 + $0x148] sm:$0xff]
        %v376 = vld [vmem:[%s320 + $0x150] sm:$0xff]
        %v377 = vld [vmem:[%s320 + $0x158] sm:$0xff]
        %v378 = vld [vmem:[%s320 + $0x160] sm:$0xff]
        %v379 = vld [vmem:[%s320 + $0x168] sm:$0xff]
        %v380 = vld [vmem:[%s320 + $0x170] sm:$0xff]
        %v381 = vld [vmem:[%s320 + $0x178] sm:$0xff]
        %v382 = vld [vmem:[%s320 + $0x180] sm:$0xff]
        %v383 = vld [vmem:[%s320 + $0x188] sm:$0xff]
        %v384 = vld [vmem:[%s320 + $0x190] sm:$0xff]
        %v385 = vld [vmem:[%s320 + $0x198] sm:$0xff]
        %v386 = vld [vmem:[%s320 + $0x1a0] sm:$0xff]
        %v387 = vld [vmem:[%s320 + $0x1a8] sm:$0xff]
        %v388 = vld [vmem:[%s320 + $0x1b0] sm:$0xff]
        %v389 = vld [vmem:[%s320 + $0x1b8] sm:$0xff]
        %v390 = vld [vmem:[%s320 + $0x1c0] sm:$0xff]
        %v391 = vld [vmem:[%s320 + $0x1c8] sm:$0xff]
        %v392 = vld [vmem:[%s320 + $0x1d0] sm:$0xff]
        %v393 = vld [vmem:[%s320 + $0x1d8] sm:$0xff]
        %v394 = vld [vmem:[%s320 + $0x1e0] sm:$0xff]
        %v395 = vld [vmem:[%s320 + $0x1e8] sm:$0xff]
        %v396 = vld [vmem:[%s320 + $0x1f0] sm:$0xff]
        %v397 = vld [vmem:[%s320 + $0x1f8] sm:$0xff]
        %v398 = vpack.c.bf16 %v338, %v334
        %v399 = vpack.c.bf16 %v339, %v335
        %v400 = vpack.c.bf16 %v340, %v336
        %v401 = vpack.c.bf16 %v341, %v337
        %v402 = vpack.c.bf16 %v346, %v342
        %v403 = vpack.c.bf16 %v347, %v343
        %v404 = vpack.c.bf16 %v348, %v344
        %v405 = vpack.c.bf16 %v349, %v345
        %v406 = vpack.c.bf16 %v354, %v350
        %v407 = vpack.c.bf16 %v355, %v351
        %v408 = vpack.c.bf16 %v356, %v352
        %v409 = vpack.c.bf16 %v357, %v353
        %v410 = vpack.c.bf16 %v362, %v358
        %v411 = vpack.c.bf16 %v363, %v359
        %v412 = vpack.c.bf16 %v364, %v360
        %v413 = vpack.c.bf16 %v365, %v361
        %v414 = vpack.c.bf16 %v370, %v366
        %v415 = vpack.c.bf16 %v371, %v367
        %v416 = vpack.c.bf16 %v372, %v368
        %v417 = vpack.c.bf16 %v373, %v369
        %v418 = vpack.c.bf16 %v378, %v374
        %v419 = vpack.c.bf16 %v379, %v375
        %v420 = vpack.c.bf16 %v380, %v376
        %v421 = vpack.c.bf16 %v381, %v377
        %v422 = vpack.c.bf16 %v386, %v382
        %v423 = vpack.c.bf16 %v387, %v383
        %v424 = vpack.c.bf16 %v388, %v384
        %v425 = vpack.c.bf16 %v389, %v385
        %v426 = vpack.c.bf16 %v394, %v390
        %v427 = vpack.c.bf16 %v395, %v391
        %v428 = vpack.c.bf16 %v396, %v392
        %v429 = vpack.c.bf16 %v397, %v393
        %v430 = vld [vmem:[%s4] sm:$0x3]
        loop: start=0, step=1, limit=6
        $region79: #{net_forward.20} parent=73 // loop_pre_header
          _
        $region80: #{net_forward.20} parent=73 // loop_header
          %s432 = sphi 0, %s436
          %p433 = scmp.ge.s32.totalorder %s432, 6
        $region81: #{net_forward.20} parent=73 // loop_header_branch
          %435 = sbr.rel (%p433) target = $region85
        $region82: #{net_forward.20} parent=73 // loop_body
          %p437 = scmp.eq.s32.totalorder %s16, 0
          %s438 = ssub.s32 5, %s432
          %s439 = scalar_select %p437, %s432, %s438
          %s440 = smul.u32 %s439, 4
          %s441 = smul.addr %s440, 2
          %s442 = scalar_lea.vmem %s278, %s441 [#allocation4]
          %v443 = vld [vmem:[%s442] sm:$0xff]
          %v444 = vld [vmem:[#allocation2] sm:$0x3]
          %v445 = vld [vmem:[#allocation3] sm:$0x3]
          %v446 = vpack.c.bf16 %v444, %v444
          %447 = vmatprep.subr.bf16.mxu0 %v399
          %448 = vmatpush1.bf16.msra.mxu0 %v398
          %449 = vmatprep.subr.bf16.mxu0 %v403
          %450 = vmatpush1.bf16.msra.mxu0 %v402
          %451 = vmatprep.subr.bf16.mxu0 %v407
          %452 = vmatpush1.bf16.msra.mxu0 %v406
          %453 = vmatprep.subr.bf16.mxu0 %v411
          %454 = vmatpush1.bf16.msra.mxu0 %v410
          %455 = vmatprep.subr.bf16.mxu0 %v415
          %456 = vmatpush1.bf16.msra.mxu0 %v414
          %457 = vmatprep.subr.bf16.mxu0 %v419
          %458 = vmatpush1.bf16.msra.mxu0 %v418
          %459 = vmatprep.subr.bf16.mxu0 %v423
          %460 = vmatpush1.bf16.msra.mxu0 %v422
          %461 = vmatprep.subr.bf16.mxu0 %v427
          %462 = vmatpush1.bf16.msra.mxu0 %v426
          %463 = vmatprep.subr.bf16.mxu0 0
          %464 = vmatpush1.bf16.msra.mxu0 0
          %465 = vmatprep.subr.bf16.mxu0 0
          %466 = vmatpush1.bf16.msra.mxu0 0
          %467 = vmatprep.subr.bf16.mxu0 0
          %468 = vmatpush1.bf16.msra.mxu0 0
          %469 = vmatprep.subr.bf16.mxu0 0
          %470 = vmatpush1.bf16.msra.mxu0 0
          %471 = vmatprep.subr.bf16.mxu0 0
          %472 = vmatpush1.bf16.msra.mxu0 0
          %473 = vmatprep.subr.bf16.mxu0 0
          %474 = vmatpush1.bf16.msra.mxu0 0
          %475 = vmatprep.subr.bf16.mxu0 0
          %476 = vmatpush1.bf16.msra.mxu0 0
          %477 = vmatprep.subr.bf16.mxu0 0
          %478 = vmatpush1.bf16.msra.mxu0 0
          %479 = vmatprep.mubr.bf16.mxu0 0
          %480 = vmatmul.mubr.bf16.gmra.mrb[0].mxu0 %v446
          %v481 = vpop.f32.mrb[0].mxu0
          %v482 = vadd.f32 0.0, %v481
          %v483 = vpop.f32.mrb[0].mxu0
          %v484 = vadd.f32 0.0, %v483
          %v485 = vpop.f32.mrb[0].mxu0
          %v486 = vpop.f32.mrb[0].mxu0
          %487 = vdwg.mxu0
          %488 = vmatprep.subr.bf16.mxu0 %v401
          %489 = vmatpush1.bf16.msra.mxu0 %v400
          %490 = vmatprep.subr.bf16.mxu0 %v405
          %491 = vmatpush1.bf16.msra.mxu0 %v404
          %492 = vmatprep.subr.bf16.mxu0 %v409
          %493 = vmatpush1.bf16.msra.mxu0 %v408
          %494 = vmatprep.subr.bf16.mxu0 %v413
          %495 = vmatpush1.bf16.msra.mxu0 %v412
          %496 = vmatprep.subr.bf16.mxu0 %v417
          %497 = vmatpush1.bf16.msra.mxu0 %v416
          %498 = vmatprep.subr.bf16.mxu0 %v421
          %499 = vmatpush1.bf16.msra.mxu0 %v420
          %500 = vmatprep.subr.bf16.mxu0 %v425
          %501 = vmatpush1.bf16.msra.mxu0 %v424
          %502 = vmatprep.subr.bf16.mxu0 %v429
          %503 = vmatpush1.bf16.msra.mxu0 %v428
          %504 = vmatprep.subr.bf16.mxu0 0
          %505 = vmatpush1.bf16.msra.mxu0 0
          %506 = vmatprep.subr.bf16.mxu0 0
          %507 = vmatpush1.bf16.msra.mxu0 0
          %508 = vmatprep.subr.bf16.mxu0 0
          %509 = vmatpush1.bf16.msra.mxu0 0
          %510 = vmatprep.subr.bf16.mxu0 0
          %511 = vmatpush1.bf16.msra.mxu0 0
          %512 = vmatprep.subr.bf16.mxu0 0
          %513 = vmatpush1.bf16.msra.mxu0 0
          %514 = vmatprep.subr.bf16.mxu0 0
          %515 = vmatpush1.bf16.msra.mxu0 0
          %516 = vmatprep.subr.bf16.mxu0 0
          %517 = vmatpush1.bf16.msra.mxu0 0
          %518 = vmatprep.subr.bf16.mxu0 0
          %519 = vmatpush1.bf16.msra.mxu0 0
          %520 = vmatprep.mubr.bf16.mxu0 0
          %521 = vmatmul.mubr.bf16.gmra.mrb[0].mxu0 %v446
          %v522 = vpop.f32.mrb[0].mxu0
          %v523 = vadd.f32 0.0, %v522
          %v524 = vpop.f32.mrb[0].mxu0
          %v525 = vadd.f32 0.0, %v524
          %v526 = vpop.f32.mrb[0].mxu0
          %v527 = vpop.f32.mrb[0].mxu0
          %528 = vdwg.mxu0
          %v533 = vcombine.low %v482, %v484
          %v534 = vcombine.low %v523, %v525
          %v536 = vunpack.c.l.s4 1983009808
          %v537 = vunpack.c.0.s8 %v536
          %v538 = vlaneseq
          %v539 = vshrl.u32 %v538, 7
          %v540 = vsub.s32 %v537, %v539
          %v541 = vrot.slane %v533, %v540
          %v543 = vunpack.c.l.s4 1983009808
          %v544 = vunpack.c.0.s8 %v543
          %v545 = vlaneseq
          %v546 = vshrl.u32 %v545, 7
          %v547 = vsub.s32 %v544, %v546
          %v548 = vrot.slane %v534, %v547
          %v549 = vcombine.low %v541, %v548
          %v551 = vadd.f32 %v443, %v549
          %v552 = vxor.u32 %v551, 2147483648
          %v553 = vmul.f32 %v552, 1.442695
          %v554 = vpow.pop %v553
          %v555 = vadd.f32 %v554, 1.0
          %v556 = vrcp.pop %v555
          %v557 = vmul.f32 1.0, %v556
          %v559 = vrot.slane %v551, 2
          %v561 = vxor.u32 %v559, 2147483648
          %v562 = vmul.f32 %v561, 1.442695
          %v563 = vpow.pop %v562
          %v564 = vadd.f32 %v563, 1.0
          %v565 = vrcp.pop %v564
          %v566 = vmul.f32 1.0, %v565
          %v567 = vrot.slane %v551, 4
          %v569 = vtanh.pop %v567
          %v570 = vrot.slane %v551, 6
          %v572 = vxor.u32 %v570, 2147483648
          %v573 = vmul.f32 %v572, 1.442695
          %v574 = vpow.pop %v573
          %v575 = vadd.f32 %v574, 1.0
          %v576 = vrcp.pop %v575
          %v577 = vmul.f32 1.0, %v576
          %v578 = vmul.f32 %v566, %v445
          %v579 = vmul.f32 %v557, %v569
          %v580 = vadd.f32 %v578, %v579
          %v581 = vtanh.pop %v580
          %v582 = vmul.f32 %v577, %v581
          %v583 = vstv %s439
          %vm584 = vcmp.lt.s32.totalorder %v583, %v430
          %v585 = vsel %vm584, 1, 0
          %v586 = vcvt.s32.f32 %v585
          %588 = vset.pattern.permute.xlu0 0
          %589 = vperm.xlu0 %588, %v586
          %v590 = vpop.permute.xlu0 %589
          %v592 = vmul.f32 %v590, %v582
          %v593 = vsub.f32 1.0, %v586
          %595 = vset.pattern.permute.xlu0 0
          %596 = vperm.xlu0 %595, %v593
          %v597 = vpop.permute.xlu0 %596
          %v599 = vmul.f32 %v597, %v444
          %v600 = vadd.f32 %v592, %v599
          %601 = vst [vmem:[#allocation2] sm:$0x3] %v600
          %v602 = vmul.f32 %v590, %v580
          %v603 = vmul.f32 %v597, %v445
          %v604 = vadd.f32 %v602, %v603
          %605 = vst [vmem:[#allocation3] sm:$0x3] %v604
          %s606 = smul.u32 %s439, 2
          %s607 = scalar_lea.vmem %s314, %s606 [#allocation5]
          %608 = vst [vmem:[%s607] sm:$0x3] %v592
        $region83: #{net_forward.20} parent=73 // loop_footer
          %s436 = sadd.s32 1, %s432
        $region84: #{net_forward.20} parent=73 // loop_footer_branch
          %431 = sbr.rel target = $region80
        $region85: #{net_forward.20} parent=73 // loop_exit
          _
        %s609 = sand.u32 %s149, 1
        %s610 = sand.u32 %s149, 1
        %s611 = smul.addr %s610, 12
        %s612 = scalar_lea.vmem [#allocation5], %s611
        // Predicated region
        $region86: #{net_forward.20} parent=73 // pred_check
          %p613 = pneg %p159
        $region87: #{net_forward.20} parent=73 // pred_check_branch
          %615 = sbr.rel (%p613) target = $region89
        $region88: #{net_forward.20} parent=73 // pred_region
          %s616 = smul.addr %s16, 2
          %s617 = scalar_lea.vmem %s5, %s616
          // Predicated region
          $region90: #{net_forward.20} parent=88 // pred_check
            _
          $region91: #{net_forward.20} parent=88 // pred_check_branch
            %619 = sbr.rel (0) target = $region93
          $region92: #{net_forward.20} parent=88 // pred_region
            // Predicated region
            $region94: #{net_forward.20} parent=92 // pred_check
              _
            $region95: #{net_forward.20} parent=92 // pred_check_branch
              %621 = sbr.rel target = $region97
            $region96: #{net_forward.20} parent=92 // pred_region
              // Predicated region
              $region109: #{net_forward.20} parent=96 // pred_check
                _
              $region110: #{net_forward.20} parent=96 // pred_check_branch
                %646 = sbr.rel (0) target = $region112
              $region111: #{net_forward.20} parent=96 // pred_region
                loop: start=0, step=1, limit=1
                $region113: #{net_forward.20} parent=111 // loop_pre_header
                  _
                $region114: #{net_forward.20} parent=111 // loop_header
                  %s648 = sphi 0, %s652
                  %p649 = scmp.ge.s32.totalorder %s648, 1
                  %s653 = sphi %s612, %s612
                  %s654 = sphi %s617, %s617
                $region115: #{net_forward.20} parent=111 // loop_header_branch
                  %651 = sbr.rel (%p649) target = $region119
                $region116: #{net_forward.20} parent=111 // loop_body
                  _
                $region117: #{net_forward.20} parent=111 // loop_footer
                  %s652 = sadd.s32 1, %s648
                $region118: #{net_forward.20} parent=111 // loop_footer_branch
                  %647 = sbr.rel target = $region114
                $region119: #{net_forward.20} parent=111 // loop_exit
                  _
                loop: start=0, step=1, limit=1
                $region120: #{net_forward.20} parent=111 // loop_pre_header
                  _
                $region121: #{net_forward.20} parent=111 // loop_header
                  %s657 = sphi 0, %s661
                  %p658 = scmp.ge.s32.totalorder %s657, 1
                  %s662 = sphi %s612, %s612
                  %s663 = sphi %s617, %s617
                $region122: #{net_forward.20} parent=111 // loop_header_branch
                  %660 = sbr.rel (%p658) target = $region126
                $region123: #{net_forward.20} parent=111 // loop_body
                  %v664 = vld [vmem:[%s662] sm:$0x3]
                  %665 = vst [vmem:[%s663] sm:$0x3] %v664
                  %v666 = vld [vmem:[%s662 + $0x2] sm:$0x3]
                  %667 = vst [vmem:[%s663 + $0x4] sm:$0x3] %v666
                  %v668 = vld [vmem:[%s662 + $0x4] sm:$0x3]
                  %669 = vst [vmem:[%s663 + $0x8] sm:$0x3] %v668
                  %v670 = vld [vmem:[%s662 + $0x6] sm:$0x3]
                  %671 = vst [vmem:[%s663 + $0xc] sm:$0x3] %v670
                  %v672 = vld [vmem:[%s662 + $0x8] sm:$0x3]
                  %673 = vst [vmem:[%s663 + $0x10] sm:$0x3] %v672
                  %v674 = vld [vmem:[%s662 + $0xa] sm:$0x3]
                  %675 = vst [vmem:[%s663 + $0x14] sm:$0x3] %v674
                $region124: #{net_forward.20} parent=111 // loop_footer
                  %s661 = sadd.s32 1, %s657
                $region125: #{net_forward.20} parent=111 // loop_footer_branch
                  %656 = sbr.rel target = $region121
                $region126: #{net_forward.20} parent=111 // loop_exit
                  _
              $region112: #{net_forward.20} parent=96 // pred_fallthru
                _
            $region97: #{net_forward.20} parent=92 // pred_fallthru
              _
            // Predicated region
            $region98: #{net_forward.20} parent=92 // pred_check
              _
            $region99: #{net_forward.20} parent=92 // pred_check_branch
              %623 = sbr.rel (0) target = $region101
            $region100: #{net_forward.20} parent=92 // pred_region
              loop: start=0, step=1, limit=1
              $region102: #{net_forward.20} parent=100 // loop_pre_header
                _
              $region103: #{net_forward.20} parent=100 // loop_header
                %s626 = sphi 0, %s630
                %p627 = scmp.ge.s32.totalorder %s626, 1
                %s631 = sphi %s612, %s612
                %s632 = sphi %s617, %s617
              $region104: #{net_forward.20} parent=100 // loop_header_branch
                %629 = sbr.rel (%p627) target = $region108
              $region105: #{net_forward.20} parent=100 // loop_body
                %v633 = vld [vmem:[%s631] sm:$0x3]
                %634 = vst [vmem:[%s632] sm:$0x3] %v633
                %v635 = vld [vmem:[%s631 + $0x2] sm:$0x3]
                %636 = vst [vmem:[%s632 + $0x4] sm:$0x3] %v635
                %v637 = vld [vmem:[%s631 + $0x4] sm:$0x3]
                %638 = vst [vmem:[%s632 + $0x8] sm:$0x3] %v637
                %v639 = vld [vmem:[%s631 + $0x6] sm:$0x3]
                %640 = vst [vmem:[%s632 + $0xc] sm:$0x3] %v639
                %v641 = vld [vmem:[%s631 + $0x8] sm:$0x3]
                %642 = vst [vmem:[%s632 + $0x10] sm:$0x3] %v641
                %v643 = vld [vmem:[%s631 + $0xa] sm:$0x3]
                %644 = vst [vmem:[%s632 + $0x14] sm:$0x3] %v643
              $region106: #{net_forward.20} parent=100 // loop_footer
                %s630 = sadd.s32 1, %s626
              $region107: #{net_forward.20} parent=100 // loop_footer_branch
                %625 = sbr.rel target = $region103
              $region108: #{net_forward.20} parent=100 // loop_exit
                _
            $region101: #{net_forward.20} parent=92 // pred_fallthru
              _
          $region93: #{net_forward.20} parent=88 // pred_fallthru
            _
          %676 = vnop
        $region89: #{net_forward.20} parent=73 // pred_fallthru
          _
      $region74: #{net_forward.20} parent=5 // pred_fallthru
        _
      %p677 = scmp.le.s32.totalorder 2, %s11
      // Predicated region
      $region127: #{net_forward.20} parent=5 // pred_check
        %p678 = pneg %p677
      $region128: #{net_forward.20} parent=5 // pred_check_branch
        %680 = sbr.rel (%p678) target = $region130
      $region129: #{net_forward.20} parent=5 // pred_region
        %s681 = ssub.s32 %s11, 2
        // Predicated region
        $region131: #{net_forward.20} parent=129 // pred_check
          %p682 = pneg %p165
        $region132: #{net_forward.20} parent=129 // pred_check_branch
          %684 = sbr.rel (%p682) target = $region134
        $region133: #{net_forward.20} parent=129 // pred_region
          %s685 = sand.u32 %s150, 1
          %s686 = sand.u32 %s150, 1
          %s687 = smul.addr %s686, 12
          %s688 = scalar_lea.vmem [#allocation5], %s687
        $region134: #{net_forward.20} parent=129 // pred_fallthru
          _
      $region130: #{net_forward.20} parent=5 // pred_fallthru
        _
    $region6: #{net_forward.20} parent=1 // loop_footer
      %s15 = sadd.s32 1, %s11
    $region7: #{net_forward.20} parent=1 // loop_footer_branch
      %10 = sbr.rel target = $region3
    $region8: #{net_forward.20} parent=1 // loop_exit
      _

// kernel: net_forward.18
$region0: #{net_forward.18}
  #allocation0 [shape = 'u32[]', space=smem, size = 0x4, offset = 0x4, fixed_abs, tag = 'smem constant byte address 0x4 - core index']
  #allocation1 [shape = 'u32[144,128]{1,0:T(1,128)}', space=vmem, size = 0x12000, scoped, tag = 'internal scratch']
  #allocation2 [shape = 'f32[2,128]{1,0:T(2,128)}', space=vmem, size = 0x400, scoped, tag = 'scratch operand']
  #allocation3 [shape = 'f32[2,128]{1,0:T(2,128)}', space=vmem, size = 0x400, scoped, tag = 'scratch operand']
  %s0 = inlined_call_operand.vmem [shape: f32[6,2,1024], index: 0, kind: input, shape index: {}]
  %s1 = inlined_call_operand.hbm [shape: f32[2,128,512], index: 1, kind: input, shape index: {}]
  %s2 = inlined_call_operand.vmem [shape: f32[2,2,128], index: 2, kind: input, shape index: {}]
  %s3 = inlined_call_operand.vmem [shape: f32[2,2,128], index: 3, kind: input, shape index: {}]
  %s4 = inlined_call_operand.vmem [shape: s32[2,1], index: 4, kind: input, shape index: {}]
  %s5 = inlined_call_operand.vmem [shape: f32[6,2,256], index: 5, kind: output, shape index: {}]
  %s6 = sld [smem:[#allocation0]]
  $region139: #{net_forward.18} parent=0
    _
  %s8 = ssub.s32 1, %s6
  %s9 = scalar_select 0, %s8, %s6
  $region1: #{net_forward.18} parent=0
    #allocation4 [shape = 'u8[49152]{0}', space=vmem, size = 0xc000, scoped, tag = 'input window, operand 0']
    #allocation5 [shape = 'u8[524288]{0}', space=vmem, size = 0x80000, scoped, tag = 'input window, operand 1']
    #allocation6 [shape = 's32[2]{0}', space=sflag, size = 0x8, scoped, tag = 'scoped memory for net_forward.18']
    #allocation7 [shape = 'u8[12288]{0}', space=vmem, size = 0x3000, scoped, tag = 'output window, operand 0']
    %10 = vsyncpa [#allocation6], 0
    %s11 = scalar_lea.sflag [#allocation6], 1
    %12 = vsyncpa %s11, 0
    loop: start=0, step=1, limit=4
    $region2: #{net_forward.18} parent=1 // loop_pre_header
      _
    $region3: #{net_forward.18} parent=1 // loop_header
      %s14 = sphi 0, %s18
      %p15 = scmp.ge.s32.totalorder %s14, 4
      %s24 = sphi 0, %s26
      %s27 = sphi 0, %s24
      %s28 = sphi 0, %s27
      %s44 = sphi 0, %s28
      %s50 = sphi 0, %s52
      %s53 = sphi 0, %s50
      %s54 = sphi 0, %s53
      %s70 = sphi 0, %s54
      %s76 = sphi 0, %s78
      %s79 = sphi 0, %s76
      %s80 = sphi 0, %s79
      %s96 = sphi 0, %s80
      %s102 = sphi 0, %s104
      %s105 = sphi 0, %s102
      %s106 = sphi 0, %s105
      %s122 = sphi 0, %s106
      %s126 = sphi 0, %s126
      %s128 = sphi 0, %s126
      %s129 = sphi 0, %s128
      %s143 = sphi 0, %s129
      %s149 = sphi 0, %s151
      %s152 = sphi 0, %s149
      %s153 = sphi 0, %s152
      %s169 = sphi 0, %s153
    $region4: #{net_forward.18} parent=1 // loop_header_branch
      %17 = sbr.rel (%p15) target = $region8
    $region5: #{net_forward.18} parent=1 // loop_body
      %s19 = ssub.s32 %s14, 1
      %s20 = ssub.s32 %s14, 2
      %s21 = sadd.s32 %s14, 1
      %s22 = ssub.s32 %s14, %s21
      %p23 = scmp.eq.s32.totalorder %s22, 0
      %s25 = sadd.s32 %s24, 1
      %s26 = scalar_select %p23, %s24, %s25
      %p29 = pneg %p23
      %p30 = scmp.eq.s32.totalorder %s14, 1
      %p31 = por %p29, %p30
      %p32 = scmp.ne.s32.totalorder %s24, %s27
      %p33 = scmp.eq.s32.totalorder %s14, 0
      %p34 = por %p32, %p33
      %p35 = scmp.ne.s32.totalorder %s24, %s27
      %p36 = scmp.eq.s32.totalorder %s19, 1
      %p37 = por %p35, %p36
      %p38 = scmp.ne.s32.totalorder %s27, %s28
      %p39 = scmp.eq.s32.totalorder %s19, 0
      %p40 = por %p38, %p39
      %p41 = scmp.ne.s32.totalorder %s27, %s28
      %p42 = scmp.eq.s32.totalorder %s20, 1
      %p43 = por %p41, %p42
      %p45 = scmp.ne.s32.totalorder %s28, %s44
      %p46 = scmp.eq.s32.totalorder %s20, 0
      %p47 = por %p45, %p46
      %s48 = ssub.s32 %s14, %s21
      %p49 = scmp.eq.s32.totalorder %s48, 0
      %s51 = sadd.s32 %s50, 1
      %s52 = scalar_select %p49, %s50, %s51
      %p55 = pneg %p49
      %p56 = scmp.eq.s32.totalorder %s14, 1
      %p57 = por %p55, %p56
      %p58 = scmp.ne.s32.totalorder %s50, %s53
      %p59 = scmp.eq.s32.totalorder %s14, 0
      %p60 = por %p58, %p59
      %p61 = scmp.ne.s32.totalorder %s50, %s53
      %p62 = scmp.eq.s32.totalorder %s19, 1
      %p63 = por %p61, %p62
      %p64 = scmp.ne.s32.totalorder %s53, %s54
      %p65 = scmp.eq.s32.totalorder %s19, 0
      %p66 = por %p64, %p65
      %p67 = scmp.ne.s32.totalorder %s53, %s54
      %p68 = scmp.eq.s32.totalorder %s20, 1
      %p69 = por %p67, %p68
      %p71 = scmp.ne.s32.totalorder %s54, %s70
      %p72 = scmp.eq.s32.totalorder %s20, 0
      %p73 = por %p71, %p72
      %s74 = ssub.s32 %s14, %s21
      %p75 = scmp.eq.s32.totalorder %s74, 0
      %s77 = sadd.s32 %s76, 1
      %s78 = scalar_select %p75, %s76, %s77
      %p81 = pneg %p75
      %p82 = scmp.eq.s32.totalorder %s14, 1
      %p83 = por %p81, %p82
      %p84 = scmp.ne.s32.totalorder %s76, %s79
      %p85 = scmp.eq.s32.totalorder %s14, 0
      %p86 = por %p84, %p85
      %p87 = scmp.ne.s32.totalorder %s76, %s79
      %p88 = scmp.eq.s32.totalorder %s19, 1
      %p89 = por %p87, %p88
      %p90 = scmp.ne.s32.totalorder %s79, %s80
      %p91 = scmp.eq.s32.totalorder %s19, 0
      %p92 = por %p90, %p91
      %p93 = scmp.ne.s32.totalorder %s79, %s80
      %p94 = scmp.eq.s32.totalorder %s20, 1
      %p95 = por %p93, %p94
      %p97 = scmp.ne.s32.totalorder %s80, %s96
      %p98 = scmp.eq.s32.totalorder %s20, 0
      %p99 = por %p97, %p98
      %s100 = ssub.s32 %s14, %s21
      %p101 = scmp.eq.s32.totalorder %s100, 0
      %s103 = sadd.s32 %s102, 1
      %s104 = scalar_select %p101, %s102, %s103
      %p107 = pneg %p101
      %p108 = scmp.eq.s32.totalorder %s14, 1
      %p109 = por %p107, %p108
      %p110 = scmp.ne.s32.totalorder %s102, %s105
      %p111 = scmp.eq.s32.totalorder %s14, 0
      %p112 = por %p110, %p111
      %p113 = scmp.ne.s32.totalorder %s102, %s105
      %p114 = scmp.eq.s32.totalorder %s19, 1
      %p115 = por %p113, %p114
      %p116 = scmp.ne.s32.totalorder %s105, %s106
      %p117 = scmp.eq.s32.totalorder %s19, 0
      %p118 = por %p116, %p117
      %p119 = scmp.ne.s32.totalorder %s105, %s106
      %p120 = scmp.eq.s32.totalorder %s20, 1
      %p121 = por %p119, %p120
      %p123 = scmp.ne.s32.totalorder %s106, %s122
      %p124 = scmp.eq.s32.totalorder %s20, 0
      %p125 = por %p123, %p124
      %s127 = sadd.s32 %s126, 1
      %p130 = scmp.eq.s32.totalorder %s14, 1
      %p131 = scmp.ne.s32.totalorder %s126, %s128
      %p132 = scmp.eq.s32.totalorder %s14, 0
      %p133 = por %p131, %p132
      %p134 = scmp.ne.s32.totalorder %s126, %s128
      %p135 = scmp.eq.s32.totalorder %s19, 1
      %p136 = por %p134, %p135
      %p137 = scmp.ne.s32.totalorder %s128, %s129
      %p138 = scmp.eq.s32.totalorder %s19, 0
      %p139 = por %p137, %p138
      %p140 = scmp.ne.s32.totalorder %s128, %s129
      %p141 = scmp.eq.s32.totalorder %s20, 1
      %p142 = por %p140, %p141
      %p144 = scmp.ne.s32.totalorder %s129, %s143
      %p145 = scmp.eq.s32.totalorder %s20, 0
      %p146 = por %p144, %p145
      %s147 = ssub.s32 %s14, %s21
      %p148 = scmp.eq.s32.totalorder %s147, 0
      %s150 = sadd.s32 %s149, 1
      %s151 = scalar_select %p148, %s149, %s150
      %p154 = pneg %p148
      %p155 = scmp.eq.s32.totalorder %s14, 1
      %p156 = por %p154, %p155
      %p157 = scmp.ne.s32.totalorder %s149, %s152
      %p158 = scmp.eq.s32.totalorder %s14, 0
      %p159 = por %p157, %p158
      %p160 = scmp.ne.s32.totalorder %s149, %s152
      %p161 = scmp.eq.s32.totalorder %s19, 1
      %p162 = por %p160, %p161
      %p163 = scmp.ne.s32.totalorder %s152, %s153
      %p164 = scmp.eq.s32.totalorder %s19, 0
      %p165 = por %p163, %p164
      %p166 = scmp.ne.s32.totalorder %s152, %s153
      %p167 = scmp.eq.s32.totalorder %s20, 1
      %p168 = por %p166, %p167
      %p170 = scmp.ne.s32.totalorder %s153, %s169
      %p171 = scmp.eq.s32.totalorder %s20, 0
      %p172 = por %p170, %p171
      %p173 = scmp.le.s32.totalorder 1, %s14
      %p174 = scmp.lt.s32.totalorder %s14, 3
      %p175 = pnand %p173, %p174
      %p176 = pneg %p175
      // Predicated region
      $region9: #{net_forward.18} parent=5 // pred_check
        _
      $region10: #{net_forward.18} parent=5 // pred_check_branch
        %178 = sbr.rel (%p175) target = $region12
      $region11: #{net_forward.18} parent=5 // pred_region
        %s179 = ssub.s32 %s14, 1
        // Predicated region
        $region13: #{net_forward.18} parent=11 // pred_check
          %p180 = pneg %p139
        $region14: #{net_forward.18} parent=11 // pred_check_branch
          %182 = sbr.rel (%p180) target = $region16
        $region15: #{net_forward.18} parent=11 // pred_region
          _
        $region16: #{net_forward.18} parent=11 // pred_fallthru
          _
      $region12: #{net_forward.18} parent=5 // pred_fallthru
        _
      %p183 = scmp.lt.s32.totalorder %s14, 2
      // Predicated region
      $region17: #{net_forward.18} parent=5 // pred_check
        %p184 = pneg %p183
      $region18: #{net_forward.18} parent=5 // pred_check_branch
        %186 = sbr.rel (%p184) target = $region20
      $region19: #{net_forward.18} parent=5 // pred_region
        // Predicated region
        $region21: #{net_forward.18} parent=19 // pred_check
          %p187 = pneg %p34
        $region22: #{net_forward.18} parent=19 // pred_check_branch
          %189 = sbr.rel (%p187) target = $region24
        $region23: #{net_forward.18} parent=19 // pred_region
          %s190 = sand.u32 %s24, 1
          %s191 = sand.u32 %s24, 1
          %s192 = smul.addr %s191, 48
          %s193 = scalar_lea.vmem [#allocation4], %s192
          %s194 = smul.u32 4, %s14
          %s195 = smul.addr %s194, 2
          %s196 = scalar_lea.vmem %s0, %s195
          // Predicated region
          $region25: #{net_forward.18} parent=23 // pred_check
            _
          $region26: #{net_forward.18} parent=23 // pred_check_branch
            %198 = sbr.rel (0) target = $region28
          $region27: #{net_forward.18} parent=23 // pred_region
            // Predicated region
            $region29: #{net_forward.18} parent=27 // pred_check
              _
            $region30: #{net_forward.18} parent=27 // pred_check_branch
              %200 = sbr.rel (0) target = $region32
            $region31: #{net_forward.18} parent=27 // pred_region
              // Predicated region
              $region44: #{net_forward.18} parent=31 // pred_check
                _
              $region45: #{net_forward.18} parent=31 // pred_check_branch
                %225 = sbr.rel (0) target = $region47
              $region46: #{net_forward.18} parent=31 // pred_region
                loop: start=0, step=1, limit=1
                $region48: #{net_forward.18} parent=46 // loop_pre_header
                  _
                $region49: #{net_forward.18} parent=46 // loop_header
                  %s227 = sphi 0, %s231
                  %p228 = scmp.ge.s32.totalorder %s227, 1
                  %s232 = sphi %s196, %s196
                  %s233 = sphi %s193, %s193
                $region50: #{net_forward.18} parent=46 // loop_header_branch
                  %230 = sbr.rel (%p228) target = $region54
                $region51: #{net_forward.18} parent=46 // loop_body
                  %v234 = vld [vmem:[%s232] sm:$0xff]
                  %235 = vst [vmem:[%s233] sm:$0xff] %v234
                  %v236 = vld [vmem:[%s232 + $0x10] sm:$0xff]
                  %237 = vst [vmem:[%s233 + $0x8] sm:$0xff] %v236
                  %v238 = vld [vmem:[%s232 + $0x20] sm:$0xff]
                  %239 = vst [vmem:[%s233 + $0x10] sm:$0xff] %v238
                  %v240 = vld [vmem:[%s232 + $0x30] sm:$0xff]
                  %241 = vst [vmem:[%s233 + $0x18] sm:$0xff] %v240
                  %v242 = vld [vmem:[%s232 + $0x40] sm:$0xff]
                  %243 = vst [vmem:[%s233 + $0x20] sm:$0xff] %v242
                  %v244 = vld [vmem:[%s232 + $0x50] sm:$0xff]
                  %245 = vst [vmem:[%s233 + $0x28] sm:$0xff] %v244
                $region52: #{net_forward.18} parent=46 // loop_footer
                  %s231 = sadd.s32 1, %s227
                $region53: #{net_forward.18} parent=46 // loop_footer_branch
                  %226 = sbr.rel target = $region49
                $region54: #{net_forward.18} parent=46 // loop_exit
                  _
              $region47: #{net_forward.18} parent=31 // pred_fallthru
                _
              // Predicated region
              $region55: #{net_forward.18} parent=31 // pred_check
                _
              $region56: #{net_forward.18} parent=31 // pred_check_branch
                %247 = sbr.rel target = $region58
              $region57: #{net_forward.18} parent=31 // pred_region
                _
              $region58: #{net_forward.18} parent=31 // pred_fallthru
                _
            $region32: #{net_forward.18} parent=27 // pred_fallthru
              _
            // Predicated region
            $region33: #{net_forward.18} parent=27 // pred_check
              _
            $region34: #{net_forward.18} parent=27 // pred_check_branch
              %202 = sbr.rel target = $region36
            $region35: #{net_forward.18} parent=27 // pred_region
              loop: start=0, step=1, limit=1
              $region37: #{net_forward.18} parent=35 // loop_pre_header
                _
              $region38: #{net_forward.18} parent=35 // loop_header
                %s205 = sphi 0, %s209
                %p206 = scmp.ge.s32.totalorder %s205, 1
                %s210 = sphi %s196, %s196
                %s211 = sphi %s193, %s193
              $region39: #{net_forward.18} parent=35 // loop_header_branch
                %208 = sbr.rel (%p206) target = $region43
              $region40: #{net_forward.18} parent=35 // loop_body
                %v212 = vld [vmem:[%s210] sm:$0xff]
                %213 = vst [vmem:[%s211] sm:$0xff] %v212
                %v214 = vld [vmem:[%s210 + $0x10] sm:$0xff]
                %215 = vst [vmem:[%s211 + $0x8] sm:$0xff] %v214
                %v216 = vld [vmem:[%s210 + $0x20] sm:$0xff]
                %217 = vst [vmem:[%s211 + $0x10] sm:$0xff] %v216
                %v218 = vld [vmem:[%s210 + $0x30] sm:$0xff]
                %219 = vst [vmem:[%s211 + $0x18] sm:$0xff] %v218
                %v220 = vld [vmem:[%s210 + $0x40] sm:$0xff]
                %221 = vst [vmem:[%s211 + $0x20] sm:$0xff] %v220
                %v222 = vld [vmem:[%s210 + $0x50] sm:$0xff]
                %223 = vst [vmem:[%s211 + $0x28] sm:$0xff] %v222
              $region41: #{net_forward.18} parent=35 // loop_footer
                %s209 = sadd.s32 1, %s205
              $region42: #{net_forward.18} parent=35 // loop_footer_branch
                %204 = sbr.rel target = $region38
              $region43: #{net_forward.18} parent=35 // loop_exit
                _
            $region36: #{net_forward.18} parent=27 // pred_fallthru
              _
          $region28: #{net_forward.18} parent=23 // pred_fallthru
            _
          %248 = vnop
        $region24: #{net_forward.18} parent=19 // pred_fallthru
          _
        // Predicated region
        $region59: #{net_forward.18} parent=19 // pred_check
          %p249 = pneg %p60
        $region60: #{net_forward.18} parent=19 // pred_check_branch
          %251 = sbr.rel (%p249) target = $region62
        $region61: #{net_forward.18} parent=19 // pred_region
          %s252 = sand.u32 %s50, 1
          %s253 = scalar_lea.sflag [#allocation6], %s252
          %s254 = sand.u32 %s50, 1
          %s255 = smul.addr %s254, 512
          %s256 = scalar_lea.vmem [#allocation5], %s255
          %s258 = ssub.s32 8192, 8192
          %259 = vsyncadd %s253, %s258
          %s260 = smul.addr %s14, 64
          %s261 = smul.addr %s260, 128
          %s262 = scalar_lea.hbm %s1, %s261
          %s263 = sshll.u32 %s256, 4
          %s264 = int_to_ptr.vmem [resolvable:$true] %s263
          %269 = dma.hbm_to_vmem [thread:$0]  %s262, 8192, %s264, %s253, 512, 512, 32
        $region62: #{net_forward.18} parent=19 // pred_fallthru
          _
        // Predicated region
        $region63: #{net_forward.18} parent=19 // pred_check
          %p270 = pneg %p86
        $region64: #{net_forward.18} parent=19 // pred_check_branch
          %272 = sbr.rel (%p270) target = $region66
        $region65: #{net_forward.18} parent=19 // pred_region
          %p273 = scmp.lt.s32.totalorder %s14, 1
          %s274 = scalar_select %p273, %s14, 1
          %s275 = smul.addr %s274, 2
          %s276 = scalar_lea.vmem %s2, %s275
        $region66: #{net_forward.18} parent=19 // pred_fallthru
          _
        // Predicated region
        $region67: #{net_forward.18} parent=19 // pred_check
          %p277 = pneg %p112
        $region68: #{net_forward.18} parent=19 // pred_check_branch
          %279 = sbr.rel (%p277) target = $region70
        $region69: #{net_forward.18} parent=19 // pred_region
          %p280 = scmp.lt.s32.totalorder %s14, 1
          %s281 = scalar_select %p280, %s14, 1
          %s282 = smul.addr %s281, 2
          %s283 = scalar_lea.vmem %s3, %s282
        $region70: #{net_forward.18} parent=19 // pred_fallthru
          _
      $region20: #{net_forward.18} parent=5 // pred_fallthru
        _
      %p284 = scmp.le.s32.totalorder 1, %s14
      %p285 = scmp.lt.s32.totalorder %s14, 3
      %p286 = pnand %p284, %p285
      %p287 = pneg %p286
      // Predicated region
      $region71: #{net_forward.18} parent=5 // pred_check
        _
      $region72: #{net_forward.18} parent=5 // pred_check_branch
        %289 = sbr.rel (%p286) target = $region74
      $region73: #{net_forward.18} parent=5 // pred_region
        %s290 = ssub.s32 %s14, 1
        %s291 = sand.u32 %s27, 1
        %s292 = sand.u32 %s27, 1
        %s293 = smul.addr %s292, 48
        %s294 = scalar_lea.vmem [#allocation4], %s293
        // Predicated region
        $region75: #{net_forward.18} parent=73 // pred_check
          %p295 = pneg %p40
        $region76: #{net_forward.18} parent=73 // pred_check_branch
          %297 = sbr.rel (%p295) target = $region78
        $region77: #{net_forward.18} parent=73 // pred_region
          _
        $region78: #{net_forward.18} parent=73 // pred_fallthru
          _
        %s298 = sand.u32 %s53, 1
        %s299 = scalar_lea.sflag [#allocation6], %s298
        %s300 = sand.u32 %s53, 1
        %s301 = smul.addr %s300, 512
        %s302 = scalar_lea.vmem [#allocation5], %s301
        // Predicated region
        $region79: #{net_forward.18} parent=73 // pred_check
          %p303 = pneg %p66
        $region80: #{net_forward.18} parent=73 // pred_check_branch
          %305 = sbr.rel (%p303) target = $region82
        $region81: #{net_forward.18} parent=73 // pred_region
          %306 = dma.done %s299, 8192
        $region82: #{net_forward.18} parent=73 // pred_fallthru
          _
        %s307 = sand.u32 %s27, 1
        %s308 = sand.u32 %s27, 1
        %s309 = smul.addr %s308, 48
        %s310 = scalar_lea.vmem [#allocation4], %s309
        %p311 = pneg %p40
        %p312 = pneg %p37
        %s313 = sand.u32 %s53, 1
        %s314 = scalar_lea.sflag [#allocation6], %s313
        %s315 = sand.u32 %s53, 1
        %s316 = smul.addr %s315, 512
        %s317 = scalar_lea.vmem [#allocation5], %s316
        %p318 = pneg %p66
        %p319 = pneg %p63
        %p320 = scmp.lt.s32.totalorder %s19, 1
        %s321 = scalar_select %p320, %s19, 1
        %s322 = smul.addr %s321, 2
        %s323 = scalar_lea.vmem %s2, %s322
        %p324 = pneg %p92
        %p325 = pneg %p89
        %p326 = scmp.lt.s32.totalorder %s19, 1
        %s327 = scalar_select %p326, %s19, 1
        %s328 = smul.addr %s327, 2
        %s329 = scalar_lea.vmem %s3, %s328
        %p330 = pneg %p118
        %p331 = pneg %p115
        %p332 = pneg %p139
        %p333 = pneg %p136
        %p334 = pneg %p165
        %p335 = pneg %p162
        %s336 = sand.u32 %s152, 1
        %s337 = sand.u32 %s152, 1
        %s338 = smul.addr %s337, 12
        %s339 = scalar_lea.vmem [#allocation7], %s338
        %s340 = smul.u32 4, %s19
        %p341 = scmp.lt.s32.totalorder %s19, 1
        %s342 = scalar_select %p341, %s19, 1
        %s343 = smul.addr %s342, 2
        %s344 = scalar_lea.vmem %s2, %s343
        %p345 = scmp.lt.s32.totalorder %s19, 1
        %s346 = scalar_select %p345, %s19, 1
        %s347 = smul.addr %s346, 2
        %s348 = scalar_lea.vmem %s3, %s347
        %v350 = vld [vmem:[%s344] sm:$0x3]
        %351 = vst [vmem:[#allocation2] sm:$0x3] %v350
        %v352 = vld [vmem:[%s348] sm:$0x3]
        %353 = vst [vmem:[#allocation3] sm:$0x3] %v352
        %v354 = vld [vmem:[%s302] sm:$0xff]
        %v355 = vld [vmem:[%s302 + $0x8] sm:$0xff]
        %v356 = vld [vmem:[%s302 + $0x10] sm:$0xff]
        %v357 = vld [vmem:[%s302 + $0x18] sm:$0xff]
        %v358 = vld [vmem:[%s302 + $0x20] sm:$0xff]
        %v359 = vld [vmem:[%s302 + $0x28] sm:$0xff]
        %v360 = vld [vmem:[%s302 + $0x30] sm:$0xff]
        %v361 = vld [vmem:[%s302 + $0x38] sm:$0xff]
        %v362 = vld [vmem:[%s302 + $0x40] sm:$0xff]
        %v363 = vld [vmem:[%s302 + $0x48] sm:$0xff]
        %v364 = vld [vmem:[%s302 + $0x50] sm:$0xff]
        %v365 = vld [vmem:[%s302 + $0x58] sm:$0xff]
        %v366 = vld [vmem:[%s302 + $0x60] sm:$0xff]
        %v367 = vld [vmem:[%s302 + $0x68] sm:$0xff]
        %v368 = vld [vmem:[%s302 + $0x70] sm:$0xff]
        %v369 = vld [vmem:[%s302 + $0x78] sm:$0xff]
        %v370 = vld [vmem:[%s302 + $0x80] sm:$0xff]
        %v371 = vld [vmem:[%s302 + $0x88] sm:$0xff]
        %v372 = vld [vmem:[%s302 + $0x90] sm:$0xff]
        %v373 = vld [vmem:[%s302 + $0x98] sm:$0xff]
        %v374 = vld [vmem:[%s302 + $0xa0] sm:$0xff]
        %v375 = vld [vmem:[%s302 + $0xa8] sm:$0xff]
        %v376 = vld [vmem:[%s302 + $0xb0] sm:$0xff]
        %v377 = vld [vmem:[%s302 + $0xb8] sm:$0xff]
        %v378 = vld [vmem:[%s302 + $0xc0] sm:$0xff]
        %v379 = vld [vmem:[%s302 + $0xc8] sm:$0xff]
        %v380 = vld [vmem:[%s302 + $0xd0] sm:$0xff]
        %v381 = vld [vmem:[%s302 + $0xd8] sm:$0xff]
        %v382 = vld [vmem:[%s302 + $0xe0] sm:$0xff]
        %v383 = vld [vmem:[%s302 + $0xe8] sm:$0xff]
        %v384 = vld [vmem:[%s302 + $0xf0] sm:$0xff]
        %v385 = vld [vmem:[%s302 + $0xf8] sm:$0xff]
        %v386 = vld [vmem:[%s302 + $0x100] sm:$0xff]
        %v387 = vld [vmem:[%s302 + $0x108] sm:$0xff]
        %v388 = vld [vmem:[%s302 + $0x110] sm:$0xff]
        %v389 = vld [vmem:[%s302 + $0x118] sm:$0xff]
        %v390 = vld [vmem:[%s302 + $0x120] sm:$0xff]
        %v391 = vld [vmem:[%s302 + $0x128] sm:$0xff]
        %v392 = vld [vmem:[%s302 + $0x130] sm:$0xff]
        %v393 = vld [vmem:[%s302 + $0x138] sm:$0xff]
        %v394 = vld [vmem:[%s302 + $0x140] sm:$0xff]
        %v395 = vld [vmem:[%s302 + $0x148] sm:$0xff]
        %v396 = vld [vmem:[%s302 + $0x150] sm:$0xff]
        %v397 = vld [vmem:[%s302 + $0x158] sm:$0xff]
        %v398 = vld [vmem:[%s302 + $0x160] sm:$0xff]
        %v399 = vld [vmem:[%s302 + $0x168] sm:$0xff]
        %v400 = vld [vmem:[%s302 + $0x170] sm:$0xff]
        %v401 = vld [vmem:[%s302 + $0x178] sm:$0xff]
        %v402 = vld [vmem:[%s302 + $0x180] sm:$0xff]
        %v403 = vld [vmem:[%s302 + $0x188] sm:$0xff]
        %v404 = vld [vmem:[%s302 + $0x190] sm:$0xff]
        %v405 = vld [vmem:[%s302 + $0x198] sm:$0xff]
        %v406 = vld [vmem:[%s302 + $0x1a0] sm:$0xff]
        %v407 = vld [vmem:[%s302 + $0x1a8] sm:$0xff]
        %v408 = vld [vmem:[%s302 + $0x1b0] sm:$0xff]
        %v409 = vld [vmem:[%s302 + $0x1b8] sm:$0xff]
        %v410 = vld [vmem:[%s302 + $0x1c0] sm:$0xff]
        %v411 = vld [vmem:[%s302 + $0x1c8] sm:$0xff]
        %v412 = vld [vmem:[%s302 + $0x1d0] sm:$0xff]
        %v413 = vld [vmem:[%s302 + $0x1d8] sm:$0xff]
        %v414 = vld [vmem:[%s302 + $0x1e0] sm:$0xff]
        %v415 = vld [vmem:[%s302 + $0x1e8] sm:$0xff]
        %v416 = vld [vmem:[%s302 + $0x1f0] sm:$0xff]
        %v417 = vld [vmem:[%s302 + $0x1f8] sm:$0xff]
        %v418 = vpack.c.bf16 %v358, %v354
        %v419 = vpack.c.bf16 %v359, %v355
        %v420 = vpack.c.bf16 %v360, %v356
        %v421 = vpack.c.bf16 %v361, %v357
        %v422 = vpack.c.bf16 %v366, %v362
        %v423 = vpack.c.bf16 %v367, %v363
        %v424 = vpack.c.bf16 %v368, %v364
        %v425 = vpack.c.bf16 %v369, %v365
        %v426 = vpack.c.bf16 %v374, %v370
        %v427 = vpack.c.bf16 %v375, %v371
        %v428 = vpack.c.bf16 %v376, %v372
        %v429 = vpack.c.bf16 %v377, %v373
        %v430 = vpack.c.bf16 %v382, %v378
        %v431 = vpack.c.bf16 %v383, %v379
        %v432 = vpack.c.bf16 %v384, %v380
        %v433 = vpack.c.bf16 %v385, %v381
        %v434 = vpack.c.bf16 %v390, %v386
        %v435 = vpack.c.bf16 %v391, %v387
        %v436 = vpack.c.bf16 %v392, %v388
        %v437 = vpack.c.bf16 %v393, %v389
        %v438 = vpack.c.bf16 %v398, %v394
        %v439 = vpack.c.bf16 %v399, %v395
        %v440 = vpack.c.bf16 %v400, %v396
        %v441 = vpack.c.bf16 %v401, %v397
        %v442 = vpack.c.bf16 %v406, %v402
        %v443 = vpack.c.bf16 %v407, %v403
        %v444 = vpack.c.bf16 %v408, %v404
        %v445 = vpack.c.bf16 %v409, %v405
        %v446 = vpack.c.bf16 %v414, %v410
        %v447 = vpack.c.bf16 %v415, %v411
        %v448 = vpack.c.bf16 %v416, %v412
        %v449 = vpack.c.bf16 %v417, %v413
        %v450 = vld [vmem:[%s4] sm:$0x3]
        loop: start=0, step=1, limit=6
        $region83: #{net_forward.18} parent=73 // loop_pre_header
          _
        $region84: #{net_forward.18} parent=73 // loop_header
          %s452 = sphi 0, %s456
          %p453 = scmp.ge.s32.totalorder %s452, 6
        $region85: #{net_forward.18} parent=73 // loop_header_branch
          %455 = sbr.rel (%p453) target = $region89
        $region86: #{net_forward.18} parent=73 // loop_body
          %p457 = scmp.eq.s32.totalorder %s19, 0
          %s458 = ssub.s32 5, %s452
          %s459 = scalar_select %p457, %s452, %s458
          %s460 = smul.u32 %s459, 4
          %s461 = smul.addr %s460, 2
          %s462 = scalar_lea.vmem %s294, %s461 [#allocation4]
          %v463 = vld [vmem:[%s462] sm:$0xff]
          %v464 = vld [vmem:[#allocation2] sm:$0x3]
          %v465 = vld [vmem:[#allocation3] sm:$0x3]
          %v466 = vpack.c.bf16 %v464, %v464
          %467 = vmatprep.subr.bf16.mxu0 %v419
          %468 = vmatpush1.bf16.msra.mxu0 %v418
          %469 = vmatprep.subr.bf16.mxu0 %v423
          %470 = vmatpush1.bf16.msra.mxu0 %v422
          %471 = vmatprep.subr.bf16.mxu0 %v427
          %472 = vmatpush1.bf16.msra.mxu0 %v426
          %473 = vmatprep.subr.bf16.mxu0 %v431
          %474 = vmatpush1.bf16.msra.mxu0 %v430
          %475 = vmatprep.subr.bf16.mxu0 %v435
          %476 = vmatpush1.bf16.msra.mxu0 %v434
          %477 = vmatprep.subr.bf16.mxu0 %v439
          %478 = vmatpush1.bf16.msra.mxu0 %v438
          %479 = vmatprep.subr.bf16.mxu0 %v443
          %480 = vmatpush1.bf16.msra.mxu0 %v442
          %481 = vmatprep.subr.bf16.mxu0 %v447
          %482 = vmatpush1.bf16.msra.mxu0 %v446
          %483 = vmatprep.subr.bf16.mxu0 0
          %484 = vmatpush1.bf16.msra.mxu0 0
          %485 = vmatprep.subr.bf16.mxu0 0
          %486 = vmatpush1.bf16.msra.mxu0 0
          %487 = vmatprep.subr.bf16.mxu0 0
          %488 = vmatpush1.bf16.msra.mxu0 0
          %489 = vmatprep.subr.bf16.mxu0 0
          %490 = vmatpush1.bf16.msra.mxu0 0
          %491 = vmatprep.subr.bf16.mxu0 0
          %492 = vmatpush1.bf16.msra.mxu0 0
          %493 = vmatprep.subr.bf16.mxu0 0
          %494 = vmatpush1.bf16.msra.mxu0 0
          %495 = vmatprep.subr.bf16.mxu0 0
          %496 = vmatpush1.bf16.msra.mxu0 0
          %497 = vmatprep.subr.bf16.mxu0 0
          %498 = vmatpush1.bf16.msra.mxu0 0
          %499 = vmatprep.mubr.bf16.mxu0 0
          %500 = vmatmul.mubr.bf16.gmra.mrb[0].mxu0 %v466
          %v501 = vpop.f32.mrb[0].mxu0
          %v502 = vadd.f32 0.0, %v501
          %v503 = vpop.f32.mrb[0].mxu0
          %v504 = vadd.f32 0.0, %v503
          %v505 = vpop.f32.mrb[0].mxu0
          %v506 = vpop.f32.mrb[0].mxu0
          %507 = vdwg.mxu0
          %508 = vmatprep.subr.bf16.mxu0 %v421
          %509 = vmatpush1.bf16.msra.mxu0 %v420
          %510 = vmatprep.subr.bf16.mxu0 %v425
          %511 = vmatpush1.bf16.msra.mxu0 %v424
          %512 = vmatprep.subr.bf16.mxu0 %v429
          %513 = vmatpush1.bf16.msra.mxu0 %v428
          %514 = vmatprep.subr.bf16.mxu0 %v433
          %515 = vmatpush1.bf16.msra.mxu0 %v432
          %516 = vmatprep.subr.bf16.mxu0 %v437
          %517 = vmatpush1.bf16.msra.mxu0 %v436
          %518 = vmatprep.subr.bf16.mxu0 %v441
          %519 = vmatpush1.bf16.msra.mxu0 %v440
          %520 = vmatprep.subr.bf16.mxu0 %v445
          %521 = vmatpush1.bf16.msra.mxu0 %v444
          %522 = vmatprep.subr.bf16.mxu0 %v449
          %523 = vmatpush1.bf16.msra.mxu0 %v448
          %524 = vmatprep.subr.bf16.mxu0 0
          %525 = vmatpush1.bf16.msra.mxu0 0
          %526 = vmatprep.subr.bf16.mxu0 0
          %527 = vmatpush1.bf16.msra.mxu0 0
          %528 = vmatprep.subr.bf16.mxu0 0
          %529 = vmatpush1.bf16.msra.mxu0 0
          %530 = vmatprep.subr.bf16.mxu0 0
          %531 = vmatpush1.bf16.msra.mxu0 0
          %532 = vmatprep.subr.bf16.mxu0 0
          %533 = vmatpush1.bf16.msra.mxu0 0
          %534 = vmatprep.subr.bf16.mxu0 0
          %535 = vmatpush1.bf16.msra.mxu0 0
          %536 = vmatprep.subr.bf16.mxu0 0
          %537 = vmatpush1.bf16.msra.mxu0 0
          %538 = vmatprep.subr.bf16.mxu0 0
          %539 = vmatpush1.bf16.msra.mxu0 0
          %540 = vmatprep.mubr.bf16.mxu0 0
          %541 = vmatmul.mubr.bf16.gmra.mrb[0].mxu0 %v466
          %v542 = vpop.f32.mrb[0].mxu0
          %v543 = vadd.f32 0.0, %v542
          %v544 = vpop.f32.mrb[0].mxu0
          %v545 = vadd.f32 0.0, %v544
          %v546 = vpop.f32.mrb[0].mxu0
          %v547 = vpop.f32.mrb[0].mxu0
          %548 = vdwg.mxu0
          %v553 = vcombine.low %v502, %v504
          %v554 = vcombine.low %v543, %v545
          %v556 = vunpack.c.l.s4 1983009808
          %v557 = vunpack.c.0.s8 %v556
          %v558 = vlaneseq
          %v559 = vshrl.u32 %v558, 7
          %v560 = vsub.s32 %v557, %v559
          %v561 = vrot.slane %v553, %v560
          %v563 = vunpack.c.l.s4 1983009808
          %v564 = vunpack.c.0.s8 %v563
          %v565 = vlaneseq
          %v566 = vshrl.u32 %v565, 7
          %v567 = vsub.s32 %v564, %v566
          %v568 = vrot.slane %v554, %v567
          %v569 = vcombine.low %v561, %v568
          %v571 = vadd.f32 %v463, %v569
          %v572 = vxor.u32 %v571, 2147483648
          %v573 = vmul.f32 %v572, 1.442695
          %v574 = vpow.pop %v573
          %v575 = vadd.f32 %v574, 1.0
          %v576 = vrcp.pop %v575
          %v577 = vmul.f32 1.0, %v576
          %v579 = vrot.slane %v571, 2
          %v581 = vxor.u32 %v579, 2147483648
          %v582 = vmul.f32 %v581, 1.442695
          %v583 = vpow.pop %v582
          %v584 = vadd.f32 %v583, 1.0
          %v585 = vrcp.pop %v584
          %v586 = vmul.f32 1.0, %v585
          %v587 = vrot.slane %v571, 4
          %v589 = vtanh.pop %v587
          %v590 = vrot.slane %v571, 6
          %v592 = vxor.u32 %v590, 2147483648
          %v593 = vmul.f32 %v592, 1.442695
          %v594 = vpow.pop %v593
          %v595 = vadd.f32 %v594, 1.0
          %v596 = vrcp.pop %v595
          %v597 = vmul.f32 1.0, %v596
          %v598 = vmul.f32 %v586, %v465
          %v599 = vmul.f32 %v577, %v589
          %v600 = vadd.f32 %v598, %v599
          %v601 = vtanh.pop %v600
          %v602 = vmul.f32 %v597, %v601
          %v603 = vstv %s459
          %vm604 = vcmp.lt.s32.totalorder %v603, %v450
          %v605 = vsel %vm604, 1, 0
          %v606 = vcvt.s32.f32 %v605
          %608 = vset.pattern.permute.xlu0 0
          %609 = vperm.xlu0 %608, %v606
          %v610 = vpop.permute.xlu0 %609
          %v612 = vmul.f32 %v610, %v602
          %v613 = vsub.f32 1.0, %v606
          %615 = vset.pattern.permute.xlu0 0
          %616 = vperm.xlu0 %615, %v613
          %v617 = vpop.permute.xlu0 %616
          %v619 = vmul.f32 %v617, %v464
          %v620 = vadd.f32 %v612, %v619
          %621 = vst [vmem:[#allocation2] sm:$0x3] %v620
          %v622 = vmul.f32 %v610, %v600
          %v623 = vmul.f32 %v617, %v465
          %v624 = vadd.f32 %v622, %v623
          %625 = vst [vmem:[#allocation3] sm:$0x3] %v624
          %s626 = smul.u32 %s459, 2
          %s627 = scalar_lea.vmem %s339, %s626 [#allocation7]
          %628 = vst [vmem:[%s627] sm:$0x3] %v612
        $region87: #{net_forward.18} parent=73 // loop_footer
          %s456 = sadd.s32 1, %s452
        $region88: #{net_forward.18} parent=73 // loop_footer_branch
          %451 = sbr.rel target = $region84
        $region89: #{net_forward.18} parent=73 // loop_exit
          _
        %s629 = sand.u32 %s152, 1
        %s630 = sand.u32 %s152, 1
        %s631 = smul.addr %s630, 12
        %s632 = scalar_lea.vmem [#allocation7], %s631
        // Predicated region
        $region90: #{net_forward.18} parent=73 // pred_check
          %p633 = pneg %p162
        $region91: #{net_forward.18} parent=73 // pred_check_branch
          %635 = sbr.rel (%p633) target = $region93
        $region92: #{net_forward.18} parent=73 // pred_region
          %s636 = smul.addr %s19, 2
          %s637 = scalar_lea.vmem %s5, %s636
          // Predicated region
          $region94: #{net_forward.18} parent=92 // pred_check
            _
          $region95: #{net_forward.18} parent=92 // pred_check_branch
            %639 = sbr.rel (0) target = $region97
          $region96: #{net_forward.18} parent=92 // pred_region
            // Predicated region
            $region98: #{net_forward.18} parent=96 // pred_check
              _
            $region99: #{net_forward.18} parent=96 // pred_check_branch
              %641 = sbr.rel target = $region101
            $region100: #{net_forward.18} parent=96 // pred_region
              // Predicated region
              $region113: #{net_forward.18} parent=100 // pred_check
                _
              $region114: #{net_forward.18} parent=100 // pred_check_branch
                %666 = sbr.rel (0) target = $region116
              $region115: #{net_forward.18} parent=100 // pred_region
                loop: start=0, step=1, limit=1
                $region117: #{net_forward.18} parent=115 // loop_pre_header
                  _
                $region118: #{net_forward.18} parent=115 // loop_header
                  %s668 = sphi 0, %s672
                  %p669 = scmp.ge.s32.totalorder %s668, 1
                  %s673 = sphi %s632, %s632
                  %s674 = sphi %s637, %s637
                $region119: #{net_forward.18} parent=115 // loop_header_branch
                  %671 = sbr.rel (%p669) target = $region123
                $region120: #{net_forward.18} parent=115 // loop_body
                  _
                $region121: #{net_forward.18} parent=115 // loop_footer
                  %s672 = sadd.s32 1, %s668
                $region122: #{net_forward.18} parent=115 // loop_footer_branch
                  %667 = sbr.rel target = $region118
                $region123: #{net_forward.18} parent=115 // loop_exit
                  _
                loop: start=0, step=1, limit=1
                $region124: #{net_forward.18} parent=115 // loop_pre_header
                  _
                $region125: #{net_forward.18} parent=115 // loop_header
                  %s677 = sphi 0, %s681
                  %p678 = scmp.ge.s32.totalorder %s677, 1
                  %s682 = sphi %s632, %s632
                  %s683 = sphi %s637, %s637
                $region126: #{net_forward.18} parent=115 // loop_header_branch
                  %680 = sbr.rel (%p678) target = $region130
                $region127: #{net_forward.18} parent=115 // loop_body
                  %v684 = vld [vmem:[%s682] sm:$0x3]
                  %685 = vst [vmem:[%s683] sm:$0x3] %v684
                  %v686 = vld [vmem:[%s682 + $0x2] sm:$0x3]
                  %687 = vst [vmem:[%s683 + $0x4] sm:$0x3] %v686
                  %v688 = vld [vmem:[%s682 + $0x4] sm:$0x3]
                  %689 = vst [vmem:[%s683 + $0x8] sm:$0x3] %v688
                  %v690 = vld [vmem:[%s682 + $0x6] sm:$0x3]
                  %691 = vst [vmem:[%s683 + $0xc] sm:$0x3] %v690
                  %v692 = vld [vmem:[%s682 + $0x8] sm:$0x3]
                  %693 = vst [vmem:[%s683 + $0x10] sm:$0x3] %v692
                  %v694 = vld [vmem:[%s682 + $0xa] sm:$0x3]
                  %695 = vst [vmem:[%s683 + $0x14] sm:$0x3] %v694
                $region128: #{net_forward.18} parent=115 // loop_footer
                  %s681 = sadd.s32 1, %s677
                $region129: #{net_forward.18} parent=115 // loop_footer_branch
                  %676 = sbr.rel target = $region125
                $region130: #{net_forward.18} parent=115 // loop_exit
                  _
              $region116: #{net_forward.18} parent=100 // pred_fallthru
                _
            $region101: #{net_forward.18} parent=96 // pred_fallthru
              _
            // Predicated region
            $region102: #{net_forward.18} parent=96 // pred_check
              _
            $region103: #{net_forward.18} parent=96 // pred_check_branch
              %643 = sbr.rel (0) target = $region105
            $region104: #{net_forward.18} parent=96 // pred_region
              loop: start=0, step=1, limit=1
              $region106: #{net_forward.18} parent=104 // loop_pre_header
                _
              $region107: #{net_forward.18} parent=104 // loop_header
                %s646 = sphi 0, %s650
                %p647 = scmp.ge.s32.totalorder %s646, 1
                %s651 = sphi %s632, %s632
                %s652 = sphi %s637, %s637
              $region108: #{net_forward.18} parent=104 // loop_header_branch
                %649 = sbr.rel (%p647) target = $region112
              $region109: #{net_forward.18} parent=104 // loop_body
                %v653 = vld [vmem:[%s651] sm:$0x3]
                %654 = vst [vmem:[%s652] sm:$0x3] %v653
                %v655 = vld [vmem:[%s651 + $0x2] sm:$0x3]
                %656 = vst [vmem:[%s652 + $0x4] sm:$0x3] %v655
                %v657 = vld [vmem:[%s651 + $0x4] sm:$0x3]
                %658 = vst [vmem:[%s652 + $0x8] sm:$0x3] %v657
                %v659 = vld [vmem:[%s651 + $0x6] sm:$0x3]
                %660 = vst [vmem:[%s652 + $0xc] sm:$0x3] %v659
                %v661 = vld [vmem:[%s651 + $0x8] sm:$0x3]
                %662 = vst [vmem:[%s652 + $0x10] sm:$0x3] %v661
                %v663 = vld [vmem:[%s651 + $0xa] sm:$0x3]
                %664 = vst [vmem:[%s652 + $0x14] sm:$0x3] %v663
              $region110: #{net_forward.18} parent=104 // loop_footer
                %s650 = sadd.s32 1, %s646
              $region111: #{net_forward.18} parent=104 // loop_footer_branch
                %645 = sbr.rel target = $region107
              $region112: #{net_forward.18} parent=104 // loop_exit
                _
            $region105: #{net_forward.18} parent=96 // pred_fallthru
              _
          $region97: #{net_forward.18} parent=92 // pred_fallthru
            _
          %696 = vnop
        $region93: #{net_forward.18} parent=73 // pred_fallthru
          _
      $region74: #{net_forward.18} parent=5 // pred_fallthru
        _
      %p697 = scmp.le.s32.totalorder 2, %s14
      // Predicated region
      $region131: #{net_forward.18} parent=5 // pred_check
        %p698 = pneg %p697
      $region132: #{net_forward.18} parent=5 // pred_check_branch
        %700 = sbr.rel (%p698) target = $region134
      $region133: #{net_forward.18} parent=5 // pred_region
        %s701 = ssub.s32 %s14, 2
        // Predicated region
        $region135: #{net_forward.18} parent=133 // pred_check
          %p702 = pneg %p168
        $region136: #{net_forward.18} parent=133 // pred_check_branch
          %704 = sbr.rel (%p702) target = $region138
        $region137: #{net_forward.18} parent=133 // pred_region
          %s705 = sand.u32 %s153, 1
          %s706 = sand.u32 %s153, 1
          %s707 = smul.addr %s706, 12
          %s708 = scalar_lea.vmem [#allocation7], %s707
        $region138: #{net_forward.18} parent=133 // pred_fallthru
          _
      $region134: #{net_forward.18} parent=5 // pred_fallthru
        _
    $region6: #{net_forward.18} parent=1 // loop_footer
      %s18 = sadd.s32 1, %s14
    $region7: #{net_forward.18} parent=1 // loop_footer_branch
      %13 = sbr.rel target = $region3
    $region8: #{net_forward.18} parent=1 // loop_exit
      _
    %709 = vsyncpa [#allocation6], 1
    %s710 = scalar_lea.sflag [#allocation6], 1
    %711 = vsyncpa %s710, 1

// kernel: net_forward.19
$region0: #{net_forward.19}
  #allocation0 [shape = 'u32[]', space=smem, size = 0x4, offset = 0x4, fixed_abs, tag = 'smem constant byte address 0x4 - core index']
  #allocation1 [shape = 'u32[144,128]{1,0:T(1,128)}', space=vmem, size = 0x12000, scoped, tag = 'internal scratch']
  %s0 = inlined_call_operand.vmem [shape: f32[16,256], index: 0, kind: input, shape index: {}]
  %s1 = inlined_call_operand.vmem [shape: f32[256,1024], index: 1, kind: input, shape index: {}]
  %s2 = inlined_call_operand.vmem [shape: f32[1,1024], index: 2, kind: input, shape index: {}]
  %s3 = inlined_call_operand.vmem [shape: f32[16,1024], index: 3, kind: output, shape index: {}]
  %s4 = sld [smem:[#allocation0]]
  $region22: #{net_forward.19} parent=0
    _
  %s6 = ssub.s32 1, %s4
  %s7 = scalar_select 0, %s6, %s4
  // Predicated region
  $region2: #{net_forward.19} parent=0 // pred_check
    _
  $region3: #{net_forward.19} parent=0 // pred_check_branch
    %9 = sbr.rel (0) target = $region5
  $region4: #{net_forward.19} parent=0 // pred_region
    _
  $region5: #{net_forward.19} parent=0 // pred_fallthru
    _
  // Predicated region
  $region6: #{net_forward.19} parent=0 // pred_check
    _
  $region7: #{net_forward.19} parent=0 // pred_check_branch
    %11 = sbr.rel (0) target = $region9
  $region8: #{net_forward.19} parent=0 // pred_region
    _
  $region9: #{net_forward.19} parent=0 // pred_fallthru
    _
  // Predicated region
  $region10: #{net_forward.19} parent=0 // pred_check
    _
  $region11: #{net_forward.19} parent=0 // pred_check_branch
    %13 = sbr.rel (0) target = $region13
  $region12: #{net_forward.19} parent=0 // pred_region
    _
  $region13: #{net_forward.19} parent=0 // pred_fallthru
    _
  %v14 = vld [vmem:[%s0] sm:$0xff]
  %v15 = vld [vmem:[%s0 + $0x8] sm:$0xff]
  %v16 = vld [vmem:[%s0 + $0x10] sm:$0xff]
  %v17 = vld [vmem:[%s0 + $0x18] sm:$0xff]
  %v18 = vpack.c.bf16 %v16, %v14
  %v19 = vpack.c.bf16 %v17, %v15
  %v20 = vld [vmem:[%s1] sm:$0xff]
  %v21 = vld [vmem:[%s1 + $0x8] sm:$0xff]
  %v22 = vld [vmem:[%s1 + $0x10] sm:$0xff]
  %v23 = vld [vmem:[%s1 + $0x18] sm:$0xff]
  %v24 = vld [vmem:[%s1 + $0x20] sm:$0xff]
  %v25 = vld [vmem:[%s1 + $0x28] sm:$0xff]
  %v26 = vld [vmem:[%s1 + $0x30] sm:$0xff]
  %v27 = vld [vmem:[%s1 + $0x38] sm:$0xff]
  %v28 = vld [vmem:[%s1 + $0x40] sm:$0xff]
  %v29 = vld [vmem:[%s1 + $0x48] sm:$0xff]
  %v30 = vld [vmem:[%s1 + $0x50] sm:$0xff]
  %v31 = vld [vmem:[%s1 + $0x58] sm:$0xff]
  %v32 = vld [vmem:[%s1 + $0x60] sm:$0xff]
  %v33 = vld [vmem:[%s1 + $0x68] sm:$0xff]
  %v34 = vld [vmem:[%s1 + $0x70] sm:$0xff]
  %v35 = vld [vmem:[%s1 + $0x78] sm:$0xff]
  %v36 = vld [vmem:[%s1 + $0x80] sm:$0xff]
  %v37 = vld [vmem:[%s1 + $0x88] sm:$0xff]
  %v38 = vld [vmem:[%s1 + $0x90] sm:$0xff]
  %v39 = vld [vmem:[%s1 + $0x98] sm:$0xff]
  %v40 = vld [vmem:[%s1 + $0xa0] sm:$0xff]
  %v41 = vld [vmem:[%s1 + $0xa8] sm:$0xff]
  %v42 = vld [vmem:[%s1 + $0xb0] sm:$0xff]
  %v43 = vld [vmem:[%s1 + $0xb8] sm:$0xff]
  %v44 = vld [vmem:[%s1 + $0xc0] sm:$0xff]
  %v45 = vld [vmem:[%s1 + $0xc8] sm:$0xff]
  %v46 = vld [vmem:[%s1 + $0xd0] sm:$0xff]
  %v47 = vld [vmem:[%s1 + $0xd8] sm:$0xff]
  %v48 = vld [vmem:[%s1 + $0xe0] sm:$0xff]
  %v49 = vld [vmem:[%s1 + $0xe8] sm:$0xff]
  %v50 = vld [vmem:[%s1 + $0xf0] sm:$0xff]
  %v51 = vld [vmem:[%s1 + $0xf8] sm:$0xff]
  %v52 = vld [vmem:[%s1 + $0x100] sm:$0xff]
  %v53 = vld [vmem:[%s1 + $0x108] sm:$0xff]
  %v54 = vld [vmem:[%s1 + $0x110] sm:$0xff]
  %v55 = vld [vmem:[%s1 + $0x118] sm:$0xff]
  %v56 = vld [vmem:[%s1 + $0x120] sm:$0xff]
  %v57 = vld [vmem:[%s1 + $0x128] sm:$0xff]
  %v58 = vld [vmem:[%s1 + $0x130] sm:$0xff]
  %v59 = vld [vmem:[%s1 + $0x138] sm:$0xff]
  %v60 = vld [vmem:[%s1 + $0x140] sm:$0xff]
  %v61 = vld [vmem:[%s1 + $0x148] sm:$0xff]
  %v62 = vld [vmem:[%s1 + $0x150] sm:$0xff]
  %v63 = vld [vmem:[%s1 + $0x158] sm:$0xff]
  %v64 = vld [vmem:[%s1 + $0x160] sm:$0xff]
  %v65 = vld [vmem:[%s1 + $0x168] sm:$0xff]
  %v66 = vld [vmem:[%s1 + $0x170] sm:$0xff]
  %v67 = vld [vmem:[%s1 + $0x178] sm:$0xff]
  %v68 = vld [vmem:[%s1 + $0x180] sm:$0xff]
  %v69 = vld [vmem:[%s1 + $0x188] sm:$0xff]
  %v70 = vld [vmem:[%s1 + $0x190] sm:$0xff]
  %v71 = vld [vmem:[%s1 + $0x198] sm:$0xff]
  %v72 = vld [vmem:[%s1 + $0x1a0] sm:$0xff]
  %v73 = vld [vmem:[%s1 + $0x1a8] sm:$0xff]
  %v74 = vld [vmem:[%s1 + $0x1b0] sm:$0xff]
  %v75 = vld [vmem:[%s1 + $0x1b8] sm:$0xff]
  %v76 = vld [vmem:[%s1 + $0x1c0] sm:$0xff]
  %v77 = vld [vmem:[%s1 + $0x1c8] sm:$0xff]
  %v78 = vld [vmem:[%s1 + $0x1d0] sm:$0xff]
  %v79 = vld [vmem:[%s1 + $0x1d8] sm:$0xff]
  %v80 = vld [vmem:[%s1 + $0x1e0] sm:$0xff]
  %v81 = vld [vmem:[%s1 + $0x1e8] sm:$0xff]
  %v82 = vld [vmem:[%s1 + $0x1f0] sm:$0xff]
  %v83 = vld [vmem:[%s1 + $0x1f8] sm:$0xff]
  %v84 = vld [vmem:[%s1 + $0x200] sm:$0xff]
  %v85 = vld [vmem:[%s1 + $0x208] sm:$0xff]
  %v86 = vld [vmem:[%s1 + $0x210] sm:$0xff]
  %v87 = vld [vmem:[%s1 + $0x218] sm:$0xff]
  %v88 = vld [vmem:[%s1 + $0x220] sm:$0xff]
  %v89 = vld [vmem:[%s1 + $0x228] sm:$0xff]
  %v90 = vld [vmem:[%s1 + $0x230] sm:$0xff]
  %v91 = vld [vmem:[%s1 + $0x238] sm:$0xff]
  %v92 = vld [vmem:[%s1 + $0x240] sm:$0xff]
  %v93 = vld [vmem:[%s1 + $0x248] sm:$0xff]
  %v94 = vld [vmem:[%s1 + $0x250] sm:$0xff]
  %v95 = vld [vmem:[%s1 + $0x258] sm:$0xff]
  %v96 = vld [vmem:[%s1 + $0x260] sm:$0xff]
  %v97 = vld [vmem:[%s1 + $0x268] sm:$0xff]
  %v98 = vld [vmem:[%s1 + $0x270] sm:$0xff]
  %v99 = vld [vmem:[%s1 + $0x278] sm:$0xff]
  %v100 = vld [vmem:[%s1 + $0x280] sm:$0xff]
  %v101 = vld [vmem:[%s1 + $0x288] sm:$0xff]
  %v102 = vld [vmem:[%s1 + $0x290] sm:$0xff]
  %v103 = vld [vmem:[%s1 + $0x298] sm:$0xff]
  %v104 = vld [vmem:[%s1 + $0x2a0] sm:$0xff]
  %v105 = vld [vmem:[%s1 + $0x2a8] sm:$0xff]
  %v106 = vld [vmem:[%s1 + $0x2b0] sm:$0xff]
  %v107 = vld [vmem:[%s1 + $0x2b8] sm:$0xff]
  %v108 = vld [vmem:[%s1 + $0x2c0] sm:$0xff]
  %v109 = vld [vmem:[%s1 + $0x2c8] sm:$0xff]
  %v110 = vld [vmem:[%s1 + $0x2d0] sm:$0xff]
  %v111 = vld [vmem:[%s1 + $0x2d8] sm:$0xff]
  %v112 = vld [vmem:[%s1 + $0x2e0] sm:$0xff]
  %v113 = vld [vmem:[%s1 + $0x2e8] sm:$0xff]
  %v114 = vld [vmem:[%s1 + $0x2f0] sm:$0xff]
  %v115 = vld [vmem:[%s1 + $0x2f8] sm:$0xff]
  %v116 = vld [vmem:[%s1 + $0x300] sm:$0xff]
  %v117 = vld [vmem:[%s1 + $0x308] sm:$0xff]
  %v118 = vld [vmem:[%s1 + $0x310] sm:$0xff]
  %v119 = vld [vmem:[%s1 + $0x318] sm:$0xff]
  %v120 = vld [vmem:[%s1 + $0x320] sm:$0xff]
  %v121 = vld [vmem:[%s1 + $0x328] sm:$0xff]
  %v122 = vld [vmem:[%s1 + $0x330] sm:$0xff]
  %v123 = vld [vmem:[%s1 + $0x338] sm:$0xff]
  %v124 = vld [vmem:[%s1 + $0x340] sm:$0xff]
  %v125 = vld [vmem:[%s1 + $0x348] sm:$0xff]
  %v126 = vld [vmem:[%s1 + $0x350] sm:$0xff]
  %v127 = vld [vmem:[%s1 + $0x358] sm:$0xff]
  %v128 = vld [vmem:[%s1 + $0x360] sm:$0xff]
  %v129 = vld [vmem:[%s1 + $0x368] sm:$0xff]
  %v130 = vld [vmem:[%s1 + $0x370] sm:$0xff]
  %v131 = vld [vmem:[%s1 + $0x378] sm:$0xff]
  %v132 = vld [vmem:[%s1 + $0x380] sm:$0xff]
  %v133 = vld [vmem:[%s1 + $0x388] sm:$0xff]
  %v134 = vld [vmem:[%s1 + $0x390] sm:$0xff]
  %v135 = vld [vmem:[%s1 + $0x398] sm:$0xff]
  %v136 = vld [vmem:[%s1 + $0x3a0] sm:$0xff]
  %v137 = vld [vmem:[%s1 + $0x3a8] sm:$0xff]
  %v138 = vld [vmem:[%s1 + $0x3b0] sm:$0xff]
  %v139 = vld [vmem:[%s1 + $0x3b8] sm:$0xff]
  %v140 = vld [vmem:[%s1 + $0x3c0] sm:$0xff]
  %v141 = vld [vmem:[%s1 + $0x3c8] sm:$0xff]
  %v142 = vld [vmem:[%s1 + $0x3d0] sm:$0xff]
  %v143 = vld [vmem:[%s1 + $0x3d8] sm:$0xff]
  %v144 = vld [vmem:[%s1 + $0x3e0] sm:$0xff]
  %v145 = vld [vmem:[%s1 + $0x3e8] sm:$0xff]
  %v146 = vld [vmem:[%s1 + $0x3f0] sm:$0xff]
  %v147 = vld [vmem:[%s1 + $0x3f8] sm:$0xff]
  %v148 = vld [vmem:[%s1 + $0x400] sm:$0xff]
  %v149 = vld [vmem:[%s1 + $0x408] sm:$0xff]
  %v150 = vld [vmem:[%s1 + $0x410] sm:$0xff]
  %v151 = vld [vmem:[%s1 + $0x418] sm:$0xff]
  %v152 = vld [vmem:[%s1 + $0x420] sm:$0xff]
  %v153 = vld [vmem:[%s1 + $0x428] sm:$0xff]
  %v154 = vld [vmem:[%s1 + $0x430] sm:$0xff]
  %v155 = vld [vmem:[%s1 + $0x438] sm:$0xff]
  %v156 = vld [vmem:[%s1 + $0x440] sm:$0xff]
  %v157 = vld [vmem:[%s1 + $0x448] sm:$0xff]
  %v158 = vld [vmem:[%s1 + $0x450] sm:$0xff]
  %v159 = vld [vmem:[%s1 + $0x458] sm:$0xff]
  %v160 = vld [vmem:[%s1 + $0x460] sm:$0xff]
  %v161 = vld [vmem:[%s1 + $0x468] sm:$0xff]
  %v162 = vld [vmem:[%s1 + $0x470] sm:$0xff]
  %v163 = vld [vmem:[%s1 + $0x478] sm:$0xff]
  %v164 = vld [vmem:[%s1 + $0x480] sm:$0xff]
  %v165 = vld [vmem:[%s1 + $0x488] sm:$0xff]
  %v166 = vld [vmem:[%s1 + $0x490] sm:$0xff]
  %v167 = vld [vmem:[%s1 + $0x498] sm:$0xff]
  %v168 = vld [vmem:[%s1 + $0x4a0] sm:$0xff]
  %v169 = vld [vmem:[%s1 + $0x4a8] sm:$0xff]
  %v170 = vld [vmem:[%s1 + $0x4b0] sm:$0xff]
  %v171 = vld [vmem:[%s1 + $0x4b8] sm:$0xff]
  %v172 = vld [vmem:[%s1 + $0x4c0] sm:$0xff]
  %v173 = vld [vmem:[%s1 + $0x4c8] sm:$0xff]
  %v174 = vld [vmem:[%s1 + $0x4d0] sm:$0xff]
  %v175 = vld [vmem:[%s1 + $0x4d8] sm:$0xff]
  %v176 = vld [vmem:[%s1 + $0x4e0] sm:$0xff]
  %v177 = vld [vmem:[%s1 + $0x4e8] sm:$0xff]
  %v178 = vld [vmem:[%s1 + $0x4f0] sm:$0xff]
  %v179 = vld [vmem:[%s1 + $0x4f8] sm:$0xff]
  %v180 = vld [vmem:[%s1 + $0x500] sm:$0xff]
  %v181 = vld [vmem:[%s1 + $0x508] sm:$0xff]
  %v182 = vld [vmem:[%s1 + $0x510] sm:$0xff]
  %v183 = vld [vmem:[%s1 + $0x518] sm:$0xff]
  %v184 = vld [vmem:[%s1 + $0x520] sm:$0xff]
  %v185 = vld [vmem:[%s1 + $0x528] sm:$0xff]
  %v186 = vld [vmem:[%s1 + $0x530] sm:$0xff]
  %v187 = vld [vmem:[%s1 + $0x538] sm:$0xff]
  %v188 = vld [vmem:[%s1 + $0x540] sm:$0xff]
  %v189 = vld [vmem:[%s1 + $0x548] sm:$0xff]
  %v190 = vld [vmem:[%s1 + $0x550] sm:$0xff]
  %v191 = vld [vmem:[%s1 + $0x558] sm:$0xff]
  %v192 = vld [vmem:[%s1 + $0x560] sm:$0xff]
  %v193 = vld [vmem:[%s1 + $0x568] sm:$0xff]
  %v194 = vld [vmem:[%s1 + $0x570] sm:$0xff]
  %v195 = vld [vmem:[%s1 + $0x578] sm:$0xff]
  %v196 = vld [vmem:[%s1 + $0x580] sm:$0xff]
  %v197 = vld [vmem:[%s1 + $0x588] sm:$0xff]
  %v198 = vld [vmem:[%s1 + $0x590] sm:$0xff]
  %v199 = vld [vmem:[%s1 + $0x598] sm:$0xff]
  %v200 = vld [vmem:[%s1 + $0x5a0] sm:$0xff]
  %v201 = vld [vmem:[%s1 + $0x5a8] sm:$0xff]
  %v202 = vld [vmem:[%s1 + $0x5b0] sm:$0xff]
  %v203 = vld [vmem:[%s1 + $0x5b8] sm:$0xff]
  %v204 = vld [vmem:[%s1 + $0x5c0] sm:$0xff]
  %v205 = vld [vmem:[%s1 + $0x5c8] sm:$0xff]
  %v206 = vld [vmem:[%s1 + $0x5d0] sm:$0xff]
  %v207 = vld [vmem:[%s1 + $0x5d8] sm:$0xff]
  %v208 = vld [vmem:[%s1 + $0x5e0] sm:$0xff]
  %v209 = vld [vmem:[%s1 + $0x5e8] sm:$0xff]
  %v210 = vld [vmem:[%s1 + $0x5f0] sm:$0xff]
  %v211 = vld [vmem:[%s1 + $0x5f8] sm:$0xff]
  %v212 = vld [vmem:[%s1 + $0x600] sm:$0xff]
  %v213 = vld [vmem:[%s1 + $0x608] sm:$0xff]
  %v214 = vld [vmem:[%s1 + $0x610] sm:$0xff]
  %v215 = vld [vmem:[%s1 + $0x618] sm:$0xff]
  %v216 = vld [vmem:[%s1 + $0x620] sm:$0xff]
  %v217 = vld [vmem:[%s1 + $0x628] sm:$0xff]
  %v218 = vld [vmem:[%s1 + $0x630] sm:$0xff]
  %v219 = vld [vmem:[%s1 + $0x638] sm:$0xff]
  %v220 = vld [vmem:[%s1 + $0x640] sm:$0xff]
  %v221 = vld [vmem:[%s1 + $0x648] sm:$0xff]
  %v222 = vld [vmem:[%s1 + $0x650] sm:$0xff]
  %v223 = vld [vmem:[%s1 + $0x658] sm:$0xff]
  %v224 = vld [vmem:[%s1 + $0x660] sm:$0xff]
  %v225 = vld [vmem:[%s1 + $0x668] sm:$0xff]
  %v226 = vld [vmem:[%s1 + $0x670] sm:$0xff]
  %v227 = vld [vmem:[%s1 + $0x678] sm:$0xff]
  %v228 = vld [vmem:[%s1 + $0x680] sm:$0xff]
  %v229 = vld [vmem:[%s1 + $0x688] sm:$0xff]
  %v230 = vld [vmem:[%s1 + $0x690] sm:$0xff]
  %v231 = vld [vmem:[%s1 + $0x698] sm:$0xff]
  %v232 = vld [vmem:[%s1 + $0x6a0] sm:$0xff]
  %v233 = vld [vmem:[%s1 + $0x6a8] sm:$0xff]
  %v234 = vld [vmem:[%s1 + $0x6b0] sm:$0xff]
  %v235 = vld [vmem:[%s1 + $0x6b8] sm:$0xff]
  %v236 = vld [vmem:[%s1 + $0x6c0] sm:$0xff]
  %v237 = vld [vmem:[%s1 + $0x6c8] sm:$0xff]
  %v238 = vld [vmem:[%s1 + $0x6d0] sm:$0xff]
  %v239 = vld [vmem:[%s1 + $0x6d8] sm:$0xff]
  %v240 = vld [vmem:[%s1 + $0x6e0] sm:$0xff]
  %v241 = vld [vmem:[%s1 + $0x6e8] sm:$0xff]
  %v242 = vld [vmem:[%s1 + $0x6f0] sm:$0xff]
  %v243 = vld [vmem:[%s1 + $0x6f8] sm:$0xff]
  %v244 = vld [vmem:[%s1 + $0x700] sm:$0xff]
  %v245 = vld [vmem:[%s1 + $0x708] sm:$0xff]
  %v246 = vld [vmem:[%s1 + $0x710] sm:$0xff]
  %v247 = vld [vmem:[%s1 + $0x718] sm:$0xff]
  %v248 = vld [vmem:[%s1 + $0x720] sm:$0xff]
  %v249 = vld [vmem:[%s1 + $0x728] sm:$0xff]
  %v250 = vld [vmem:[%s1 + $0x730] sm:$0xff]
  %v251 = vld [vmem:[%s1 + $0x738] sm:$0xff]
  %v252 = vld [vmem:[%s1 + $0x740] sm:$0xff]
  %v253 = vld [vmem:[%s1 + $0x748] sm:$0xff]
  %v254 = vld [vmem:[%s1 + $0x750] sm:$0xff]
  %v255 = vld [vmem:[%s1 + $0x758] sm:$0xff]
  %v256 = vld [vmem:[%s1 + $0x760] sm:$0xff]
  %v257 = vld [vmem:[%s1 + $0x768] sm:$0xff]
  %v258 = vld [vmem:[%s1 + $0x770] sm:$0xff]
  %v259 = vld [vmem:[%s1 + $0x778] sm:$0xff]
  %v260 = vld [vmem:[%s1 + $0x780] sm:$0xff]
  %v261 = vld [vmem:[%s1 + $0x788] sm:$0xff]
  %v262 = vld [vmem:[%s1 + $0x790] sm:$0xff]
  %v263 = vld [vmem:[%s1 + $0x798] sm:$0xff]
  %v264 = vld [vmem:[%s1 + $0x7a0] sm:$0xff]
  %v265 = vld [vmem:[%s1 + $0x7a8] sm:$0xff]
  %v266 = vld [vmem:[%s1 + $0x7b0] sm:$0xff]
  %v267 = vld [vmem:[%s1 + $0x7b8] sm:$0xff]
  %v268 = vld [vmem:[%s1 + $0x7c0] sm:$0xff]
  %v269 = vld [vmem:[%s1 + $0x7c8] sm:$0xff]
  %v270 = vld [vmem:[%s1 + $0x7d0] sm:$0xff]
  %v271 = vld [vmem:[%s1 + $0x7d8] sm:$0xff]
  %v272 = vld [vmem:[%s1 + $0x7e0] sm:$0xff]
  %v273 = vld [vmem:[%s1 + $0x7e8] sm:$0xff]
  %v274 = vld [vmem:[%s1 + $0x7f0] sm:$0xff]
  %v275 = vld [vmem:[%s1 + $0x7f8] sm:$0xff]
  %v276 = vpack.c.bf16 %v28, %v20
  %v277 = vpack.c.bf16 %v29, %v21
  %v278 = vpack.c.bf16 %v30, %v22
  %v279 = vpack.c.bf16 %v31, %v23
  %v280 = vpack.c.bf16 %v32, %v24
  %v281 = vpack.c.bf16 %v33, %v25
  %v282 = vpack.c.bf16 %v34, %v26
  %v283 = vpack.c.bf16 %v35, %v27
  %v284 = vpack.c.bf16 %v44, %v36
  %v285 = vpack.c.bf16 %v45, %v37
  %v286 = vpack.c.bf16 %v46, %v38
  %v287 = vpack.c.bf16 %v47, %v39
  %v288 = vpack.c.bf16 %v48, %v40
  %v289 = vpack.c.bf16 %v49, %v41
  %v290 = vpack.c.bf16 %v50, %v42
  %v291 = vpack.c.bf16 %v51, %v43
  %v292 = vpack.c.bf16 %v60, %v52
  %v293 = vpack.c.bf16 %v61, %v53
  %v294 = vpack.c.bf16 %v62, %v54
  %v295 = vpack.c.bf16 %v63, %v55
  %v296 = vpack.c.bf16 %v64, %v56
  %v297 = vpack.c.bf16 %v65, %v57
  %v298 = vpack.c.bf16 %v66, %v58
  %v299 = vpack.c.bf16 %v67, %v59
  %v300 = vpack.c.bf16 %v76, %v68
  %v301 = vpack.c.bf16 %v77, %v69
  %v302 = vpack.c.bf16 %v78, %v70
  %v303 = vpack.c.bf16 %v79, %v71
  %v304 = vpack.c.bf16 %v80, %v72
  %v305 = vpack.c.bf16 %v81, %v73
  %v306 = vpack.c.bf16 %v82, %v74
  %v307 = vpack.c.bf16 %v83, %v75
  %v308 = vpack.c.bf16 %v92, %v84
  %v309 = vpack.c.bf16 %v93, %v85
  %v310 = vpack.c.bf16 %v94, %v86
  %v311 = vpack.c.bf16 %v95, %v87
  %v312 = vpack.c.bf16 %v96, %v88
  %v313 = vpack.c.bf16 %v97, %v89
  %v314 = vpack.c.bf16 %v98, %v90
  %v315 = vpack.c.bf16 %v99, %v91
  %v316 = vpack.c.bf16 %v108, %v100
  %v317 = vpack.c.bf16 %v109, %v101
  %v318 = vpack.c.bf16 %v110, %v102
  %v319 = vpack.c.bf16 %v111, %v103
  %v320 = vpack.c.bf16 %v112, %v104
  %v321 = vpack.c.bf16 %v113, %v105
  %v322 = vpack.c.bf16 %v114, %v106
  %v323 = vpack.c.bf16 %v115, %v107
  %v324 = vpack.c.bf16 %v124, %v116
  %v325 = vpack.c.bf16 %v125, %v117
  %v326 = vpack.c.bf16 %v126, %v118
  %v327 = vpack.c.bf16 %v127, %v119
  %v328 = vpack.c.bf16 %v128, %v120
  %v329 = vpack.c.bf16 %v129, %v121
  %v330 = vpack.c.bf16 %v130, %v122
  %v331 = vpack.c.bf16 %v131, %v123
  %v332 = vpack.c.bf16 %v140, %v132
  %v333 = vpack.c.bf16 %v141, %v133
  %v334 = vpack.c.bf16 %v142, %v134
  %v335 = vpack.c.bf16 %v143, %v135
  %v336 = vpack.c.bf16 %v144, %v136
  %v337 = vpack.c.bf16 %v145, %v137
  %v338 = vpack.c.bf16 %v146, %v138
  %v339 = vpack.c.bf16 %v147, %v139
  %v340 = vpack.c.bf16 %v156, %v148
  %v341 = vpack.c.bf16 %v157, %v149
  %v342 = vpack.c.bf16 %v158, %v150
  %v343 = vpack.c.bf16 %v159, %v151
  %v344 = vpack.c.bf16 %v160, %v152
  %v345 = vpack.c.bf16 %v161, %v153
  %v346 = vpack.c.bf16 %v162, %v154
  %v347 = vpack.c.bf16 %v163, %v155
  %v348 = vpack.c.bf16 %v172, %v164
  %v349 = vpack.c.bf16 %v173, %v165
  %v350 = vpack.c.bf16 %v174, %v166
  %v351 = vpack.c.bf16 %v175, %v167
  %v352 = vpack.c.bf16 %v176, %v168
  %v353 = vpack.c.bf16 %v177, %v169
  %v354 = vpack.c.bf16 %v178, %v170
  %v355 = vpack.c.bf16 %v179, %v171
  %v356 = vpack.c.bf16 %v188, %v180
  %v357 = vpack.c.bf16 %v189, %v181
  %v358 = vpack.c.bf16 %v190, %v182
  %v359 = vpack.c.bf16 %v191, %v183
  %v360 = vpack.c.bf16 %v192, %v184
  %v361 = vpack.c.bf16 %v193, %v185
  %v362 = vpack.c.bf16 %v194, %v186
  %v363 = vpack.c.bf16 %v195, %v187
  %v364 = vpack.c.bf16 %v204, %v196
  %v365 = vpack.c.bf16 %v205, %v197
  %v366 = vpack.c.bf16 %v206, %v198
  %v367 = vpack.c.bf16 %v207, %v199
  %v368 = vpack.c.bf16 %v208, %v200
  %v369 = vpack.c.bf16 %v209, %v201
  %v370 = vpack.c.bf16 %v210, %v202
  %v371 = vpack.c.bf16 %v211, %v203
  %v372 = vpack.c.bf16 %v220, %v212
  %v373 = vpack.c.bf16 %v221, %v213
  %v374 = vpack.c.bf16 %v222, %v214
  %v375 = vpack.c.bf16 %v223, %v215
  %v376 = vpack.c.bf16 %v224, %v216
  %v377 = vpack.c.bf16 %v225, %v217
  %v378 = vpack.c.bf16 %v226, %v218
  %v379 = vpack.c.bf16 %v227, %v219
  %v380 = vpack.c.bf16 %v236, %v228
  %v381 = vpack.c.bf16 %v237, %v229
  %v382 = vpack.c.bf16 %v238, %v230
  %v383 = vpack.c.bf16 %v239, %v231
  %v384 = vpack.c.bf16 %v240, %v232
  %v385 = vpack.c.bf16 %v241, %v233
  %v386 = vpack.c.bf16 %v242, %v234
  %v387 = vpack.c.bf16 %v243, %v235
  %v388 = vpack.c.bf16 %v252, %v244
  %v389 = vpack.c.bf16 %v253, %v245
  %v390 = vpack.c.bf16 %v254, %v246
  %v391 = vpack.c.bf16 %v255, %v247
  %v392 = vpack.c.bf16 %v256, %v248
  %v393 = vpack.c.bf16 %v257, %v249
  %v394 = vpack.c.bf16 %v258, %v250
  %v395 = vpack.c.bf16 %v259, %v251
  %v396 = vpack.c.bf16 %v268, %v260
  %v397 = vpack.c.bf16 %v269, %v261
  %v398 = vpack.c.bf16 %v270, %v262
  %v399 = vpack.c.bf16 %v271, %v263
  %v400 = vpack.c.bf16 %v272, %v264
  %v401 = vpack.c.bf16 %v273, %v265
  %v402 = vpack.c.bf16 %v274, %v266
  %v403 = vpack.c.bf16 %v275, %v267
  %v404 = vld [vmem:[%s2] sm:$0xff]
  %v406 = vlaneseq
  %v407 = vshrl.u32 %v406, 7
  %v408 = vsub.s32 0, %v407
  %v409 = vrot.slane %v404, %v408
  %v410 = vlaneseq
  %v411 = vshrl.u32 %v410, 7
  %v412 = vsub.s32 1, %v411
  %v413 = vrot.slane %v404, %v412
  %v414 = vlaneseq
  %v415 = vshrl.u32 %v414, 7
  %v416 = vsub.s32 2, %v415
  %v417 = vrot.slane %v404, %v416
  %v418 = vlaneseq
  %v419 = vshrl.u32 %v418, 7
  %v420 = vsub.s32 3, %v419
  %v421 = vrot.slane %v404, %v420
  %v422 = vlaneseq
  %v423 = vshrl.u32 %v422, 7
  %v424 = vsub.s32 4, %v423
  %v425 = vrot.slane %v404, %v424
  %v426 = vlaneseq
  %v427 = vshrl.u32 %v426, 7
  %v428 = vsub.s32 5, %v427
  %v429 = vrot.slane %v404, %v428
  %v430 = vlaneseq
  %v431 = vshrl.u32 %v430, 7
  %v432 = vsub.s32 6, %v431
  %v433 = vrot.slane %v404, %v432
  %v434 = vlaneseq
  %v435 = vshrl.u32 %v434, 7
  %v436 = vsub.s32 7, %v435
  %v437 = vrot.slane %v404, %v436
  %446 = vmatprep.subr.bf16.mxu0 %v277
  %447 = vmatpush1.bf16.msra.mxu0 %v276
  %448 = vmatprep.subr.bf16.mxu0 %v285
  %449 = vmatpush1.bf16.msra.mxu0 %v284
  %450 = vmatprep.subr.bf16.mxu0 %v293
  %451 = vmatpush1.bf16.msra.mxu0 %v292
  %452 = vmatprep.subr.bf16.mxu0 %v301
  %453 = vmatpush1.bf16.msra.mxu0 %v300
  %454 = vmatprep.subr.bf16.mxu0 %v309
  %455 = vmatpush1.bf16.msra.mxu0 %v308
  %456 = vmatprep.subr.bf16.mxu0 %v317
  %457 = vmatpush1.bf16.msra.mxu0 %v316
  %458 = vmatprep.subr.bf16.mxu0 %v325
  %459 = vmatpush1.bf16.msra.mxu0 %v324
  %460 = vmatprep.subr.bf16.mxu0 %v333
  %461 = vmatpush1.bf16.msra.mxu0 %v332
  %462 = vmatprep.subr.bf16.mxu0 %v341
  %463 = vmatpush1.bf16.msra.mxu0 %v340
  %464 = vmatprep.subr.bf16.mxu0 %v349
  %465 = vmatpush1.bf16.msra.mxu0 %v348
  %466 = vmatprep.subr.bf16.mxu0 %v357
  %467 = vmatpush1.bf16.msra.mxu0 %v356
  %468 = vmatprep.subr.bf16.mxu0 %v365
  %469 = vmatpush1.bf16.msra.mxu0 %v364
  %470 = vmatprep.subr.bf16.mxu0 %v373
  %471 = vmatpush1.bf16.msra.mxu0 %v372
  %472 = vmatprep.subr.bf16.mxu0 %v381
  %473 = vmatpush1.bf16.msra.mxu0 %v380
  %474 = vmatprep.subr.bf16.mxu0 %v389
  %475 = vmatpush1.bf16.msra.mxu0 %v388
  %476 = vmatprep.subr.bf16.mxu0 %v397
  %477 = vmatpush1.bf16.msra.mxu0 %v396
  %478 = vmatprep.mubr.bf16.mxu0 %v19
  %479 = vmatmul.mubr.bf16.gmra.mrb[0].mxu0 %v18
  %v480 = vpop.f32.mrb[0].mxu0
  %v481 = vadd.f32 %v409, %v480
  %v482 = vpop.f32.mrb[0].mxu0
  %v483 = vadd.f32 %v413, %v482
  %v484 = vpop.f32.mrb[0].mxu0
  %v485 = vadd.f32 %v409, %v484
  %v486 = vpop.f32.mrb[0].mxu0
  %v487 = vadd.f32 %v413, %v486
  %488 = vdwg.mxu0
  %489 = vmatprep.subr.bf16.mxu0 %v279
  %490 = vmatpush1.bf16.msra.mxu0 %v278
  %491 = vmatprep.subr.bf16.mxu0 %v287
  %492 = vmatpush1.bf16.msra.mxu0 %v286
  %493 = vmatprep.subr.bf16.mxu0 %v295
  %494 = vmatpush1.bf16.msra.mxu0 %v294
  %495 = vmatprep.subr.bf16.mxu0 %v303
  %496 = vmatpush1.bf16.msra.mxu0 %v302
  %497 = vmatprep.subr.bf16.mxu0 %v311
  %498 = vmatpush1.bf16.msra.mxu0 %v310
  %499 = vmatprep.subr.bf16.mxu0 %v319
  %500 = vmatpush1.bf16.msra.mxu0 %v318
  %501 = vmatprep.subr.bf16.mxu0 %v327
  %502 = vmatpush1.bf16.msra.mxu0 %v326
  %503 = vmatprep.subr.bf16.mxu0 %v335
  %504 = vmatpush1.bf16.msra.mxu0 %v334
  %505 = vmatprep.subr.bf16.mxu0 %v343
  %506 = vmatpush1.bf16.msra.mxu0 %v342
  %507 = vmatprep.subr.bf16.mxu0 %v351
  %508 = vmatpush1.bf16.msra.mxu0 %v350
  %509 = vmatprep.subr.bf16.mxu0 %v359
  %510 = vmatpush1.bf16.msra.mxu0 %v358
  %511 = vmatprep.subr.bf16.mxu0 %v367
  %512 = vmatpush1.bf16.msra.mxu0 %v366
  %513 = vmatprep.subr.bf16.mxu0 %v375
  %514 = vmatpush1.bf16.msra.mxu0 %v374
  %515 = vmatprep.subr.bf16.mxu0 %v383
  %516 = vmatpush1.bf16.msra.mxu0 %v382
  %517 = vmatprep.subr.bf16.mxu0 %v391
  %518 = vmatpush1.bf16.msra.mxu0 %v390
  %519 = vmatprep.subr.bf16.mxu0 %v399
  %520 = vmatpush1.bf16.msra.mxu0 %v398
  %521 = vmatprep.mubr.bf16.mxu0 %v19
  %522 = vmatmul.mubr.bf16.gmra.mrb[0].mxu0 %v18
  %v523 = vpop.f32.mrb[0].mxu0
  %v524 = vadd.f32 %v417, %v523
  %v525 = vpop.f32.mrb[0].mxu0
  %v526 = vadd.f32 %v421, %v525
  %v527 = vpop.f32.mrb[0].mxu0
  %v528 = vadd.f32 %v417, %v527
  %v529 = vpop.f32.mrb[0].mxu0
  %v530 = vadd.f32 %v421, %v529
  %531 = vdwg.mxu0
  %532 = vmatprep.subr.bf16.mxu0 %v281
  %533 = vmatpush1.bf16.msra.mxu0 %v280
  %534 = vmatprep.subr.bf16.mxu0 %v289
  %535 = vmatpush1.bf16.msra.mxu0 %v288
  %536 = vmatprep.subr.bf16.mxu0 %v297
  %537 = vmatpush1.bf16.msra.mxu0 %v296
  %538 = vmatprep.subr.bf16.mxu0 %v305
  %539 = vmatpush1.bf16.msra.mxu0 %v304
  %540 = vmatprep.subr.bf16.mxu0 %v313
  %541 = vmatpush1.bf16.msra.mxu0 %v312
  %542 = vmatprep.subr.bf16.mxu0 %v321
  %543 = vmatpush1.bf16.msra.mxu0 %v320
  %544 = vmatprep.subr.bf16.mxu0 %v329
  %545 = vmatpush1.bf16.msra.mxu0 %v328
  %546 = vmatprep.subr.bf16.mxu0 %v337
  %547 = vmatpush1.bf16.msra.mxu0 %v336
  %548 = vmatprep.subr.bf16.mxu0 %v345
  %549 = vmatpush1.bf16.msra.mxu0 %v344
  %550 = vmatprep.subr.bf16.mxu0 %v353
  %551 = vmatpush1.bf16.msra.mxu0 %v352
  %552 = vmatprep.subr.bf16.mxu0 %v361
  %553 = vmatpush1.bf16.msra.mxu0 %v360
  %554 = vmatprep.subr.bf16.mxu0 %v369
  %555 = vmatpush1.bf16.msra.mxu0 %v368
  %556 = vmatprep.subr.bf16.mxu0 %v377
  %557 = vmatpush1.bf16.msra.mxu0 %v376
  %558 = vmatprep.subr.bf16.mxu0 %v385
  %559 = vmatpush1.bf16.msra.mxu0 %v384
  %560 = vmatprep.subr.bf16.mxu0 %v393
  %561 = vmatpush1.bf16.msra.mxu0 %v392
  %562 = vmatprep.subr.bf16.mxu0 %v401
  %563 = vmatpush1.bf16.msra.mxu0 %v400
  %564 = vmatprep.mubr.bf16.mxu0 %v19
  %565 = vmatmul.mubr.bf16.gmra.mrb[0].mxu0 %v18
  %v566 = vpop.f32.mrb[0].mxu0
  %v567 = vadd.f32 %v425, %v566
  %v568 = vpop.f32.mrb[0].mxu0
  %v569 = vadd.f32 %v429, %v568
  %v570 = vpop.f32.mrb[0].mxu0
  %v571 = vadd.f32 %v425, %v570
  %v572 = vpop.f32.mrb[0].mxu0
  %v573 = vadd.f32 %v429, %v572
  %574 = vdwg.mxu0
  %575 = vmatprep.subr.bf16.mxu0 %v283
  %576 = vmatpush1.bf16.msra.mxu0 %v282
  %577 = vmatprep.subr.bf16.mxu0 %v291
  %578 = vmatpush1.bf16.msra.mxu0 %v290
  %579 = vmatprep.subr.bf16.mxu0 %v299
  %580 = vmatpush1.bf16.msra.mxu0 %v298
  %581 = vmatprep.subr.bf16.mxu0 %v307
  %582 = vmatpush1.bf16.msra.mxu0 %v306
  %583 = vmatprep.subr.bf16.mxu0 %v315
  %584 = vmatpush1.bf16.msra.mxu0 %v314
  %585 = vmatprep.subr.bf16.mxu0 %v323
  %586 = vmatpush1.bf16.msra.mxu0 %v322
  %587 = vmatprep.subr.bf16.mxu0 %v331
  %588 = vmatpush1.bf16.msra.mxu0 %v330
  %589 = vmatprep.subr.bf16.mxu0 %v339
  %590 = vmatpush1.bf16.msra.mxu0 %v338
  %591 = vmatprep.subr.bf16.mxu0 %v347
  %592 = vmatpush1.bf16.msra.mxu0 %v346
  %593 = vmatprep.subr.bf16.mxu0 %v355
  %594 = vmatpush1.bf16.msra.mxu0 %v354
  %595 = vmatprep.subr.bf16.mxu0 %v363
  %596 = vmatpush1.bf16.msra.mxu0 %v362
  %597 = vmatprep.subr.bf16.mxu0 %v371
  %598 = vmatpush1.bf16.msra.mxu0 %v370
  %599 = vmatprep.subr.bf16.mxu0 %v379
  %600 = vmatpush1.bf16.msra.mxu0 %v378
  %601 = vmatprep.subr.bf16.mxu0 %v387
  %602 = vmatpush1.bf16.msra.mxu0 %v386
  %603 = vmatprep.subr.bf16.mxu0 %v395
  %604 = vmatpush1.bf16.msra.mxu0 %v394
  %605 = vmatprep.subr.bf16.mxu0 %v403
  %606 = vmatpush1.bf16.msra.mxu0 %v402
  %607 = vmatprep.mubr.bf16.mxu0 %v19
  %608 = vmatmul.mubr.bf16.gmra.mrb[0].mxu0 %v18
  %v609 = vpop.f32.mrb[0].mxu0
  %v610 = vadd.f32 %v433, %v609
  %v611 = vpop.f32.mrb[0].mxu0
  %v612 = vadd.f32 %v437, %v611
  %v613 = vpop.f32.mrb[0].mxu0
  %v614 = vadd.f32 %v433, %v613
  %v615 = vpop.f32.mrb[0].mxu0
  %v616 = vadd.f32 %v437, %v615
  %617 = vdwg.mxu0
  %618 = vst [vmem:[%s3] sm:$0xff] %v481
  %619 = vst [vmem:[%s3 + $0x8] sm:$0xff] %v483
  %620 = vst [vmem:[%s3 + $0x10] sm:$0xff] %v524
  %621 = vst [vmem:[%s3 + $0x18] sm:$0xff] %v526
  %622 = vst [vmem:[%s3 + $0x20] sm:$0xff] %v567
  %623 = vst [vmem:[%s3 + $0x28] sm:$0xff] %v569
  %624 = vst [vmem:[%s3 + $0x30] sm:$0xff] %v610
  %625 = vst [vmem:[%s3 + $0x38] sm:$0xff] %v612
  %626 = vst [vmem:[%s3 + $0x40] sm:$0xff] %v485
  %627 = vst [vmem:[%s3 + $0x48] sm:$0xff] %v487
  %628 = vst [vmem:[%s3 + $0x50] sm:$0xff] %v528
  %629 = vst [vmem:[%s3 + $0x58] sm:$0xff] %v530
  %630 = vst [vmem:[%s3 + $0x60] sm:$0xff] %v571
  %631 = vst [vmem:[%s3 + $0x68] sm:$0xff] %v573
  %632 = vst [vmem:[%s3 + $0x70] sm:$0xff] %v614
  %633 = vst [vmem:[%s3 + $0x78] sm:$0xff] %v616
  // Predicated region
  $region14: #{net_forward.19} parent=0 // pred_check
    _
  $region15: #{net_forward.19} parent=0 // pred_check_branch
    %635 = sbr.rel (0) target = $region17
  $region16: #{net_forward.19} parent=0 // pred_region
    _
  $region17: #{net_forward.19} parent=0 // pred_fallthru
    _
  // Predicated region
  $region18: #{net_forward.19} parent=0 // pred_check
    _
  $region19: #{net_forward.19} parent=0 // pred_check_branch
    %637 = sbr.rel (0) target = $region21
  $region20: #{net_forward.19} parent=0 // pred_region
    _
  $region21: #{net_forward.19} parent=0 // pred_fallthru
    _

// kernel: net_forward.17
$region0: #{net_forward.17}
  #allocation0 [shape = 'u32[]', space=smem, size = 0x4, offset = 0x4, fixed_abs, tag = 'smem constant byte address 0x4 - core index']
  #allocation1 [shape = 'u32[144,128]{1,0:T(1,128)}', space=vmem, size = 0x12000, scoped, tag = 'internal scratch']
  %s0 = inlined_call_operand.vmem [shape: f32[16,300], index: 0, kind: input, shape index: {}]
  %s1 = inlined_call_operand.hbm [shape: f32[300,1024], index: 1, kind: input, shape index: {}]
  %s2 = inlined_call_operand.hbm [shape: f32[1,1024], index: 2, kind: input, shape index: {}]
  %s3 = inlined_call_operand.vmem [shape: f32[16,1024], index: 3, kind: output, shape index: {}]
  %s4 = sld [smem:[#allocation0]]
  $region30: #{net_forward.17} parent=0
    _
  %s6 = ssub.s32 1, %s4
  %s7 = scalar_select 0, %s6, %s4
  $region1: #{net_forward.17} parent=0
    #allocation2 [shape = 'u8[1245184]{0}', space=vmem, size = 0x130000, scoped, tag = 'input window, operand 1, single buffered']
    #allocation3 [shape = 's32[1]{0}', space=sflag, size = 0x4, scoped, tag = 'scoped memory for net_forward.17']
    #allocation4 [shape = 'u8[4096]{0}', space=vmem, size = 0x1000, scoped, tag = 'input window, operand 2, single buffered']
    #allocation5 [shape = 's32[1]{0}', space=sflag, size = 0x4, scoped, tag = 'scoped memory for net_forward.17']
    %8 = vsyncpa [#allocation3], 0
    %9 = vsyncpa [#allocation5], 0
    // Predicated region
    $region2: #{net_forward.17} parent=1 // pred_check
      _
    $region3: #{net_forward.17} parent=1 // pred_check_branch
      %11 = sbr.rel (0) target = $region5
    $region4: #{net_forward.17} parent=1 // pred_region
      _
    $region5: #{net_forward.17} parent=1 // pred_fallthru
      _
    // Predicated region
    $region6: #{net_forward.17} parent=1 // pred_check
      _
    $region7: #{net_forward.17} parent=1 // pred_check_branch
      %13 = sbr.rel (0) target = $region9
    $region8: #{net_forward.17} parent=1 // pred_region
      %s15 = ssub.s32 38912, 38912
      %16 = vsyncadd [#allocation3], %s15
      %s17 = sshll.u32 [#allocation2], 4
      %s18 = int_to_ptr.vmem [resolvable:$true] %s17
      %23 = dma.hbm_to_vmem [thread:$0]  %s1, 38912, %s18, [#allocation3], 1024, 1024, 64
    $region9: #{net_forward.17} parent=1 // pred_fallthru
      _
    // Predicated region
    $region10: #{net_forward.17} parent=1 // pred_check
      _
    $region11: #{net_forward.17} parent=1 // pred_check_branch
      %25 = sbr.rel (0) target = $region13
    $region12: #{net_forward.17} parent=1 // pred_region
      %s27 = ssub.s32 128, 128
      %28 = vsyncadd [#allocation5], %s27
      %s30 = sshll.u32 [#allocation4], 4
      %s31 = int_to_ptr.vmem [resolvable:$true] %s30
      %33 = dma.hbm_to_vmem [thread:$0]  %s2, 128, %s31, [#allocation5]
    $region13: #{net_forward.17} parent=1 // pred_fallthru
      _
    // Predicated region
    $region14: #{net_forward.17} parent=1 // pred_check
      _
    $region15: #{net_forward.17} parent=1 // pred_check_branch
      %35 = sbr.rel (0) target = $region17
    $region16: #{net_forward.17} parent=1 // pred_region
      %36 = dma.done [#allocation3], 38912
    $region17: #{net_forward.17} parent=1 // pred_fallthru
      _
    // Predicated region
    $region18: #{net_forward.17} parent=1 // pred_check
      _
    $region19: #{net_forward.17} parent=1 // pred_check_branch
      %38 = sbr.rel (0) target = $region21
    $region20: #{net_forward.17} parent=1 // pred_region
      %39 = dma.done [#allocation5], 128
    $region21: #{net_forward.17} parent=1 // pred_fallthru
      _
    %v41 = vld [vmem:[%s0] sm:$0xff]
    %v42 = vld [vmem:[%s0 + $0x8] sm:$0xff]
    %v43 = vld [vmem:[%s0 + $0x10] sm:$0xff]
    %v44 = vld [vmem:[%s0 + $0x18] sm:$0xff]
    %v45 = vld [vmem:[%s0 + $0x20] sm:$0xff]
    %v46 = vld [vmem:[%s0 + $0x28] sm:$0xff]
    %v47 = vpack.c.bf16 %v44, %v41
    %v48 = vpack.c.bf16 %v45, %v42
    %v49 = vpack.c.bf16 %v46, %v43
    %v50 = vld [vmem:[#allocation2] sm:$0xff]
    %v51 = vld [vmem:[#allocation2 + $0x8] sm:$0xff]
    %v52 = vld [vmem:[#allocation2 + $0x10] sm:$0xff]
    %v53 = vld [vmem:[#allocation2 + $0x18] sm:$0xff]
    %v54 = vld [vmem:[#allocation2 + $0x20] sm:$0xff]
    %v55 = vld [vmem:[#allocation2 + $0x28] sm:$0xff]
    %v56 = vld [vmem:[#allocation2 + $0x30] sm:$0xff]
    %v57 = vld [vmem:[#allocation2 + $0x38] sm:$0xff]
    %v58 = vld [vmem:[#allocation2 + $0x40] sm:$0xff]
    %v59 = vld [vmem:[#allocation2 + $0x48] sm:$0xff]
    %v60 = vld [vmem:[#allocation2 + $0x50] sm:$0xff]
    %v61 = vld [vmem:[#allocation2 + $0x58] sm:$0xff]
    %v62 = vld [vmem:[#allocation2 + $0x60] sm:$0xff]
    %v63 = vld [vmem:[#allocation2 + $0x68] sm:$0xff]
    %v64 = vld [vmem:[#allocation2 + $0x70] sm:$0xff]
    %v65 = vld [vmem:[#allocation2 + $0x78] sm:$0xff]
    %v66 = vld [vmem:[#allocation2 + $0x80] sm:$0xff]
    %v67 = vld [vmem:[#allocation2 + $0x88] sm:$0xff]
    %v68 = vld [vmem:[#allocation2 + $0x90] sm:$0xff]
    %v69 = vld [vmem:[#allocation2 + $0x98] sm:$0xff]
    %v70 = vld [vmem:[#allocation2 + $0xa0] sm:$0xff]
    %v71 = vld [vmem:[#allocation2 + $0xa8] sm:$0xff]
    %v72 = vld [vmem:[#allocation2 + $0xb0] sm:$0xff]
    %v73 = vld [vmem:[#allocation2 + $0xb8] sm:$0xff]
    %v74 = vld [vmem:[#allocation2 + $0xc0] sm:$0xff]
    %v75 = vld [vmem:[#allocation2 + $0xc8] sm:$0xff]
    %v76 = vld [vmem:[#allocation2 + $0xd0] sm:$0xff]
    %v77 = vld [vmem:[#allocation2 + $0xd8] sm:$0xff]
    %v78 = vld [vmem:[#allocation2 + $0xe0] sm:$0xff]
    %v79 = vld [vmem:[#allocation2 + $0xe8] sm:$0xff]
    %v80 = vld [vmem:[#allocation2 + $0xf0] sm:$0xff]
    %v81 = vld [vmem:[#allocation2 + $0xf8] sm:$0xff]
    %v82 = vld [vmem:[#allocation2 + $0x100] sm:$0xff]
    %v83 = vld [vmem:[#allocation2 + $0x108] sm:$0xff]
    %v84 = vld [vmem:[#allocation2 + $0x110] sm:$0xff]
    %v85 = vld [vmem:[#allocation2 + $0x118] sm:$0xff]
    %v86 = vld [vmem:[#allocation2 + $0x120] sm:$0xff]
    %v87 = vld [vmem:[#allocation2 + $0x128] sm:$0xff]
    %v88 = vld [vmem:[#allocation2 + $0x130] sm:$0xff]
    %v89 = vld [vmem:[#allocation2 + $0x138] sm:$0xff]
    %v90 = vld [vmem:[#allocation2 + $0x140] sm:$0xff]
    %v91 = vld [vmem:[#allocation2 + $0x148] sm:$0xff]
    %v92 = vld [vmem:[#allocation2 + $0x150] sm:$0xff]
    %v93 = vld [vmem:[#allocation2 + $0x158] sm:$0xff]
    %v94 = vld [vmem:[#allocation2 + $0x160] sm:$0xff]
    %v95 = vld [vmem:[#allocation2 + $0x168] sm:$0xff]
    %v96 = vld [vmem:[#allocation2 + $0x170] sm:$0xff]
    %v97 = vld [vmem:[#allocation2 + $0x178] sm:$0xff]
    %v98 = vld [vmem:[#allocation2 + $0x180] sm:$0xff]
    %v99 = vld [vmem:[#allocation2 + $0x188] sm:$0xff]
    %v100 = vld [vmem:[#allocation2 + $0x190] sm:$0xff]
    %v101 = vld [vmem:[#allocation2 + $0x198] sm:$0xff]
    %v102 = vld [vmem:[#allocation2 + $0x1a0] sm:$0xff]
    %v103 = vld [vmem:[#allocation2 + $0x1a8] sm:$0xff]
    %v104 = vld [vmem:[#allocation2 + $0x1b0] sm:$0xff]
    %v105 = vld [vmem:[#allocation2 + $0x1b8] sm:$0xff]
    %v106 = vld [vmem:[#allocation2 + $0x1c0] sm:$0xff]
    %v107 = vld [vmem:[#allocation2 + $0x1c8] sm:$0xff]
    %v108 = vld [vmem:[#allocation2 + $0x1d0] sm:$0xff]
    %v109 = vld [vmem:[#allocation2 + $0x1d8] sm:$0xff]
    %v110 = vld [vmem:[#allocation2 + $0x1e0] sm:$0xff]
    %v111 = vld [vmem:[#allocation2 + $0x1e8] sm:$0xff]
    %v112 = vld [vmem:[#allocation2 + $0x1f0] sm:$0xff]
    %v113 = vld [vmem:[#allocation2 + $0x1f8] sm:$0xff]
    %v114 = vld [vmem:[#allocation2 + $0x200] sm:$0xff]
    %v115 = vld [vmem:[#allocation2 + $0x208] sm:$0xff]
    %v116 = vld [vmem:[#allocation2 + $0x210] sm:$0xff]
    %v117 = vld [vmem:[#allocation2 + $0x218] sm:$0xff]
    %v118 = vld [vmem:[#allocation2 + $0x220] sm:$0xff]
    %v119 = vld [vmem:[#allocation2 + $0x228] sm:$0xff]
    %v120 = vld [vmem:[#allocation2 + $0x230] sm:$0xff]
    %v121 = vld [vmem:[#allocation2 + $0x238] sm:$0xff]
    %v122 = vld [vmem:[#allocation2 + $0x240] sm:$0xff]
    %v123 = vld [vmem:[#allocation2 + $0x248] sm:$0xff]
    %v124 = vld [vmem:[#allocation2 + $0x250] sm:$0xff]
    %v125 = vld [vmem:[#allocation2 + $0x258] sm:$0xff]
    %v126 = vld [vmem:[#allocation2 + $0x260] sm:$0xff]
    %v127 = vld [vmem:[#allocation2 + $0x268] sm:$0xff]
    %v128 = vld [vmem:[#allocation2 + $0x270] sm:$0xff]
    %v129 = vld [vmem:[#allocation2 + $0x278] sm:$0xff]
    %v130 = vld [vmem:[#allocation2 + $0x280] sm:$0xff]
    %v131 = vld [vmem:[#allocation2 + $0x288] sm:$0xff]
    %v132 = vld [vmem:[#allocation2 + $0x290] sm:$0xff]
    %v133 = vld [vmem:[#allocation2 + $0x298] sm:$0xff]
    %v134 = vld [vmem:[#allocation2 + $0x2a0] sm:$0xff]
    %v135 = vld [vmem:[#allocation2 + $0x2a8] sm:$0xff]
    %v136 = vld [vmem:[#allocation2 + $0x2b0] sm:$0xff]
    %v137 = vld [vmem:[#allocation2 + $0x2b8] sm:$0xff]
    %v138 = vld [vmem:[#allocation2 + $0x2c0] sm:$0xff]
    %v139 = vld [vmem:[#allocation2 + $0x2c8] sm:$0xff]
    %v140 = vld [vmem:[#allocation2 + $0x2d0] sm:$0xff]
    %v141 = vld [vmem:[#allocation2 + $0x2d8] sm:$0xff]
    %v142 = vld [vmem:[#allocation2 + $0x2e0] sm:$0xff]
    %v143 = vld [vmem:[#allocation2 + $0x2e8] sm:$0xff]
    %v144 = vld [vmem:[#allocation2 + $0x2f0] sm:$0xff]
    %v145 = vld [vmem:[#allocation2 + $0x2f8] sm:$0xff]
    %v146 = vld [vmem:[#allocation2 + $0x300] sm:$0xff]
    %v147 = vld [vmem:[#allocation2 + $0x308] sm:$0xff]
    %v148 = vld [vmem:[#allocation2 + $0x310] sm:$0xff]
    %v149 = vld [vmem:[#allocation2 + $0x318] sm:$0xff]
    %v150 = vld [vmem:[#allocation2 + $0x320] sm:$0xff]
    %v151 = vld [vmem:[#allocation2 + $0x328] sm:$0xff]
    %v152 = vld [vmem:[#allocation2 + $0x330] sm:$0xff]
    %v153 = vld [vmem:[#allocation2 + $0x338] sm:$0xff]
    %v154 = vld [vmem:[#allocation2 + $0x340] sm:$0xff]
    %v155 = vld [vmem:[#allocation2 + $0x348] sm:$0xff]
    %v156 = vld [vmem:[#allocation2 + $0x350] sm:$0xff]
    %v157 = vld [vmem:[#allocation2 + $0x358] sm:$0xff]
    %v158 = vld [vmem:[#allocation2 + $0x360] sm:$0xff]
    %v159 = vld [vmem:[#allocation2 + $0x368] sm:$0xff]
    %v160 = vld [vmem:[#allocation2 + $0x370] sm:$0xff]
    %v161 = vld [vmem:[#allocation2 + $0x378] sm:$0xff]
    %v162 = vld [vmem:[#allocation2 + $0x380] sm:$0xff]
    %v163 = vld [vmem:[#allocation2 + $0x388] sm:$0xff]
    %v164 = vld [vmem:[#allocation2 + $0x390] sm:$0xff]
    %v165 = vld [vmem:[#allocation2 + $0x398] sm:$0xff]
    %v166 = vld [vmem:[#allocation2 + $0x3a0] sm:$0xff]
    %v167 = vld [vmem:[#allocation2 + $0x3a8] sm:$0xff]
    %v168 = vld [vmem:[#allocation2 + $0x3b0] sm:$0xff]
    %v169 = vld [vmem:[#allocation2 + $0x3b8] sm:$0xff]
    %v170 = vld [vmem:[#allocation2 + $0x3c0] sm:$0xff]
    %v171 = vld [vmem:[#allocation2 + $0x3c8] sm:$0xff]
    %v172 = vld [vmem:[#allocation2 + $0x3d0] sm:$0xff]
    %v173 = vld [vmem:[#allocation2 + $0x3d8] sm:$0xff]
    %v174 = vld [vmem:[#allocation2 + $0x3e0] sm:$0xff]
    %v175 = vld [vmem:[#allocation2 + $0x3e8] sm:$0xff]
    %v176 = vld [vmem:[#allocation2 + $0x3f0] sm:$0xff]
    %v177 = vld [vmem:[#allocation2 + $0x3f8] sm:$0xff]
    %v178 = vld [vmem:[#allocation2 + $0x400] sm:$0xff]
    %v179 = vld [vmem:[#allocation2 + $0x408] sm:$0xff]
    %v180 = vld [vmem:[#allocation2 + $0x410] sm:$0xff]
    %v181 = vld [vmem:[#allocation2 + $0x418] sm:$0xff]
    %v182 = vld [vmem:[#allocation2 + $0x420] sm:$0xff]
    %v183 = vld [vmem:[#allocation2 + $0x428] sm:$0xff]
    %v184 = vld [vmem:[#allocation2 + $0x430] sm:$0xff]
    %v185 = vld [vmem:[#allocation2 + $0x438] sm:$0xff]
    %v186 = vld [vmem:[#allocation2 + $0x440] sm:$0xff]
    %v187 = vld [vmem:[#allocation2 + $0x448] sm:$0xff]
    %v188 = vld [vmem:[#allocation2 + $0x450] sm:$0xff]
    %v189 = vld [vmem:[#allocation2 + $0x458] sm:$0xff]
    %v190 = vld [vmem:[#allocation2 + $0x460] sm:$0xff]
    %v191 = vld [vmem:[#allocation2 + $0x468] sm:$0xff]
    %v192 = vld [vmem:[#allocation2 + $0x470] sm:$0xff]
    %v193 = vld [vmem:[#allocation2 + $0x478] sm:$0xff]
    %v194 = vld [vmem:[#allocation2 + $0x480] sm:$0xff]
    %v195 = vld [vmem:[#allocation2 + $0x488] sm:$0xff]
    %v196 = vld [vmem:[#allocation2 + $0x490] sm:$0xff]
    %v197 = vld [vmem:[#allocation2 + $0x498] sm:$0xff]
    %v198 = vld [vmem:[#allocation2 + $0x4a0] sm:$0xff]
    %v199 = vld [vmem:[#allocation2 + $0x4a8] sm:$0xff]
    %v200 = vld [vmem:[#allocation2 + $0x4b0] sm:$0xff]
    %v201 = vld [vmem:[#allocation2 + $0x4b8] sm:$0xff]
    %v202 = vld [vmem:[#allocation2 + $0x4c0] sm:$0xff]
    %v203 = vld [vmem:[#allocation2 + $0x4c8] sm:$0xff]
    %v204 = vld [vmem:[#allocation2 + $0x4d0] sm:$0xff]
    %v205 = vld [vmem:[#allocation2 + $0x4d8] sm:$0xff]
    %v206 = vld [vmem:[#allocation2 + $0x4e0] sm:$0xff]
    %v207 = vld [vmem:[#allocation2 + $0x4e8] sm:$0xff]
    %v208 = vld [vmem:[#allocation2 + $0x4f0] sm:$0xff]
    %v209 = vld [vmem:[#allocation2 + $0x4f8] sm:$0xff]
    %v210 = vld [vmem:[#allocation2 + $0x500] sm:$0xff]
    %v211 = vld [vmem:[#allocation2 + $0x508] sm:$0xff]
    %v212 = vld [vmem:[#allocation2 + $0x510] sm:$0xff]
    %v213 = vld [vmem:[#allocation2 + $0x518] sm:$0xff]
    %v214 = vld [vmem:[#allocation2 + $0x520] sm:$0xff]
    %v215 = vld [vmem:[#allocation2 + $0x528] sm:$0xff]
    %v216 = vld [vmem:[#allocation2 + $0x530] sm:$0xff]
    %v217 = vld [vmem:[#allocation2 + $0x538] sm:$0xff]
    %v218 = vld [vmem:[#allocation2 + $0x540] sm:$0xff]
    %v219 = vld [vmem:[#allocation2 + $0x548] sm:$0xff]
    %v220 = vld [vmem:[#allocation2 + $0x550] sm:$0xff]
    %v221 = vld [vmem:[#allocation2 + $0x558] sm:$0xff]
    %v222 = vld [vmem:[#allocation2 + $0x560] sm:$0xff]
    %v223 = vld [vmem:[#allocation2 + $0x568] sm:$0xff]
    %v224 = vld [vmem:[#allocation2 + $0x570] sm:$0xff]
    %v225 = vld [vmem:[#allocation2 + $0x578] sm:$0xff]
    %v226 = vld [vmem:[#allocation2 + $0x580] sm:$0xff]
    %v227 = vld [vmem:[#allocation2 + $0x588] sm:$0xff]
    %v228 = vld [vmem:[#allocation2 + $0x590] sm:$0xff]
    %v229 = vld [vmem:[#allocation2 + $0x598] sm:$0xff]
    %v230 = vld [vmem:[#allocation2 + $0x5a0] sm:$0xff]
    %v231 = vld [vmem:[#allocation2 + $0x5a8] sm:$0xff]
    %v232 = vld [vmem:[#allocation2 + $0x5b0] sm:$0xff]
    %v233 = vld [vmem:[#allocation2 + $0x5b8] sm:$0xff]
    %v234 = vld [vmem:[#allocation2 + $0x5c0] sm:$0xff]
    %v235 = vld [vmem:[#allocation2 + $0x5c8] sm:$0xff]
    %v236 = vld [vmem:[#allocation2 + $0x5d0] sm:$0xff]
    %v237 = vld [vmem:[#allocation2 + $0x5d8] sm:$0xff]
    %v238 = vld [vmem:[#allocation2 + $0x5e0] sm:$0xff]
    %v239 = vld [vmem:[#allocation2 + $0x5e8] sm:$0xff]
    %v240 = vld [vmem:[#allocation2 + $0x5f0] sm:$0xff]
    %v241 = vld [vmem:[#allocation2 + $0x5f8] sm:$0xff]
    %v242 = vld [vmem:[#allocation2 + $0x600] sm:$0xff]
    %v243 = vld [vmem:[#allocation2 + $0x608] sm:$0xff]
    %v244 = vld [vmem:[#allocation2 + $0x610] sm:$0xff]
    %v245 = vld [vmem:[#allocation2 + $0x618] sm:$0xff]
    %v246 = vld [vmem:[#allocation2 + $0x620] sm:$0xff]
    %v247 = vld [vmem:[#allocation2 + $0x628] sm:$0xff]
    %v248 = vld [vmem:[#allocation2 + $0x630] sm:$0xff]
    %v249 = vld [vmem:[#allocation2 + $0x638] sm:$0xff]
    %v250 = vld [vmem:[#allocation2 + $0x640] sm:$0xff]
    %v251 = vld [vmem:[#allocation2 + $0x648] sm:$0xff]
    %v252 = vld [vmem:[#allocation2 + $0x650] sm:$0xff]
    %v253 = vld [vmem:[#allocation2 + $0x658] sm:$0xff]
    %v254 = vld [vmem:[#allocation2 + $0x660] sm:$0xff]
    %v255 = vld [vmem:[#allocation2 + $0x668] sm:$0xff]
    %v256 = vld [vmem:[#allocation2 + $0x670] sm:$0xff]
    %v257 = vld [vmem:[#allocation2 + $0x678] sm:$0xff]
    %v258 = vld [vmem:[#allocation2 + $0x680] sm:$0xff]
    %v259 = vld [vmem:[#allocation2 + $0x688] sm:$0xff]
    %v260 = vld [vmem:[#allocation2 + $0x690] sm:$0xff]
    %v261 = vld [vmem:[#allocation2 + $0x698] sm:$0xff]
    %v262 = vld [vmem:[#allocation2 + $0x6a0] sm:$0xff]
    %v263 = vld [vmem:[#allocation2 + $0x6a8] sm:$0xff]
    %v264 = vld [vmem:[#allocation2 + $0x6b0] sm:$0xff]
    %v265 = vld [vmem:[#allocation2 + $0x6b8] sm:$0xff]
    %v266 = vld [vmem:[#allocation2 + $0x6c0] sm:$0xff]
    %v267 = vld [vmem:[#allocation2 + $0x6c8] sm:$0xff]
    %v268 = vld [vmem:[#allocation2 + $0x6d0] sm:$0xff]
    %v269 = vld [vmem:[#allocation2 + $0x6d8] sm:$0xff]
    %v270 = vld [vmem:[#allocation2 + $0x6e0] sm:$0xff]
    %v271 = vld [vmem:[#allocation2 + $0x6e8] sm:$0xff]
    %v272 = vld [vmem:[#allocation2 + $0x6f0] sm:$0xff]
    %v273 = vld [vmem:[#allocation2 + $0x6f8] sm:$0xff]
    %v274 = vld [vmem:[#allocation2 + $0x700] sm:$0xff]
    %v275 = vld [vmem:[#allocation2 + $0x708] sm:$0xff]
    %v276 = vld [vmem:[#allocation2 + $0x710] sm:$0xff]
    %v277 = vld [vmem:[#allocation2 + $0x718] sm:$0xff]
    %v278 = vld [vmem:[#allocation2 + $0x720] sm:$0xff]
    %v279 = vld [vmem:[#allocation2 + $0x728] sm:$0xff]
    %v280 = vld [vmem:[#allocation2 + $0x730] sm:$0xff]
    %v281 = vld [vmem:[#allocation2 + $0x738] sm:$0xff]
    %v282 = vld [vmem:[#allocation2 + $0x740] sm:$0xff]
    %v283 = vld [vmem:[#allocation2 + $0x748] sm:$0xff]
    %v284 = vld [vmem:[#allocation2 + $0x750] sm:$0xff]
    %v285 = vld [vmem:[#allocation2 + $0x758] sm:$0xff]
    %v286 = vld [vmem:[#allocation2 + $0x760] sm:$0xff]
    %v287 = vld [vmem:[#allocation2 + $0x768] sm:$0xff]
    %v288 = vld [vmem:[#allocation2 + $0x770] sm:$0xff]
    %v289 = vld [vmem:[#allocation2 + $0x778] sm:$0xff]
    %v290 = vld [vmem:[#allocation2 + $0x780] sm:$0xff]
    %v291 = vld [vmem:[#allocation2 + $0x788] sm:$0xff]
    %v292 = vld [vmem:[#allocation2 + $0x790] sm:$0xff]
    %v293 = vld [vmem:[#allocation2 + $0x798] sm:$0xff]
    %v294 = vld [vmem:[#allocation2 + $0x7a0] sm:$0xff]
    %v295 = vld [vmem:[#allocation2 + $0x7a8] sm:$0xff]
    %v296 = vld [vmem:[#allocation2 + $0x7b0] sm:$0xff]
    %v297 = vld [vmem:[#allocation2 + $0x7b8] sm:$0xff]
    %v298 = vld [vmem:[#allocation2 + $0x7c0] sm:$0xff]
    %v299 = vld [vmem:[#allocation2 + $0x7c8] sm:$0xff]
    %v300 = vld [vmem:[#allocation2 + $0x7d0] sm:$0xff]
    %v301 = vld [vmem:[#allocation2 + $0x7d8] sm:$0xff]
    %v302 = vld [vmem:[#allocation2 + $0x7e0] sm:$0xff]
    %v303 = vld [vmem:[#allocation2 + $0x7e8] sm:$0xff]
    %v304 = vld [vmem:[#allocation2 + $0x7f0] sm:$0xff]
    %v305 = vld [vmem:[#allocation2 + $0x7f8] sm:$0xff]
    %v306 = vld [vmem:[#allocation2 + $0x800] sm:$0xff]
    %v307 = vld [vmem:[#allocation2 + $0x808] sm:$0xff]
    %v308 = vld [vmem:[#allocation2 + $0x810] sm:$0xff]
    %v309 = vld [vmem:[#allocation2 + $0x818] sm:$0xff]
    %v310 = vld [vmem:[#allocation2 + $0x820] sm:$0xff]
    %v311 = vld [vmem:[#allocation2 + $0x828] sm:$0xff]
    %v312 = vld [vmem:[#allocation2 + $0x830] sm:$0xff]
    %v313 = vld [vmem:[#allocation2 + $0x838] sm:$0xff]
    %v314 = vld [vmem:[#allocation2 + $0x840] sm:$0xff]
    %v315 = vld [vmem:[#allocation2 + $0x848] sm:$0xff]
    %v316 = vld [vmem:[#allocation2 + $0x850] sm:$0xff]
    %v317 = vld [vmem:[#allocation2 + $0x858] sm:$0xff]
    %v318 = vld [vmem:[#allocation2 + $0x860] sm:$0xff]
    %v319 = vld [vmem:[#allocation2 + $0x868] sm:$0xff]
    %v320 = vld [vmem:[#allocation2 + $0x870] sm:$0xff]
    %v321 = vld [vmem:[#allocation2 + $0x878] sm:$0xff]
    %v322 = vld [vmem:[#allocation2 + $0x880] sm:$0xff]
    %v323 = vld [vmem:[#allocation2 + $0x888] sm:$0xff]
    %v324 = vld [vmem:[#allocation2 + $0x890] sm:$0xff]
    %v325 = vld [vmem:[#allocation2 + $0x898] sm:$0xff]
    %v326 = vld [vmem:[#allocation2 + $0x8a0] sm:$0xff]
    %v327 = vld [vmem:[#allocation2 + $0x8a8] sm:$0xff]
    %v328 = vld [vmem:[#allocation2 + $0x8b0] sm:$0xff]
    %v329 = vld [vmem:[#allocation2 + $0x8b8] sm:$0xff]
    %v330 = vld [vmem:[#allocation2 + $0x8c0] sm:$0xff]
    %v331 = vld [vmem:[#allocation2 + $0x8c8] sm:$0xff]
    %v332 = vld [vmem:[#allocation2 + $0x8d0] sm:$0xff]
    %v333 = vld [vmem:[#allocation2 + $0x8d8] sm:$0xff]
    %v334 = vld [vmem:[#allocation2 + $0x8e0] sm:$0xff]
    %v335 = vld [vmem:[#allocation2 + $0x8e8] sm:$0xff]
    %v336 = vld [vmem:[#allocation2 + $0x8f0] sm:$0xff]
    %v337 = vld [vmem:[#allocation2 + $0x8f8] sm:$0xff]
    %v338 = vld [vmem:[#allocation2 + $0x900] sm:$0xff]
    %v339 = vld [vmem:[#allocation2 + $0x908] sm:$0xff]
    %v340 = vld [vmem:[#allocation2 + $0x910] sm:$0xff]
    %v341 = vld [vmem:[#allocation2 + $0x918] sm:$0xff]
    %v342 = vld [vmem:[#allocation2 + $0x920] sm:$0xff]
    %v343 = vld [vmem:[#allocation2 + $0x928] sm:$0xff]
    %v344 = vld [vmem:[#allocation2 + $0x930] sm:$0xff]
    %v345 = vld [vmem:[#allocation2 + $0x938] sm:$0xff]
    %v346 = vld [vmem:[#allocation2 + $0x940] sm:$0xf]
    %v347 = vld [vmem:[#allocation2 + $0x948] sm:$0xf]
    %v348 = vld [vmem:[#allocation2 + $0x950] sm:$0xf]
    %v349 = vld [vmem:[#allocation2 + $0x958] sm:$0xf]
    %v350 = vld [vmem:[#allocation2 + $0x960] sm:$0xf]
    %v351 = vld [vmem:[#allocation2 + $0x968] sm:$0xf]
    %v352 = vld [vmem:[#allocation2 + $0x970] sm:$0xf]
    %v353 = vld [vmem:[#allocation2 + $0x978] sm:$0xf]
    %v354 = vpack.c.bf16 %v58, %v50
    %v355 = vpack.c.bf16 %v59, %v51
    %v356 = vpack.c.bf16 %v60, %v52
    %v357 = vpack.c.bf16 %v61, %v53
    %v358 = vpack.c.bf16 %v62, %v54
    %v359 = vpack.c.bf16 %v63, %v55
    %v360 = vpack.c.bf16 %v64, %v56
    %v361 = vpack.c.bf16 %v65, %v57
    %v362 = vpack.c.bf16 %v74, %v66
    %v363 = vpack.c.bf16 %v75, %v67
    %v364 = vpack.c.bf16 %v76, %v68
    %v365 = vpack.c.bf16 %v77, %v69
    %v366 = vpack.c.bf16 %v78, %v70
    %v367 = vpack.c.bf16 %v79, %v71
    %v368 = vpack.c.bf16 %v80, %v72
    %v369 = vpack.c.bf16 %v81, %v73
    %v370 = vpack.c.bf16 %v90, %v82
    %v371 = vpack.c.bf16 %v91, %v83
    %v372 = vpack.c.bf16 %v92, %v84
    %v373 = vpack.c.bf16 %v93, %v85
    %v374 = vpack.c.bf16 %v94, %v86
    %v375 = vpack.c.bf16 %v95, %v87
    %v376 = vpack.c.bf16 %v96, %v88
    %v377 = vpack.c.bf16 %v97, %v89
    %v378 = vpack.c.bf16 %v106, %v98
    %v379 = vpack.c.bf16 %v107, %v99
    %v380 = vpack.c.bf16 %v108, %v100
    %v381 = vpack.c.bf16 %v109, %v101
    %v382 = vpack.c.bf16 %v110, %v102
    %v383 = vpack.c.bf16 %v111, %v103
    %v384 = vpack.c.bf16 %v112, %v104
    %v385 = vpack.c.bf16 %v113, %v105
    %v386 = vpack.c.bf16 %v122, %v114
    %v387 = vpack.c.bf16 %v123, %v115
    %v388 = vpack.c.bf16 %v124, %v116
    %v389 = vpack.c.bf16 %v125, %v117
    %v390 = vpack.c.bf16 %v126, %v118
    %v391 = vpack.c.bf16 %v127, %v119
    %v392 = vpack.c.bf16 %v128, %v120
    %v393 = vpack.c.bf16 %v129, %v121
    %v394 = vpack.c.bf16 %v138, %v130
    %v395 = vpack.c.bf16 %v139, %v131
    %v396 = vpack.c.bf16 %v140, %v132
    %v397 = vpack.c.bf16 %v141, %v133
    %v398 = vpack.c.bf16 %v142, %v134
    %v399 = vpack.c.bf16 %v143, %v135
    %v400 = vpack.c.bf16 %v144, %v136
    %v401 = vpack.c.bf16 %v145, %v137
    %v402 = vpack.c.bf16 %v154, %v146
    %v403 = vpack.c.bf16 %v155, %v147
    %v404 = vpack.c.bf16 %v156, %v148
    %v405 = vpack.c.bf16 %v157, %v149
    %v406 = vpack.c.bf16 %v158, %v150
    %v407 = vpack.c.bf16 %v159, %v151
    %v408 = vpack.c.bf16 %v160, %v152
    %v409 = vpack.c.bf16 %v161, %v153
    %v410 = vpack.c.bf16 %v170, %v162
    %v411 = vpack.c.bf16 %v171, %v163
    %v412 = vpack.c.bf16 %v172, %v164
    %v413 = vpack.c.bf16 %v173, %v165
    %v414 = vpack.c.bf16 %v174, %v166
    %v415 = vpack.c.bf16 %v175, %v167
    %v416 = vpack.c.bf16 %v176, %v168
    %v417 = vpack.c.bf16 %v177, %v169
    %v418 = vpack.c.bf16 %v186, %v178
    %v419 = vpack.c.bf16 %v187, %v179
    %v420 = vpack.c.bf16 %v188, %v180
    %v421 = vpack.c.bf16 %v189, %v181
    %v422 = vpack.c.bf16 %v190, %v182
    %v423 = vpack.c.bf16 %v191, %v183
    %v424 = vpack.c.bf16 %v192, %v184
    %v425 = vpack.c.bf16 %v193, %v185
    %v426 = vpack.c.bf16 %v202, %v194
    %v427 = vpack.c.bf16 %v203, %v195
    %v428 = vpack.c.bf16 %v204, %v196
    %v429 = vpack.c.bf16 %v205, %v197
    %v430 = vpack.c.bf16 %v206, %v198
    %v431 = vpack.c.bf16 %v207, %v199
    %v432 = vpack.c.bf16 %v208, %v200
    %v433 = vpack.c.bf16 %v209, %v201
    %v434 = vpack.c.bf16 %v218, %v210
    %v435 = vpack.c.bf16 %v219, %v211
    %v436 = vpack.c.bf16 %v220, %v212
    %v437 = vpack.c.bf16 %v221, %v213
    %v438 = vpack.c.bf16 %v222, %v214
    %v439 = vpack.c.bf16 %v223, %v215
    %v440 = vpack.c.bf16 %v224, %v216
    %v441 = vpack.c.bf16 %v225, %v217
    %v442 = vpack.c.bf16 %v234, %v226
    %v443 = vpack.c.bf16 %v235, %v227
    %v444 = vpack.c.bf16 %v236, %v228
    %v445 = vpack.c.bf16 %v237, %v229
    %v446 = vpack.c.bf16 %v238, %v230
    %v447 = vpack.c.bf16 %v239, %v231
    %v448 = vpack.c.bf16 %v240, %v232
    %v449 = vpack.c.bf16 %v241, %v233
    %v450 = vpack.c.bf16 %v250, %v242
    %v451 = vpack.c.bf16 %v251, %v243
    %v452 = vpack.c.bf16 %v252, %v244
    %v453 = vpack.c.bf16 %v253, %v245
    %v454 = vpack.c.bf16 %v254, %v246
    %v455 = vpack.c.bf16 %v255, %v247
    %v456 = vpack.c.bf16 %v256, %v248
    %v457 = vpack.c.bf16 %v257, %v249
    %v458 = vpack.c.bf16 %v266, %v258
    %v459 = vpack.c.bf16 %v267, %v259
    %v460 = vpack.c.bf16 %v268, %v260
    %v461 = vpack.c.bf16 %v269, %v261
    %v462 = vpack.c.bf16 %v270, %v262
    %v463 = vpack.c.bf16 %v271, %v263
    %v464 = vpack.c.bf16 %v272, %v264
    %v465 = vpack.c.bf16 %v273, %v265
    %v466 = vpack.c.bf16 %v282, %v274
    %v467 = vpack.c.bf16 %v283, %v275
    %v468 = vpack.c.bf16 %v284, %v276
    %v469 = vpack.c.bf16 %v285, %v277
    %v470 = vpack.c.bf16 %v286, %v278
    %v471 = vpack.c.bf16 %v287, %v279
    %v472 = vpack.c.bf16 %v288, %v280
    %v473 = vpack.c.bf16 %v289, %v281
    %v474 = vpack.c.bf16 %v298, %v290
    %v475 = vpack.c.bf16 %v299, %v291
    %v476 = vpack.c.bf16 %v300, %v292
    %v477 = vpack.c.bf16 %v301, %v293
    %v478 = vpack.c.bf16 %v302, %v294
    %v479 = vpack.c.bf16 %v303, %v295
    %v480 = vpack.c.bf16 %v304, %v296
    %v481 = vpack.c.bf16 %v305, %v297
    %v482 = vpack.c.bf16 %v314, %v306
    %v483 = vpack.c.bf16 %v315, %v307
    %v484 = vpack.c.bf16 %v316, %v308
    %v485 = vpack.c.bf16 %v317, %v309
    %v486 = vpack.c.bf16 %v318, %v310
    %v487 = vpack.c.bf16 %v319, %v311
    %v488 = vpack.c.bf16 %v320, %v312
    %v489 = vpack.c.bf16 %v321, %v313
    %v490 = vpack.c.bf16 %v330, %v322
    %v491 = vpack.c.bf16 %v331, %v323
    %v492 = vpack.c.bf16 %v332, %v324
    %v493 = vpack.c.bf16 %v333, %v325
    %v494 = vpack.c.bf16 %v334, %v326
    %v495 = vpack.c.bf16 %v335, %v327
    %v496 = vpack.c.bf16 %v336, %v328
    %v497 = vpack.c.bf16 %v337, %v329
    %v498 = vpack.c.bf16 %v346, %v338
    %v499 = vpack.c.bf16 %v347, %v339
    %v500 = vpack.c.bf16 %v348, %v340
    %v501 = vpack.c.bf16 %v349, %v341
    %v502 = vpack.c.bf16 %v350, %v342
    %v503 = vpack.c.bf16 %v351, %v343
    %v504 = vpack.c.bf16 %v352, %v344
    %v505 = vpack.c.bf16 %v353, %v345
    %v506 = vld [vmem:[#allocation4] sm:$0xff]
    %v508 = vlaneseq
    %v509 = vshrl.u32 %v508, 7
    %v510 = vsub.s32 0, %v509
    %v511 = vrot.slane %v506, %v510
    %v512 = vlaneseq
    %v513 = vshrl.u32 %v512, 7
    %v514 = vsub.s32 1, %v513
    %v515 = vrot.slane %v506, %v514
    %v516 = vlaneseq
    %v517 = vshrl.u32 %v516, 7
    %v518 = vsub.s32 2, %v517
    %v519 = vrot.slane %v506, %v518
    %v520 = vlaneseq
    %v521 = vshrl.u32 %v520, 7
    %v522 = vsub.s32 3, %v521
    %v523 = vrot.slane %v506, %v522
    %v524 = vlaneseq
    %v525 = vshrl.u32 %v524, 7
    %v526 = vsub.s32 4, %v525
    %v527 = vrot.slane %v506, %v526
    %v528 = vlaneseq
    %v529 = vshrl.u32 %v528, 7
    %v530 = vsub.s32 5, %v529
    %v531 = vrot.slane %v506, %v530
    %v532 = vlaneseq
    %v533 = vshrl.u32 %v532, 7
    %v534 = vsub.s32 6, %v533
    %v535 = vrot.slane %v506, %v534
    %v536 = vlaneseq
    %v537 = vshrl.u32 %v536, 7
    %v538 = vsub.s32 7, %v537
    %v539 = vrot.slane %v506, %v538
    %vm548 = vcmask 359424
    %v550 = vsel %vm548, %v49, 0
    %vm552 = vcmask 1045504
    %v554 = vsel %vm552, %v498, 0
    %v557 = vsel %vm552, %v499, 0
    %v560 = vsel %vm552, %v500, 0
    %v563 = vsel %vm552, %v501, 0
    %v566 = vsel %vm552, %v502, 0
    %v569 = vsel %vm552, %v503, 0
    %v572 = vsel %vm552, %v504, 0
    %v575 = vsel %vm552, %v505, 0
    %577 = vmatprep.subr.bf16.mxu0 %v355
    %578 = vmatpush1.bf16.msra.mxu0 %v354
    %579 = vmatprep.subr.bf16.mxu0 %v363
    %580 = vmatpush1.bf16.msra.mxu0 %v362
    %581 = vmatprep.subr.bf16.mxu0 %v371
    %582 = vmatpush1.bf16.msra.mxu0 %v370
    %583 = vmatprep.subr.bf16.mxu0 %v379
    %584 = vmatpush1.bf16.msra.mxu0 %v378
    %585 = vmatprep.subr.bf16.mxu0 %v387
    %586 = vmatpush1.bf16.msra.mxu0 %v386
    %587 = vmatprep.subr.bf16.mxu0 %v395
    %588 = vmatpush1.bf16.msra.mxu0 %v394
    %589 = vmatprep.subr.bf16.mxu0 %v403
    %590 = vmatpush1.bf16.msra.mxu0 %v402
    %591 = vmatprep.subr.bf16.mxu0 %v411
    %592 = vmatpush1.bf16.msra.mxu0 %v410
    %593 = vmatprep.subr.bf16.mxu0 %v419
    %594 = vmatpush1.bf16.msra.mxu0 %v418
    %595 = vmatprep.subr.bf16.mxu0 %v427
    %596 = vmatpush1.bf16.msra.mxu0 %v426
    %597 = vmatprep.subr.bf16.mxu0 %v435
    %598 = vmatpush1.bf16.msra.mxu0 %v434
    %599 = vmatprep.subr.bf16.mxu0 %v443
    %600 = vmatpush1.bf16.msra.mxu0 %v442
    %601 = vmatprep.subr.bf16.mxu0 %v451
    %602 = vmatpush1.bf16.msra.mxu0 %v450
    %603 = vmatprep.subr.bf16.mxu0 %v459
    %604 = vmatpush1.bf16.msra.mxu0 %v458
    %605 = vmatprep.subr.bf16.mxu0 %v467
    %606 = vmatpush1.bf16.msra.mxu0 %v466
    %607 = vmatprep.subr.bf16.mxu0 %v475
    %608 = vmatpush1.bf16.msra.mxu0 %v474
    %609 = vmatprep.mubr.bf16.mxu0 %v48
    %610 = vmatmul.mubr.bf16.gmra.mrb[0].mxu0 %v47
    %v611 = vpop.f32.mrb[0].mxu0
    %v612 = vadd.f32 %v511, %v611
    %v613 = vpop.f32.mrb[0].mxu0
    %v614 = vadd.f32 %v515, %v613
    %v615 = vpop.f32.mrb[0].mxu0
    %v616 = vadd.f32 %v511, %v615
    %v617 = vpop.f32.mrb[0].mxu0
    %v618 = vadd.f32 %v515, %v617
    %619 = vdwg.mxu0
    %620 = vmatprep.subr.bf16.mxu0 %v483
    %621 = vmatpush1.bf16.msra.mxu0 %v482
    %622 = vmatprep.subr.bf16.mxu0 %v491
    %623 = vmatpush1.bf16.msra.mxu0 %v490
    %624 = vmatprep.subr.bf16.mxu0 %v557
    %625 = vmatpush1.bf16.msra.mxu0 %v554
    %626 = vmatprep.subr.bf16.mxu0 0
    %627 = vmatpush1.bf16.msra.mxu0 0
    %628 = vmatprep.subr.bf16.mxu0 0
    %629 = vmatpush1.bf16.msra.mxu0 0
    %630 = vmatprep.subr.bf16.mxu0 0
    %631 = vmatpush1.bf16.msra.mxu0 0
    %632 = vmatprep.subr.bf16.mxu0 0
    %633 = vmatpush1.bf16.msra.mxu0 0
    %634 = vmatprep.subr.bf16.mxu0 0
    %635 = vmatpush1.bf16.msra.mxu0 0
    %636 = vmatprep.subr.bf16.mxu0 0
    %637 = vmatpush1.bf16.msra.mxu0 0
    %638 = vmatprep.subr.bf16.mxu0 0
    %639 = vmatpush1.bf16.msra.mxu0 0
    %640 = vmatprep.subr.bf16.mxu0 0
    %641 = vmatpush1.bf16.msra.mxu0 0
    %642 = vmatprep.subr.bf16.mxu0 0
    %643 = vmatpush1.bf16.msra.mxu0 0
    %644 = vmatprep.subr.bf16.mxu0 0
    %645 = vmatpush1.bf16.msra.mxu0 0
    %646 = vmatprep.subr.bf16.mxu0 0
    %647 = vmatpush1.bf16.msra.mxu0 0
    %648 = vmatprep.subr.bf16.mxu0 0
    %649 = vmatpush1.bf16.msra.mxu0 0
    %650 = vmatprep.subr.bf16.mxu0 0
    %651 = vmatpush1.bf16.msra.mxu0 0
    %652 = vmatprep.mubr.bf16.mxu0 0
    %653 = vmatmul.mubr.bf16.gmra.mrb[0].mxu0 %v550
    %v654 = vpop.f32.mrb[0].mxu0
    %v655 = vadd.f32 %v612, %v654
    %v656 = vpop.f32.mrb[0].mxu0
    %v657 = vadd.f32 %v614, %v656
    %v658 = vpop.f32.mrb[0].mxu0
    %v659 = vadd.f32 %v616, %v658
    %v660 = vpop.f32.mrb[0].mxu0
    %v661 = vadd.f32 %v618, %v660
    %662 = vdwg.mxu0
    %663 = vmatprep.subr.bf16.mxu0 %v357
    %664 = vmatpush1.bf16.msra.mxu0 %v356
    %665 = vmatprep.subr.bf16.mxu0 %v365
    %666 = vmatpush1.bf16.msra.mxu0 %v364
    %667 = vmatprep.subr.bf16.mxu0 %v373
    %668 = vmatpush1.bf16.msra.mxu0 %v372
    %669 = vmatprep.subr.bf16.mxu0 %v381
    %670 = vmatpush1.bf16.msra.mxu0 %v380
    %671 = vmatprep.subr.bf16.mxu0 %v389
    %672 = vmatpush1.bf16.msra.mxu0 %v388
    %673 = vmatprep.subr.bf16.mxu0 %v397
    %674 = vmatpush1.bf16.msra.mxu0 %v396
    %675 = vmatprep.subr.bf16.mxu0 %v405
    %676 = vmatpush1.bf16.msra.mxu0 %v404
    %677 = vmatprep.subr.bf16.mxu0 %v413
    %678 = vmatpush1.bf16.msra.mxu0 %v412
    %679 = vmatprep.subr.bf16.mxu0 %v421
    %680 = vmatpush1.bf16.msra.mxu0 %v420
    %681 = vmatprep.subr.bf16.mxu0 %v429
    %682 = vmatpush1.bf16.msra.mxu0 %v428
    %683 = vmatprep.subr.bf16.mxu0 %v437
    %684 = vmatpush1.bf16.msra.mxu0 %v436
    %685 = vmatprep.subr.bf16.mxu0 %v445
    %686 = vmatpush1.bf16.msra.mxu0 %v444
    %687 = vmatprep.subr.bf16.mxu0 %v453
    %688 = vmatpush1.bf16.msra.mxu0 %v452
    %689 = vmatprep.subr.bf16.mxu0 %v461
    %690 = vmatpush1.bf16.msra.mxu0 %v460
    %691 = vmatprep.subr.bf16.mxu0 %v469
    %692 = vmatpush1.bf16.msra.mxu0 %v468
    %693 = vmatprep.subr.bf16.mxu0 %v477
    %694 = vmatpush1.bf16.msra.mxu0 %v476
    %695 = vmatprep.mubr.bf16.mxu0 %v48
    %696 = vmatmul.mubr.bf16.gmra.mrb[0].mxu0 %v47
    %v697 = vpop.f32.mrb[0].mxu0
    %v698 = vadd.f32 %v519, %v697
    %v699 = vpop.f32.mrb[0].mxu0
    %v700 = vadd.f32 %v523, %v699
    %v701 = vpop.f32.mrb[0].mxu0
    %v702 = vadd.f32 %v519, %v701
    %v703 = vpop.f32.mrb[0].mxu0
    %v704 = vadd.f32 %v523, %v703
    %705 = vdwg.mxu0
    %706 = vmatprep.subr.bf16.mxu0 %v485
    %707 = vmatpush1.bf16.msra.mxu0 %v484
    %708 = vmatprep.subr.bf16.mxu0 %v493
    %709 = vmatpush1.bf16.msra.mxu0 %v492
    %710 = vmatprep.subr.bf16.mxu0 %v563
    %711 = vmatpush1.bf16.msra.mxu0 %v560
    %712 = vmatprep.subr.bf16.mxu0 0
    %713 = vmatpush1.bf16.msra.mxu0 0
    %714 = vmatprep.subr.bf16.mxu0 0
    %715 = vmatpush1.bf16.msra.mxu0 0
    %716 = vmatprep.subr.bf16.mxu0 0
    %717 = vmatpush1.bf16.msra.mxu0 0
    %718 = vmatprep.subr.bf16.mxu0 0
    %719 = vmatpush1.bf16.msra.mxu0 0
    %720 = vmatprep.subr.bf16.mxu0 0
    %721 = vmatpush1.bf16.msra.mxu0 0
    %722 = vmatprep.subr.bf16.mxu0 0
    %723 = vmatpush1.bf16.msra.mxu0 0
    %724 = vmatprep.subr.bf16.mxu0 0
    %725 = vmatpush1.bf16.msra.mxu0 0
    %726 = vmatprep.subr.bf16.mxu0 0
    %727 = vmatpush1.bf16.msra.mxu0 0
    %728 = vmatprep.subr.bf16.mxu0 0
    %729 = vmatpush1.bf16.msra.mxu0 0
    %730 = vmatprep.subr.bf16.mxu0 0
    %731 = vmatpush1.bf16.msra.mxu0 0
    %732 = vmatprep.subr.bf16.mxu0 0
    %733 = vmatpush1.bf16.msra.mxu0 0
    %734 = vmatprep.subr.bf16.mxu0 0
    %735 = vmatpush1.bf16.msra.mxu0 0
    %736 = vmatprep.subr.bf16.mxu0 0
    %737 = vmatpush1.bf16.msra.mxu0 0
    %738 = vmatprep.mubr.bf16.mxu0 0
    %739 = vmatmul.mubr.bf16.gmra.mrb[0].mxu0 %v550
    %v740 = vpop.f32.mrb[0].mxu0
    %v741 = vadd.f32 %v698, %v740
    %v742 = vpop.f32.mrb[0].mxu0
    %v743 = vadd.f32 %v700, %v742
    %v744 = vpop.f32.mrb[0].mxu0
    %v745 = vadd.f32 %v702, %v744
    %v746 = vpop.f32.mrb[0].mxu0
    %v747 = vadd.f32 %v704, %v746
    %748 = vdwg.mxu0
    %749 = vmatprep.subr.bf16.mxu0 %v359
    %750 = vmatpush1.bf16.msra.mxu0 %v358
    %751 = vmatprep.subr.bf16.mxu0 %v367
    %752 = vmatpush1.bf16.msra.mxu0 %v366
    %753 = vmatprep.subr.bf16.mxu0 %v375
    %754 = vmatpush1.bf16.msra.mxu0 %v374
    %755 = vmatprep.subr.bf16.mxu0 %v383
    %756 = vmatpush1.bf16.msra.mxu0 %v382
    %757 = vmatprep.subr.bf16.mxu0 %v391
    %758 = vmatpush1.bf16.msra.mxu0 %v390
    %759 = vmatprep.subr.bf16.mxu0 %v399
    %760 = vmatpush1.bf16.msra.mxu0 %v398
    %761 = vmatprep.subr.bf16.mxu0 %v407
    %762 = vmatpush1.bf16.msra.mxu0 %v406
    %763 = vmatprep.subr.bf16.mxu0 %v415
    %764 = vmatpush1.bf16.msra.mxu0 %v414
    %765 = vmatprep.subr.bf16.mxu0 %v423
    %766 = vmatpush1.bf16.msra.mxu0 %v422
    %767 = vmatprep.subr.bf16.mxu0 %v431
    %768 = vmatpush1.bf16.msra.mxu0 %v430
    %769 = vmatprep.subr.bf16.mxu0 %v439
    %770 = vmatpush1.bf16.msra.mxu0 %v438
    %771 = vmatprep.subr.bf16.mxu0 %v447
    %772 = vmatpush1.bf16.msra.mxu0 %v446
    %773 = vmatprep.subr.bf16.mxu0 %v455
    %774 = vmatpush1.bf16.msra.mxu0 %v454
    %775 = vmatprep.subr.bf16.mxu0 %v463
    %776 = vmatpush1.bf16.msra.mxu0 %v462
    %777 = vmatprep.subr.bf16.mxu0 %v471
    %778 = vmatpush1.bf16.msra.mxu0 %v470
    %779 = vmatprep.subr.bf16.mxu0 %v479
    %780 = vmatpush1.bf16.msra.mxu0 %v478
    %781 = vmatprep.mubr.bf16.mxu0 %v48
    %782 = vmatmul.mubr.bf16.gmra.mrb[0].mxu0 %v47
    %v783 = vpop.f32.mrb[0].mxu0
    %v784 = vadd.f32 %v527, %v783
    %v785 = vpop.f32.mrb[0].mxu0
    %v786 = vadd.f32 %v531, %v785
    %v787 = vpop.f32.mrb[0].mxu0
    %v788 = vadd.f32 %v527, %v787
    %v789 = vpop.f32.mrb[0].mxu0
    %v790 = vadd.f32 %v531, %v789
    %791 = vdwg.mxu0
    %792 = vmatprep.subr.bf16.mxu0 %v487
    %793 = vmatpush1.bf16.msra.mxu0 %v486
    %794 = vmatprep.subr.bf16.mxu0 %v495
    %795 = vmatpush1.bf16.msra.mxu0 %v494
    %796 = vmatprep.subr.bf16.mxu0 %v569
    %797 = vmatpush1.bf16.msra.mxu0 %v566
    %798 = vmatprep.subr.bf16.mxu0 0
    %799 = vmatpush1.bf16.msra.mxu0 0
    %800 = vmatprep.subr.bf16.mxu0 0
    %801 = vmatpush1.bf16.msra.mxu0 0
    %802 = vmatprep.subr.bf16.mxu0 0
    %803 = vmatpush1.bf16.msra.mxu0 0
    %804 = vmatprep.subr.bf16.mxu0 0
    %805 = vmatpush1.bf16.msra.mxu0 0
    %806 = vmatprep.subr.bf16.mxu0 0
    %807 = vmatpush1.bf16.msra.mxu0 0
    %808 = vmatprep.subr.bf16.mxu0 0
    %809 = vmatpush1.bf16.msra.mxu0 0
    %810 = vmatprep.subr.bf16.mxu0 0
    %811 = vmatpush1.bf16.msra.mxu0 0
    %812 = vmatprep.subr.bf16.mxu0 0
    %813 = vmatpush1.bf16.msra.mxu0 0
    %814 = vmatprep.subr.bf16.mxu0 0
    %815 = vmatpush1.bf16.msra.mxu0 0
    %816 = vmatprep.subr.bf16.mxu0 0
    %817 = vmatpush1.bf16.msra.mxu0 0
    %818 = vmatprep.subr.bf16.mxu0 0
    %819 = vmatpush1.bf16.msra.mxu0 0
    %820 = vmatprep.subr.bf16.mxu0 0
    %821 = vmatpush1.bf16.msra.mxu0 0
    %822 = vmatprep.subr.bf16.mxu0 0
    %823 = vmatpush1.bf16.msra.mxu0 0
    %824 = vmatprep.mubr.bf16.mxu0 0
    %825 = vmatmul.mubr.bf16.gmra.mrb[0].mxu0 %v550
    %v826 = vpop.f32.mrb[0].mxu0
    %v827 = vadd.f32 %v784, %v826
    %v828 = vpop.f32.mrb[0].mxu0
    %v829 = vadd.f32 %v786, %v828
    %v830 = vpop.f32.mrb[0].mxu0
    %v831 = vadd.f32 %v788, %v830
    %v832 = vpop.f32.mrb[0].mxu0
    %v833 = vadd.f32 %v790, %v832
    %834 = vdwg.mxu0
    %835 = vmatprep.subr.bf16.mxu0 %v361
    %836 = vmatpush1.bf16.msra.mxu0 %v360
    %837 = vmatprep.subr.bf16.mxu0 %v369
    %838 = vmatpush1.bf16.msra.mxu0 %v368
    %839 = vmatprep.subr.bf16.mxu0 %v377
    %840 = vmatpush1.bf16.msra.mxu0 %v376
    %841 = vmatprep.subr.bf16.mxu0 %v385
    %842 = vmatpush1.bf16.msra.mxu0 %v384
    %843 = vmatprep.subr.bf16.mxu0 %v393
    %844 = vmatpush1.bf16.msra.mxu0 %v392
    %845 = vmatprep.subr.bf16.mxu0 %v401
    %846 = vmatpush1.bf16.msra.mxu0 %v400
    %847 = vmatprep.subr.bf16.mxu0 %v409
    %848 = vmatpush1.bf16.msra.mxu0 %v408
    %849 = vmatprep.subr.bf16.mxu0 %v417
    %850 = vmatpush1.bf16.msra.mxu0 %v416
    %851 = vmatprep.subr.bf16.mxu0 %v425
    %852 = vmatpush1.bf16.msra.mxu0 %v424
    %853 = vmatprep.subr.bf16.mxu0 %v433
    %854 = vmatpush1.bf16.msra.mxu0 %v432
    %855 = vmatprep.subr.bf16.mxu0 %v441
    %856 = vmatpush1.bf16.msra.mxu0 %v440
    %857 = vmatprep.subr.bf16.mxu0 %v449
    %858 = vmatpush1.bf16.msra.mxu0 %v448
    %859 = vmatprep.subr.bf16.mxu0 %v457
    %860 = vmatpush1.bf16.msra.mxu0 %v456
    %861 = vmatprep.subr.bf16.mxu0 %v465
    %862 = vmatpush1.bf16.msra.mxu0 %v464
    %863 = vmatprep.subr.bf16.mxu0 %v473
    %864 = vmatpush1.bf16.msra.mxu0 %v472
    %865 = vmatprep.subr.bf16.mxu0 %v481
    %866 = vmatpush1.bf16.msra.mxu0 %v480
    %867 = vmatprep.mubr.bf16.mxu0 %v48
    %868 = vmatmul.mubr.bf16.gmra.mrb[0].mxu0 %v47
    %v869 = vpop.f32.mrb[0].mxu0
    %v870 = vadd.f32 %v535, %v869
    %v871 = vpop.f32.mrb[0].mxu0
    %v872 = vadd.f32 %v539, %v871
    %v873 = vpop.f32.mrb[0].mxu0
    %v874 = vadd.f32 %v535, %v873
    %v875 = vpop.f32.mrb[0].mxu0
    %v876 = vadd.f32 %v539, %v875
    %877 = vdwg.mxu0
    %878 = vmatprep.subr.bf16.mxu0 %v489
    %879 = vmatpush1.bf16.msra.mxu0 %v488
    %880 = vmatprep.subr.bf16.mxu0 %v497
    %881 = vmatpush1.bf16.msra.mxu0 %v496
    %882 = vmatprep.subr.bf16.mxu0 %v575
    %883 = vmatpush1.bf16.msra.mxu0 %v572
    %884 = vmatprep.subr.bf16.mxu0 0
    %885 = vmatpush1.bf16.msra.mxu0 0
    %886 = vmatprep.subr.bf16.mxu0 0
    %887 = vmatpush1.bf16.msra.mxu0 0
    %888 = vmatprep.subr.bf16.mxu0 0
    %889 = vmatpush1.bf16.msra.mxu0 0
    %890 = vmatprep.subr.bf16.mxu0 0
    %891 = vmatpush1.bf16.msra.mxu0 0
    %892 = vmatprep.subr.bf16.mxu0 0
    %893 = vmatpush1.bf16.msra.mxu0 0
    %894 = vmatprep.subr.bf16.mxu0 0
    %895 = vmatpush1.bf16.msra.mxu0 0
    %896 = vmatprep.subr.bf16.mxu0 0
    %897 = vmatpush1.bf16.msra.mxu0 0
    %898 = vmatprep.subr.bf16.mxu0 0
    %899 = vmatpush1.bf16.msra.mxu0 0
    %900 = vmatprep.subr.bf16.mxu0 0
    %901 = vmatpush1.bf16.msra.mxu0 0
    %902 = vmatprep.subr.bf16.mxu0 0
    %903 = vmatpush1.bf16.msra.mxu0 0
    %904 = vmatprep.subr.bf16.mxu0 0
    %905 = vmatpush1.bf16.msra.mxu0 0
    %906 = vmatprep.subr.bf16.mxu0 0
    %907 = vmatpush1.bf16.msra.mxu0 0
    %908 = vmatprep.subr.bf16.mxu0 0
    %909 = vmatpush1.bf16.msra.mxu0 0
    %910 = vmatprep.mubr.bf16.mxu0 0
    %911 = vmatmul.mubr.bf16.gmra.mrb[0].mxu0 %v550
    %v912 = vpop.f32.mrb[0].mxu0
    %v913 = vadd.f32 %v870, %v912
    %v914 = vpop.f32.mrb[0].mxu0
    %v915 = vadd.f32 %v872, %v914
    %v916 = vpop.f32.mrb[0].mxu0
    %v917 = vadd.f32 %v874, %v916
    %v918 = vpop.f32.mrb[0].mxu0
    %v919 = vadd.f32 %v876, %v918
    %920 = vdwg.mxu0
    %921 = vst [vmem:[%s3] sm:$0xff] %v655
    %922 = vst [vmem:[%s3 + $0x8] sm:$0xff] %v657
    %923 = vst [vmem:[%s3 + $0x10] sm:$0xff] %v741
    %924 = vst [vmem:[%s3 + $0x18] sm:$0xff] %v743
    %925 = vst [vmem:[%s3 + $0x20] sm:$0xff] %v827
    %926 = vst [vmem:[%s3 + $0x28] sm:$0xff] %v829
    %927 = vst [vmem:[%s3 + $0x30] sm:$0xff] %v913
    %928 = vst [vmem:[%s3 + $0x38] sm:$0xff] %v915
    %929 = vst [vmem:[%s3 + $0x40] sm:$0xff] %v659
    %930 = vst [vmem:[%s3 + $0x48] sm:$0xff] %v661
    %931 = vst [vmem:[%s3 + $0x50] sm:$0xff] %v745
    %932 = vst [vmem:[%s3 + $0x58] sm:$0xff] %v747
    %933 = vst [vmem:[%s3 + $0x60] sm:$0xff] %v831
    %934 = vst [vmem:[%s3 + $0x68] sm:$0xff] %v833
    %935 = vst [vmem:[%s3 + $0x70] sm:$0xff] %v917
    %936 = vst [vmem:[%s3 + $0x78] sm:$0xff] %v919
    // Predicated region
    $region22: #{net_forward.17} parent=1 // pred_check
      _
    $region23: #{net_forward.17} parent=1 // pred_check_branch
      %938 = sbr.rel (0) target = $region25
    $region24: #{net_forward.17} parent=1 // pred_region
      _
    $region25: #{net_forward.17} parent=1 // pred_fallthru
      _
    // Predicated region
    $region26: #{net_forward.17} parent=1 // pred_check
      _
    $region27: #{net_forward.17} parent=1 // pred_check_branch
      %940 = sbr.rel (0) target = $region29
    $region28: #{net_forward.17} parent=1 // pred_region
      _
    $region29: #{net_forward.17} parent=1 // pred_fallthru
      _
    %941 = vsyncpa [#allocation3], 1
    %942 = vsyncpa [#allocation5], 1

// kernel: net_forward.21
$region0: #{net_forward.21}
  #allocation0 [shape = 'u32[]', space=smem, size = 0x4, offset = 0x4, fixed_abs, tag = 'smem constant byte address 0x4 - core index']
  #allocation1 [shape = 'u32[144,128]{1,0:T(1,128)}', space=vmem, size = 0x12000, scoped, tag = 'internal scratch']
  %s0 = inlined_call_operand.vmem [shape: f32[16,256], index: 0, kind: input, shape index: {}]
  %s1 = inlined_call_operand.vmem [shape: f32[256,128], index: 1, kind: input, shape index: {}]
  %s2 = inlined_call_operand.vmem [shape: f32[1,128], index: 2, kind: input, shape index: {}]
  %s3 = inlined_call_operand.vmem [shape: f32[16,128], index: 3, kind: output, shape index: {}]
  %s4 = sld [smem:[#allocation0]]
  $region22: #{net_forward.21} parent=0
    _
  %s6 = ssub.s32 1, %s4
  %s7 = scalar_select 0, %s6, %s4
  // Predicated region
  $region2: #{net_forward.21} parent=0 // pred_check
    _
  $region3: #{net_forward.21} parent=0 // pred_check_branch
    %9 = sbr.rel (0) target = $region5
  $region4: #{net_forward.21} parent=0 // pred_region
    _
  $region5: #{net_forward.21} parent=0 // pred_fallthru
    _
  // Predicated region
  $region6: #{net_forward.21} parent=0 // pred_check
    _
  $region7: #{net_forward.21} parent=0 // pred_check_branch
    %11 = sbr.rel (0) target = $region9
  $region8: #{net_forward.21} parent=0 // pred_region
    _
  $region9: #{net_forward.21} parent=0 // pred_fallthru
    _
  // Predicated region
  $region10: #{net_forward.21} parent=0 // pred_check
    _
  $region11: #{net_forward.21} parent=0 // pred_check_branch
    %13 = sbr.rel (0) target = $region13
  $region12: #{net_forward.21} parent=0 // pred_region
    _
  $region13: #{net_forward.21} parent=0 // pred_fallthru
    _
  %v15 = vld [vmem:[%s0] sm:$0xff]
  %v16 = vld [vmem:[%s0 + $0x8] sm:$0xff]
  %v17 = vld [vmem:[%s0 + $0x10] sm:$0xff]
  %v18 = vld [vmem:[%s0 + $0x18] sm:$0xff]
  %v19 = vpack.c.bf16 %v17, %v15
  %v20 = vpack.c.bf16 %v18, %v16
  %v21 = vld [vmem:[%s1] sm:$0xff]
  %v22 = vld [vmem:[%s1 + $0x8] sm:$0xff]
  %v23 = vld [vmem:[%s1 + $0x10] sm:$0xff]
  %v24 = vld [vmem:[%s1 + $0x18] sm:$0xff]
  %v25 = vld [vmem:[%s1 + $0x20] sm:$0xff]
  %v26 = vld [vmem:[%s1 + $0x28] sm:$0xff]
  %v27 = vld [vmem:[%s1 + $0x30] sm:$0xff]
  %v28 = vld [vmem:[%s1 + $0x38] sm:$0xff]
  %v29 = vld [vmem:[%s1 + $0x40] sm:$0xff]
  %v30 = vld [vmem:[%s1 + $0x48] sm:$0xff]
  %v31 = vld [vmem:[%s1 + $0x50] sm:$0xff]
  %v32 = vld [vmem:[%s1 + $0x58] sm:$0xff]
  %v33 = vld [vmem:[%s1 + $0x60] sm:$0xff]
  %v34 = vld [vmem:[%s1 + $0x68] sm:$0xff]
  %v35 = vld [vmem:[%s1 + $0x70] sm:$0xff]
  %v36 = vld [vmem:[%s1 + $0x78] sm:$0xff]
  %v37 = vld [vmem:[%s1 + $0x80] sm:$0xff]
  %v38 = vld [vmem:[%s1 + $0x88] sm:$0xff]
  %v39 = vld [vmem:[%s1 + $0x90] sm:$0xff]
  %v40 = vld [vmem:[%s1 + $0x98] sm:$0xff]
  %v41 = vld [vmem:[%s1 + $0xa0] sm:$0xff]
  %v42 = vld [vmem:[%s1 + $0xa8] sm:$0xff]
  %v43 = vld [vmem:[%s1 + $0xb0] sm:$0xff]
  %v44 = vld [vmem:[%s1 + $0xb8] sm:$0xff]
  %v45 = vld [vmem:[%s1 + $0xc0] sm:$0xff]
  %v46 = vld [vmem:[%s1 + $0xc8] sm:$0xff]
  %v47 = vld [vmem:[%s1 + $0xd0] sm:$0xff]
  %v48 = vld [vmem:[%s1 + $0xd8] sm:$0xff]
  %v49 = vld [vmem:[%s1 + $0xe0] sm:$0xff]
  %v50 = vld [vmem:[%s1 + $0xe8] sm:$0xff]
  %v51 = vld [vmem:[%s1 + $0xf0] sm:$0xff]
  %v52 = vld [vmem:[%s1 + $0xf8] sm:$0xff]
  %v53 = vpack.c.bf16 %v22, %v21
  %v54 = vpack.c.bf16 %v24, %v23
  %v55 = vpack.c.bf16 %v26, %v25
  %v56 = vpack.c.bf16 %v28, %v27
  %v57 = vpack.c.bf16 %v30, %v29
  %v58 = vpack.c.bf16 %v32, %v31
  %v59 = vpack.c.bf16 %v34, %v33
  %v60 = vpack.c.bf16 %v36, %v35
  %v61 = vpack.c.bf16 %v38, %v37
  %v62 = vpack.c.bf16 %v40, %v39
  %v63 = vpack.c.bf16 %v42, %v41
  %v64 = vpack.c.bf16 %v44, %v43
  %v65 = vpack.c.bf16 %v46, %v45
  %v66 = vpack.c.bf16 %v48, %v47
  %v67 = vpack.c.bf16 %v50, %v49
  %v68 = vpack.c.bf16 %v52, %v51
  %v69 = vld [vmem:[%s2] sm:$0x1]
  %v71 = vlaneseq
  %v72 = vshrl.u32 %v71, 7
  %v73 = vsub.s32 0, %v72
  %v74 = vrot.slane %v69, %v73
  %76 = vmatprep.subr.bf16.mxu0 0
  %77 = vmatpush1.bf16.msra.mxu0 %v53
  %78 = vmatprep.subr.bf16.mxu0 0
  %79 = vmatpush1.bf16.msra.mxu0 %v54
  %80 = vmatprep.subr.bf16.mxu0 0
  %81 = vmatpush1.bf16.msra.mxu0 %v55
  %82 = vmatprep.subr.bf16.mxu0 0
  %83 = vmatpush1.bf16.msra.mxu0 %v56
  %84 = vmatprep.subr.bf16.mxu0 0
  %85 = vmatpush1.bf16.msra.mxu0 %v57
  %86 = vmatprep.subr.bf16.mxu0 0
  %87 = vmatpush1.bf16.msra.mxu0 %v58
  %88 = vmatprep.subr.bf16.mxu0 0
  %89 = vmatpush1.bf16.msra.mxu0 %v59
  %90 = vmatprep.subr.bf16.mxu0 0
  %91 = vmatpush1.bf16.msra.mxu0 %v60
  %92 = vmatprep.subr.bf16.mxu0 0
  %93 = vmatpush1.bf16.msra.mxu0 %v61
  %94 = vmatprep.subr.bf16.mxu0 0
  %95 = vmatpush1.bf16.msra.mxu0 %v62
  %96 = vmatprep.subr.bf16.mxu0 0
  %97 = vmatpush1.bf16.msra.mxu0 %v63
  %98 = vmatprep.subr.bf16.mxu0 0
  %99 = vmatpush1.bf16.msra.mxu0 %v64
  %100 = vmatprep.subr.bf16.mxu0 0
  %101 = vmatpush1.bf16.msra.mxu0 %v65
  %102 = vmatprep.subr.bf16.mxu0 0
  %103 = vmatpush1.bf16.msra.mxu0 %v66
  %104 = vmatprep.subr.bf16.mxu0 0
  %105 = vmatpush1.bf16.msra.mxu0 %v67
  %106 = vmatprep.subr.bf16.mxu0 0
  %107 = vmatpush1.bf16.msra.mxu0 %v68
  %108 = vmatprep.mubr.bf16.mxu0 %v20
  %109 = vmatmul.mubr.bf16.gmra.mrb[0].mxu0 %v19
  %v110 = vpop.f32.mrb[0].mxu0
  %v111 = vadd.f32 %v74, %v110
  %v112 = vpop.f32.mrb[0].mxu0
  %v113 = vpop.f32.mrb[0].mxu0
  %v114 = vadd.f32 %v74, %v113
  %v115 = vpop.f32.mrb[0].mxu0
  %116 = vdwg.mxu0
  %v117 = vmax.f32 %v111, 0.0
  %v118 = vmax.f32 %v114, 0.0
  %119 = vst [vmem:[%s3] sm:$0xff] %v117
  %120 = vst [vmem:[%s3 + $0x8] sm:$0xff] %v118
  // Predicated region
  $region14: #{net_forward.21} parent=0 // pred_check
    _
  $region15: #{net_forward.21} parent=0 // pred_check_branch
    %122 = sbr.rel (0) target = $region17
  $region16: #{net_forward.21} parent=0 // pred_region
    _
  $region17: #{net_forward.21} parent=0 // pred_fallthru
    _
  // Predicated region
  $region18: #{net_forward.21} parent=0 // pred_check
    _
  $region19: #{net_forward.21} parent=0 // pred_check_branch
    %124 = sbr.rel (0) target = $region21
  $region20: #{net_forward.21} parent=0 // pred_region
    _
  $region21: #{net_forward.21} parent=0 // pred_fallthru
    _

// kernel: net_forward.22
$region0: #{net_forward.22}
  #allocation0 [shape = 'u32[]', space=smem, size = 0x4, offset = 0x4, fixed_abs, tag = 'smem constant byte address 0x4 - core index']
  #allocation1 [shape = 'u32[144,128]{1,0:T(1,128)}', space=vmem, size = 0x12000, scoped, tag = 'internal scratch']
  #allocation2 [shape = 'f32[1,1]{1,0:T(1,128)S(1)}', space=vmem, size = 0x200, scoped, tag = 'scoped memory for net_forward.22']
  %s0 = inlined_call_operand.vmem [shape: f32[2,6,128], index: 0, kind: input, shape index: {}]
  %s1 = inlined_call_operand.vmem [shape: f32[2,6,256], index: 1, kind: input, shape index: {}]
  %s2 = inlined_call_operand.vmem [shape: f32[1,128], index: 2, kind: input, shape index: {}]
  %s3 = inlined_call_operand.<no memory space> [shape: f32[1,1], index: 3, kind: input, shape index: {}]
  %s4 = inlined_call_operand.vmem [shape: f32[2,1,256], index: 4, kind: output, shape index: {}]
  %s5 = sld [smem:[#allocation0]]
  $region49: #{net_forward.22} parent=0
    _
  %s7 = ssub.s32 1, %s5
  %s8 = scalar_select 0, %s7, %s5
  %v9 = vstv %s3
  %10 = vst [vmem:[#allocation2] sm:$0x1] %v9
  loop: start=0, step=1, limit=4
  $region2: #{net_forward.22} parent=0 // loop_pre_header
    _
  $region3: #{net_forward.22} parent=0 // loop_header
    %s12 = sphi 0, %s16
    %p13 = scmp.ge.s32.totalorder %s12, 4
    %s22 = sphi 0, %s24
    %s25 = sphi 0, %s22
    %s26 = sphi 0, %s25
    %s42 = sphi 0, %s26
    %s48 = sphi 0, %s50
    %s51 = sphi 0, %s48
    %s52 = sphi 0, %s51
    %s68 = sphi 0, %s52
    %s72 = sphi 0, %s72
    %s74 = sphi 0, %s72
    %s75 = sphi 0, %s74
    %s89 = sphi 0, %s75
    %s93 = sphi 0, %s93
    %s95 = sphi 0, %s93
    %s96 = sphi 0, %s95
    %s110 = sphi 0, %s96
    %s116 = sphi 0, %s118
    %s119 = sphi 0, %s116
    %s120 = sphi 0, %s119
    %s136 = sphi 0, %s120
  $region4: #{net_forward.22} parent=0 // loop_header_branch
    %15 = sbr.rel (%p13) target = $region8
  $region5: #{net_forward.22} parent=0 // loop_body
    %s17 = ssub.s32 %s12, 1
    %s18 = ssub.s32 %s12, 2
    %s19 = sadd.s32 %s12, 1
    %s20 = ssub.s32 %s12, %s19
    %p21 = scmp.eq.s32.totalorder %s20, 0
    %s23 = sadd.s32 %s22, 1
    %s24 = scalar_select %p21, %s22, %s23
    %p27 = pneg %p21
    %p28 = scmp.eq.s32.totalorder %s12, 1
    %p29 = por %p27, %p28
    %p30 = scmp.ne.s32.totalorder %s22, %s25
    %p31 = scmp.eq.s32.totalorder %s12, 0
    %p32 = por %p30, %p31
    %p33 = scmp.ne.s32.totalorder %s22, %s25
    %p34 = scmp.eq.s32.totalorder %s17, 1
    %p35 = por %p33, %p34
    %p36 = scmp.ne.s32.totalorder %s25, %s26
    %p37 = scmp.eq.s32.totalorder %s17, 0
    %p38 = por %p36, %p37
    %p39 = scmp.ne.s32.totalorder %s25, %s26
    %p40 = scmp.eq.s32.totalorder %s18, 1
    %p41 = por %p39, %p40
    %p43 = scmp.ne.s32.totalorder %s26, %s42
    %p44 = scmp.eq.s32.totalorder %s18, 0
    %p45 = por %p43, %p44
    %s46 = ssub.s32 %s12, %s19
    %p47 = scmp.eq.s32.totalorder %s46, 0
    %s49 = sadd.s32 %s48, 1
    %s50 = scalar_select %p47, %s48, %s49
    %p53 = pneg %p47
    %p54 = scmp.eq.s32.totalorder %s12, 1
    %p55 = por %p53, %p54
    %p56 = scmp.ne.s32.totalorder %s48, %s51
    %p57 = scmp.eq.s32.totalorder %s12, 0
    %p58 = por %p56, %p57
    %p59 = scmp.ne.s32.totalorder %s48, %s51
    %p60 = scmp.eq.s32.totalorder %s17, 1
    %p61 = por %p59, %p60
    %p62 = scmp.ne.s32.totalorder %s51, %s52
    %p63 = scmp.eq.s32.totalorder %s17, 0
    %p64 = por %p62, %p63
    %p65 = scmp.ne.s32.totalorder %s51, %s52
    %p66 = scmp.eq.s32.totalorder %s18, 1
    %p67 = por %p65, %p66
    %p69 = scmp.ne.s32.totalorder %s52, %s68
    %p70 = scmp.eq.s32.totalorder %s18, 0
    %p71 = por %p69, %p70
    %s73 = sadd.s32 %s72, 1
    %p76 = scmp.eq.s32.totalorder %s12, 1
    %p77 = scmp.ne.s32.totalorder %s72, %s74
    %p78 = scmp.eq.s32.totalorder %s12, 0
    %p79 = por %p77, %p78
    %p80 = scmp.ne.s32.totalorder %s72, %s74
    %p81 = scmp.eq.s32.totalorder %s17, 1
    %p82 = por %p80, %p81
    %p83 = scmp.ne.s32.totalorder %s74, %s75
    %p84 = scmp.eq.s32.totalorder %s17, 0
    %p85 = por %p83, %p84
    %p86 = scmp.ne.s32.totalorder %s74, %s75
    %p87 = scmp.eq.s32.totalorder %s18, 1
    %p88 = por %p86, %p87
    %p90 = scmp.ne.s32.totalorder %s75, %s89
    %p91 = scmp.eq.s32.totalorder %s18, 0
    %p92 = por %p90, %p91
    %s94 = sadd.s32 %s93, 1
    %p97 = scmp.eq.s32.totalorder %s12, 1
    %p98 = scmp.ne.s32.totalorder %s93, %s95
    %p99 = scmp.eq.s32.totalorder %s12, 0
    %p100 = por %p98, %p99
    %p101 = scmp.ne.s32.totalorder %s93, %s95
    %p102 = scmp.eq.s32.totalorder %s17, 1
    %p103 = por %p101, %p102
    %p104 = scmp.ne.s32.totalorder %s95, %s96
    %p105 = scmp.eq.s32.totalorder %s17, 0
    %p106 = por %p104, %p105
    %p107 = scmp.ne.s32.totalorder %s95, %s96
    %p108 = scmp.eq.s32.totalorder %s18, 1
    %p109 = por %p107, %p108
    %p111 = scmp.ne.s32.totalorder %s96, %s110
    %p112 = scmp.eq.s32.totalorder %s18, 0
    %p113 = por %p111, %p112
    %s114 = ssub.s32 %s12, %s19
    %p115 = scmp.eq.s32.totalorder %s114, 0
    %s117 = sadd.s32 %s116, 1
    %s118 = scalar_select %p115, %s116, %s117
    %p121 = pneg %p115
    %p122 = scmp.eq.s32.totalorder %s12, 1
    %p123 = por %p121, %p122
    %p124 = scmp.ne.s32.totalorder %s116, %s119
    %p125 = scmp.eq.s32.totalorder %s12, 0
    %p126 = por %p124, %p125
    %p127 = scmp.ne.s32.totalorder %s116, %s119
    %p128 = scmp.eq.s32.totalorder %s17, 1
    %p129 = por %p127, %p128
    %p130 = scmp.ne.s32.totalorder %s119, %s120
    %p131 = scmp.eq.s32.totalorder %s17, 0
    %p132 = por %p130, %p131
    %p133 = scmp.ne.s32.totalorder %s119, %s120
    %p134 = scmp.eq.s32.totalorder %s18, 1
    %p135 = por %p133, %p134
    %p137 = scmp.ne.s32.totalorder %s120, %s136
    %p138 = scmp.eq.s32.totalorder %s18, 0
    %p139 = por %p137, %p138
    %p140 = scmp.le.s32.totalorder 1, %s12
    %p141 = scmp.lt.s32.totalorder %s12, 3
    %p142 = pnand %p140, %p141
    %p143 = pneg %p142
    // Predicated region
    $region9: #{net_forward.22} parent=5 // pred_check
      _
    $region10: #{net_forward.22} parent=5 // pred_check_branch
      %145 = sbr.rel (%p142) target = $region12
    $region11: #{net_forward.22} parent=5 // pred_region
      %s146 = ssub.s32 %s12, 1
      // Predicated region
      $region13: #{net_forward.22} parent=11 // pred_check
        %p147 = pneg %p85
      $region14: #{net_forward.22} parent=11 // pred_check_branch
        %149 = sbr.rel (%p147) target = $region16
      $region15: #{net_forward.22} parent=11 // pred_region
        _
      $region16: #{net_forward.22} parent=11 // pred_fallthru
        _
      // Predicated region
      $region17: #{net_forward.22} parent=11 // pred_check
        %p150 = pneg %p106
      $region18: #{net_forward.22} parent=11 // pred_check_branch
        %152 = sbr.rel (%p150) target = $region20
      $region19: #{net_forward.22} parent=11 // pred_region
        _
      $region20: #{net_forward.22} parent=11 // pred_fallthru
        _
    $region12: #{net_forward.22} parent=5 // pred_fallthru
      _
    %p153 = scmp.lt.s32.totalorder %s12, 2
    // Predicated region
    $region21: #{net_forward.22} parent=5 // pred_check
      %p154 = pneg %p153
    $region22: #{net_forward.22} parent=5 // pred_check_branch
      %156 = sbr.rel (%p154) target = $region24
    $region23: #{net_forward.22} parent=5 // pred_region
      // Predicated region
      $region25: #{net_forward.22} parent=23 // pred_check
        %p157 = pneg %p32
      $region26: #{net_forward.22} parent=23 // pred_check_branch
        %159 = sbr.rel (%p157) target = $region28
      $region27: #{net_forward.22} parent=23 // pred_region
        %p160 = scmp.lt.s32.totalorder %s12, 1
        %s161 = scalar_select %p160, %s12, 1
        %s162 = smul.addr %s161, 8
        %s163 = scalar_lea.vmem %s0, %s162
      $region28: #{net_forward.22} parent=23 // pred_fallthru
        _
      // Predicated region
      $region29: #{net_forward.22} parent=23 // pred_check
        %p164 = pneg %p58
      $region30: #{net_forward.22} parent=23 // pred_check_branch
        %166 = sbr.rel (%p164) target = $region32
      $region31: #{net_forward.22} parent=23 // pred_region
        %p167 = scmp.lt.s32.totalorder %s12, 1
        %s168 = scalar_select %p167, %s12, 1
        %s169 = smul.addr %s168, 2
        %s170 = smul.addr %s169, 8
        %s171 = scalar_lea.vmem %s1, %s170
      $region32: #{net_forward.22} parent=23 // pred_fallthru
        _
    $region24: #{net_forward.22} parent=5 // pred_fallthru
      _
    %p172 = scmp.le.s32.totalorder 1, %s12
    %p173 = scmp.lt.s32.totalorder %s12, 3
    %p174 = pnand %p172, %p173
    %p175 = pneg %p174
    // Predicated region
    $region33: #{net_forward.22} parent=5 // pred_check
      _
    $region34: #{net_forward.22} parent=5 // pred_check_branch
      %177 = sbr.rel (%p174) target = $region36
    $region35: #{net_forward.22} parent=5 // pred_region
      %s178 = ssub.s32 %s12, 1
      %p179 = scmp.lt.s32.totalorder %s17, 1
      %s180 = scalar_select %p179, %s17, 1
      %s181 = smul.addr %s180, 8
      %s182 = scalar_lea.vmem %s0, %s181
      %p183 = pneg %p38
      %p184 = pneg %p35
      %p185 = scmp.lt.s32.totalorder %s17, 1
      %s186 = scalar_select %p185, %s17, 1
      %s187 = smul.addr %s186, 2
      %s188 = smul.addr %s187, 8
      %s189 = scalar_lea.vmem %s1, %s188
      %p190 = pneg %p64
      %p191 = pneg %p61
      %p192 = pneg %p85
      %p193 = pneg %p82
      %p194 = pneg %p106
      %p195 = pneg %p103
      %p196 = pneg %p132
      %p197 = pneg %p129
      %p198 = scmp.lt.s32.totalorder %s17, 1
      %s199 = scalar_select %p198, %s17, 1
      %s200 = smul.addr %s199, 2
      %s201 = scalar_lea.vmem %s4, %s200
      %p202 = scmp.lt.s32.totalorder %s17, 1
      %s203 = scalar_select %p202, %s17, 1
      %s204 = smul.addr %s203, 8
      %s205 = scalar_lea.vmem %s0, %s204
      %p206 = scmp.lt.s32.totalorder %s17, 1
      %s207 = scalar_select %p206, %s17, 1
      %s208 = smul.addr %s207, 2
      %s209 = smul.addr %s208, 8
      %s210 = scalar_lea.vmem %s1, %s209
      %p211 = scmp.lt.s32.totalorder %s17, 1
      %s212 = scalar_select %p211, %s17, 1
      %s213 = smul.addr %s212, 2
      %s214 = scalar_lea.vmem %s4, %s213
      %v215 = vld [vmem:[%s205] sm:$0x3f]
      %v216 = vld [vmem:[%s2] sm:$0x1]
      %v218 = vlaneseq
      %v219 = vshrl.u32 %v218, 7
      %v220 = vsub.s32 0, %v219
      %v221 = vrot.slane %v216, %v220
      %v223 = vmul.f32 %v215, %v221
      %vm224 = vcmask 1045504
      %v225 = vsel %vm224, %v223, 0.0
      %226 = vadd.xlane.f32.xlu0 %v225
      %v227 = vpop.xlane.xlu0 %226
      %v228 = vld [vmem:[#allocation2] sm:$0x1]
      %v230 = vlaneseq
      %v231 = vshrl.u32 %v230, 7
      %v232 = vsub.s32 0, %v231
      %v233 = vrot.slane %v228, %v232
      %v235 = vadd.f32 %v227, %v233
      %vm236 = vcmask 5120
      %v237 = vsel %vm236, %v235, -inf
      %v238 = vrot.slane %v237, 4
      %v239 = vmax.f32 %v237, %v238
      %v240 = vrot.slane %v239, 2
      %v241 = vmax.f32 %v239, %v240
      %v242 = vrot.slane %v241, 1
      %v243 = vmax.f32 %v241, %v242
      %v244 = vsub.f32 %v235, %v243
      %v245 = vmul.f32 %v244, 1.442695
      %v246 = vpow.pop %v245
      %v247 = vsel %vm236, %v246, 0.0
      %v248 = vrot.slane %v247, 4
      %v249 = vadd.f32 %v247, %v248
      %v250 = vrot.slane %v249, 2
      %v251 = vadd.f32 %v249, %v250
      %v252 = vrot.slane %v251, 1
      %v253 = vadd.f32 %v251, %v252
      %v254 = vrcp.pop %v253
      %v255 = vmul.f32 %v246, %v254
      %v256 = vld [vmem:[%s210] sm:$0x3f]
      %v257 = vld [vmem:[%s210 + $0x8] sm:$0x3f]
      %259 = vset.pattern.permute.xlu0 0
      %260 = vperm.xlu0 %259, %v255
      %v261 = vpop.permute.xlu0 %260
      %v263 = vmul.f32 %v261, %v256
      %v264 = vmul.f32 %v261, %v257
      %v265 = vsel %vm224, %v263, 0.0
      %v266 = vrot.slane %v265, 4
      %v267 = vadd.f32 %v265, %v266
      %v268 = vrot.slane %v267, 2
      %v269 = vadd.f32 %v267, %v268
      %v270 = vrot.slane %v269, 1
      %v271 = vadd.f32 %v269, %v270
      %v272 = vsel %vm224, %v264, 0.0
      %v273 = vrot.slane %v272, 4
      %v274 = vadd.f32 %v272, %v273
      %v275 = vrot.slane %v274, 2
      %v276 = vadd.f32 %v274, %v275
      %v277 = vrot.slane %v276, 1
      %v278 = vadd.f32 %v276, %v277
      %v281 = vcombine.low %v271, %v278
      %v283 = vunpack.c.l.s4 1966171168
      %v284 = vunpack.c.0.s8 %v283
      %v285 = vlaneseq
      %v286 = vshrl.u32 %v285, 7
      %v287 = vsub.s32 %v284, %v286
      %v288 = vrot.slane %v281, %v287
      %v290 = vunpack.c.l.s4 1966171168
      %v291 = vunpack.c.0.s8 %v290
      %v292 = vlaneseq
      %v293 = vshrl.u32 %v292, 7
      %v294 = vsub.s32 %v291, %v293
      %v295 = vrot.slane %v288, %v294
      %v297 = vlaneseq
      %vm298 = vcmp.ge.s32.totalorder %v297, 0
      %vm299 = vcmp.lt.s32.totalorder %v297, 256
      %vm300 = vmand %vm298, %vm299
      %301 = vst.msk [vmem:[%s214] sm:$0x3] %vm300, %v295
      %p302 = scmp.lt.s32.totalorder %s17, 1
      %s303 = scalar_select %p302, %s17, 1
      %s304 = smul.addr %s303, 2
      %s305 = scalar_lea.vmem %s4, %s304
      // Predicated region
      $region37: #{net_forward.22} parent=35 // pred_check
        %p306 = pneg %p129
      $region38: #{net_forward.22} parent=35 // pred_check_branch
        %308 = sbr.rel (%p306) target = $region40
      $region39: #{net_forward.22} parent=35 // pred_region
        _
      $region40: #{net_forward.22} parent=35 // pred_fallthru
        _
    $region36: #{net_forward.22} parent=5 // pred_fallthru
      _
    %p309 = scmp.le.s32.totalorder 2, %s12
    // Predicated region
    $region41: #{net_forward.22} parent=5 // pred_check
      %p310 = pneg %p309
    $region42: #{net_forward.22} parent=5 // pred_check_branch
      %312 = sbr.rel (%p310) target = $region44
    $region43: #{net_forward.22} parent=5 // pred_region
      %s313 = ssub.s32 %s12, 2
      // Predicated region
      $region45: #{net_forward.22} parent=43 // pred_check
        %p314 = pneg %p135
      $region46: #{net_forward.22} parent=43 // pred_check_branch
        %316 = sbr.rel (%p314) target = $region48
      $region47: #{net_forward.22} parent=43 // pred_region
        %p317 = scmp.lt.s32.totalorder %s18, 1
        %s318 = scalar_select %p317, %s18, 1
        %s319 = smul.addr %s318, 2
        %s320 = scalar_lea.vmem %s4, %s319
      $region48: #{net_forward.22} parent=43 // pred_fallthru
        _
    $region44: #{net_forward.22} parent=5 // pred_fallthru
      _
  $region6: #{net_forward.22} parent=0 // loop_footer
    %s16 = sadd.s32 1, %s12
  $region7: #{net_forward.22} parent=0 // loop_footer_branch
    %11 = sbr.rel target = $region3
  $region8: #{net_forward.22} parent=0 // loop_exit
    _

// kernel: net_forward.15
$region0: #{net_forward.15}
  #allocation0 [shape = 'u32[]', space=smem, size = 0x4, offset = 0x4, fixed_abs, tag = 'smem constant byte address 0x4 - core index']
  #allocation1 [shape = 'u32[144,128]{1,0:T(1,128)}', space=vmem, size = 0x12000, scoped, tag = 'internal scratch']
  %s0 = inlined_call_operand.vmem [shape: f32[32,300], index: 0, kind: input, shape index: {}]
  %s1 = inlined_call_operand.vmem [shape: f32[300,128], index: 1, kind: input, shape index: {}]
  %s2 = inlined_call_operand.vmem [shape: f32[1,128], index: 2, kind: input, shape index: {}]
  %s3 = inlined_call_operand.vmem [shape: f32[32,128], index: 3, kind: output, shape index: {}]
  %s4 = sld [smem:[#allocation0]]
  $region22: #{net_forward.15} parent=0
    _
  %s6 = ssub.s32 1, %s4
  %s7 = scalar_select 0, %s6, %s4
  // Predicated region
  $region2: #{net_forward.15} parent=0 // pred_check
    _
  $region3: #{net_forward.15} parent=0 // pred_check_branch
    %9 = sbr.rel (0) target = $region5
  $region4: #{net_forward.15} parent=0 // pred_region
    _
  $region5: #{net_forward.15} parent=0 // pred_fallthru
    _
  // Predicated region
  $region6: #{net_forward.15} parent=0 // pred_check
    _
  $region7: #{net_forward.15} parent=0 // pred_check_branch
    %11 = sbr.rel (0) target = $region9
  $region8: #{net_forward.15} parent=0 // pred_region
    _
  $region9: #{net_forward.15} parent=0 // pred_fallthru
    _
  // Predicated region
  $region10: #{net_forward.15} parent=0 // pred_check
    _
  $region11: #{net_forward.15} parent=0 // pred_check_branch
    %13 = sbr.rel (0) target = $region13
  $region12: #{net_forward.15} parent=0 // pred_region
    _
  $region13: #{net_forward.15} parent=0 // pred_fallthru
    _
  %v15 = vld [vmem:[%s0] sm:$0xff]
  %v16 = vld [vmem:[%s0 + $0x8] sm:$0xff]
  %v17 = vld [vmem:[%s0 + $0x10] sm:$0xff]
  %v18 = vld [vmem:[%s0 + $0x18] sm:$0xff]
  %v19 = vld [vmem:[%s0 + $0x20] sm:$0xff]
  %v20 = vld [vmem:[%s0 + $0x28] sm:$0xff]
  %v21 = vld [vmem:[%s0 + $0x30] sm:$0xff]
  %v22 = vld [vmem:[%s0 + $0x38] sm:$0xff]
  %v23 = vld [vmem:[%s0 + $0x40] sm:$0xff]
  %v24 = vld [vmem:[%s0 + $0x48] sm:$0xff]
  %v25 = vld [vmem:[%s0 + $0x50] sm:$0xff]
  %v26 = vld [vmem:[%s0 + $0x58] sm:$0xff]
  %v27 = vpack.c.bf16 %v18, %v15
  %v28 = vpack.c.bf16 %v19, %v16
  %v29 = vpack.c.bf16 %v20, %v17
  %v30 = vpack.c.bf16 %v24, %v21
  %v31 = vpack.c.bf16 %v25, %v22
  %v32 = vpack.c.bf16 %v26, %v23
  %v33 = vld [vmem:[%s1] sm:$0xff]
  %v34 = vld [vmem:[%s1 + $0x8] sm:$0xff]
  %v35 = vld [vmem:[%s1 + $0x10] sm:$0xff]
  %v36 = vld [vmem:[%s1 + $0x18] sm:$0xff]
  %v37 = vld [vmem:[%s1 + $0x20] sm:$0xff]
  %v38 = vld [vmem:[%s1 + $0x28] sm:$0xff]
  %v39 = vld [vmem:[%s1 + $0x30] sm:$0xff]
  %v40 = vld [vmem:[%s1 + $0x38] sm:$0xff]
  %v41 = vld [vmem:[%s1 + $0x40] sm:$0xff]
  %v42 = vld [vmem:[%s1 + $0x48] sm:$0xff]
  %v43 = vld [vmem:[%s1 + $0x50] sm:$0xff]
  %v44 = vld [vmem:[%s1 + $0x58] sm:$0xff]
  %v45 = vld [vmem:[%s1 + $0x60] sm:$0xff]
  %v46 = vld [vmem:[%s1 + $0x68] sm:$0xff]
  %v47 = vld [vmem:[%s1 + $0x70] sm:$0xff]
  %v48 = vld [vmem:[%s1 + $0x78] sm:$0xff]
  %v49 = vld [vmem:[%s1 + $0x80] sm:$0xff]
  %v50 = vld [vmem:[%s1 + $0x88] sm:$0xff]
  %v51 = vld [vmem:[%s1 + $0x90] sm:$0xff]
  %v52 = vld [vmem:[%s1 + $0x98] sm:$0xff]
  %v53 = vld [vmem:[%s1 + $0xa0] sm:$0xff]
  %v54 = vld [vmem:[%s1 + $0xa8] sm:$0xff]
  %v55 = vld [vmem:[%s1 + $0xb0] sm:$0xff]
  %v56 = vld [vmem:[%s1 + $0xb8] sm:$0xff]
  %v57 = vld [vmem:[%s1 + $0xc0] sm:$0xff]
  %v58 = vld [vmem:[%s1 + $0xc8] sm:$0xff]
  %v59 = vld [vmem:[%s1 + $0xd0] sm:$0xff]
  %v60 = vld [vmem:[%s1 + $0xd8] sm:$0xff]
  %v61 = vld [vmem:[%s1 + $0xe0] sm:$0xff]
  %v62 = vld [vmem:[%s1 + $0xe8] sm:$0xff]
  %v63 = vld [vmem:[%s1 + $0xf0] sm:$0xff]
  %v64 = vld [vmem:[%s1 + $0xf8] sm:$0xff]
  %v65 = vld [vmem:[%s1 + $0x100] sm:$0xff]
  %v66 = vld [vmem:[%s1 + $0x108] sm:$0xff]
  %v67 = vld [vmem:[%s1 + $0x110] sm:$0xff]
  %v68 = vld [vmem:[%s1 + $0x118] sm:$0xff]
  %v69 = vld [vmem:[%s1 + $0x120] sm:$0xff]
  %v70 = vld [vmem:[%s1 + $0x128] sm:$0xf]
  %v71 = vpack.c.bf16 %v34, %v33
  %v72 = vpack.c.bf16 %v36, %v35
  %v73 = vpack.c.bf16 %v38, %v37
  %v74 = vpack.c.bf16 %v40, %v39
  %v75 = vpack.c.bf16 %v42, %v41
  %v76 = vpack.c.bf16 %v44, %v43
  %v77 = vpack.c.bf16 %v46, %v45
  %v78 = vpack.c.bf16 %v48, %v47
  %v79 = vpack.c.bf16 %v50, %v49
  %v80 = vpack.c.bf16 %v52, %v51
  %v81 = vpack.c.bf16 %v54, %v53
  %v82 = vpack.c.bf16 %v56, %v55
  %v83 = vpack.c.bf16 %v58, %v57
  %v84 = vpack.c.bf16 %v60, %v59
  %v85 = vpack.c.bf16 %v62, %v61
  %v86 = vpack.c.bf16 %v64, %v63
  %v87 = vpack.c.bf16 %v66, %v65
  %v88 = vpack.c.bf16 %v68, %v67
  %v89 = vpack.c.bf16 %v70, %v69
  %v90 = vld [vmem:[%s2] sm:$0x1]
  %v92 = vlaneseq
  %v93 = vshrl.u32 %v92, 7
  %v94 = vsub.s32 0, %v93
  %v95 = vrot.slane %v90, %v94
  %vm97 = vcmask 359424
  %v99 = vsel %vm97, %v29, 0
  %v102 = vsel %vm97, %v32, 0
  %vm104 = vcmask 1045504
  %v106 = vsel %vm104, %v89, 0
  %108 = vmatprep.subr.bf16.mxu0 0
  %109 = vmatpush1.bf16.msra.mxu0 %v71
  %110 = vmatprep.subr.bf16.mxu0 0
  %111 = vmatpush1.bf16.msra.mxu0 %v72
  %112 = vmatprep.subr.bf16.mxu0 0
  %113 = vmatpush1.bf16.msra.mxu0 %v73
  %114 = vmatprep.subr.bf16.mxu0 0
  %115 = vmatpush1.bf16.msra.mxu0 %v74
  %116 = vmatprep.subr.bf16.mxu0 0
  %117 = vmatpush1.bf16.msra.mxu0 %v75
  %118 = vmatprep.subr.bf16.mxu0 0
  %119 = vmatpush1.bf16.msra.mxu0 %v76
  %120 = vmatprep.subr.bf16.mxu0 0
  %121 = vmatpush1.bf16.msra.mxu0 %v77
  %122 = vmatprep.subr.bf16.mxu0 0
  %123 = vmatpush1.bf16.msra.mxu0 %v78
  %124 = vmatprep.subr.bf16.mxu0 0
  %125 = vmatpush1.bf16.msra.mxu0 %v79
  %126 = vmatprep.subr.bf16.mxu0 0
  %127 = vmatpush1.bf16.msra.mxu0 %v80
  %128 = vmatprep.subr.bf16.mxu0 0
  %129 = vmatpush1.bf16.msra.mxu0 %v81
  %130 = vmatprep.subr.bf16.mxu0 0
  %131 = vmatpush1.bf16.msra.mxu0 %v82
  %132 = vmatprep.subr.bf16.mxu0 0
  %133 = vmatpush1.bf16.msra.mxu0 %v83
  %134 = vmatprep.subr.bf16.mxu0 0
  %135 = vmatpush1.bf16.msra.mxu0 %v84
  %136 = vmatprep.subr.bf16.mxu0 0
  %137 = vmatpush1.bf16.msra.mxu0 %v85
  %138 = vmatprep.subr.bf16.mxu0 0
  %139 = vmatpush1.bf16.msra.mxu0 %v86
  %140 = vmatprep.mubr.bf16.mxu0 %v28
  %141 = vmatmul.mubr.bf16.gmra.mrb[0].mxu0 %v27
  %v142 = vpop.f32.mrb[0].mxu0
  %v143 = vadd.f32 %v95, %v142
  %v144 = vpop.f32.mrb[0].mxu0
  %v145 = vpop.f32.mrb[0].mxu0
  %v146 = vadd.f32 %v95, %v145
  %v147 = vpop.f32.mrb[0].mxu0
  %148 = vmatprep.mubr.bf16.mxu0 %v31
  %149 = vmatmul.mubr.bf16.gmra.mrb[0].mxu0 %v30
  %v150 = vpop.f32.mrb[0].mxu0
  %v151 = vadd.f32 %v95, %v150
  %v152 = vpop.f32.mrb[0].mxu0
  %v153 = vpop.f32.mrb[0].mxu0
  %v154 = vadd.f32 %v95, %v153
  %v155 = vpop.f32.mrb[0].mxu0
  %156 = vdwg.mxu0
  %157 = vmatprep.subr.bf16.mxu0 0
  %158 = vmatpush1.bf16.msra.mxu0 %v87
  %159 = vmatprep.subr.bf16.mxu0 0
  %160 = vmatpush1.bf16.msra.mxu0 %v88
  %161 = vmatprep.subr.bf16.mxu0 0
  %162 = vmatpush1.bf16.msra.mxu0 %v106
  %163 = vmatprep.subr.bf16.mxu0 0
  %164 = vmatpush1.bf16.msra.mxu0 0
  %165 = vmatprep.subr.bf16.mxu0 0
  %166 = vmatpush1.bf16.msra.mxu0 0
  %167 = vmatprep.subr.bf16.mxu0 0
  %168 = vmatpush1.bf16.msra.mxu0 0
  %169 = vmatprep.subr.bf16.mxu0 0
  %170 = vmatpush1.bf16.msra.mxu0 0
  %171 = vmatprep.subr.bf16.mxu0 0
  %172 = vmatpush1.bf16.msra.mxu0 0
  %173 = vmatprep.subr.bf16.mxu0 0
  %174 = vmatpush1.bf16.msra.mxu0 0
  %175 = vmatprep.subr.bf16.mxu0 0
  %176 = vmatpush1.bf16.msra.mxu0 0
  %177 = vmatprep.subr.bf16.mxu0 0
  %178 = vmatpush1.bf16.msra.mxu0 0
  %179 = vmatprep.subr.bf16.mxu0 0
  %180 = vmatpush1.bf16.msra.mxu0 0
  %181 = vmatprep.subr.bf16.mxu0 0
  %182 = vmatpush1.bf16.msra.mxu0 0
  %183 = vmatprep.subr.bf16.mxu0 0
  %184 = vmatpush1.bf16.msra.mxu0 0
  %185 = vmatprep.subr.bf16.mxu0 0
  %186 = vmatpush1.bf16.msra.mxu0 0
  %187 = vmatprep.subr.bf16.mxu0 0
  %188 = vmatpush1.bf16.msra.mxu0 0
  %189 = vmatprep.mubr.bf16.mxu0 0
  %190 = vmatmul.mubr.bf16.gmra.mrb[0].mxu0 %v99
  %v191 = vpop.f32.mrb[0].mxu0
  %v192 = vadd.f32 %v143, %v191
  %v193 = vpop.f32.mrb[0].mxu0
  %v194 = vpop.f32.mrb[0].mxu0
  %v195 = vadd.f32 %v146, %v194
  %v196 = vpop.f32.mrb[0].mxu0
  %197 = vmatprep.mubr.bf16.mxu0 0
  %198 = vmatmul.mubr.bf16.gmra.mrb[0].mxu0 %v102
  %v199 = vpop.f32.mrb[0].mxu0
  %v200 = vadd.f32 %v151, %v199
  %v201 = vpop.f32.mrb[0].mxu0
  %v202 = vpop.f32.mrb[0].mxu0
  %v203 = vadd.f32 %v154, %v202
  %v204 = vpop.f32.mrb[0].mxu0
  %205 = vdwg.mxu0
  %v206 = vmax.f32 %v192, 0.0
  %v207 = vmax.f32 %v195, 0.0
  %v208 = vmax.f32 %v200, 0.0
  %v209 = vmax.f32 %v203, 0.0
  %210 = vst [vmem:[%s3] sm:$0xff] %v206
  %211 = vst [vmem:[%s3 + $0x8] sm:$0xff] %v207
  %212 = vst [vmem:[%s3 + $0x10] sm:$0xff] %v208
  %213 = vst [vmem:[%s3 + $0x18] sm:$0xff] %v209
  // Predicated region
  $region14: #{net_forward.15} parent=0 // pred_check
    _
  $region15: #{net_forward.15} parent=0 // pred_check_branch
    %215 = sbr.rel (0) target = $region17
  $region16: #{net_forward.15} parent=0 // pred_region
    _
  $region17: #{net_forward.15} parent=0 // pred_fallthru
    _
  // Predicated region
  $region18: #{net_forward.15} parent=0 // pred_check
    _
  $region19: #{net_forward.15} parent=0 // pred_check_branch
    %217 = sbr.rel (0) target = $region21
  $region20: #{net_forward.15} parent=0 // pred_region
    _
  $region21: #{net_forward.15} parent=0 // pred_fallthru
    _

// kernel: net_forward.16
$region0: #{net_forward.16}
  #allocation0 [shape = 'u32[]', space=smem, size = 0x4, offset = 0x4, fixed_abs, tag = 'smem constant byte address 0x4 - core index']
  #allocation1 [shape = 'u32[144,128]{1,0:T(1,128)}', space=vmem, size = 0x12000, scoped, tag = 'internal scratch']
  %s0 = inlined_call_operand.vmem [shape: f32[2,8,128], index: 0, kind: input, shape index: {}]
  %s1 = inlined_call_operand.vmem [shape: f32[2,6,128], index: 1, kind: input, shape index: {}]
  %s2 = inlined_call_operand.vmem [shape: f32[2,6,300], index: 2, kind: input, shape index: {}]
  %s3 = inlined_call_operand.vmem [shape: f32[2,8,300], index: 3, kind: output, shape index: {}]
  %s4 = sld [smem:[#allocation0]]
  $region45: #{net_forward.16} parent=0
    _
  %s6 = ssub.s32 1, %s4
  %s7 = scalar_select 0, %s6, %s4
  loop: start=0, step=1, limit=4
  $region2: #{net_forward.16} parent=0 // loop_pre_header
    _
  $region3: #{net_forward.16} parent=0 // loop_header
    %s9 = sphi 0, %s13
    %p10 = scmp.ge.s32.totalorder %s9, 4
    %s19 = sphi 0, %s21
    %s22 = sphi 0, %s19
    %s23 = sphi 0, %s22
    %s39 = sphi 0, %s23
    %s45 = sphi 0, %s47
    %s48 = sphi 0, %s45
    %s49 = sphi 0, %s48
    %s65 = sphi 0, %s49
    %s71 = sphi 0, %s73
    %s74 = sphi 0, %s71
    %s75 = sphi 0, %s74
    %s91 = sphi 0, %s75
    %s97 = sphi 0, %s99
    %s100 = sphi 0, %s97
    %s101 = sphi 0, %s100
    %s117 = sphi 0, %s101
  $region4: #{net_forward.16} parent=0 // loop_header_branch
    %12 = sbr.rel (%p10) target = $region8
  $region5: #{net_forward.16} parent=0 // loop_body
    %s14 = ssub.s32 %s9, 1
    %s15 = ssub.s32 %s9, 2
    %s16 = sadd.s32 %s9, 1
    %s17 = ssub.s32 %s9, %s16
    %p18 = scmp.eq.s32.totalorder %s17, 0
    %s20 = sadd.s32 %s19, 1
    %s21 = scalar_select %p18, %s19, %s20
    %p24 = pneg %p18
    %p25 = scmp.eq.s32.totalorder %s9, 1
    %p26 = por %p24, %p25
    %p27 = scmp.ne.s32.totalorder %s19, %s22
    %p28 = scmp.eq.s32.totalorder %s9, 0
    %p29 = por %p27, %p28
    %p30 = scmp.ne.s32.totalorder %s19, %s22
    %p31 = scmp.eq.s32.totalorder %s14, 1
    %p32 = por %p30, %p31
    %p33 = scmp.ne.s32.totalorder %s22, %s23
    %p34 = scmp.eq.s32.totalorder %s14, 0
    %p35 = por %p33, %p34
    %p36 = scmp.ne.s32.totalorder %s22, %s23
    %p37 = scmp.eq.s32.totalorder %s15, 1
    %p38 = por %p36, %p37
    %p40 = scmp.ne.s32.totalorder %s23, %s39
    %p41 = scmp.eq.s32.totalorder %s15, 0
    %p42 = por %p40, %p41
    %s43 = ssub.s32 %s9, %s16
    %p44 = scmp.eq.s32.totalorder %s43, 0
    %s46 = sadd.s32 %s45, 1
    %s47 = scalar_select %p44, %s45, %s46
    %p50 = pneg %p44
    %p51 = scmp.eq.s32.totalorder %s9, 1
    %p52 = por %p50, %p51
    %p53 = scmp.ne.s32.totalorder %s45, %s48
    %p54 = scmp.eq.s32.totalorder %s9, 0
    %p55 = por %p53, %p54
    %p56 = scmp.ne.s32.totalorder %s45, %s48
    %p57 = scmp.eq.s32.totalorder %s14, 1
    %p58 = por %p56, %p57
    %p59 = scmp.ne.s32.totalorder %s48, %s49
    %p60 = scmp.eq.s32.totalorder %s14, 0
    %p61 = por %p59, %p60
    %p62 = scmp.ne.s32.totalorder %s48, %s49
    %p63 = scmp.eq.s32.totalorder %s15, 1
    %p64 = por %p62, %p63
    %p66 = scmp.ne.s32.totalorder %s49, %s65
    %p67 = scmp.eq.s32.totalorder %s15, 0
    %p68 = por %p66, %p67
    %s69 = ssub.s32 %s9, %s16
    %p70 = scmp.eq.s32.totalorder %s69, 0
    %s72 = sadd.s32 %s71, 1
    %s73 = scalar_select %p70, %s71, %s72
    %p76 = pneg %p70
    %p77 = scmp.eq.s32.totalorder %s9, 1
    %p78 = por %p76, %p77
    %p79 = scmp.ne.s32.totalorder %s71, %s74
    %p80 = scmp.eq.s32.totalorder %s9, 0
    %p81 = por %p79, %p80
    %p82 = scmp.ne.s32.totalorder %s71, %s74
    %p83 = scmp.eq.s32.totalorder %s14, 1
    %p84 = por %p82, %p83
    %p85 = scmp.ne.s32.totalorder %s74, %s75
    %p86 = scmp.eq.s32.totalorder %s14, 0
    %p87 = por %p85, %p86
    %p88 = scmp.ne.s32.totalorder %s74, %s75
    %p89 = scmp.eq.s32.totalorder %s15, 1
    %p90 = por %p88, %p89
    %p92 = scmp.ne.s32.totalorder %s75, %s91
    %p93 = scmp.eq.s32.totalorder %s15, 0
    %p94 = por %p92, %p93
    %s95 = ssub.s32 %s9, %s16
    %p96 = scmp.eq.s32.totalorder %s95, 0
    %s98 = sadd.s32 %s97, 1
    %s99 = scalar_select %p96, %s97, %s98
    %p102 = pneg %p96
    %p103 = scmp.eq.s32.totalorder %s9, 1
    %p104 = por %p102, %p103
    %p105 = scmp.ne.s32.totalorder %s97, %s100
    %p106 = scmp.eq.s32.totalorder %s9, 0
    %p107 = por %p105, %p106
    %p108 = scmp.ne.s32.totalorder %s97, %s100
    %p109 = scmp.eq.s32.totalorder %s14, 1
    %p110 = por %p108, %p109
    %p111 = scmp.ne.s32.totalorder %s100, %s101
    %p112 = scmp.eq.s32.totalorder %s14, 0
    %p113 = por %p111, %p112
    %p114 = scmp.ne.s32.totalorder %s100, %s101
    %p115 = scmp.eq.s32.totalorder %s15, 1
    %p116 = por %p114, %p115
    %p118 = scmp.ne.s32.totalorder %s101, %s117
    %p119 = scmp.eq.s32.totalorder %s15, 0
    %p120 = por %p118, %p119
    %p121 = scmp.le.s32.totalorder 1, %s9
    %p122 = scmp.lt.s32.totalorder %s9, 3
    %p123 = pnand %p121, %p122
    %p124 = pneg %p123
    // Predicated region
    $region9: #{net_forward.16} parent=5 // pred_check
      _
    $region10: #{net_forward.16} parent=5 // pred_check_branch
      %126 = sbr.rel (%p123) target = $region12
    $region11: #{net_forward.16} parent=5 // pred_region
      %s127 = ssub.s32 %s9, 1
    $region12: #{net_forward.16} parent=5 // pred_fallthru
      _
    %p128 = scmp.lt.s32.totalorder %s9, 2
    // Predicated region
    $region13: #{net_forward.16} parent=5 // pred_check
      %p129 = pneg %p128
    $region14: #{net_forward.16} parent=5 // pred_check_branch
      %131 = sbr.rel (%p129) target = $region16
    $region15: #{net_forward.16} parent=5 // pred_region
      // Predicated region
      $region17: #{net_forward.16} parent=15 // pred_check
        %p132 = pneg %p29
      $region18: #{net_forward.16} parent=15 // pred_check_branch
        %134 = sbr.rel (%p132) target = $region20
      $region19: #{net_forward.16} parent=15 // pred_region
        %p135 = scmp.lt.s32.totalorder %s9, 1
        %s136 = scalar_select %p135, %s9, 1
        %s137 = smul.addr %s136, 8
        %s138 = scalar_lea.vmem %s0, %s137
      $region20: #{net_forward.16} parent=15 // pred_fallthru
        _
      // Predicated region
      $region21: #{net_forward.16} parent=15 // pred_check
        %p139 = pneg %p55
      $region22: #{net_forward.16} parent=15 // pred_check_branch
        %141 = sbr.rel (%p139) target = $region24
      $region23: #{net_forward.16} parent=15 // pred_region
        %p142 = scmp.lt.s32.totalorder %s9, 1
        %s143 = scalar_select %p142, %s9, 1
        %s144 = smul.addr %s143, 8
        %s145 = scalar_lea.vmem %s1, %s144
      $region24: #{net_forward.16} parent=15 // pred_fallthru
        _
      // Predicated region
      $region25: #{net_forward.16} parent=15 // pred_check
        %p146 = pneg %p81
      $region26: #{net_forward.16} parent=15 // pred_check_branch
        %148 = sbr.rel (%p146) target = $region28
      $region27: #{net_forward.16} parent=15 // pred_region
        %p149 = scmp.lt.s32.totalorder %s9, 1
        %s150 = scalar_select %p149, %s9, 1
        %s151 = smul.addr %s150, 3
        %s152 = smul.addr %s151, 8
        %s153 = scalar_lea.vmem %s2, %s152
      $region28: #{net_forward.16} parent=15 // pred_fallthru
        _
    $region16: #{net_forward.16} parent=5 // pred_fallthru
      _
    %p154 = scmp.le.s32.totalorder 1, %s9
    %p155 = scmp.lt.s32.totalorder %s9, 3
    %p156 = pnand %p154, %p155
    %p157 = pneg %p156
    // Predicated region
    $region29: #{net_forward.16} parent=5 // pred_check
      _
    $region30: #{net_forward.16} parent=5 // pred_check_branch
      %159 = sbr.rel (%p156) target = $region32
    $region31: #{net_forward.16} parent=5 // pred_region
      %s160 = ssub.s32 %s9, 1
      %p161 = scmp.lt.s32.totalorder %s14, 1
      %s162 = scalar_select %p161, %s14, 1
      %s163 = smul.addr %s162, 8
      %s164 = scalar_lea.vmem %s0, %s163
      %p165 = pneg %p35
      %p166 = pneg %p32
      %p167 = scmp.lt.s32.totalorder %s14, 1
      %s168 = scalar_select %p167, %s14, 1
      %s169 = smul.addr %s168, 8
      %s170 = scalar_lea.vmem %s1, %s169
      %p171 = pneg %p61
      %p172 = pneg %p58
      %p173 = scmp.lt.s32.totalorder %s14, 1
      %s174 = scalar_select %p173, %s14, 1
      %s175 = smul.addr %s174, 3
      %s176 = smul.addr %s175, 8
      %s177 = scalar_lea.vmem %s2, %s176
      %p178 = pneg %p87
      %p179 = pneg %p84
      %p180 = pneg %p113
      %p181 = pneg %p110
      %p182 = scmp.lt.s32.totalorder %s14, 1
      %s183 = scalar_select %p182, %s14, 1
      %s184 = smul.addr %s183, 3
      %s185 = smul.addr %s184, 8
      %s186 = scalar_lea.vmem %s3, %s185
      %p187 = scmp.lt.s32.totalorder %s14, 1
      %s188 = scalar_select %p187, %s14, 1
      %s189 = smul.addr %s188, 8
      %s190 = scalar_lea.vmem %s0, %s189
      %p191 = scmp.lt.s32.totalorder %s14, 1
      %s192 = scalar_select %p191, %s14, 1
      %s193 = smul.addr %s192, 8
      %s194 = scalar_lea.vmem %s1, %s193
      %p195 = scmp.lt.s32.totalorder %s14, 1
      %s196 = scalar_select %p195, %s14, 1
      %s197 = smul.addr %s196, 3
      %s198 = smul.addr %s197, 8
      %s199 = scalar_lea.vmem %s2, %s198
      %p200 = scmp.lt.s32.totalorder %s14, 1
      %s201 = scalar_select %p200, %s14, 1
      %s202 = smul.addr %s201, 3
      %s203 = smul.addr %s202, 8
      %s204 = scalar_lea.vmem %s3, %s203
      %v206 = vld [vmem:[%s190] sm:$0xff]
      %v207 = vpack.c.bf16 %v206, %v206
      %v208 = vld [vmem:[%s194] sm:$0x3f]
      %v209 = vpack.c.bf16 %v208, %v208
      %210 = vmatprep.subr.bf16.mxu0 0
      %211 = vmatpush1.bf16.xpose.msra.mxu0 %v209
      %212 = vmatprep.subr.bf16.mxu0 0
      %213 = vmatpush1.bf16.xpose.msra.mxu0 0
      %214 = vmatprep.subr.bf16.mxu0 0
      %215 = vmatpush1.bf16.xpose.msra.mxu0 0
      %216 = vmatprep.subr.bf16.mxu0 0
      %217 = vmatpush1.bf16.xpose.msra.mxu0 0
      %218 = vmatprep.subr.bf16.mxu0 0
      %219 = vmatpush1.bf16.xpose.msra.mxu0 0
      %220 = vmatprep.subr.bf16.mxu0 0
      %221 = vmatpush1.bf16.xpose.msra.mxu0 0
      %222 = vmatprep.subr.bf16.mxu0 0
      %223 = vmatpush1.bf16.xpose.msra.mxu0 0
      %224 = vmatprep.subr.bf16.mxu0 0
      %225 = vmatpush1.bf16.xpose.msra.mxu0 0
      %226 = vmatprep.subr.bf16.mxu0 0
      %227 = vmatpush1.bf16.xpose.msra.mxu0 0
      %228 = vmatprep.subr.bf16.mxu0 0
      %229 = vmatpush1.bf16.xpose.msra.mxu0 0
      %230 = vmatprep.subr.bf16.mxu0 0
      %231 = vmatpush1.bf16.xpose.msra.mxu0 0
      %232 = vmatprep.subr.bf16.mxu0 0
      %233 = vmatpush1.bf16.xpose.msra.mxu0 0
      %234 = vmatprep.subr.bf16.mxu0 0
      %235 = vmatpush1.bf16.xpose.msra.mxu0 0
      %236 = vmatprep.subr.bf16.mxu0 0
      %237 = vmatpush1.bf16.xpose.msra.mxu0 0
      %238 = vmatprep.subr.bf16.mxu0 0
      %239 = vmatpush1.bf16.xpose.msra.mxu0 0
      %240 = vmatprep.subr.bf16.mxu0 0
      %241 = vmatpush1.bf16.xpose.msra.mxu0 0
      %242 = vmatprep.mubr.bf16.mxu0 0
      %243 = vmatmul.mubr.bf16.gmra.mrb[0].mxu0 %v207
      %v244 = vpop.f32.mrb[0].mxu0
      %v245 = vadd.f32 0.0, %v244
      %v246 = vpop.f32.mrb[0].mxu0
      %v247 = vpop.f32.mrb[0].mxu0
      %v248 = vpop.f32.mrb[0].mxu0
      %249 = vdwg.mxu0
      %vm250 = vcmask 48128
      %v251 = vsel %vm250, %v245, -inf
      %252 = vmax.xlane.f32.xlu0 %v251
      %v253 = vpop.xlane.xlu0 %252
      %v254 = vsub.f32 %v245, %v253
      %v255 = vmul.f32 %v254, 1.442695
      %v256 = vpow.pop %v255
      %v257 = vsel %vm250, %v256, 0.0
      %258 = vadd.xlane.f32.xlu0 %v257
      %v259 = vpop.xlane.xlu0 %258
      %v260 = vrcp.pop %v259
      %v261 = vmul.f32 %v256, %v260
      %v262 = vpack.c.bf16 %v261, %v261
      %v263 = vld [vmem:[%s199] sm:$0x3f]
      %v264 = vld [vmem:[%s199 + $0x8] sm:$0x3f]
      %v265 = vld [vmem:[%s199 + $0x10] sm:$0x3f]
      %v266 = vpack.c.bf16 %v263, %v263
      %v267 = vpack.c.bf16 %v264, %v264
      %v268 = vpack.c.bf16 %v265, %v265
      %v270 = vsel %vm250, %v262, 0
      %vm272 = vcmask 1042432
      %v274 = vsel %vm272, %v266, 0
      %v277 = vsel %vm272, %v267, 0
      %v280 = vsel %vm272, %v268, 0
      %282 = vmatprep.subr.bf16.mxu0 %v277
      %283 = vmatpush1.bf16.msra.mxu0 %v274
      %284 = vmatprep.subr.bf16.mxu0 0
      %285 = vmatpush1.bf16.msra.mxu0 0
      %286 = vmatprep.subr.bf16.mxu0 0
      %287 = vmatpush1.bf16.msra.mxu0 0
      %288 = vmatprep.subr.bf16.mxu0 0
      %289 = vmatpush1.bf16.msra.mxu0 0
      %290 = vmatprep.subr.bf16.mxu0 0
      %291 = vmatpush1.bf16.msra.mxu0 0
      %292 = vmatprep.subr.bf16.mxu0 0
      %293 = vmatpush1.bf16.msra.mxu0 0
      %294 = vmatprep.subr.bf16.mxu0 0
      %295 = vmatpush1.bf16.msra.mxu0 0
      %296 = vmatprep.subr.bf16.mxu0 0
      %297 = vmatpush1.bf16.msra.mxu0 0
      %298 = vmatprep.subr.bf16.mxu0 0
      %299 = vmatpush1.bf16.msra.mxu0 0
      %300 = vmatprep.subr.bf16.mxu0 0
      %301 = vmatpush1.bf16.msra.mxu0 0
      %302 = vmatprep.subr.bf16.mxu0 0
      %303 = vmatpush1.bf16.msra.mxu0 0
      %304 = vmatprep.subr.bf16.mxu0 0
      %305 = vmatpush1.bf16.msra.mxu0 0
      %306 = vmatprep.subr.bf16.mxu0 0
      %307 = vmatpush1.bf16.msra.mxu0 0
      %308 = vmatprep.subr.bf16.mxu0 0
      %309 = vmatpush1.bf16.msra.mxu0 0
      %310 = vmatprep.subr.bf16.mxu0 0
      %311 = vmatpush1.bf16.msra.mxu0 0
      %312 = vmatprep.subr.bf16.mxu0 0
      %313 = vmatpush1.bf16.msra.mxu0 0
      %314 = vmatprep.mubr.bf16.mxu0 0
      %315 = vmatmul.mubr.bf16.gmra.mrb[0].mxu0 %v270
      %v316 = vpop.f32.mrb[0].mxu0
      %v317 = vadd.f32 0.0, %v316
      %v318 = vpop.f32.mrb[0].mxu0
      %v319 = vadd.f32 0.0, %v318
      %v320 = vpop.f32.mrb[0].mxu0
      %v321 = vpop.f32.mrb[0].mxu0
      %322 = vdwg.mxu0
      %323 = vmatprep.subr.bf16.mxu0 0
      %324 = vmatpush1.bf16.msra.mxu0 %v280
      %325 = vmatprep.subr.bf16.mxu0 0
      %326 = vmatpush1.bf16.msra.mxu0 0
      %327 = vmatprep.subr.bf16.mxu0 0
      %328 = vmatpush1.bf16.msra.mxu0 0
      %329 = vmatprep.subr.bf16.mxu0 0
      %330 = vmatpush1.bf16.msra.mxu0 0
      %331 = vmatprep.subr.bf16.mxu0 0
      %332 = vmatpush1.bf16.msra.mxu0 0
      %333 = vmatprep.subr.bf16.mxu0 0
      %334 = vmatpush1.bf16.msra.mxu0 0
      %335 = vmatprep.subr.bf16.mxu0 0
      %336 = vmatpush1.bf16.msra.mxu0 0
      %337 = vmatprep.subr.bf16.mxu0 0
      %338 = vmatpush1.bf16.msra.mxu0 0
      %339 = vmatprep.subr.bf16.mxu0 0
      %340 = vmatpush1.bf16.msra.mxu0 0
      %341 = vmatprep.subr.bf16.mxu0 0
      %342 = vmatpush1.bf16.msra.mxu0 0
      %343 = vmatprep.subr.bf16.mxu0 0
      %344 = vmatpush1.bf16.msra.mxu0 0
      %345 = vmatprep.subr.bf16.mxu0 0
      %346 = vmatpush1.bf16.msra.mxu0 0
      %347 = vmatprep.subr.bf16.mxu0 0
      %348 = vmatpush1.bf16.msra.mxu0 0
      %349 = vmatprep.subr.bf16.mxu0 0
      %350 = vmatpush1.bf16.msra.mxu0 0
      %351 = vmatprep.subr.bf16.mxu0 0
      %352 = vmatpush1.bf16.msra.mxu0 0
      %353 = vmatprep.subr.bf16.mxu0 0
      %354 = vmatpush1.bf16.msra.mxu0 0
      %355 = vmatprep.mubr.bf16.mxu0 0
      %356 = vmatmul.mubr.bf16.gmra.mrb[0].mxu0 %v270
      %v357 = vpop.f32.mrb[0].mxu0
      %v358 = vadd.f32 0.0, %v357
      %v359 = vpop.f32.mrb[0].mxu0
      %v360 = vpop.f32.mrb[0].mxu0
      %v361 = vpop.f32.mrb[0].mxu0
      %362 = vdwg.mxu0
      %363 = vst [vmem:[%s204] sm:$0xff] %v317
      %364 = vst [vmem:[%s204 + $0x8] sm:$0xff] %v319
      %vm365 = vcmask 359424
      %366 = vst.msk [vmem:[%s204 + $0x10] sm:$0xff] %vm365, %v358
      %p367 = scmp.lt.s32.totalorder %s14, 1
      %s368 = scalar_select %p367, %s14, 1
      %s369 = smul.addr %s368, 3
      %s370 = smul.addr %s369, 8
      %s371 = scalar_lea.vmem %s3, %s370
      // Predicated region
      $region33: #{net_forward.16} parent=31 // pred_check
        %p372 = pneg %p110
      $region34: #{net_forward.16} parent=31 // pred_check_branch
        %374 = sbr.rel (%p372) target = $region36
      $region35: #{net_forward.16} parent=31 // pred_region
        _
      $region36: #{net_forward.16} parent=31 // pred_fallthru
        _
    $region32: #{net_forward.16} parent=5 // pred_fallthru
      _
    %p375 = scmp.le.s32.totalorder 2, %s9
    // Predicated region
    $region37: #{net_forward.16} parent=5 // pred_check
      %p376 = pneg %p375
    $region38: #{net_forward.16} parent=5 // pred_check_branch
      %378 = sbr.rel (%p376) target = $region40
    $region39: #{net_forward.16} parent=5 // pred_region
      %s379 = ssub.s32 %s9, 2
      // Predicated region
      $region41: #{net_forward.16} parent=39 // pred_check
        %p380 = pneg %p116
      $region42: #{net_forward.16} parent=39 // pred_check_branch
        %382 = sbr.rel (%p380) target = $region44
      $region43: #{net_forward.16} parent=39 // pred_region
        %p383 = scmp.lt.s32.totalorder %s15, 1
        %s384 = scalar_select %p383, %s15, 1
        %s385 = smul.addr %s384, 3
        %s386 = smul.addr %s385, 8
        %s387 = scalar_lea.vmem %s3, %s386
      $region44: #{net_forward.16} parent=39 // pred_fallthru
        _
    $region40: #{net_forward.16} parent=5 // pred_fallthru
      _
  $region6: #{net_forward.16} parent=0 // loop_footer
    %s13 = sadd.s32 1, %s9
  $region7: #{net_forward.16} parent=0 // loop_footer_branch
    %8 = sbr.rel target = $region3
  $region8: #{net_forward.16} parent=0 // loop_exit
    _

// kernel: net_forward.24
$region0: #{net_forward.24}
  #allocation0 [shape = 'u32[]', space=smem, size = 0x4, offset = 0x4, fixed_abs, tag = 'smem constant byte address 0x4 - core index']
  #allocation1 [shape = 'u32[144,128]{1,0:T(1,128)}', space=vmem, size = 0x12000, scoped, tag = 'internal scratch']
  %s0 = inlined_call_operand.vmem [shape: f32[8,256], index: 0, kind: input, shape index: {}]
  %s1 = inlined_call_operand.vmem [shape: f32[256,1024], index: 1, kind: input, shape index: {}]
  %s2 = inlined_call_operand.vmem [shape: f32[1,1024], index: 2, kind: input, shape index: {}]
  %s3 = inlined_call_operand.vmem [shape: f32[8,1024], index: 3, kind: output, shape index: {}]
  %s4 = sld [smem:[#allocation0]]
  $region22: #{net_forward.24} parent=0
    _
  %s6 = ssub.s32 1, %s4
  %s7 = scalar_select 0, %s6, %s4
  // Predicated region
  $region2: #{net_forward.24} parent=0 // pred_check
    _
  $region3: #{net_forward.24} parent=0 // pred_check_branch
    %9 = sbr.rel (0) target = $region5
  $region4: #{net_forward.24} parent=0 // pred_region
    _
  $region5: #{net_forward.24} parent=0 // pred_fallthru
    _
  // Predicated region
  $region6: #{net_forward.24} parent=0 // pred_check
    _
  $region7: #{net_forward.24} parent=0 // pred_check_branch
    %11 = sbr.rel (0) target = $region9
  $region8: #{net_forward.24} parent=0 // pred_region
    _
  $region9: #{net_forward.24} parent=0 // pred_fallthru
    _
  // Predicated region
  $region10: #{net_forward.24} parent=0 // pred_check
    _
  $region11: #{net_forward.24} parent=0 // pred_check_branch
    %13 = sbr.rel (0) target = $region13
  $region12: #{net_forward.24} parent=0 // pred_region
    _
  $region13: #{net_forward.24} parent=0 // pred_fallthru
    _
  %v14 = vld [vmem:[%s0] sm:$0xff]
  %v15 = vld [vmem:[%s0 + $0x8] sm:$0xff]
  %v16 = vpack.c.bf16 %v14, %v14
  %v17 = vpack.c.bf16 %v15, %v15
  %v18 = vld [vmem:[%s1] sm:$0xff]
  %v19 = vld [vmem:[%s1 + $0x8] sm:$0xff]
  %v20 = vld [vmem:[%s1 + $0x10] sm:$0xff]
  %v21 = vld [vmem:[%s1 + $0x18] sm:$0xff]
  %v22 = vld [vmem:[%s1 + $0x20] sm:$0xff]
  %v23 = vld [vmem:[%s1 + $0x28] sm:$0xff]
  %v24 = vld [vmem:[%s1 + $0x30] sm:$0xff]
  %v25 = vld [vmem:[%s1 + $0x38] sm:$0xff]
  %v26 = vld [vmem:[%s1 + $0x40] sm:$0xff]
  %v27 = vld [vmem:[%s1 + $0x48] sm:$0xff]
  %v28 = vld [vmem:[%s1 + $0x50] sm:$0xff]
  %v29 = vld [vmem:[%s1 + $0x58] sm:$0xff]
  %v30 = vld [vmem:[%s1 + $0x60] sm:$0xff]
  %v31 = vld [vmem:[%s1 + $0x68] sm:$0xff]
  %v32 = vld [vmem:[%s1 + $0x70] sm:$0xff]
  %v33 = vld [vmem:[%s1 + $0x78] sm:$0xff]
  %v34 = vld [vmem:[%s1 + $0x80] sm:$0xff]
  %v35 = vld [vmem:[%s1 + $0x88] sm:$0xff]
  %v36 = vld [vmem:[%s1 + $0x90] sm:$0xff]
  %v37 = vld [vmem:[%s1 + $0x98] sm:$0xff]
  %v38 = vld [vmem:[%s1 + $0xa0] sm:$0xff]
  %v39 = vld [vmem:[%s1 + $0xa8] sm:$0xff]
  %v40 = vld [vmem:[%s1 + $0xb0] sm:$0xff]
  %v41 = vld [vmem:[%s1 + $0xb8] sm:$0xff]
  %v42 = vld [vmem:[%s1 + $0xc0] sm:$0xff]
  %v43 = vld [vmem:[%s1 + $0xc8] sm:$0xff]
  %v44 = vld [vmem:[%s1 + $0xd0] sm:$0xff]
  %v45 = vld [vmem:[%s1 + $0xd8] sm:$0xff]
  %v46 = vld [vmem:[%s1 + $0xe0] sm:$0xff]
  %v47 = vld [vmem:[%s1 + $0xe8] sm:$0xff]
  %v48 = vld [vmem:[%s1 + $0xf0] sm:$0xff]
  %v49 = vld [vmem:[%s1 + $0xf8] sm:$0xff]
  %v50 = vld [vmem:[%s1 + $0x100] sm:$0xff]
  %v51 = vld [vmem:[%s1 + $0x108] sm:$0xff]
  %v52 = vld [vmem:[%s1 + $0x110] sm:$0xff]
  %v53 = vld [vmem:[%s1 + $0x118] sm:$0xff]
  %v54 = vld [vmem:[%s1 + $0x120] sm:$0xff]
  %v55 = vld [vmem:[%s1 + $0x128] sm:$0xff]
  %v56 = vld [vmem:[%s1 + $0x130] sm:$0xff]
  %v57 = vld [vmem:[%s1 + $0x138] sm:$0xff]
  %v58 = vld [vmem:[%s1 + $0x140] sm:$0xff]
  %v59 = vld [vmem:[%s1 + $0x148] sm:$0xff]
  %v60 = vld [vmem:[%s1 + $0x150] sm:$0xff]
  %v61 = vld [vmem:[%s1 + $0x158] sm:$0xff]
  %v62 = vld [vmem:[%s1 + $0x160] sm:$0xff]
  %v63 = vld [vmem:[%s1 + $0x168] sm:$0xff]
  %v64 = vld [vmem:[%s1 + $0x170] sm:$0xff]
  %v65 = vld [vmem:[%s1 + $0x178] sm:$0xff]
  %v66 = vld [vmem:[%s1 + $0x180] sm:$0xff]
  %v67 = vld [vmem:[%s1 + $0x188] sm:$0xff]
  %v68 = vld [vmem:[%s1 + $0x190] sm:$0xff]
  %v69 = vld [vmem:[%s1 + $0x198] sm:$0xff]
  %v70 = vld [vmem:[%s1 + $0x1a0] sm:$0xff]
  %v71 = vld [vmem:[%s1 + $0x1a8] sm:$0xff]
  %v72 = vld [vmem:[%s1 + $0x1b0] sm:$0xff]
  %v73 = vld [vmem:[%s1 + $0x1b8] sm:$0xff]
  %v74 = vld [vmem:[%s1 + $0x1c0] sm:$0xff]
  %v75 = vld [vmem:[%s1 + $0x1c8] sm:$0xff]
  %v76 = vld [vmem:[%s1 + $0x1d0] sm:$0xff]
  %v77 = vld [vmem:[%s1 + $0x1d8] sm:$0xff]
  %v78 = vld [vmem:[%s1 + $0x1e0] sm:$0xff]
  %v79 = vld [vmem:[%s1 + $0x1e8] sm:$0xff]
  %v80 = vld [vmem:[%s1 + $0x1f0] sm:$0xff]
  %v81 = vld [vmem:[%s1 + $0x1f8] sm:$0xff]
  %v82 = vld [vmem:[%s1 + $0x200] sm:$0xff]
  %v83 = vld [vmem:[%s1 + $0x208] sm:$0xff]
  %v84 = vld [vmem:[%s1 + $0x210] sm:$0xff]
  %v85 = vld [vmem:[%s1 + $0x218] sm:$0xff]
  %v86 = vld [vmem:[%s1 + $0x220] sm:$0xff]
  %v87 = vld [vmem:[%s1 + $0x228] sm:$0xff]
  %v88 = vld [vmem:[%s1 + $0x230] sm:$0xff]
  %v89 = vld [vmem:[%s1 + $0x238] sm:$0xff]
  %v90 = vld [vmem:[%s1 + $0x240] sm:$0xff]
  %v91 = vld [vmem:[%s1 + $0x248] sm:$0xff]
  %v92 = vld [vmem:[%s1 + $0x250] sm:$0xff]
  %v93 = vld [vmem:[%s1 + $0x258] sm:$0xff]
  %v94 = vld [vmem:[%s1 + $0x260] sm:$0xff]
  %v95 = vld [vmem:[%s1 + $0x268] sm:$0xff]
  %v96 = vld [vmem:[%s1 + $0x270] sm:$0xff]
  %v97 = vld [vmem:[%s1 + $0x278] sm:$0xff]
  %v98 = vld [vmem:[%s1 + $0x280] sm:$0xff]
  %v99 = vld [vmem:[%s1 + $0x288] sm:$0xff]
  %v100 = vld [vmem:[%s1 + $0x290] sm:$0xff]
  %v101 = vld [vmem:[%s1 + $0x298] sm:$0xff]
  %v102 = vld [vmem:[%s1 + $0x2a0] sm:$0xff]
  %v103 = vld [vmem:[%s1 + $0x2a8] sm:$0xff]
  %v104 = vld [vmem:[%s1 + $0x2b0] sm:$0xff]
  %v105 = vld [vmem:[%s1 + $0x2b8] sm:$0xff]
  %v106 = vld [vmem:[%s1 + $0x2c0] sm:$0xff]
  %v107 = vld [vmem:[%s1 + $0x2c8] sm:$0xff]
  %v108 = vld [vmem:[%s1 + $0x2d0] sm:$0xff]
  %v109 = vld [vmem:[%s1 + $0x2d8] sm:$0xff]
  %v110 = vld [vmem:[%s1 + $0x2e0] sm:$0xff]
  %v111 = vld [vmem:[%s1 + $0x2e8] sm:$0xff]
  %v112 = vld [vmem:[%s1 + $0x2f0] sm:$0xff]
  %v113 = vld [vmem:[%s1 + $0x2f8] sm:$0xff]
  %v114 = vld [vmem:[%s1 + $0x300] sm:$0xff]
  %v115 = vld [vmem:[%s1 + $0x308] sm:$0xff]
  %v116 = vld [vmem:[%s1 + $0x310] sm:$0xff]
  %v117 = vld [vmem:[%s1 + $0x318] sm:$0xff]
  %v118 = vld [vmem:[%s1 + $0x320] sm:$0xff]
  %v119 = vld [vmem:[%s1 + $0x328] sm:$0xff]
  %v120 = vld [vmem:[%s1 + $0x330] sm:$0xff]
  %v121 = vld [vmem:[%s1 + $0x338] sm:$0xff]
  %v122 = vld [vmem:[%s1 + $0x340] sm:$0xff]
  %v123 = vld [vmem:[%s1 + $0x348] sm:$0xff]
  %v124 = vld [vmem:[%s1 + $0x350] sm:$0xff]
  %v125 = vld [vmem:[%s1 + $0x358] sm:$0xff]
  %v126 = vld [vmem:[%s1 + $0x360] sm:$0xff]
  %v127 = vld [vmem:[%s1 + $0x368] sm:$0xff]
  %v128 = vld [vmem:[%s1 + $0x370] sm:$0xff]
  %v129 = vld [vmem:[%s1 + $0x378] sm:$0xff]
  %v130 = vld [vmem:[%s1 + $0x380] sm:$0xff]
  %v131 = vld [vmem:[%s1 + $0x388] sm:$0xff]
  %v132 = vld [vmem:[%s1 + $0x390] sm:$0xff]
  %v133 = vld [vmem:[%s1 + $0x398] sm:$0xff]
  %v134 = vld [vmem:[%s1 + $0x3a0] sm:$0xff]
  %v135 = vld [vmem:[%s1 + $0x3a8] sm:$0xff]
  %v136 = vld [vmem:[%s1 + $0x3b0] sm:$0xff]
  %v137 = vld [vmem:[%s1 + $0x3b8] sm:$0xff]
  %v138 = vld [vmem:[%s1 + $0x3c0] sm:$0xff]
  %v139 = vld [vmem:[%s1 + $0x3c8] sm:$0xff]
  %v140 = vld [vmem:[%s1 + $0x3d0] sm:$0xff]
  %v141 = vld [vmem:[%s1 + $0x3d8] sm:$0xff]
  %v142 = vld [vmem:[%s1 + $0x3e0] sm:$0xff]
  %v143 = vld [vmem:[%s1 + $0x3e8] sm:$0xff]
  %v144 = vld [vmem:[%s1 + $0x3f0] sm:$0xff]
  %v145 = vld [vmem:[%s1 + $0x3f8] sm:$0xff]
  %v146 = vld [vmem:[%s1 + $0x400] sm:$0xff]
  %v147 = vld [vmem:[%s1 + $0x408] sm:$0xff]
  %v148 = vld [vmem:[%s1 + $0x410] sm:$0xff]
  %v149 = vld [vmem:[%s1 + $0x418] sm:$0xff]
  %v150 = vld [vmem:[%s1 + $0x420] sm:$0xff]
  %v151 = vld [vmem:[%s1 + $0x428] sm:$0xff]
  %v152 = vld [vmem:[%s1 + $0x430] sm:$0xff]
  %v153 = vld [vmem:[%s1 + $0x438] sm:$0xff]
  %v154 = vld [vmem:[%s1 + $0x440] sm:$0xff]
  %v155 = vld [vmem:[%s1 + $0x448] sm:$0xff]
  %v156 = vld [vmem:[%s1 + $0x450] sm:$0xff]
  %v157 = vld [vmem:[%s1 + $0x458] sm:$0xff]
  %v158 = vld [vmem:[%s1 + $0x460] sm:$0xff]
  %v159 = vld [vmem:[%s1 + $0x468] sm:$0xff]
  %v160 = vld [vmem:[%s1 + $0x470] sm:$0xff]
  %v161 = vld [vmem:[%s1 + $0x478] sm:$0xff]
  %v162 = vld [vmem:[%s1 + $0x480] sm:$0xff]
  %v163 = vld [vmem:[%s1 + $0x488] sm:$0xff]
  %v164 = vld [vmem:[%s1 + $0x490] sm:$0xff]
  %v165 = vld [vmem:[%s1 + $0x498] sm:$0xff]
  %v166 = vld [vmem:[%s1 + $0x4a0] sm:$0xff]
  %v167 = vld [vmem:[%s1 + $0x4a8] sm:$0xff]
  %v168 = vld [vmem:[%s1 + $0x4b0] sm:$0xff]
  %v169 = vld [vmem:[%s1 + $0x4b8] sm:$0xff]
  %v170 = vld [vmem:[%s1 + $0x4c0] sm:$0xff]
  %v171 = vld [vmem:[%s1 + $0x4c8] sm:$0xff]
  %v172 = vld [vmem:[%s1 + $0x4d0] sm:$0xff]
  %v173 = vld [vmem:[%s1 + $0x4d8] sm:$0xff]
  %v174 = vld [vmem:[%s1 + $0x4e0] sm:$0xff]
  %v175 = vld [vmem:[%s1 + $0x4e8] sm:$0xff]
  %v176 = vld [vmem:[%s1 + $0x4f0] sm:$0xff]
  %v177 = vld [vmem:[%s1 + $0x4f8] sm:$0xff]
  %v178 = vld [vmem:[%s1 + $0x500] sm:$0xff]
  %v179 = vld [vmem:[%s1 + $0x508] sm:$0xff]
  %v180 = vld [vmem:[%s1 + $0x510] sm:$0xff]
  %v181 = vld [vmem:[%s1 + $0x518] sm:$0xff]
  %v182 = vld [vmem:[%s1 + $0x520] sm:$0xff]
  %v183 = vld [vmem:[%s1 + $0x528] sm:$0xff]
  %v184 = vld [vmem:[%s1 + $0x530] sm:$0xff]
  %v185 = vld [vmem:[%s1 + $0x538] sm:$0xff]
  %v186 = vld [vmem:[%s1 + $0x540] sm:$0xff]
  %v187 = vld [vmem:[%s1 + $0x548] sm:$0xff]
  %v188 = vld [vmem:[%s1 + $0x550] sm:$0xff]
  %v189 = vld [vmem:[%s1 + $0x558] sm:$0xff]
  %v190 = vld [vmem:[%s1 + $0x560] sm:$0xff]
  %v191 = vld [vmem:[%s1 + $0x568] sm:$0xff]
  %v192 = vld [vmem:[%s1 + $0x570] sm:$0xff]
  %v193 = vld [vmem:[%s1 + $0x578] sm:$0xff]
  %v194 = vld [vmem:[%s1 + $0x580] sm:$0xff]
  %v195 = vld [vmem:[%s1 + $0x588] sm:$0xff]
  %v196 = vld [vmem:[%s1 + $0x590] sm:$0xff]
  %v197 = vld [vmem:[%s1 + $0x598] sm:$0xff]
  %v198 = vld [vmem:[%s1 + $0x5a0] sm:$0xff]
  %v199 = vld [vmem:[%s1 + $0x5a8] sm:$0xff]
  %v200 = vld [vmem:[%s1 + $0x5b0] sm:$0xff]
  %v201 = vld [vmem:[%s1 + $0x5b8] sm:$0xff]
  %v202 = vld [vmem:[%s1 + $0x5c0] sm:$0xff]
  %v203 = vld [vmem:[%s1 + $0x5c8] sm:$0xff]
  %v204 = vld [vmem:[%s1 + $0x5d0] sm:$0xff]
  %v205 = vld [vmem:[%s1 + $0x5d8] sm:$0xff]
  %v206 = vld [vmem:[%s1 + $0x5e0] sm:$0xff]
  %v207 = vld [vmem:[%s1 + $0x5e8] sm:$0xff]
  %v208 = vld [vmem:[%s1 + $0x5f0] sm:$0xff]
  %v209 = vld [vmem:[%s1 + $0x5f8] sm:$0xff]
  %v210 = vld [vmem:[%s1 + $0x600] sm:$0xff]
  %v211 = vld [vmem:[%s1 + $0x608] sm:$0xff]
  %v212 = vld [vmem:[%s1 + $0x610] sm:$0xff]
  %v213 = vld [vmem:[%s1 + $0x618] sm:$0xff]
  %v214 = vld [vmem:[%s1 + $0x620] sm:$0xff]
  %v215 = vld [vmem:[%s1 + $0x628] sm:$0xff]
  %v216 = vld [vmem:[%s1 + $0x630] sm:$0xff]
  %v217 = vld [vmem:[%s1 + $0x638] sm:$0xff]
  %v218 = vld [vmem:[%s1 + $0x640] sm:$0xff]
  %v219 = vld [vmem:[%s1 + $0x648] sm:$0xff]
  %v220 = vld [vmem:[%s1 + $0x650] sm:$0xff]
  %v221 = vld [vmem:[%s1 + $0x658] sm:$0xff]
  %v222 = vld [vmem:[%s1 + $0x660] sm:$0xff]
  %v223 = vld [vmem:[%s1 + $0x668] sm:$0xff]
  %v224 = vld [vmem:[%s1 + $0x670] sm:$0xff]
  %v225 = vld [vmem:[%s1 + $0x678] sm:$0xff]
  %v226 = vld [vmem:[%s1 + $0x680] sm:$0xff]
  %v227 = vld [vmem:[%s1 + $0x688] sm:$0xff]
  %v228 = vld [vmem:[%s1 + $0x690] sm:$0xff]
  %v229 = vld [vmem:[%s1 + $0x698] sm:$0xff]
  %v230 = vld [vmem:[%s1 + $0x6a0] sm:$0xff]
  %v231 = vld [vmem:[%s1 + $0x6a8] sm:$0xff]
  %v232 = vld [vmem:[%s1 + $0x6b0] sm:$0xff]
  %v233 = vld [vmem:[%s1 + $0x6b8] sm:$0xff]
  %v234 = vld [vmem:[%s1 + $0x6c0] sm:$0xff]
  %v235 = vld [vmem:[%s1 + $0x6c8] sm:$0xff]
  %v236 = vld [vmem:[%s1 + $0x6d0] sm:$0xff]
  %v237 = vld [vmem:[%s1 + $0x6d8] sm:$0xff]
  %v238 = vld [vmem:[%s1 + $0x6e0] sm:$0xff]
  %v239 = vld [vmem:[%s1 + $0x6e8] sm:$0xff]
  %v240 = vld [vmem:[%s1 + $0x6f0] sm:$0xff]
  %v241 = vld [vmem:[%s1 + $0x6f8] sm:$0xff]
  %v242 = vld [vmem:[%s1 + $0x700] sm:$0xff]
  %v243 = vld [vmem:[%s1 + $0x708] sm:$0xff]
  %v244 = vld [vmem:[%s1 + $0x710] sm:$0xff]
  %v245 = vld [vmem:[%s1 + $0x718] sm:$0xff]
  %v246 = vld [vmem:[%s1 + $0x720] sm:$0xff]
  %v247 = vld [vmem:[%s1 + $0x728] sm:$0xff]
  %v248 = vld [vmem:[%s1 + $0x730] sm:$0xff]
  %v249 = vld [vmem:[%s1 + $0x738] sm:$0xff]
  %v250 = vld [vmem:[%s1 + $0x740] sm:$0xff]
  %v251 = vld [vmem:[%s1 + $0x748] sm:$0xff]
  %v252 = vld [vmem:[%s1 + $0x750] sm:$0xff]
  %v253 = vld [vmem:[%s1 + $0x758] sm:$0xff]
  %v254 = vld [vmem:[%s1 + $0x760] sm:$0xff]
  %v255 = vld [vmem:[%s1 + $0x768] sm:$0xff]
  %v256 = vld [vmem:[%s1 + $0x770] sm:$0xff]
  %v257 = vld [vmem:[%s1 + $0x778] sm:$0xff]
  %v258 = vld [vmem:[%s1 + $0x780] sm:$0xff]
  %v259 = vld [vmem:[%s1 + $0x788] sm:$0xff]
  %v260 = vld [vmem:[%s1 + $0x790] sm:$0xff]
  %v261 = vld [vmem:[%s1 + $0x798] sm:$0xff]
  %v262 = vld [vmem:[%s1 + $0x7a0] sm:$0xff]
  %v263 = vld [vmem:[%s1 + $0x7a8] sm:$0xff]
  %v264 = vld [vmem:[%s1 + $0x7b0] sm:$0xff]
  %v265 = vld [vmem:[%s1 + $0x7b8] sm:$0xff]
  %v266 = vld [vmem:[%s1 + $0x7c0] sm:$0xff]
  %v267 = vld [vmem:[%s1 + $0x7c8] sm:$0xff]
  %v268 = vld [vmem:[%s1 + $0x7d0] sm:$0xff]
  %v269 = vld [vmem:[%s1 + $0x7d8] sm:$0xff]
  %v270 = vld [vmem:[%s1 + $0x7e0] sm:$0xff]
  %v271 = vld [vmem:[%s1 + $0x7e8] sm:$0xff]
  %v272 = vld [vmem:[%s1 + $0x7f0] sm:$0xff]
  %v273 = vld [vmem:[%s1 + $0x7f8] sm:$0xff]
  %v274 = vpack.c.bf16 %v26, %v18
  %v275 = vpack.c.bf16 %v27, %v19
  %v276 = vpack.c.bf16 %v28, %v20
  %v277 = vpack.c.bf16 %v29, %v21
  %v278 = vpack.c.bf16 %v30, %v22
  %v279 = vpack.c.bf16 %v31, %v23
  %v280 = vpack.c.bf16 %v32, %v24
  %v281 = vpack.c.bf16 %v33, %v25
  %v282 = vpack.c.bf16 %v42, %v34
  %v283 = vpack.c.bf16 %v43, %v35
  %v284 = vpack.c.bf16 %v44, %v36
  %v285 = vpack.c.bf16 %v45, %v37
  %v286 = vpack.c.bf16 %v46, %v38
  %v287 = vpack.c.bf16 %v47, %v39
  %v288 = vpack.c.bf16 %v48, %v40
  %v289 = vpack.c.bf16 %v49, %v41
  %v290 = vpack.c.bf16 %v58, %v50
  %v291 = vpack.c.bf16 %v59, %v51
  %v292 = vpack.c.bf16 %v60, %v52
  %v293 = vpack.c.bf16 %v61, %v53
  %v294 = vpack.c.bf16 %v62, %v54
  %v295 = vpack.c.bf16 %v63, %v55
  %v296 = vpack.c.bf16 %v64, %v56
  %v297 = vpack.c.bf16 %v65, %v57
  %v298 = vpack.c.bf16 %v74, %v66
  %v299 = vpack.c.bf16 %v75, %v67
  %v300 = vpack.c.bf16 %v76, %v68
  %v301 = vpack.c.bf16 %v77, %v69
  %v302 = vpack.c.bf16 %v78, %v70
  %v303 = vpack.c.bf16 %v79, %v71
  %v304 = vpack.c.bf16 %v80, %v72
  %v305 = vpack.c.bf16 %v81, %v73
  %v306 = vpack.c.bf16 %v90, %v82
  %v307 = vpack.c.bf16 %v91, %v83
  %v308 = vpack.c.bf16 %v92, %v84
  %v309 = vpack.c.bf16 %v93, %v85
  %v310 = vpack.c.bf16 %v94, %v86
  %v311 = vpack.c.bf16 %v95, %v87
  %v312 = vpack.c.bf16 %v96, %v88
  %v313 = vpack.c.bf16 %v97, %v89
  %v314 = vpack.c.bf16 %v106, %v98
  %v315 = vpack.c.bf16 %v107, %v99
  %v316 = vpack.c.bf16 %v108, %v100
  %v317 = vpack.c.bf16 %v109, %v101
  %v318 = vpack.c.bf16 %v110, %v102
  %v319 = vpack.c.bf16 %v111, %v103
  %v320 = vpack.c.bf16 %v112, %v104
  %v321 = vpack.c.bf16 %v113, %v105
  %v322 = vpack.c.bf16 %v122, %v114
  %v323 = vpack.c.bf16 %v123, %v115
  %v324 = vpack.c.bf16 %v124, %v116
  %v325 = vpack.c.bf16 %v125, %v117
  %v326 = vpack.c.bf16 %v126, %v118
  %v327 = vpack.c.bf16 %v127, %v119
  %v328 = vpack.c.bf16 %v128, %v120
  %v329 = vpack.c.bf16 %v129, %v121
  %v330 = vpack.c.bf16 %v138, %v130
  %v331 = vpack.c.bf16 %v139, %v131
  %v332 = vpack.c.bf16 %v140, %v132
  %v333 = vpack.c.bf16 %v141, %v133
  %v334 = vpack.c.bf16 %v142, %v134
  %v335 = vpack.c.bf16 %v143, %v135
  %v336 = vpack.c.bf16 %v144, %v136
  %v337 = vpack.c.bf16 %v145, %v137
  %v338 = vpack.c.bf16 %v154, %v146
  %v339 = vpack.c.bf16 %v155, %v147
  %v340 = vpack.c.bf16 %v156, %v148
  %v341 = vpack.c.bf16 %v157, %v149
  %v342 = vpack.c.bf16 %v158, %v150
  %v343 = vpack.c.bf16 %v159, %v151
  %v344 = vpack.c.bf16 %v160, %v152
  %v345 = vpack.c.bf16 %v161, %v153
  %v346 = vpack.c.bf16 %v170, %v162
  %v347 = vpack.c.bf16 %v171, %v163
  %v348 = vpack.c.bf16 %v172, %v164
  %v349 = vpack.c.bf16 %v173, %v165
  %v350 = vpack.c.bf16 %v174, %v166
  %v351 = vpack.c.bf16 %v175, %v167
  %v352 = vpack.c.bf16 %v176, %v168
  %v353 = vpack.c.bf16 %v177, %v169
  %v354 = vpack.c.bf16 %v186, %v178
  %v355 = vpack.c.bf16 %v187, %v179
  %v356 = vpack.c.bf16 %v188, %v180
  %v357 = vpack.c.bf16 %v189, %v181
  %v358 = vpack.c.bf16 %v190, %v182
  %v359 = vpack.c.bf16 %v191, %v183
  %v360 = vpack.c.bf16 %v192, %v184
  %v361 = vpack.c.bf16 %v193, %v185
  %v362 = vpack.c.bf16 %v202, %v194
  %v363 = vpack.c.bf16 %v203, %v195
  %v364 = vpack.c.bf16 %v204, %v196
  %v365 = vpack.c.bf16 %v205, %v197
  %v366 = vpack.c.bf16 %v206, %v198
  %v367 = vpack.c.bf16 %v207, %v199
  %v368 = vpack.c.bf16 %v208, %v200
  %v369 = vpack.c.bf16 %v209, %v201
  %v370 = vpack.c.bf16 %v218, %v210
  %v371 = vpack.c.bf16 %v219, %v211
  %v372 = vpack.c.bf16 %v220, %v212
  %v373 = vpack.c.bf16 %v221, %v213
  %v374 = vpack.c.bf16 %v222, %v214
  %v375 = vpack.c.bf16 %v223, %v215
  %v376 = vpack.c.bf16 %v224, %v216
  %v377 = vpack.c.bf16 %v225, %v217
  %v378 = vpack.c.bf16 %v234, %v226
  %v379 = vpack.c.bf16 %v235, %v227
  %v380 = vpack.c.bf16 %v236, %v228
  %v381 = vpack.c.bf16 %v237, %v229
  %v382 = vpack.c.bf16 %v238, %v230
  %v383 = vpack.c.bf16 %v239, %v231
  %v384 = vpack.c.bf16 %v240, %v232
  %v385 = vpack.c.bf16 %v241, %v233
  %v386 = vpack.c.bf16 %v250, %v242
  %v387 = vpack.c.bf16 %v251, %v243
  %v388 = vpack.c.bf16 %v252, %v244
  %v389 = vpack.c.bf16 %v253, %v245
  %v390 = vpack.c.bf16 %v254, %v246
  %v391 = vpack.c.bf16 %v255, %v247
  %v392 = vpack.c.bf16 %v256, %v248
  %v393 = vpack.c.bf16 %v257, %v249
  %v394 = vpack.c.bf16 %v266, %v258
  %v395 = vpack.c.bf16 %v267, %v259
  %v396 = vpack.c.bf16 %v268, %v260
  %v397 = vpack.c.bf16 %v269, %v261
  %v398 = vpack.c.bf16 %v270, %v262
  %v399 = vpack.c.bf16 %v271, %v263
  %v400 = vpack.c.bf16 %v272, %v264
  %v401 = vpack.c.bf16 %v273, %v265
  %v402 = vld [vmem:[%s2] sm:$0xff]
  %v404 = vlaneseq
  %v405 = vshrl.u32 %v404, 7
  %v406 = vsub.s32 0, %v405
  %v407 = vrot.slane %v402, %v406
  %v408 = vlaneseq
  %v409 = vshrl.u32 %v408, 7
  %v410 = vsub.s32 1, %v409
  %v411 = vrot.slane %v402, %v410
  %v412 = vlaneseq
  %v413 = vshrl.u32 %v412, 7
  %v414 = vsub.s32 2, %v413
  %v415 = vrot.slane %v402, %v414
  %v416 = vlaneseq
  %v417 = vshrl.u32 %v416, 7
  %v418 = vsub.s32 3, %v417
  %v419 = vrot.slane %v402, %v418
  %v420 = vlaneseq
  %v421 = vshrl.u32 %v420, 7
  %v422 = vsub.s32 4, %v421
  %v423 = vrot.slane %v402, %v422
  %v424 = vlaneseq
  %v425 = vshrl.u32 %v424, 7
  %v426 = vsub.s32 5, %v425
  %v427 = vrot.slane %v402, %v426
  %v428 = vlaneseq
  %v429 = vshrl.u32 %v428, 7
  %v430 = vsub.s32 6, %v429
  %v431 = vrot.slane %v402, %v430
  %v432 = vlaneseq
  %v433 = vshrl.u32 %v432, 7
  %v434 = vsub.s32 7, %v433
  %v435 = vrot.slane %v402, %v434
  %444 = vmatprep.subr.bf16.mxu0 %v275
  %445 = vmatpush1.bf16.msra.mxu0 %v274
  %446 = vmatprep.subr.bf16.mxu0 %v283
  %447 = vmatpush1.bf16.msra.mxu0 %v282
  %448 = vmatprep.subr.bf16.mxu0 %v291
  %449 = vmatpush1.bf16.msra.mxu0 %v290
  %450 = vmatprep.subr.bf16.mxu0 %v299
  %451 = vmatpush1.bf16.msra.mxu0 %v298
  %452 = vmatprep.subr.bf16.mxu0 %v307
  %453 = vmatpush1.bf16.msra.mxu0 %v306
  %454 = vmatprep.subr.bf16.mxu0 %v315
  %455 = vmatpush1.bf16.msra.mxu0 %v314
  %456 = vmatprep.subr.bf16.mxu0 %v323
  %457 = vmatpush1.bf16.msra.mxu0 %v322
  %458 = vmatprep.subr.bf16.mxu0 %v331
  %459 = vmatpush1.bf16.msra.mxu0 %v330
  %460 = vmatprep.subr.bf16.mxu0 %v339
  %461 = vmatpush1.bf16.msra.mxu0 %v338
  %462 = vmatprep.subr.bf16.mxu0 %v347
  %463 = vmatpush1.bf16.msra.mxu0 %v346
  %464 = vmatprep.subr.bf16.mxu0 %v355
  %465 = vmatpush1.bf16.msra.mxu0 %v354
  %466 = vmatprep.subr.bf16.mxu0 %v363
  %467 = vmatpush1.bf16.msra.mxu0 %v362
  %468 = vmatprep.subr.bf16.mxu0 %v371
  %469 = vmatpush1.bf16.msra.mxu0 %v370
  %470 = vmatprep.subr.bf16.mxu0 %v379
  %471 = vmatpush1.bf16.msra.mxu0 %v378
  %472 = vmatprep.subr.bf16.mxu0 %v387
  %473 = vmatpush1.bf16.msra.mxu0 %v386
  %474 = vmatprep.subr.bf16.mxu0 %v395
  %475 = vmatpush1.bf16.msra.mxu0 %v394
  %476 = vmatprep.mubr.bf16.mxu0 %v17
  %477 = vmatmul.mubr.bf16.gmra.mrb[0].mxu0 %v16
  %v478 = vpop.f32.mrb[0].mxu0
  %v479 = vadd.f32 %v407, %v478
  %v480 = vpop.f32.mrb[0].mxu0
  %v481 = vadd.f32 %v411, %v480
  %v482 = vpop.f32.mrb[0].mxu0
  %v483 = vpop.f32.mrb[0].mxu0
  %484 = vdwg.mxu0
  %485 = vmatprep.subr.bf16.mxu0 %v277
  %486 = vmatpush1.bf16.msra.mxu0 %v276
  %487 = vmatprep.subr.bf16.mxu0 %v285
  %488 = vmatpush1.bf16.msra.mxu0 %v284
  %489 = vmatprep.subr.bf16.mxu0 %v293
  %490 = vmatpush1.bf16.msra.mxu0 %v292
  %491 = vmatprep.subr.bf16.mxu0 %v301
  %492 = vmatpush1.bf16.msra.mxu0 %v300
  %493 = vmatprep.subr.bf16.mxu0 %v309
  %494 = vmatpush1.bf16.msra.mxu0 %v308
  %495 = vmatprep.subr.bf16.mxu0 %v317
  %496 = vmatpush1.bf16.msra.mxu0 %v316
  %497 = vmatprep.subr.bf16.mxu0 %v325
  %498 = vmatpush1.bf16.msra.mxu0 %v324
  %499 = vmatprep.subr.bf16.mxu0 %v333
  %500 = vmatpush1.bf16.msra.mxu0 %v332
  %501 = vmatprep.subr.bf16.mxu0 %v341
  %502 = vmatpush1.bf16.msra.mxu0 %v340
  %503 = vmatprep.subr.bf16.mxu0 %v349
  %504 = vmatpush1.bf16.msra.mxu0 %v348
  %505 = vmatprep.subr.bf16.mxu0 %v357
  %506 = vmatpush1.bf16.msra.mxu0 %v356
  %507 = vmatprep.subr.bf16.mxu0 %v365
  %508 = vmatpush1.bf16.msra.mxu0 %v364
  %509 = vmatprep.subr.bf16.mxu0 %v373
  %510 = vmatpush1.bf16.msra.mxu0 %v372
  %511 = vmatprep.subr.bf16.mxu0 %v381
  %512 = vmatpush1.bf16.msra.mxu0 %v380
  %513 = vmatprep.subr.bf16.mxu0 %v389
  %514 = vmatpush1.bf16.msra.mxu0 %v388
  %515 = vmatprep.subr.bf16.mxu0 %v397
  %516 = vmatpush1.bf16.msra.mxu0 %v396
  %517 = vmatprep.mubr.bf16.mxu0 %v17
  %518 = vmatmul.mubr.bf16.gmra.mrb[0].mxu0 %v16
  %v519 = vpop.f32.mrb[0].mxu0
  %v520 = vadd.f32 %v415, %v519
  %v521 = vpop.f32.mrb[0].mxu0
  %v522 = vadd.f32 %v419, %v521
  %v523 = vpop.f32.mrb[0].mxu0
  %v524 = vpop.f32.mrb[0].mxu0
  %525 = vdwg.mxu0
  %526 = vmatprep.subr.bf16.mxu0 %v279
  %527 = vmatpush1.bf16.msra.mxu0 %v278
  %528 = vmatprep.subr.bf16.mxu0 %v287
  %529 = vmatpush1.bf16.msra.mxu0 %v286
  %530 = vmatprep.subr.bf16.mxu0 %v295
  %531 = vmatpush1.bf16.msra.mxu0 %v294
  %532 = vmatprep.subr.bf16.mxu0 %v303
  %533 = vmatpush1.bf16.msra.mxu0 %v302
  %534 = vmatprep.subr.bf16.mxu0 %v311
  %535 = vmatpush1.bf16.msra.mxu0 %v310
  %536 = vmatprep.subr.bf16.mxu0 %v319
  %537 = vmatpush1.bf16.msra.mxu0 %v318
  %538 = vmatprep.subr.bf16.mxu0 %v327
  %539 = vmatpush1.bf16.msra.mxu0 %v326
  %540 = vmatprep.subr.bf16.mxu0 %v335
  %541 = vmatpush1.bf16.msra.mxu0 %v334
  %542 = vmatprep.subr.bf16.mxu0 %v343
  %543 = vmatpush1.bf16.msra.mxu0 %v342
  %544 = vmatprep.subr.bf16.mxu0 %v351
  %545 = vmatpush1.bf16.msra.mxu0 %v350
  %546 = vmatprep.subr.bf16.mxu0 %v359
  %547 = vmatpush1.bf16.msra.mxu0 %v358
  %548 = vmatprep.subr.bf16.mxu0 %v367
  %549 = vmatpush1.bf16.msra.mxu0 %v366
  %550 = vmatprep.subr.bf16.mxu0 %v375
  %551 = vmatpush1.bf16.msra.mxu0 %v374
  %552 = vmatprep.subr.bf16.mxu0 %v383
  %553 = vmatpush1.bf16.msra.mxu0 %v382
  %554 = vmatprep.subr.bf16.mxu0 %v391
  %555 = vmatpush1.bf16.msra.mxu0 %v390
  %556 = vmatprep.subr.bf16.mxu0 %v399
  %557 = vmatpush1.bf16.msra.mxu0 %v398
  %558 = vmatprep.mubr.bf16.mxu0 %v17
  %559 = vmatmul.mubr.bf16.gmra.mrb[0].mxu0 %v16
  %v560 = vpop.f32.mrb[0].mxu0
  %v561 = vadd.f32 %v423, %v560
  %v562 = vpop.f32.mrb[0].mxu0
  %v563 = vadd.f32 %v427, %v562
  %v564 = vpop.f32.mrb[0].mxu0
  %v565 = vpop.f32.mrb[0].mxu0
  %566 = vdwg.mxu0
  %567 = vmatprep.subr.bf16.mxu0 %v281
  %568 = vmatpush1.bf16.msra.mxu0 %v280
  %569 = vmatprep.subr.bf16.mxu0 %v289
  %570 = vmatpush1.bf16.msra.mxu0 %v288
  %571 = vmatprep.subr.bf16.mxu0 %v297
  %572 = vmatpush1.bf16.msra.mxu0 %v296
  %573 = vmatprep.subr.bf16.mxu0 %v305
  %574 = vmatpush1.bf16.msra.mxu0 %v304
  %575 = vmatprep.subr.bf16.mxu0 %v313
  %576 = vmatpush1.bf16.msra.mxu0 %v312
  %577 = vmatprep.subr.bf16.mxu0 %v321
  %578 = vmatpush1.bf16.msra.mxu0 %v320
  %579 = vmatprep.subr.bf16.mxu0 %v329
  %580 = vmatpush1.bf16.msra.mxu0 %v328
  %581 = vmatprep.subr.bf16.mxu0 %v337
  %582 = vmatpush1.bf16.msra.mxu0 %v336
  %583 = vmatprep.subr.bf16.mxu0 %v345
  %584 = vmatpush1.bf16.msra.mxu0 %v344
  %585 = vmatprep.subr.bf16.mxu0 %v353
  %586 = vmatpush1.bf16.msra.mxu0 %v352
  %587 = vmatprep.subr.bf16.mxu0 %v361
  %588 = vmatpush1.bf16.msra.mxu0 %v360
  %589 = vmatprep.subr.bf16.mxu0 %v369
  %590 = vmatpush1.bf16.msra.mxu0 %v368
  %591 = vmatprep.subr.bf16.mxu0 %v377
  %592 = vmatpush1.bf16.msra.mxu0 %v376
  %593 = vmatprep.subr.bf16.mxu0 %v385
  %594 = vmatpush1.bf16.msra.mxu0 %v384
  %595 = vmatprep.subr.bf16.mxu0 %v393
  %596 = vmatpush1.bf16.msra.mxu0 %v392
  %597 = vmatprep.subr.bf16.mxu0 %v401
  %598 = vmatpush1.bf16.msra.mxu0 %v400
  %599 = vmatprep.mubr.bf16.mxu0 %v17
  %600 = vmatmul.mubr.bf16.gmra.mrb[0].mxu0 %v16
  %v601 = vpop.f32.mrb[0].mxu0
  %v602 = vadd.f32 %v431, %v601
  %v603 = vpop.f32.mrb[0].mxu0
  %v604 = vadd.f32 %v435, %v603
  %v605 = vpop.f32.mrb[0].mxu0
  %v606 = vpop.f32.mrb[0].mxu0
  %607 = vdwg.mxu0
  %608 = vst [vmem:[%s3] sm:$0xff] %v479
  %609 = vst [vmem:[%s3 + $0x8] sm:$0xff] %v481
  %610 = vst [vmem:[%s3 + $0x10] sm:$0xff] %v520
  %611 = vst [vmem:[%s3 + $0x18] sm:$0xff] %v522
  %612 = vst [vmem:[%s3 + $0x20] sm:$0xff] %v561
  %613 = vst [vmem:[%s3 + $0x28] sm:$0xff] %v563
  %614 = vst [vmem:[%s3 + $0x30] sm:$0xff] %v602
  %615 = vst [vmem:[%s3 + $0x38] sm:$0xff] %v604
  // Predicated region
  $region14: #{net_forward.24} parent=0 // pred_check
    _
  $region15: #{net_forward.24} parent=0 // pred_check_branch
    %617 = sbr.rel (0) target = $region17
  $region16: #{net_forward.24} parent=0 // pred_region
    _
  $region17: #{net_forward.24} parent=0 // pred_fallthru
    _
  // Predicated region
  $region18: #{net_forward.24} parent=0 // pred_check
    _
  $region19: #{net_forward.24} parent=0 // pred_check_branch
    %619 = sbr.rel (0) target = $region21
  $region20: #{net_forward.24} parent=0 // pred_region
    _
  $region21: #{net_forward.24} parent=0 // pred_fallthru
    _

// kernel: net_forward.28
$region0: #{net_forward.28}
  #allocation0 [shape = 'u32[]', space=smem, size = 0x4, offset = 0x4, fixed_abs, tag = 'smem constant byte address 0x4 - core index']
  #allocation1 [shape = 'u32[144,128]{1,0:T(1,128)}', space=vmem, size = 0x12000, scoped, tag = 'internal scratch']
  %s0 = inlined_call_operand.vmem [shape: f32[16,256], index: 0, kind: input, shape index: {}]
  %s1 = inlined_call_operand.vmem [shape: f32[256,256], index: 1, kind: input, shape index: {}]
  %s2 = inlined_call_operand.vmem [shape: f32[1,256], index: 2, kind: input, shape index: {}]
  %s3 = inlined_call_operand.vmem [shape: f32[16,256], index: 3, kind: output, shape index: {}]
  %s4 = sld [smem:[#allocation0]]
  $region22: #{net_forward.28} parent=0
    _
  %s6 = ssub.s32 1, %s4
  %s7 = scalar_select 0, %s6, %s4
  // Predicated region
  $region2: #{net_forward.28} parent=0 // pred_check
    _
  $region3: #{net_forward.28} parent=0 // pred_check_branch
    %9 = sbr.rel (0) target = $region5
  $region4: #{net_forward.28} parent=0 // pred_region
    _
  $region5: #{net_forward.28} parent=0 // pred_fallthru
    _
  // Predicated region
  $region6: #{net_forward.28} parent=0 // pred_check
    _
  $region7: #{net_forward.28} parent=0 // pred_check_branch
    %11 = sbr.rel (0) target = $region9
  $region8: #{net_forward.28} parent=0 // pred_region
    _
  $region9: #{net_forward.28} parent=0 // pred_fallthru
    _
  // Predicated region
  $region10: #{net_forward.28} parent=0 // pred_check
    _
  $region11: #{net_forward.28} parent=0 // pred_check_branch
    %13 = sbr.rel (0) target = $region13
  $region12: #{net_forward.28} parent=0 // pred_region
    _
  $region13: #{net_forward.28} parent=0 // pred_fallthru
    _
  %v14 = vld [vmem:[%s0] sm:$0xff]
  %v15 = vld [vmem:[%s0 + $0x8] sm:$0xff]
  %v16 = vld [vmem:[%s0 + $0x10] sm:$0xff]
  %v17 = vld [vmem:[%s0 + $0x18] sm:$0xff]
  %v18 = vpack.c.bf16 %v16, %v14
  %v19 = vpack.c.bf16 %v17, %v15
  %v20 = vld [vmem:[%s1] sm:$0xff]
  %v21 = vld [vmem:[%s1 + $0x8] sm:$0xff]
  %v22 = vld [vmem:[%s1 + $0x10] sm:$0xff]
  %v23 = vld [vmem:[%s1 + $0x18] sm:$0xff]
  %v24 = vld [vmem:[%s1 + $0x20] sm:$0xff]
  %v25 = vld [vmem:[%s1 + $0x28] sm:$0xff]
  %v26 = vld [vmem:[%s1 + $0x30] sm:$0xff]
  %v27 = vld [vmem:[%s1 + $0x38] sm:$0xff]
  %v28 = vld [vmem:[%s1 + $0x40] sm:$0xff]
  %v29 = vld [vmem:[%s1 + $0x48] sm:$0xff]
  %v30 = vld [vmem:[%s1 + $0x50] sm:$0xff]
  %v31 = vld [vmem:[%s1 + $0x58] sm:$0xff]
  %v32 = vld [vmem:[%s1 + $0x60] sm:$0xff]
  %v33 = vld [vmem:[%s1 + $0x68] sm:$0xff]
  %v34 = vld [vmem:[%s1 + $0x70] sm:$0xff]
  %v35 = vld [vmem:[%s1 + $0x78] sm:$0xff]
  %v36 = vld [vmem:[%s1 + $0x80] sm:$0xff]
  %v37 = vld [vmem:[%s1 + $0x88] sm:$0xff]
  %v38 = vld [vmem:[%s1 + $0x90] sm:$0xff]
  %v39 = vld [vmem:[%s1 + $0x98] sm:$0xff]
  %v40 = vld [vmem:[%s1 + $0xa0] sm:$0xff]
  %v41 = vld [vmem:[%s1 + $0xa8] sm:$0xff]
  %v42 = vld [vmem:[%s1 + $0xb0] sm:$0xff]
  %v43 = vld [vmem:[%s1 + $0xb8] sm:$0xff]
  %v44 = vld [vmem:[%s1 + $0xc0] sm:$0xff]
  %v45 = vld [vmem:[%s1 + $0xc8] sm:$0xff]
  %v46 = vld [vmem:[%s1 + $0xd0] sm:$0xff]
  %v47 = vld [vmem:[%s1 + $0xd8] sm:$0xff]
  %v48 = vld [vmem:[%s1 + $0xe0] sm:$0xff]
  %v49 = vld [vmem:[%s1 + $0xe8] sm:$0xff]
  %v50 = vld [vmem:[%s1 + $0xf0] sm:$0xff]
  %v51 = vld [vmem:[%s1 + $0xf8] sm:$0xff]
  %v52 = vld [vmem:[%s1 + $0x100] sm:$0xff]
  %v53 = vld [vmem:[%s1 + $0x108] sm:$0xff]
  %v54 = vld [vmem:[%s1 + $0x110] sm:$0xff]
  %v55 = vld [vmem:[%s1 + $0x118] sm:$0xff]
  %v56 = vld [vmem:[%s1 + $0x120] sm:$0xff]
  %v57 = vld [vmem:[%s1 + $0x128] sm:$0xff]
  %v58 = vld [vmem:[%s1 + $0x130] sm:$0xff]
  %v59 = vld [vmem:[%s1 + $0x138] sm:$0xff]
  %v60 = vld [vmem:[%s1 + $0x140] sm:$0xff]
  %v61 = vld [vmem:[%s1 + $0x148] sm:$0xff]
  %v62 = vld [vmem:[%s1 + $0x150] sm:$0xff]
  %v63 = vld [vmem:[%s1 + $0x158] sm:$0xff]
  %v64 = vld [vmem:[%s1 + $0x160] sm:$0xff]
  %v65 = vld [vmem:[%s1 + $0x168] sm:$0xff]
  %v66 = vld [vmem:[%s1 + $0x170] sm:$0xff]
  %v67 = vld [vmem:[%s1 + $0x178] sm:$0xff]
  %v68 = vld [vmem:[%s1 + $0x180] sm:$0xff]
  %v69 = vld [vmem:[%s1 + $0x188] sm:$0xff]
  %v70 = vld [vmem:[%s1 + $0x190] sm:$0xff]
  %v71 = vld [vmem:[%s1 + $0x198] sm:$0xff]
  %v72 = vld [vmem:[%s1 + $0x1a0] sm:$0xff]
  %v73 = vld [vmem:[%s1 + $0x1a8] sm:$0xff]
  %v74 = vld [vmem:[%s1 + $0x1b0] sm:$0xff]
  %v75 = vld [vmem:[%s1 + $0x1b8] sm:$0xff]
  %v76 = vld [vmem:[%s1 + $0x1c0] sm:$0xff]
  %v77 = vld [vmem:[%s1 + $0x1c8] sm:$0xff]
  %v78 = vld [vmem:[%s1 + $0x1d0] sm:$0xff]
  %v79 = vld [vmem:[%s1 + $0x1d8] sm:$0xff]
  %v80 = vld [vmem:[%s1 + $0x1e0] sm:$0xff]
  %v81 = vld [vmem:[%s1 + $0x1e8] sm:$0xff]
  %v82 = vld [vmem:[%s1 + $0x1f0] sm:$0xff]
  %v83 = vld [vmem:[%s1 + $0x1f8] sm:$0xff]
  %v84 = vpack.c.bf16 %v22, %v20
  %v85 = vpack.c.bf16 %v23, %v21
  %v86 = vpack.c.bf16 %v26, %v24
  %v87 = vpack.c.bf16 %v27, %v25
  %v88 = vpack.c.bf16 %v30, %v28
  %v89 = vpack.c.bf16 %v31, %v29
  %v90 = vpack.c.bf16 %v34, %v32
  %v91 = vpack.c.bf16 %v35, %v33
  %v92 = vpack.c.bf16 %v38, %v36
  %v93 = vpack.c.bf16 %v39, %v37
  %v94 = vpack.c.bf16 %v42, %v40
  %v95 = vpack.c.bf16 %v43, %v41
  %v96 = vpack.c.bf16 %v46, %v44
  %v97 = vpack.c.bf16 %v47, %v45
  %v98 = vpack.c.bf16 %v50, %v48
  %v99 = vpack.c.bf16 %v51, %v49
  %v100 = vpack.c.bf16 %v54, %v52
  %v101 = vpack.c.bf16 %v55, %v53
  %v102 = vpack.c.bf16 %v58, %v56
  %v103 = vpack.c.bf16 %v59, %v57
  %v104 = vpack.c.bf16 %v62, %v60
  %v105 = vpack.c.bf16 %v63, %v61
  %v106 = vpack.c.bf16 %v66, %v64
  %v107 = vpack.c.bf16 %v67, %v65
  %v108 = vpack.c.bf16 %v70, %v68
  %v109 = vpack.c.bf16 %v71, %v69
  %v110 = vpack.c.bf16 %v74, %v72
  %v111 = vpack.c.bf16 %v75, %v73
  %v112 = vpack.c.bf16 %v78, %v76
  %v113 = vpack.c.bf16 %v79, %v77
  %v114 = vpack.c.bf16 %v82, %v80
  %v115 = vpack.c.bf16 %v83, %v81
  %v116 = vld [vmem:[%s2] sm:$0x3]
  %v118 = vlaneseq
  %v119 = vshrl.u32 %v118, 7
  %v120 = vsub.s32 0, %v119
  %v121 = vrot.slane %v116, %v120
  %v122 = vlaneseq
  %v123 = vshrl.u32 %v122, 7
  %v124 = vsub.s32 1, %v123
  %v125 = vrot.slane %v116, %v124
  %128 = vmatprep.subr.bf16.mxu0 %v85
  %129 = vmatpush1.bf16.msra.mxu0 %v84
  %130 = vmatprep.subr.bf16.mxu0 %v87
  %131 = vmatpush1.bf16.msra.mxu0 %v86
  %132 = vmatprep.subr.bf16.mxu0 %v89
  %133 = vmatpush1.bf16.msra.mxu0 %v88
  %134 = vmatprep.subr.bf16.mxu0 %v91
  %135 = vmatpush1.bf16.msra.mxu0 %v90
  %136 = vmatprep.subr.bf16.mxu0 %v93
  %137 = vmatpush1.bf16.msra.mxu0 %v92
  %138 = vmatprep.subr.bf16.mxu0 %v95
  %139 = vmatpush1.bf16.msra.mxu0 %v94
  %140 = vmatprep.subr.bf16.mxu0 %v97
  %141 = vmatpush1.bf16.msra.mxu0 %v96
  %142 = vmatprep.subr.bf16.mxu0 %v99
  %143 = vmatpush1.bf16.msra.mxu0 %v98
  %144 = vmatprep.subr.bf16.mxu0 %v101
  %145 = vmatpush1.bf16.msra.mxu0 %v100
  %146 = vmatprep.subr.bf16.mxu0 %v103
  %147 = vmatpush1.bf16.msra.mxu0 %v102
  %148 = vmatprep.subr.bf16.mxu0 %v105
  %149 = vmatpush1.bf16.msra.mxu0 %v104
  %150 = vmatprep.subr.bf16.mxu0 %v107
  %151 = vmatpush1.bf16.msra.mxu0 %v106
  %152 = vmatprep.subr.bf16.mxu0 %v109
  %153 = vmatpush1.bf16.msra.mxu0 %v108
  %154 = vmatprep.subr.bf16.mxu0 %v111
  %155 = vmatpush1.bf16.msra.mxu0 %v110
  %156 = vmatprep.subr.bf16.mxu0 %v113
  %157 = vmatpush1.bf16.msra.mxu0 %v112
  %158 = vmatprep.subr.bf16.mxu0 %v115
  %159 = vmatpush1.bf16.msra.mxu0 %v114
  %160 = vmatprep.mubr.bf16.mxu0 %v19
  %161 = vmatmul.mubr.bf16.gmra.mrb[0].mxu0 %v18
  %v162 = vpop.f32.mrb[0].mxu0
  %v163 = vadd.f32 %v121, %v162
  %v164 = vpop.f32.mrb[0].mxu0
  %v165 = vadd.f32 %v125, %v164
  %v166 = vpop.f32.mrb[0].mxu0
  %v167 = vadd.f32 %v121, %v166
  %v168 = vpop.f32.mrb[0].mxu0
  %v169 = vadd.f32 %v125, %v168
  %170 = vdwg.mxu0
  %v171 = vmax.f32 %v163, 0.0
  %v172 = vmax.f32 %v165, 0.0
  %v173 = vmax.f32 %v167, 0.0
  %v174 = vmax.f32 %v169, 0.0
  %175 = vst [vmem:[%s3] sm:$0xff] %v171
  %176 = vst [vmem:[%s3 + $0x8] sm:$0xff] %v172
  %177 = vst [vmem:[%s3 + $0x10] sm:$0xff] %v173
  %178 = vst [vmem:[%s3 + $0x18] sm:$0xff] %v174
  // Predicated region
  $region14: #{net_forward.28} parent=0 // pred_check
    _
  $region15: #{net_forward.28} parent=0 // pred_check_branch
    %180 = sbr.rel (0) target = $region17
  $region16: #{net_forward.28} parent=0 // pred_region
    _
  $region17: #{net_forward.28} parent=0 // pred_fallthru
    _
  // Predicated region
  $region18: #{net_forward.28} parent=0 // pred_check
    _
  $region19: #{net_forward.28} parent=0 // pred_check_branch
    %182 = sbr.rel (0) target = $region21
  $region20: #{net_forward.28} parent=0 // pred_region
    _
  $region21: #{net_forward.28} parent=0 // pred_fallthru
    _

// kernel: net_forward.25
$region0: #{net_forward.25}
  #allocation0 [shape = 'u32[]', space=smem, size = 0x4, offset = 0x4, fixed_abs, tag = 'smem constant byte address 0x4 - core index']
  #allocation1 [shape = 'u32[144,128]{1,0:T(1,128)}', space=vmem, size = 0x12000, scoped, tag = 'internal scratch']
  #allocation2 [shape = 'f32[2,128]{1,0:T(2,128)}', space=vmem, size = 0x400, scoped, tag = 'scratch operand']
  #allocation3 [shape = 'f32[2,128]{1,0:T(2,128)}', space=vmem, size = 0x400, scoped, tag = 'scratch operand']
  %s0 = inlined_call_operand.vmem [shape: f32[8,2,1024], index: 0, kind: input, shape index: {}]
  %s1 = inlined_call_operand.vmem [shape: f32[2,128,512], index: 1, kind: input, shape index: {}]
  %s2 = inlined_call_operand.vmem [shape: f32[2,2,128], index: 2, kind: input, shape index: {}]
  %s3 = inlined_call_operand.vmem [shape: f32[2,2,128], index: 3, kind: input, shape index: {}]
  %s4 = inlined_call_operand.vmem [shape: s32[2,1], index: 4, kind: input, shape index: {}]
  %s5 = inlined_call_operand.vmem [shape: f32[8,2,256], index: 5, kind: output, shape index: {}]
  %s6 = sld [smem:[#allocation0]]
  $region135: #{net_forward.25} parent=0
    _
  %s8 = ssub.s32 1, %s6
  %s9 = scalar_select 0, %s8, %s6
  $region1: #{net_forward.25} parent=0
    #allocation4 [shape = 'u8[65536]{0}', space=vmem, size = 0x10000, scoped, tag = 'input window, operand 0']
    #allocation5 [shape = 'u8[16384]{0}', space=vmem, size = 0x4000, scoped, tag = 'output window, operand 0']
    loop: start=0, step=1, limit=4
    $region2: #{net_forward.25} parent=1 // loop_pre_header
      _
    $region3: #{net_forward.25} parent=1 // loop_header
      %s11 = sphi 0, %s15
      %p12 = scmp.ge.s32.totalorder %s11, 4
      %s21 = sphi 0, %s23
      %s24 = sphi 0, %s21
      %s25 = sphi 0, %s24
      %s41 = sphi 0, %s25
      %s47 = sphi 0, %s49
      %s50 = sphi 0, %s47
      %s51 = sphi 0, %s50
      %s67 = sphi 0, %s51
      %s73 = sphi 0, %s75
      %s76 = sphi 0, %s73
      %s77 = sphi 0, %s76
      %s93 = sphi 0, %s77
      %s99 = sphi 0, %s101
      %s102 = sphi 0, %s99
      %s103 = sphi 0, %s102
      %s119 = sphi 0, %s103
      %s123 = sphi 0, %s123
      %s125 = sphi 0, %s123
      %s126 = sphi 0, %s125
      %s140 = sphi 0, %s126
      %s146 = sphi 0, %s148
      %s149 = sphi 0, %s146
      %s150 = sphi 0, %s149
      %s166 = sphi 0, %s150
    $region4: #{net_forward.25} parent=1 // loop_header_branch
      %14 = sbr.rel (%p12) target = $region8
    $region5: #{net_forward.25} parent=1 // loop_body
      %s16 = ssub.s32 %s11, 1
      %s17 = ssub.s32 %s11, 2
      %s18 = sadd.s32 %s11, 1
      %s19 = ssub.s32 %s11, %s18
      %p20 = scmp.eq.s32.totalorder %s19, 0
      %s22 = sadd.s32 %s21, 1
      %s23 = scalar_select %p20, %s21, %s22
      %p26 = pneg %p20
      %p27 = scmp.eq.s32.totalorder %s11, 1
      %p28 = por %p26, %p27
      %p29 = scmp.ne.s32.totalorder %s21, %s24
      %p30 = scmp.eq.s32.totalorder %s11, 0
      %p31 = por %p29, %p30
      %p32 = scmp.ne.s32.totalorder %s21, %s24
      %p33 = scmp.eq.s32.totalorder %s16, 1
      %p34 = por %p32, %p33
      %p35 = scmp.ne.s32.totalorder %s24, %s25
      %p36 = scmp.eq.s32.totalorder %s16, 0
      %p37 = por %p35, %p36
      %p38 = scmp.ne.s32.totalorder %s24, %s25
      %p39 = scmp.eq.s32.totalorder %s17, 1
      %p40 = por %p38, %p39
      %p42 = scmp.ne.s32.totalorder %s25, %s41
      %p43 = scmp.eq.s32.totalorder %s17, 0
      %p44 = por %p42, %p43
      %s45 = ssub.s32 %s11, %s18
      %p46 = scmp.eq.s32.totalorder %s45, 0
      %s48 = sadd.s32 %s47, 1
      %s49 = scalar_select %p46, %s47, %s48
      %p52 = pneg %p46
      %p53 = scmp.eq.s32.totalorder %s11, 1
      %p54 = por %p52, %p53
      %p55 = scmp.ne.s32.totalorder %s47, %s50
      %p56 = scmp.eq.s32.totalorder %s11, 0
      %p57 = por %p55, %p56
      %p58 = scmp.ne.s32.totalorder %s47, %s50
      %p59 = scmp.eq.s32.totalorder %s16, 1
      %p60 = por %p58, %p59
      %p61 = scmp.ne.s32.totalorder %s50, %s51
      %p62 = scmp.eq.s32.totalorder %s16, 0
      %p63 = por %p61, %p62
      %p64 = scmp.ne.s32.totalorder %s50, %s51
      %p65 = scmp.eq.s32.totalorder %s17, 1
      %p66 = por %p64, %p65
      %p68 = scmp.ne.s32.totalorder %s51, %s67
      %p69 = scmp.eq.s32.totalorder %s17, 0
      %p70 = por %p68, %p69
      %s71 = ssub.s32 %s11, %s18
      %p72 = scmp.eq.s32.totalorder %s71, 0
      %s74 = sadd.s32 %s73, 1
      %s75 = scalar_select %p72, %s73, %s74
      %p78 = pneg %p72
      %p79 = scmp.eq.s32.totalorder %s11, 1
      %p80 = por %p78, %p79
      %p81 = scmp.ne.s32.totalorder %s73, %s76
      %p82 = scmp.eq.s32.totalorder %s11, 0
      %p83 = por %p81, %p82
      %p84 = scmp.ne.s32.totalorder %s73, %s76
      %p85 = scmp.eq.s32.totalorder %s16, 1
      %p86 = por %p84, %p85
      %p87 = scmp.ne.s32.totalorder %s76, %s77
      %p88 = scmp.eq.s32.totalorder %s16, 0
      %p89 = por %p87, %p88
      %p90 = scmp.ne.s32.totalorder %s76, %s77
      %p91 = scmp.eq.s32.totalorder %s17, 1
      %p92 = por %p90, %p91
      %p94 = scmp.ne.s32.totalorder %s77, %s93
      %p95 = scmp.eq.s32.totalorder %s17, 0
      %p96 = por %p94, %p95
      %s97 = ssub.s32 %s11, %s18
      %p98 = scmp.eq.s32.totalorder %s97, 0
      %s100 = sadd.s32 %s99, 1
      %s101 = scalar_select %p98, %s99, %s100
      %p104 = pneg %p98
      %p105 = scmp.eq.s32.totalorder %s11, 1
      %p106 = por %p104, %p105
      %p107 = scmp.ne.s32.totalorder %s99, %s102
      %p108 = scmp.eq.s32.totalorder %s11, 0
      %p109 = por %p107, %p108
      %p110 = scmp.ne.s32.totalorder %s99, %s102
      %p111 = scmp.eq.s32.totalorder %s16, 1
      %p112 = por %p110, %p111
      %p113 = scmp.ne.s32.totalorder %s102, %s103
      %p114 = scmp.eq.s32.totalorder %s16, 0
      %p115 = por %p113, %p114
      %p116 = scmp.ne.s32.totalorder %s102, %s103
      %p117 = scmp.eq.s32.totalorder %s17, 1
      %p118 = por %p116, %p117
      %p120 = scmp.ne.s32.totalorder %s103, %s119
      %p121 = scmp.eq.s32.totalorder %s17, 0
      %p122 = por %p120, %p121
      %s124 = sadd.s32 %s123, 1
      %p127 = scmp.eq.s32.totalorder %s11, 1
      %p128 = scmp.ne.s32.totalorder %s123, %s125
      %p129 = scmp.eq.s32.totalorder %s11, 0
      %p130 = por %p128, %p129
      %p131 = scmp.ne.s32.totalorder %s123, %s125
      %p132 = scmp.eq.s32.totalorder %s16, 1
      %p133 = por %p131, %p132
      %p134 = scmp.ne.s32.totalorder %s125, %s126
      %p135 = scmp.eq.s32.totalorder %s16, 0
      %p136 = por %p134, %p135
      %p137 = scmp.ne.s32.totalorder %s125, %s126
      %p138 = scmp.eq.s32.totalorder %s17, 1
      %p139 = por %p137, %p138
      %p141 = scmp.ne.s32.totalorder %s126, %s140
      %p142 = scmp.eq.s32.totalorder %s17, 0
      %p143 = por %p141, %p142
      %s144 = ssub.s32 %s11, %s18
      %p145 = scmp.eq.s32.totalorder %s144, 0
      %s147 = sadd.s32 %s146, 1
      %s148 = scalar_select %p145, %s146, %s147
      %p151 = pneg %p145
      %p152 = scmp.eq.s32.totalorder %s11, 1
      %p153 = por %p151, %p152
      %p154 = scmp.ne.s32.totalorder %s146, %s149
      %p155 = scmp.eq.s32.totalorder %s11, 0
      %p156 = por %p154, %p155
      %p157 = scmp.ne.s32.totalorder %s146, %s149
      %p158 = scmp.eq.s32.totalorder %s16, 1
      %p159 = por %p157, %p158
      %p160 = scmp.ne.s32.totalorder %s149, %s150
      %p161 = scmp.eq.s32.totalorder %s16, 0
      %p162 = por %p160, %p161
      %p163 = scmp.ne.s32.totalorder %s149, %s150
      %p164 = scmp.eq.s32.totalorder %s17, 1
      %p165 = por %p163, %p164
      %p167 = scmp.ne.s32.totalorder %s150, %s166
      %p168 = scmp.eq.s32.totalorder %s17, 0
      %p169 = por %p167, %p168
      %p170 = scmp.le.s32.totalorder 1, %s11
      %p171 = scmp.lt.s32.totalorder %s11, 3
      %p172 = pnand %p170, %p171
      %p173 = pneg %p172
      // Predicated region
      $region9: #{net_forward.25} parent=5 // pred_check
        _
      $region10: #{net_forward.25} parent=5 // pred_check_branch
        %175 = sbr.rel (%p172) target = $region12
      $region11: #{net_forward.25} parent=5 // pred_region
        %s176 = ssub.s32 %s11, 1
        // Predicated region
        $region13: #{net_forward.25} parent=11 // pred_check
          %p177 = pneg %p136
        $region14: #{net_forward.25} parent=11 // pred_check_branch
          %179 = sbr.rel (%p177) target = $region16
        $region15: #{net_forward.25} parent=11 // pred_region
          _
        $region16: #{net_forward.25} parent=11 // pred_fallthru
          _
      $region12: #{net_forward.25} parent=5 // pred_fallthru
        _
      %p180 = scmp.lt.s32.totalorder %s11, 2
      // Predicated region
      $region17: #{net_forward.25} parent=5 // pred_check
        %p181 = pneg %p180
      $region18: #{net_forward.25} parent=5 // pred_check_branch
        %183 = sbr.rel (%p181) target = $region20
      $region19: #{net_forward.25} parent=5 // pred_region
        // Predicated region
        $region21: #{net_forward.25} parent=19 // pred_check
          %p184 = pneg %p31
        $region22: #{net_forward.25} parent=19 // pred_check_branch
          %186 = sbr.rel (%p184) target = $region24
        $region23: #{net_forward.25} parent=19 // pred_region
          %s187 = sand.u32 %s21, 1
          %s188 = sand.u32 %s21, 1
          %s189 = smul.addr %s188, 64
          %s190 = scalar_lea.vmem [#allocation4], %s189
          %s191 = smul.u32 4, %s11
          %s192 = smul.addr %s191, 2
          %s193 = scalar_lea.vmem %s0, %s192
          // Predicated region
          $region25: #{net_forward.25} parent=23 // pred_check
            _
          $region26: #{net_forward.25} parent=23 // pred_check_branch
            %195 = sbr.rel (0) target = $region28
          $region27: #{net_forward.25} parent=23 // pred_region
            // Predicated region
            $region29: #{net_forward.25} parent=27 // pred_check
              _
            $region30: #{net_forward.25} parent=27 // pred_check_branch
              %197 = sbr.rel (0) target = $region32
            $region31: #{net_forward.25} parent=27 // pred_region
              // Predicated region
              $region44: #{net_forward.25} parent=31 // pred_check
                _
              $region45: #{net_forward.25} parent=31 // pred_check_branch
                %226 = sbr.rel (0) target = $region47
              $region46: #{net_forward.25} parent=31 // pred_region
                loop: start=0, step=1, limit=1
                $region48: #{net_forward.25} parent=46 // loop_pre_header
                  _
                $region49: #{net_forward.25} parent=46 // loop_header
                  %s228 = sphi 0, %s232
                  %p229 = scmp.ge.s32.totalorder %s228, 1
                  %s233 = sphi %s193, %s193
                  %s234 = sphi %s190, %s190
                $region50: #{net_forward.25} parent=46 // loop_header_branch
                  %231 = sbr.rel (%p229) target = $region54
                $region51: #{net_forward.25} parent=46 // loop_body
                  %v235 = vld [vmem:[%s233] sm:$0xff]
                  %236 = vst [vmem:[%s234] sm:$0xff] %v235
                  %v237 = vld [vmem:[%s233 + $0x10] sm:$0xff]
                  %238 = vst [vmem:[%s234 + $0x8] sm:$0xff] %v237
                  %v239 = vld [vmem:[%s233 + $0x20] sm:$0xff]
                  %240 = vst [vmem:[%s234 + $0x10] sm:$0xff] %v239
                  %v241 = vld [vmem:[%s233 + $0x30] sm:$0xff]
                  %242 = vst [vmem:[%s234 + $0x18] sm:$0xff] %v241
                  %v243 = vld [vmem:[%s233 + $0x40] sm:$0xff]
                  %244 = vst [vmem:[%s234 + $0x20] sm:$0xff] %v243
                  %v245 = vld [vmem:[%s233 + $0x50] sm:$0xff]
                  %246 = vst [vmem:[%s234 + $0x28] sm:$0xff] %v245
                  %v247 = vld [vmem:[%s233 + $0x60] sm:$0xff]
                  %248 = vst [vmem:[%s234 + $0x30] sm:$0xff] %v247
                  %v249 = vld [vmem:[%s233 + $0x70] sm:$0xff]
                  %250 = vst [vmem:[%s234 + $0x38] sm:$0xff] %v249
                $region52: #{net_forward.25} parent=46 // loop_footer
                  %s232 = sadd.s32 1, %s228
                $region53: #{net_forward.25} parent=46 // loop_footer_branch
                  %227 = sbr.rel target = $region49
                $region54: #{net_forward.25} parent=46 // loop_exit
                  _
              $region47: #{net_forward.25} parent=31 // pred_fallthru
                _
              // Predicated region
              $region55: #{net_forward.25} parent=31 // pred_check
                _
              $region56: #{net_forward.25} parent=31 // pred_check_branch
                %252 = sbr.rel target = $region58
              $region57: #{net_forward.25} parent=31 // pred_region
                _
              $region58: #{net_forward.25} parent=31 // pred_fallthru
                _
            $region32: #{net_forward.25} parent=27 // pred_fallthru
              _
            // Predicated region
            $region33: #{net_forward.25} parent=27 // pred_check
              _
            $region34: #{net_forward.25} parent=27 // pred_check_branch
              %199 = sbr.rel target = $region36
            $region35: #{net_forward.25} parent=27 // pred_region
              loop: start=0, step=1, limit=1
              $region37: #{net_forward.25} parent=35 // loop_pre_header
                _
              $region38: #{net_forward.25} parent=35 // loop_header
                %s202 = sphi 0, %s206
                %p203 = scmp.ge.s32.totalorder %s202, 1
                %s207 = sphi %s193, %s193
                %s208 = sphi %s190, %s190
              $region39: #{net_forward.25} parent=35 // loop_header_branch
                %205 = sbr.rel (%p203) target = $region43
              $region40: #{net_forward.25} parent=35 // loop_body
                %v209 = vld [vmem:[%s207] sm:$0xff]
                %210 = vst [vmem:[%s208] sm:$0xff] %v209
                %v211 = vld [vmem:[%s207 + $0x10] sm:$0xff]
                %212 = vst [vmem:[%s208 + $0x8] sm:$0xff] %v211
                %v213 = vld [vmem:[%s207 + $0x20] sm:$0xff]
                %214 = vst [vmem:[%s208 + $0x10] sm:$0xff] %v213
                %v215 = vld [vmem:[%s207 + $0x30] sm:$0xff]
                %216 = vst [vmem:[%s208 + $0x18] sm:$0xff] %v215
                %v217 = vld [vmem:[%s207 + $0x40] sm:$0xff]
                %218 = vst [vmem:[%s208 + $0x20] sm:$0xff] %v217
                %v219 = vld [vmem:[%s207 + $0x50] sm:$0xff]
                %220 = vst [vmem:[%s208 + $0x28] sm:$0xff] %v219
                %v221 = vld [vmem:[%s207 + $0x60] sm:$0xff]
                %222 = vst [vmem:[%s208 + $0x30] sm:$0xff] %v221
                %v223 = vld [vmem:[%s207 + $0x70] sm:$0xff]
                %224 = vst [vmem:[%s208 + $0x38] sm:$0xff] %v223
              $region41: #{net_forward.25} parent=35 // loop_footer
                %s206 = sadd.s32 1, %s202
              $region42: #{net_forward.25} parent=35 // loop_footer_branch
                %201 = sbr.rel target = $region38
              $region43: #{net_forward.25} parent=35 // loop_exit
                _
            $region36: #{net_forward.25} parent=27 // pred_fallthru
              _
          $region28: #{net_forward.25} parent=23 // pred_fallthru
            _
          %253 = vnop
        $region24: #{net_forward.25} parent=19 // pred_fallthru
          _
        // Predicated region
        $region59: #{net_forward.25} parent=19 // pred_check
          %p254 = pneg %p57
        $region60: #{net_forward.25} parent=19 // pred_check_branch
          %256 = sbr.rel (%p254) target = $region62
        $region61: #{net_forward.25} parent=19 // pred_region
          %p257 = scmp.lt.s32.totalorder %s11, 1
          %s258 = scalar_select %p257, %s11, 1
          %s259 = smul.addr %s258, 64
          %s260 = smul.addr %s259, 8
          %s261 = scalar_lea.vmem %s1, %s260
        $region62: #{net_forward.25} parent=19 // pred_fallthru
          _
        // Predicated region
        $region63: #{net_forward.25} parent=19 // pred_check
          %p262 = pneg %p83
        $region64: #{net_forward.25} parent=19 // pred_check_branch
          %264 = sbr.rel (%p262) target = $region66
        $region65: #{net_forward.25} parent=19 // pred_region
          %p265 = scmp.lt.s32.totalorder %s11, 1
          %s266 = scalar_select %p265, %s11, 1
          %s267 = smul.addr %s266, 2
          %s268 = scalar_lea.vmem %s2, %s267
        $region66: #{net_forward.25} parent=19 // pred_fallthru
          _
        // Predicated region
        $region67: #{net_forward.25} parent=19 // pred_check
          %p269 = pneg %p109
        $region68: #{net_forward.25} parent=19 // pred_check_branch
          %271 = sbr.rel (%p269) target = $region70
        $region69: #{net_forward.25} parent=19 // pred_region
          %p272 = scmp.lt.s32.totalorder %s11, 1
          %s273 = scalar_select %p272, %s11, 1
          %s274 = smul.addr %s273, 2
          %s275 = scalar_lea.vmem %s3, %s274
        $region70: #{net_forward.25} parent=19 // pred_fallthru
          _
      $region20: #{net_forward.25} parent=5 // pred_fallthru
        _
      %p276 = scmp.le.s32.totalorder 1, %s11
      %p277 = scmp.lt.s32.totalorder %s11, 3
      %p278 = pnand %p276, %p277
      %p279 = pneg %p278
      // Predicated region
      $region71: #{net_forward.25} parent=5 // pred_check
        _
      $region72: #{net_forward.25} parent=5 // pred_check_branch
        %281 = sbr.rel (%p278) target = $region74
      $region73: #{net_forward.25} parent=5 // pred_region
        %s282 = ssub.s32 %s11, 1
        %s283 = sand.u32 %s24, 1
        %s284 = sand.u32 %s24, 1
        %s285 = smul.addr %s284, 64
        %s286 = scalar_lea.vmem [#allocation4], %s285
        // Predicated region
        $region75: #{net_forward.25} parent=73 // pred_check
          %p287 = pneg %p37
        $region76: #{net_forward.25} parent=73 // pred_check_branch
          %289 = sbr.rel (%p287) target = $region78
        $region77: #{net_forward.25} parent=73 // pred_region
          _
        $region78: #{net_forward.25} parent=73 // pred_fallthru
          _
        %s290 = sand.u32 %s24, 1
        %s291 = sand.u32 %s24, 1
        %s292 = smul.addr %s291, 64
        %s293 = scalar_lea.vmem [#allocation4], %s292
        %p294 = pneg %p37
        %p295 = pneg %p34
        %p296 = scmp.lt.s32.totalorder %s16, 1
        %s297 = scalar_select %p296, %s16, 1
        %s298 = smul.addr %s297, 64
        %s299 = smul.addr %s298, 8
        %s300 = scalar_lea.vmem %s1, %s299
        %p301 = pneg %p63
        %p302 = pneg %p60
        %p303 = scmp.lt.s32.totalorder %s16, 1
        %s304 = scalar_select %p303, %s16, 1
        %s305 = smul.addr %s304, 2
        %s306 = scalar_lea.vmem %s2, %s305
        %p307 = pneg %p89
        %p308 = pneg %p86
        %p309 = scmp.lt.s32.totalorder %s16, 1
        %s310 = scalar_select %p309, %s16, 1
        %s311 = smul.addr %s310, 2
        %s312 = scalar_lea.vmem %s3, %s311
        %p313 = pneg %p115
        %p314 = pneg %p112
        %p315 = pneg %p136
        %p316 = pneg %p133
        %p317 = pneg %p162
        %p318 = pneg %p159
        %s319 = sand.u32 %s149, 1
        %s320 = sand.u32 %s149, 1
        %s321 = smul.addr %s320, 16
        %s322 = scalar_lea.vmem [#allocation5], %s321
        %s323 = smul.u32 4, %s16
        %p324 = scmp.lt.s32.totalorder %s16, 1
        %s325 = scalar_select %p324, %s16, 1
        %s326 = smul.addr %s325, 64
        %s327 = smul.addr %s326, 8
        %s328 = scalar_lea.vmem %s1, %s327
        %p329 = scmp.lt.s32.totalorder %s16, 1
        %s330 = scalar_select %p329, %s16, 1
        %s331 = smul.addr %s330, 2
        %s332 = scalar_lea.vmem %s2, %s331
        %p333 = scmp.lt.s32.totalorder %s16, 1
        %s334 = scalar_select %p333, %s16, 1
        %s335 = smul.addr %s334, 2
        %s336 = scalar_lea.vmem %s3, %s335
        %v338 = vld [vmem:[%s332] sm:$0x3]
        %339 = vst [vmem:[#allocation2] sm:$0x3] %v338
        %v340 = vld [vmem:[%s336] sm:$0x3]
        %341 = vst [vmem:[#allocation3] sm:$0x3] %v340
        %v342 = vld [vmem:[%s328] sm:$0xff]
        %v343 = vld [vmem:[%s328 + $0x8] sm:$0xff]
        %v344 = vld [vmem:[%s328 + $0x10] sm:$0xff]
        %v345 = vld [vmem:[%s328 + $0x18] sm:$0xff]
        %v346 = vld [vmem:[%s328 + $0x20] sm:$0xff]
        %v347 = vld [vmem:[%s328 + $0x28] sm:$0xff]
        %v348 = vld [vmem:[%s328 + $0x30] sm:$0xff]
        %v349 = vld [vmem:[%s328 + $0x38] sm:$0xff]
        %v350 = vld [vmem:[%s328 + $0x40] sm:$0xff]
        %v351 = vld [vmem:[%s328 + $0x48] sm:$0xff]
        %v352 = vld [vmem:[%s328 + $0x50] sm:$0xff]
        %v353 = vld [vmem:[%s328 + $0x58] sm:$0xff]
        %v354 = vld [vmem:[%s328 + $0x60] sm:$0xff]
        %v355 = vld [vmem:[%s328 + $0x68] sm:$0xff]
        %v356 = vld [vmem:[%s328 + $0x70] sm:$0xff]
        %v357 = vld [vmem:[%s328 + $0x78] sm:$0xff]
        %v358 = vld [vmem:[%s328 + $0x80] sm:$0xff]
        %v359 = vld [vmem:[%s328 + $0x88] sm:$0xff]
        %v360 = vld [vmem:[%s328 + $0x90] sm:$0xff]
        %v361 = vld [vmem:[%s328 + $0x98] sm:$0xff]
        %v362 = vld [vmem:[%s328 + $0xa0] sm:$0xff]
        %v363 = vld [vmem:[%s328 + $0xa8] sm:$0xff]
        %v364 = vld [vmem:[%s328 + $0xb0] sm:$0xff]
        %v365 = vld [vmem:[%s328 + $0xb8] sm:$0xff]
        %v366 = vld [vmem:[%s328 + $0xc0] sm:$0xff]
        %v367 = vld [vmem:[%s328 + $0xc8] sm:$0xff]
        %v368 = vld [vmem:[%s328 + $0xd0] sm:$0xff]
        %v369 = vld [vmem:[%s328 + $0xd8] sm:$0xff]
        %v370 = vld [vmem:[%s328 + $0xe0] sm:$0xff]
        %v371 = vld [vmem:[%s328 + $0xe8] sm:$0xff]
        %v372 = vld [vmem:[%s328 + $0xf0] sm:$0xff]
        %v373 = vld [vmem:[%s328 + $0xf8] sm:$0xff]
        %v374 = vld [vmem:[%s328 + $0x100] sm:$0xff]
        %v375 = vld [vmem:[%s328 + $0x108] sm:$0xff]
        %v376 = vld [vmem:[%s328 + $0x110] sm:$0xff]
        %v377 = vld [vmem:[%s328 + $0x118] sm:$0xff]
        %v378 = vld [vmem:[%s328 + $0x120] sm:$0xff]
        %v379 = vld [vmem:[%s328 + $0x128] sm:$0xff]
        %v380 = vld [vmem:[%s328 + $0x130] sm:$0xff]
        %v381 = vld [vmem:[%s328 + $0x138] sm:$0xff]
        %v382 = vld [vmem:[%s328 + $0x140] sm:$0xff]
        %v383 = vld [vmem:[%s328 + $0x148] sm:$0xff]
        %v384 = vld [vmem:[%s328 + $0x150] sm:$0xff]
        %v385 = vld [vmem:[%s328 + $0x158] sm:$0xff]
        %v386 = vld [vmem:[%s328 + $0x160] sm:$0xff]
        %v387 = vld [vmem:[%s328 + $0x168] sm:$0xff]
        %v388 = vld [vmem:[%s328 + $0x170] sm:$0xff]
        %v389 = vld [vmem:[%s328 + $0x178] sm:$0xff]
        %v390 = vld [vmem:[%s328 + $0x180] sm:$0xff]
        %v391 = vld [vmem:[%s328 + $0x188] sm:$0xff]
        %v392 = vld [vmem:[%s328 + $0x190] sm:$0xff]
        %v393 = vld [vmem:[%s328 + $0x198] sm:$0xff]
        %v394 = vld [vmem:[%s328 + $0x1a0] sm:$0xff]
        %v395 = vld [vmem:[%s328 + $0x1a8] sm:$0xff]
        %v396 = vld [vmem:[%s328 + $0x1b0] sm:$0xff]
        %v397 = vld [vmem:[%s328 + $0x1b8] sm:$0xff]
        %v398 = vld [vmem:[%s328 + $0x1c0] sm:$0xff]
        %v399 = vld [vmem:[%s328 + $0x1c8] sm:$0xff]
        %v400 = vld [vmem:[%s328 + $0x1d0] sm:$0xff]
        %v401 = vld [vmem:[%s328 + $0x1d8] sm:$0xff]
        %v402 = vld [vmem:[%s328 + $0x1e0] sm:$0xff]
        %v403 = vld [vmem:[%s328 + $0x1e8] sm:$0xff]
        %v404 = vld [vmem:[%s328 + $0x1f0] sm:$0xff]
        %v405 = vld [vmem:[%s328 + $0x1f8] sm:$0xff]
        %v406 = vpack.c.bf16 %v346, %v342
        %v407 = vpack.c.bf16 %v347, %v343
        %v408 = vpack.c.bf16 %v348, %v344
        %v409 = vpack.c.bf16 %v349, %v345
        %v410 = vpack.c.bf16 %v354, %v350
        %v411 = vpack.c.bf16 %v355, %v351
        %v412 = vpack.c.bf16 %v356, %v352
        %v413 = vpack.c.bf16 %v357, %v353
        %v414 = vpack.c.bf16 %v362, %v358
        %v415 = vpack.c.bf16 %v363, %v359
        %v416 = vpack.c.bf16 %v364, %v360
        %v417 = vpack.c.bf16 %v365, %v361
        %v418 = vpack.c.bf16 %v370, %v366
        %v419 = vpack.c.bf16 %v371, %v367
        %v420 = vpack.c.bf16 %v372, %v368
        %v421 = vpack.c.bf16 %v373, %v369
        %v422 = vpack.c.bf16 %v378, %v374
        %v423 = vpack.c.bf16 %v379, %v375
        %v424 = vpack.c.bf16 %v380, %v376
        %v425 = vpack.c.bf16 %v381, %v377
        %v426 = vpack.c.bf16 %v386, %v382
        %v427 = vpack.c.bf16 %v387, %v383
        %v428 = vpack.c.bf16 %v388, %v384
        %v429 = vpack.c.bf16 %v389, %v385
        %v430 = vpack.c.bf16 %v394, %v390
        %v431 = vpack.c.bf16 %v395, %v391
        %v432 = vpack.c.bf16 %v396, %v392
        %v433 = vpack.c.bf16 %v397, %v393
        %v434 = vpack.c.bf16 %v402, %v398
        %v435 = vpack.c.bf16 %v403, %v399
        %v436 = vpack.c.bf16 %v404, %v400
        %v437 = vpack.c.bf16 %v405, %v401
        %v438 = vld [vmem:[%s4] sm:$0x3]
        loop: start=0, step=1, limit=8
        $region79: #{net_forward.25} parent=73 // loop_pre_header
          _
        $region80: #{net_forward.25} parent=73 // loop_header
          %s440 = sphi 0, %s444
          %p441 = scmp.ge.s32.totalorder %s440, 8
        $region81: #{net_forward.25} parent=73 // loop_header_branch
          %443 = sbr.rel (%p441) target = $region85
        $region82: #{net_forward.25} parent=73 // loop_body
          %p445 = scmp.eq.s32.totalorder %s16, 0
          %s446 = ssub.s32 7, %s440
          %s447 = scalar_select %p445, %s440, %s446
          %s448 = smul.u32 %s447, 4
          %s449 = smul.addr %s448, 2
          %s450 = scalar_lea.vmem %s286, %s449 [#allocation4]
          %v451 = vld [vmem:[%s450] sm:$0xff]
          %v452 = vld [vmem:[#allocation2] sm:$0x3]
          %v453 = vld [vmem:[#allocation3] sm:$0x3]
          %v454 = vpack.c.bf16 %v452, %v452
          %455 = vmatprep.subr.bf16.mxu0 %v407
          %456 = vmatpush1.bf16.msra.mxu0 %v406
          %457 = vmatprep.subr.bf16.mxu0 %v411
          %458 = vmatpush1.bf16.msra.mxu0 %v410
          %459 = vmatprep.subr.bf16.mxu0 %v415
          %460 = vmatpush1.bf16.msra.mxu0 %v414
          %461 = vmatprep.subr.bf16.mxu0 %v419
          %462 = vmatpush1.bf16.msra.mxu0 %v418
          %463 = vmatprep.subr.bf16.mxu0 %v423
          %464 = vmatpush1.bf16.msra.mxu0 %v422
          %465 = vmatprep.subr.bf16.mxu0 %v427
          %466 = vmatpush1.bf16.msra.mxu0 %v426
          %467 = vmatprep.subr.bf16.mxu0 %v431
          %468 = vmatpush1.bf16.msra.mxu0 %v430
          %469 = vmatprep.subr.bf16.mxu0 %v435
          %470 = vmatpush1.bf16.msra.mxu0 %v434
          %471 = vmatprep.subr.bf16.mxu0 0
          %472 = vmatpush1.bf16.msra.mxu0 0
          %473 = vmatprep.subr.bf16.mxu0 0
          %474 = vmatpush1.bf16.msra.mxu0 0
          %475 = vmatprep.subr.bf16.mxu0 0
          %476 = vmatpush1.bf16.msra.mxu0 0
          %477 = vmatprep.subr.bf16.mxu0 0
          %478 = vmatpush1.bf16.msra.mxu0 0
          %479 = vmatprep.subr.bf16.mxu0 0
          %480 = vmatpush1.bf16.msra.mxu0 0
          %481 = vmatprep.subr.bf16.mxu0 0
          %482 = vmatpush1.bf16.msra.mxu0 0
          %483 = vmatprep.subr.bf16.mxu0 0
          %484 = vmatpush1.bf16.msra.mxu0 0
          %485 = vmatprep.subr.bf16.mxu0 0
          %486 = vmatpush1.bf16.msra.mxu0 0
          %487 = vmatprep.mubr.bf16.mxu0 0
          %488 = vmatmul.mubr.bf16.gmra.mrb[0].mxu0 %v454
          %v489 = vpop.f32.mrb[0].mxu0
          %v490 = vadd.f32 0.0, %v489
          %v491 = vpop.f32.mrb[0].mxu0
          %v492 = vadd.f32 0.0, %v491
          %v493 = vpop.f32.mrb[0].mxu0
          %v494 = vpop.f32.mrb[0].mxu0
          %495 = vdwg.mxu0
          %496 = vmatprep.subr.bf16.mxu0 %v409
          %497 = vmatpush1.bf16.msra.mxu0 %v408
          %498 = vmatprep.subr.bf16.mxu0 %v413
          %499 = vmatpush1.bf16.msra.mxu0 %v412
          %500 = vmatprep.subr.bf16.mxu0 %v417
          %501 = vmatpush1.bf16.msra.mxu0 %v416
          %502 = vmatprep.subr.bf16.mxu0 %v421
          %503 = vmatpush1.bf16.msra.mxu0 %v420
          %504 = vmatprep.subr.bf16.mxu0 %v425
          %505 = vmatpush1.bf16.msra.mxu0 %v424
          %506 = vmatprep.subr.bf16.mxu0 %v429
          %507 = vmatpush1.bf16.msra.mxu0 %v428
          %508 = vmatprep.subr.bf16.mxu0 %v433
          %509 = vmatpush1.bf16.msra.mxu0 %v432
          %510 = vmatprep.subr.bf16.mxu0 %v437
          %511 = vmatpush1.bf16.msra.mxu0 %v436
          %512 = vmatprep.subr.bf16.mxu0 0
          %513 = vmatpush1.bf16.msra.mxu0 0
          %514 = vmatprep.subr.bf16.mxu0 0
          %515 = vmatpush1.bf16.msra.mxu0 0
          %516 = vmatprep.subr.bf16.mxu0 0
          %517 = vmatpush1.bf16.msra.mxu0 0
          %518 = vmatprep.subr.bf16.mxu0 0
          %519 = vmatpush1.bf16.msra.mxu0 0
          %520 = vmatprep.subr.bf16.mxu0 0
          %521 = vmatpush1.bf16.msra.mxu0 0
          %522 = vmatprep.subr.bf16.mxu0 0
          %523 = vmatpush1.bf16.msra.mxu0 0
          %524 = vmatprep.subr.bf16.mxu0 0
          %525 = vmatpush1.bf16.msra.mxu0 0
          %526 = vmatprep.subr.bf16.mxu0 0
          %527 = vmatpush1.bf16.msra.mxu0 0
          %528 = vmatprep.mubr.bf16.mxu0 0
          %529 = vmatmul.mubr.bf16.gmra.mrb[0].mxu0 %v454
          %v530 = vpop.f32.mrb[0].mxu0
          %v531 = vadd.f32 0.0, %v530
          %v532 = vpop.f32.mrb[0].mxu0
          %v533 = vadd.f32 0.0, %v532
          %v534 = vpop.f32.mrb[0].mxu0
          %v535 = vpop.f32.mrb[0].mxu0
          %536 = vdwg.mxu0
          %v541 = vcombine.low %v490, %v492
          %v542 = vcombine.low %v531, %v533
          %v544 = vunpack.c.l.s4 1983009808
          %v545 = vunpack.c.0.s8 %v544
          %v546 = vlaneseq
          %v547 = vshrl.u32 %v546, 7
          %v548 = vsub.s32 %v545, %v547
          %v549 = vrot.slane %v541, %v548
          %v551 = vunpack.c.l.s4 1983009808
          %v552 = vunpack.c.0.s8 %v551
          %v553 = vlaneseq
          %v554 = vshrl.u32 %v553, 7
          %v555 = vsub.s32 %v552, %v554
          %v556 = vrot.slane %v542, %v555
          %v557 = vcombine.low %v549, %v556
          %v559 = vadd.f32 %v451, %v557
          %v560 = vxor.u32 %v559, 2147483648
          %v561 = vmul.f32 %v560, 1.442695
          %v562 = vpow.pop %v561
          %v563 = vadd.f32 %v562, 1.0
          %v564 = vrcp.pop %v563
          %v565 = vmul.f32 1.0, %v564
          %v567 = vrot.slane %v559, 2
          %v569 = vxor.u32 %v567, 2147483648
          %v570 = vmul.f32 %v569, 1.442695
          %v571 = vpow.pop %v570
          %v572 = vadd.f32 %v571, 1.0
          %v573 = vrcp.pop %v572
          %v574 = vmul.f32 1.0, %v573
          %v575 = vrot.slane %v559, 4
          %v577 = vtanh.pop %v575
          %v578 = vrot.slane %v559, 6
          %v580 = vxor.u32 %v578, 2147483648
          %v581 = vmul.f32 %v580, 1.442695
          %v582 = vpow.pop %v581
          %v583 = vadd.f32 %v582, 1.0
          %v584 = vrcp.pop %v583
          %v585 = vmul.f32 1.0, %v584
          %v586 = vmul.f32 %v574, %v453
          %v587 = vmul.f32 %v565, %v577
          %v588 = vadd.f32 %v586, %v587
          %v589 = vtanh.pop %v588
          %v590 = vmul.f32 %v585, %v589
          %v591 = vstv %s447
          %vm592 = vcmp.lt.s32.totalorder %v591, %v438
          %v593 = vsel %vm592, 1, 0
          %v594 = vcvt.s32.f32 %v593
          %596 = vset.pattern.permute.xlu0 0
          %597 = vperm.xlu0 %596, %v594
          %v598 = vpop.permute.xlu0 %597
          %v600 = vmul.f32 %v598, %v590
          %v601 = vsub.f32 1.0, %v594
          %603 = vset.pattern.permute.xlu0 0
          %604 = vperm.xlu0 %603, %v601
          %v605 = vpop.permute.xlu0 %604
          %v607 = vmul.f32 %v605, %v452
          %v608 = vadd.f32 %v600, %v607
          %609 = vst [vmem:[#allocation2] sm:$0x3] %v608
          %v610 = vmul.f32 %v598, %v588
          %v611 = vmul.f32 %v605, %v453
          %v612 = vadd.f32 %v610, %v611
          %613 = vst [vmem:[#allocation3] sm:$0x3] %v612
          %s614 = smul.u32 %s447, 2
          %s615 = scalar_lea.vmem %s322, %s614 [#allocation5]
          %616 = vst [vmem:[%s615] sm:$0x3] %v600
        $region83: #{net_forward.25} parent=73 // loop_footer
          %s444 = sadd.s32 1, %s440
        $region84: #{net_forward.25} parent=73 // loop_footer_branch
          %439 = sbr.rel target = $region80
        $region85: #{net_forward.25} parent=73 // loop_exit
          _
        %s617 = sand.u32 %s149, 1
        %s618 = sand.u32 %s149, 1
        %s619 = smul.addr %s618, 16
        %s620 = scalar_lea.vmem [#allocation5], %s619
        // Predicated region
        $region86: #{net_forward.25} parent=73 // pred_check
          %p621 = pneg %p159
        $region87: #{net_forward.25} parent=73 // pred_check_branch
          %623 = sbr.rel (%p621) target = $region89
        $region88: #{net_forward.25} parent=73 // pred_region
          %s624 = smul.addr %s16, 2
          %s625 = scalar_lea.vmem %s5, %s624
          // Predicated region
          $region90: #{net_forward.25} parent=88 // pred_check
            _
          $region91: #{net_forward.25} parent=88 // pred_check_branch
            %627 = sbr.rel (0) target = $region93
          $region92: #{net_forward.25} parent=88 // pred_region
            // Predicated region
            $region94: #{net_forward.25} parent=92 // pred_check
              _
            $region95: #{net_forward.25} parent=92 // pred_check_branch
              %629 = sbr.rel target = $region97
            $region96: #{net_forward.25} parent=92 // pred_region
              // Predicated region
              $region109: #{net_forward.25} parent=96 // pred_check
                _
              $region110: #{net_forward.25} parent=96 // pred_check_branch
                %658 = sbr.rel (0) target = $region112
              $region111: #{net_forward.25} parent=96 // pred_region
                loop: start=0, step=1, limit=1
                $region113: #{net_forward.25} parent=111 // loop_pre_header
                  _
                $region114: #{net_forward.25} parent=111 // loop_header
                  %s660 = sphi 0, %s664
                  %p661 = scmp.ge.s32.totalorder %s660, 1
                  %s665 = sphi %s620, %s620
                  %s666 = sphi %s625, %s625
                $region115: #{net_forward.25} parent=111 // loop_header_branch
                  %663 = sbr.rel (%p661) target = $region119
                $region116: #{net_forward.25} parent=111 // loop_body
                  _
                $region117: #{net_forward.25} parent=111 // loop_footer
                  %s664 = sadd.s32 1, %s660
                $region118: #{net_forward.25} parent=111 // loop_footer_branch
                  %659 = sbr.rel target = $region114
                $region119: #{net_forward.25} parent=111 // loop_exit
                  _
                loop: start=0, step=1, limit=1
                $region120: #{net_forward.25} parent=111 // loop_pre_header
                  _
                $region121: #{net_forward.25} parent=111 // loop_header
                  %s669 = sphi 0, %s673
                  %p670 = scmp.ge.s32.totalorder %s669, 1
                  %s674 = sphi %s620, %s620
                  %s675 = sphi %s625, %s625
                $region122: #{net_forward.25} parent=111 // loop_header_branch
                  %672 = sbr.rel (%p670) target = $region126
                $region123: #{net_forward.25} parent=111 // loop_body
                  %v676 = vld [vmem:[%s674] sm:$0x3]
                  %677 = vst [vmem:[%s675] sm:$0x3] %v676
                  %v678 = vld [vmem:[%s674 + $0x2] sm:$0x3]
                  %679 = vst [vmem:[%s675 + $0x4] sm:$0x3] %v678
                  %v680 = vld [vmem:[%s674 + $0x4] sm:$0x3]
                  %681 = vst [vmem:[%s675 + $0x8] sm:$0x3] %v680
                  %v682 = vld [vmem:[%s674 + $0x6] sm:$0x3]
                  %683 = vst [vmem:[%s675 + $0xc] sm:$0x3] %v682
                  %v684 = vld [vmem:[%s674 + $0x8] sm:$0x3]
                  %685 = vst [vmem:[%s675 + $0x10] sm:$0x3] %v684
                  %v686 = vld [vmem:[%s674 + $0xa] sm:$0x3]
                  %687 = vst [vmem:[%s675 + $0x14] sm:$0x3] %v686
                  %v688 = vld [vmem:[%s674 + $0xc] sm:$0x3]
                  %689 = vst [vmem:[%s675 + $0x18] sm:$0x3] %v688
                  %v690 = vld [vmem:[%s674 + $0xe] sm:$0x3]
                  %691 = vst [vmem:[%s675 + $0x1c] sm:$0x3] %v690
                $region124: #{net_forward.25} parent=111 // loop_footer
                  %s673 = sadd.s32 1, %s669
                $region125: #{net_forward.25} parent=111 // loop_footer_branch
                  %668 = sbr.rel target = $region121
                $region126: #{net_forward.25} parent=111 // loop_exit
                  _
              $region112: #{net_forward.25} parent=96 // pred_fallthru
                _
            $region97: #{net_forward.25} parent=92 // pred_fallthru
              _
            // Predicated region
            $region98: #{net_forward.25} parent=92 // pred_check
              _
            $region99: #{net_forward.25} parent=92 // pred_check_branch
              %631 = sbr.rel (0) target = $region101
            $region100: #{net_forward.25} parent=92 // pred_region
              loop: start=0, step=1, limit=1
              $region102: #{net_forward.25} parent=100 // loop_pre_header
                _
              $region103: #{net_forward.25} parent=100 // loop_header
                %s634 = sphi 0, %s638
                %p635 = scmp.ge.s32.totalorder %s634, 1
                %s639 = sphi %s620, %s620
                %s640 = sphi %s625, %s625
              $region104: #{net_forward.25} parent=100 // loop_header_branch
                %637 = sbr.rel (%p635) target = $region108
              $region105: #{net_forward.25} parent=100 // loop_body
                %v641 = vld [vmem:[%s639] sm:$0x3]
                %642 = vst [vmem:[%s640] sm:$0x3] %v641
                %v643 = vld [vmem:[%s639 + $0x2] sm:$0x3]
                %644 = vst [vmem:[%s640 + $0x4] sm:$0x3] %v643
                %v645 = vld [vmem:[%s639 + $0x4] sm:$0x3]
                %646 = vst [vmem:[%s640 + $0x8] sm:$0x3] %v645
                %v647 = vld [vmem:[%s639 + $0x6] sm:$0x3]
                %648 = vst [vmem:[%s640 + $0xc] sm:$0x3] %v647
                %v649 = vld [vmem:[%s639 + $0x8] sm:$0x3]
                %650 = vst [vmem:[%s640 + $0x10] sm:$0x3] %v649
                %v651 = vld [vmem:[%s639 + $0xa] sm:$0x3]
                %652 = vst [vmem:[%s640 + $0x14] sm:$0x3] %v651
                %v653 = vld [vmem:[%s639 + $0xc] sm:$0x3]
                %654 = vst [vmem:[%s640 + $0x18] sm:$0x3] %v653
                %v655 = vld [vmem:[%s639 + $0xe] sm:$0x3]
                %656 = vst [vmem:[%s640 + $0x1c] sm:$0x3] %v655
              $region106: #{net_forward.25} parent=100 // loop_footer
                %s638 = sadd.s32 1, %s634
              $region107: #{net_forward.25} parent=100 // loop_footer_branch
                %633 = sbr.rel target = $region103
              $region108: #{net_forward.25} parent=100 // loop_exit
                _
            $region101: #{net_forward.25} parent=92 // pred_fallthru
              _
          $region93: #{net_forward.25} parent=88 // pred_fallthru
            _
          %692 = vnop
        $region89: #{net_forward.25} parent=73 // pred_fallthru
          _
      $region74: #{net_forward.25} parent=5 // pred_fallthru
        _
      %p693 = scmp.le.s32.totalorder 2, %s11
      // Predicated region
      $region127: #{net_forward.25} parent=5 // pred_check
        %p694 = pneg %p693
      $region128: #{net_forward.25} parent=5 // pred_check_branch
        %696 = sbr.rel (%p694) target = $region130
      $region129: #{net_forward.25} parent=5 // pred_region
        %s697 = ssub.s32 %s11, 2
        // Predicated region
        $region131: #{net_forward.25} parent=129 // pred_check
          %p698 = pneg %p165
        $region132: #{net_forward.25} parent=129 // pred_check_branch
          %700 = sbr.rel (%p698) target = $region134
        $region133: #{net_forward.25} parent=129 // pred_region
          %s701 = sand.u32 %s150, 1
          %s702 = sand.u32 %s150, 1
          %s703 = smul.addr %s702, 16
          %s704 = scalar_lea.vmem [#allocation5], %s703
        $region134: #{net_forward.25} parent=129 // pred_fallthru
          _
      $region130: #{net_forward.25} parent=5 // pred_fallthru
        _
    $region6: #{net_forward.25} parent=1 // loop_footer
      %s15 = sadd.s32 1, %s11
    $region7: #{net_forward.25} parent=1 // loop_footer_branch
      %10 = sbr.rel target = $region3
    $region8: #{net_forward.25} parent=1 // loop_exit
      _

// kernel: net_forward.23
$region0: #{net_forward.23}
  #allocation0 [shape = 'u32[]', space=smem, size = 0x4, offset = 0x4, fixed_abs, tag = 'smem constant byte address 0x4 - core index']
  #allocation1 [shape = 'u32[144,128]{1,0:T(1,128)}', space=vmem, size = 0x12000, scoped, tag = 'internal scratch']
  %s0 = inlined_call_operand.vmem [shape: f32[16,600], index: 0, kind: input, shape index: {}]
  %s1 = inlined_call_operand.vmem [shape: f32[600,1024], index: 1, kind: input, shape index: {}]
  %s2 = inlined_call_operand.vmem [shape: f32[1,1024], index: 2, kind: input, shape index: {}]
  %s3 = inlined_call_operand.vmem [shape: f32[16,1024], index: 3, kind: output, shape index: {}]
  %s4 = sld [smem:[#allocation0]]
  $region22: #{net_forward.23} parent=0
    _
  %s6 = ssub.s32 1, %s4
  %s7 = scalar_select 0, %s6, %s4
  // Predicated region
  $region2: #{net_forward.23} parent=0 // pred_check
    _
  $region3: #{net_forward.23} parent=0 // pred_check_branch
    %9 = sbr.rel (0) target = $region5
  $region4: #{net_forward.23} parent=0 // pred_region
    _
  $region5: #{net_forward.23} parent=0 // pred_fallthru
    _
  // Predicated region
  $region6: #{net_forward.23} parent=0 // pred_check
    _
  $region7: #{net_forward.23} parent=0 // pred_check_branch
    %11 = sbr.rel (0) target = $region9
  $region8: #{net_forward.23} parent=0 // pred_region
    _
  $region9: #{net_forward.23} parent=0 // pred_fallthru
    _
  // Predicated region
  $region10: #{net_forward.23} parent=0 // pred_check
    _
  $region11: #{net_forward.23} parent=0 // pred_check_branch
    %13 = sbr.rel (0) target = $region13
  $region12: #{net_forward.23} parent=0 // pred_region
    _
  $region13: #{net_forward.23} parent=0 // pred_fallthru
    _
  %v15 = vld [vmem:[%s0] sm:$0xff]
  %v16 = vld [vmem:[%s0 + $0x8] sm:$0xff]
  %v17 = vld [vmem:[%s0 + $0x10] sm:$0xff]
  %v18 = vld [vmem:[%s0 + $0x18] sm:$0xff]
  %v19 = vld [vmem:[%s0 + $0x20] sm:$0xff]
  %v20 = vld [vmem:[%s0 + $0x28] sm:$0xff]
  %v21 = vld [vmem:[%s0 + $0x30] sm:$0xff]
  %v22 = vld [vmem:[%s0 + $0x38] sm:$0xff]
  %v23 = vld [vmem:[%s0 + $0x40] sm:$0xff]
  %v24 = vld [vmem:[%s0 + $0x48] sm:$0xff]
  %v25 = vpack.c.bf16 %v20, %v15
  %v26 = vpack.c.bf16 %v21, %v16
  %v27 = vpack.c.bf16 %v22, %v17
  %v28 = vpack.c.bf16 %v23, %v18
  %v29 = vpack.c.bf16 %v24, %v19
  %v30 = vld [vmem:[%s1] sm:$0xff]
  %v31 = vld [vmem:[%s1 + $0x8] sm:$0xff]
  %v32 = vld [vmem:[%s1 + $0x10] sm:$0xff]
  %v33 = vld [vmem:[%s1 + $0x18] sm:$0xff]
  %v34 = vld [vmem:[%s1 + $0x20] sm:$0xff]
  %v35 = vld [vmem:[%s1 + $0x28] sm:$0xff]
  %v36 = vld [vmem:[%s1 + $0x30] sm:$0xff]
  %v37 = vld [vmem:[%s1 + $0x38] sm:$0xff]
  %v38 = vld [vmem:[%s1 + $0x40] sm:$0xff]
  %v39 = vld [vmem:[%s1 + $0x48] sm:$0xff]
  %v40 = vld [vmem:[%s1 + $0x50] sm:$0xff]
  %v41 = vld [vmem:[%s1 + $0x58] sm:$0xff]
  %v42 = vld [vmem:[%s1 + $0x60] sm:$0xff]
  %v43 = vld [vmem:[%s1 + $0x68] sm:$0xff]
  %v44 = vld [vmem:[%s1 + $0x70] sm:$0xff]
  %v45 = vld [vmem:[%s1 + $0x78] sm:$0xff]
  %v46 = vld [vmem:[%s1 + $0x80] sm:$0xff]
  %v47 = vld [vmem:[%s1 + $0x88] sm:$0xff]
  %v48 = vld [vmem:[%s1 + $0x90] sm:$0xff]
  %v49 = vld [vmem:[%s1 + $0x98] sm:$0xff]
  %v50 = vld [vmem:[%s1 + $0xa0] sm:$0xff]
  %v51 = vld [vmem:[%s1 + $0xa8] sm:$0xff]
  %v52 = vld [vmem:[%s1 + $0xb0] sm:$0xff]
  %v53 = vld [vmem:[%s1 + $0xb8] sm:$0xff]
  %v54 = vld [vmem:[%s1 + $0xc0] sm:$0xff]
  %v55 = vld [vmem:[%s1 + $0xc8] sm:$0xff]
  %v56 = vld [vmem:[%s1 + $0xd0] sm:$0xff]
  %v57 = vld [vmem:[%s1 + $0xd8] sm:$0xff]
  %v58 = vld [vmem:[%s1 + $0xe0] sm:$0xff]
  %v59 = vld [vmem:[%s1 + $0xe8] sm:$0xff]
  %v60 = vld [vmem:[%s1 + $0xf0] sm:$0xff]
  %v61 = vld [vmem:[%s1 + $0xf8] sm:$0xff]
  %v62 = vld [vmem:[%s1 + $0x100] sm:$0xff]
  %v63 = vld [vmem:[%s1 + $0x108] sm:$0xff]
  %v64 = vld [vmem:[%s1 + $0x110] sm:$0xff]
  %v65 = vld [vmem:[%s1 + $0x118] sm:$0xff]
  %v66 = vld [vmem:[%s1 + $0x120] sm:$0xff]
  %v67 = vld [vmem:[%s1 + $0x128] sm:$0xff]
  %v68 = vld [vmem:[%s1 + $0x130] sm:$0xff]
  %v69 = vld [vmem:[%s1 + $0x138] sm:$0xff]
  %v70 = vld [vmem:[%s1 + $0x140] sm:$0xff]
  %v71 = vld [vmem:[%s1 + $0x148] sm:$0xff]
  %v72 = vld [vmem:[%s1 + $0x150] sm:$0xff]
  %v73 = vld [vmem:[%s1 + $0x158] sm:$0xff]
  %v74 = vld [vmem:[%s1 + $0x160] sm:$0xff]
  %v75 = vld [vmem:[%s1 + $0x168] sm:$0xff]
  %v76 = vld [vmem:[%s1 + $0x170] sm:$0xff]
  %v77 = vld [vmem:[%s1 + $0x178] sm:$0xff]
  %v78 = vld [vmem:[%s1 + $0x180] sm:$0xff]
  %v79 = vld [vmem:[%s1 + $0x188] sm:$0xff]
  %v80 = vld [vmem:[%s1 + $0x190] sm:$0xff]
  %v81 = vld [vmem:[%s1 + $0x198] sm:$0xff]
  %v82 = vld [vmem:[%s1 + $0x1a0] sm:$0xff]
  %v83 = vld [vmem:[%s1 + $0x1a8] sm:$0xff]
  %v84 = vld [vmem:[%s1 + $0x1b0] sm:$0xff]
  %v85 = vld [vmem:[%s1 + $0x1b8] sm:$0xff]
  %v86 = vld [vmem:[%s1 + $0x1c0] sm:$0xff]
  %v87 = vld [vmem:[%s1 + $0x1c8] sm:$0xff]
  %v88 = vld [vmem:[%s1 + $0x1d0] sm:$0xff]
  %v89 = vld [vmem:[%s1 + $0x1d8] sm:$0xff]
  %v90 = vld [vmem:[%s1 + $0x1e0] sm:$0xff]
  %v91 = vld [vmem:[%s1 + $0x1e8] sm:$0xff]
  %v92 = vld [vmem:[%s1 + $0x1f0] sm:$0xff]
  %v93 = vld [vmem:[%s1 + $0x1f8] sm:$0xff]
  %v94 = vld [vmem:[%s1 + $0x200] sm:$0xff]
  %v95 = vld [vmem:[%s1 + $0x208] sm:$0xff]
  %v96 = vld [vmem:[%s1 + $0x210] sm:$0xff]
  %v97 = vld [vmem:[%s1 + $0x218] sm:$0xff]
  %v98 = vld [vmem:[%s1 + $0x220] sm:$0xff]
  %v99 = vld [vmem:[%s1 + $0x228] sm:$0xff]
  %v100 = vld [vmem:[%s1 + $0x230] sm:$0xff]
  %v101 = vld [vmem:[%s1 + $0x238] sm:$0xff]
  %v102 = vld [vmem:[%s1 + $0x240] sm:$0xff]
  %v103 = vld [vmem:[%s1 + $0x248] sm:$0xff]
  %v104 = vld [vmem:[%s1 + $0x250] sm:$0xff]
  %v105 = vld [vmem:[%s1 + $0x258] sm:$0xff]
  %v106 = vld [vmem:[%s1 + $0x260] sm:$0xff]
  %v107 = vld [vmem:[%s1 + $0x268] sm:$0xff]
  %v108 = vld [vmem:[%s1 + $0x270] sm:$0xff]
  %v109 = vld [vmem:[%s1 + $0x278] sm:$0xff]
  %v110 = vld [vmem:[%s1 + $0x280] sm:$0xff]
  %v111 = vld [vmem:[%s1 + $0x288] sm:$0xff]
  %v112 = vld [vmem:[%s1 + $0x290] sm:$0xff]
  %v113 = vld [vmem:[%s1 + $0x298] sm:$0xff]
  %v114 = vld [vmem:[%s1 + $0x2a0] sm:$0xff]
  %v115 = vld [vmem:[%s1 + $0x2a8] sm:$0xff]
  %v116 = vld [vmem:[%s1 + $0x2b0] sm:$0xff]
  %v117 = vld [vmem:[%s1 + $0x2b8] sm:$0xff]
  %v118 = vld [vmem:[%s1 + $0x2c0] sm:$0xff]
  %v119 = vld [vmem:[%s1 + $0x2c8] sm:$0xff]
  %v120 = vld [vmem:[%s1 + $0x2d0] sm:$0xff]
  %v121 = vld [vmem:[%s1 + $0x2d8] sm:$0xff]
  %v122 = vld [vmem:[%s1 + $0x2e0] sm:$0xff]
  %v123 = vld [vmem:[%s1 + $0x2e8] sm:$0xff]
  %v124 = vld [vmem:[%s1 + $0x2f0] sm:$0xff]
  %v125 = vld [vmem:[%s1 + $0x2f8] sm:$0xff]
  %v126 = vld [vmem:[%s1 + $0x300] sm:$0xff]
  %v127 = vld [vmem:[%s1 + $0x308] sm:$0xff]
  %v128 = vld [vmem:[%s1 + $0x310] sm:$0xff]
  %v129 = vld [vmem:[%s1 + $0x318] sm:$0xff]
  %v130 = vld [vmem:[%s1 + $0x320] sm:$0xff]
  %v131 = vld [vmem:[%s1 + $0x328] sm:$0xff]
  %v132 = vld [vmem:[%s1 + $0x330] sm:$0xff]
  %v133 = vld [vmem:[%s1 + $0x338] sm:$0xff]
  %v134 = vld [vmem:[%s1 + $0x340] sm:$0xff]
  %v135 = vld [vmem:[%s1 + $0x348] sm:$0xff]
  %v136 = vld [vmem:[%s1 + $0x350] sm:$0xff]
  %v137 = vld [vmem:[%s1 + $0x358] sm:$0xff]
  %v138 = vld [vmem:[%s1 + $0x360] sm:$0xff]
  %v139 = vld [vmem:[%s1 + $0x368] sm:$0xff]
  %v140 = vld [vmem:[%s1 + $0x370] sm:$0xff]
  %v141 = vld [vmem:[%s1 + $0x378] sm:$0xff]
  %v142 = vld [vmem:[%s1 + $0x380] sm:$0xff]
  %v143 = vld [vmem:[%s1 + $0x388] sm:$0xff]
  %v144 = vld [vmem:[%s1 + $0x390] sm:$0xff]
  %v145 = vld [vmem:[%s1 + $0x398] sm:$0xff]
  %v146 = vld [vmem:[%s1 + $0x3a0] sm:$0xff]
  %v147 = vld [vmem:[%s1 + $0x3a8] sm:$0xff]
  %v148 = vld [vmem:[%s1 + $0x3b0] sm:$0xff]
  %v149 = vld [vmem:[%s1 + $0x3b8] sm:$0xff]
  %v150 = vld [vmem:[%s1 + $0x3c0] sm:$0xff]
  %v151 = vld [vmem:[%s1 + $0x3c8] sm:$0xff]
  %v152 = vld [vmem:[%s1 + $0x3d0] sm:$0xff]
  %v153 = vld [vmem:[%s1 + $0x3d8] sm:$0xff]
  %v154 = vld [vmem:[%s1 + $0x3e0] sm:$0xff]
  %v155 = vld [vmem:[%s1 + $0x3e8] sm:$0xff]
  %v156 = vld [vmem:[%s1 + $0x3f0] sm:$0xff]
  %v157 = vld [vmem:[%s1 + $0x3f8] sm:$0xff]
  %v158 = vld [vmem:[%s1 + $0x400] sm:$0xff]
  %v159 = vld [vmem:[%s1 + $0x408] sm:$0xff]
  %v160 = vld [vmem:[%s1 + $0x410] sm:$0xff]
  %v161 = vld [vmem:[%s1 + $0x418] sm:$0xff]
  %v162 = vld [vmem:[%s1 + $0x420] sm:$0xff]
  %v163 = vld [vmem:[%s1 + $0x428] sm:$0xff]
  %v164 = vld [vmem:[%s1 + $0x430] sm:$0xff]
  %v165 = vld [vmem:[%s1 + $0x438] sm:$0xff]
  %v166 = vld [vmem:[%s1 + $0x440] sm:$0xff]
  %v167 = vld [vmem:[%s1 + $0x448] sm:$0xff]
  %v168 = vld [vmem:[%s1 + $0x450] sm:$0xff]
  %v169 = vld [vmem:[%s1 + $0x458] sm:$0xff]
  %v170 = vld [vmem:[%s1 + $0x460] sm:$0xff]
  %v171 = vld [vmem:[%s1 + $0x468] sm:$0xff]
  %v172 = vld [vmem:[%s1 + $0x470] sm:$0xff]
  %v173 = vld [vmem:[%s1 + $0x478] sm:$0xff]
  %v174 = vld [vmem:[%s1 + $0x480] sm:$0xff]
  %v175 = vld [vmem:[%s1 + $0x488] sm:$0xff]
  %v176 = vld [vmem:[%s1 + $0x490] sm:$0xff]
  %v177 = vld [vmem:[%s1 + $0x498] sm:$0xff]
  %v178 = vld [vmem:[%s1 + $0x4a0] sm:$0xff]
  %v179 = vld [vmem:[%s1 + $0x4a8] sm:$0xff]
  %v180 = vld [vmem:[%s1 + $0x4b0] sm:$0xff]
  %v181 = vld [vmem:[%s1 + $0x4b8] sm:$0xff]
  %v182 = vld [vmem:[%s1 + $0x4c0] sm:$0xff]
  %v183 = vld [vmem:[%s1 + $0x4c8] sm:$0xff]
  %v184 = vld [vmem:[%s1 + $0x4d0] sm:$0xff]
  %v185 = vld [vmem:[%s1 + $0x4d8] sm:$0xff]
  %v186 = vld [vmem:[%s1 + $0x4e0] sm:$0xff]
  %v187 = vld [vmem:[%s1 + $0x4e8] sm:$0xff]
  %v188 = vld [vmem:[%s1 + $0x4f0] sm:$0xff]
  %v189 = vld [vmem:[%s1 + $0x4f8] sm:$0xff]
  %v190 = vld [vmem:[%s1 + $0x500] sm:$0xff]
  %v191 = vld [vmem:[%s1 + $0x508] sm:$0xff]
  %v192 = vld [vmem:[%s1 + $0x510] sm:$0xff]
  %v193 = vld [vmem:[%s1 + $0x518] sm:$0xff]
  %v194 = vld [vmem:[%s1 + $0x520] sm:$0xff]
  %v195 = vld [vmem:[%s1 + $0x528] sm:$0xff]
  %v196 = vld [vmem:[%s1 + $0x530] sm:$0xff]
  %v197 = vld [vmem:[%s1 + $0x538] sm:$0xff]
  %v198 = vld [vmem:[%s1 + $0x540] sm:$0xff]
  %v199 = vld [vmem:[%s1 + $0x548] sm:$0xff]
  %v200 = vld [vmem:[%s1 + $0x550] sm:$0xff]
  %v201 = vld [vmem:[%s1 + $0x558] sm:$0xff]
  %v202 = vld [vmem:[%s1 + $0x560] sm:$0xff]
  %v203 = vld [vmem:[%s1 + $0x568] sm:$0xff]
  %v204 = vld [vmem:[%s1 + $0x570] sm:$0xff]
  %v205 = vld [vmem:[%s1 + $0x578] sm:$0xff]
  %v206 = vld [vmem:[%s1 + $0x580] sm:$0xff]
  %v207 = vld [vmem:[%s1 + $0x588] sm:$0xff]
  %v208 = vld [vmem:[%s1 + $0x590] sm:$0xff]
  %v209 = vld [vmem:[%s1 + $0x598] sm:$0xff]
  %v210 = vld [vmem:[%s1 + $0x5a0] sm:$0xff]
  %v211 = vld [vmem:[%s1 + $0x5a8] sm:$0xff]
  %v212 = vld [vmem:[%s1 + $0x5b0] sm:$0xff]
  %v213 = vld [vmem:[%s1 + $0x5b8] sm:$0xff]
  %v214 = vld [vmem:[%s1 + $0x5c0] sm:$0xff]
  %v215 = vld [vmem:[%s1 + $0x5c8] sm:$0xff]
  %v216 = vld [vmem:[%s1 + $0x5d0] sm:$0xff]
  %v217 = vld [vmem:[%s1 + $0x5d8] sm:$0xff]
  %v218 = vld [vmem:[%s1 + $0x5e0] sm:$0xff]
  %v219 = vld [vmem:[%s1 + $0x5e8] sm:$0xff]
  %v220 = vld [vmem:[%s1 + $0x5f0] sm:$0xff]
  %v221 = vld [vmem:[%s1 + $0x5f8] sm:$0xff]
  %v222 = vld [vmem:[%s1 + $0x600] sm:$0xff]
  %v223 = vld [vmem:[%s1 + $0x608] sm:$0xff]
  %v224 = vld [vmem:[%s1 + $0x610] sm:$0xff]
  %v225 = vld [vmem:[%s1 + $0x618] sm:$0xff]
  %v226 = vld [vmem:[%s1 + $0x620] sm:$0xff]
  %v227 = vld [vmem:[%s1 + $0x628] sm:$0xff]
  %v228 = vld [vmem:[%s1 + $0x630] sm:$0xff]
  %v229 = vld [vmem:[%s1 + $0x638] sm:$0xff]
  %v230 = vld [vmem:[%s1 + $0x640] sm:$0xff]
  %v231 = vld [vmem:[%s1 + $0x648] sm:$0xff]
  %v232 = vld [vmem:[%s1 + $0x650] sm:$0xff]
  %v233 = vld [vmem:[%s1 + $0x658] sm:$0xff]
  %v234 = vld [vmem:[%s1 + $0x660] sm:$0xff]
  %v235 = vld [vmem:[%s1 + $0x668] sm:$0xff]
  %v236 = vld [vmem:[%s1 + $0x670] sm:$0xff]
  %v237 = vld [vmem:[%s1 + $0x678] sm:$0xff]
  %v238 = vld [vmem:[%s1 + $0x680] sm:$0xff]
  %v239 = vld [vmem:[%s1 + $0x688] sm:$0xff]
  %v240 = vld [vmem:[%s1 + $0x690] sm:$0xff]
  %v241 = vld [vmem:[%s1 + $0x698] sm:$0xff]
  %v242 = vld [vmem:[%s1 + $0x6a0] sm:$0xff]
  %v243 = vld [vmem:[%s1 + $0x6a8] sm:$0xff]
  %v244 = vld [vmem:[%s1 + $0x6b0] sm:$0xff]
  %v245 = vld [vmem:[%s1 + $0x6b8] sm:$0xff]
  %v246 = vld [vmem:[%s1 + $0x6c0] sm:$0xff]
  %v247 = vld [vmem:[%s1 + $0x6c8] sm:$0xff]
  %v248 = vld [vmem:[%s1 + $0x6d0] sm:$0xff]
  %v249 = vld [vmem:[%s1 + $0x6d8] sm:$0xff]
  %v250 = vld [vmem:[%s1 + $0x6e0] sm:$0xff]
  %v251 = vld [vmem:[%s1 + $0x6e8] sm:$0xff]
  %v252 = vld [vmem:[%s1 + $0x6f0] sm:$0xff]
  %v253 = vld [vmem:[%s1 + $0x6f8] sm:$0xff]
  %v254 = vld [vmem:[%s1 + $0x700] sm:$0xff]
  %v255 = vld [vmem:[%s1 + $0x708] sm:$0xff]
  %v256 = vld [vmem:[%s1 + $0x710] sm:$0xff]
  %v257 = vld [vmem:[%s1 + $0x718] sm:$0xff]
  %v258 = vld [vmem:[%s1 + $0x720] sm:$0xff]
  %v259 = vld [vmem:[%s1 + $0x728] sm:$0xff]
  %v260 = vld [vmem:[%s1 + $0x730] sm:$0xff]
  %v261 = vld [vmem:[%s1 + $0x738] sm:$0xff]
  %v262 = vld [vmem:[%s1 + $0x740] sm:$0xff]
  %v263 = vld [vmem:[%s1 + $0x748] sm:$0xff]
  %v264 = vld [vmem:[%s1 + $0x750] sm:$0xff]
  %v265 = vld [vmem:[%s1 + $0x758] sm:$0xff]
  %v266 = vld [vmem:[%s1 + $0x760] sm:$0xff]
  %v267 = vld [vmem:[%s1 + $0x768] sm:$0xff]
  %v268 = vld [vmem:[%s1 + $0x770] sm:$0xff]
  %v269 = vld [vmem:[%s1 + $0x778] sm:$0xff]
  %v270 = vld [vmem:[%s1 + $0x780] sm:$0xff]
  %v271 = vld [vmem:[%s1 + $0x788] sm:$0xff]
  %v272 = vld [vmem:[%s1 + $0x790] sm:$0xff]
  %v273 = vld [vmem:[%s1 + $0x798] sm:$0xff]
  %v274 = vld [vmem:[%s1 + $0x7a0] sm:$0xff]
  %v275 = vld [vmem:[%s1 + $0x7a8] sm:$0xff]
  %v276 = vld [vmem:[%s1 + $0x7b0] sm:$0xff]
  %v277 = vld [vmem:[%s1 + $0x7b8] sm:$0xff]
  %v278 = vld [vmem:[%s1 + $0x7c0] sm:$0xff]
  %v279 = vld [vmem:[%s1 + $0x7c8] sm:$0xff]
  %v280 = vld [vmem:[%s1 + $0x7d0] sm:$0xff]
  %v281 = vld [vmem:[%s1 + $0x7d8] sm:$0xff]
  %v282 = vld [vmem:[%s1 + $0x7e0] sm:$0xff]
  %v283 = vld [vmem:[%s1 + $0x7e8] sm:$0xff]
  %v284 = vld [vmem:[%s1 + $0x7f0] sm:$0xff]
  %v285 = vld [vmem:[%s1 + $0x7f8] sm:$0xff]
  %v286 = vld [vmem:[%s1 + $0x800] sm:$0xff]
  %v287 = vld [vmem:[%s1 + $0x808] sm:$0xff]
  %v288 = vld [vmem:[%s1 + $0x810] sm:$0xff]
  %v289 = vld [vmem:[%s1 + $0x818] sm:$0xff]
  %v290 = vld [vmem:[%s1 + $0x820] sm:$0xff]
  %v291 = vld [vmem:[%s1 + $0x828] sm:$0xff]
  %v292 = vld [vmem:[%s1 + $0x830] sm:$0xff]
  %v293 = vld [vmem:[%s1 + $0x838] sm:$0xff]
  %v294 = vld [vmem:[%s1 + $0x840] sm:$0xff]
  %v295 = vld [vmem:[%s1 + $0x848] sm:$0xff]
  %v296 = vld [vmem:[%s1 + $0x850] sm:$0xff]
  %v297 = vld [vmem:[%s1 + $0x858] sm:$0xff]
  %v298 = vld [vmem:[%s1 + $0x860] sm:$0xff]
  %v299 = vld [vmem:[%s1 + $0x868] sm:$0xff]
  %v300 = vld [vmem:[%s1 + $0x870] sm:$0xff]
  %v301 = vld [vmem:[%s1 + $0x878] sm:$0xff]
  %v302 = vld [vmem:[%s1 + $0x880] sm:$0xff]
  %v303 = vld [vmem:[%s1 + $0x888] sm:$0xff]
  %v304 = vld [vmem:[%s1 + $0x890] sm:$0xff]
  %v305 = vld [vmem:[%s1 + $0x898] sm:$0xff]
  %v306 = vld [vmem:[%s1 + $0x8a0] sm:$0xff]
  %v307 = vld [vmem:[%s1 + $0x8a8] sm:$0xff]
  %v308 = vld [vmem:[%s1 + $0x8b0] sm:$0xff]
  %v309 = vld [vmem:[%s1 + $0x8b8] sm:$0xff]
  %v310 = vld [vmem:[%s1 + $0x8c0] sm:$0xff]
  %v311 = vld [vmem:[%s1 + $0x8c8] sm:$0xff]
  %v312 = vld [vmem:[%s1 + $0x8d0] sm:$0xff]
  %v313 = vld [vmem:[%s1 + $0x8d8] sm:$0xff]
  %v314 = vld [vmem:[%s1 + $0x8e0] sm:$0xff]
  %v315 = vld [vmem:[%s1 + $0x8e8] sm:$0xff]
  %v316 = vld [vmem:[%s1 + $0x8f0] sm:$0xff]
  %v317 = vld [vmem:[%s1 + $0x8f8] sm:$0xff]
  %v318 = vld [vmem:[%s1 + $0x900] sm:$0xff]
  %v319 = vld [vmem:[%s1 + $0x908] sm:$0xff]
  %v320 = vld [vmem:[%s1 + $0x910] sm:$0xff]
  %v321 = vld [vmem:[%s1 + $0x918] sm:$0xff]
  %v322 = vld [vmem:[%s1 + $0x920] sm:$0xff]
  %v323 = vld [vmem:[%s1 + $0x928] sm:$0xff]
  %v324 = vld [vmem:[%s1 + $0x930] sm:$0xff]
  %v325 = vld [vmem:[%s1 + $0x938] sm:$0xff]
  %v326 = vld [vmem:[%s1 + $0x940] sm:$0xff]
  %v327 = vld [vmem:[%s1 + $0x948] sm:$0xff]
  %v328 = vld [vmem:[%s1 + $0x950] sm:$0xff]
  %v329 = vld [vmem:[%s1 + $0x958] sm:$0xff]
  %v330 = vld [vmem:[%s1 + $0x960] sm:$0xff]
  %v331 = vld [vmem:[%s1 + $0x968] sm:$0xff]
  %v332 = vld [vmem:[%s1 + $0x970] sm:$0xff]
  %v333 = vld [vmem:[%s1 + $0x978] sm:$0xff]
  %v334 = vld [vmem:[%s1 + $0x980] sm:$0xff]
  %v335 = vld [vmem:[%s1 + $0x988] sm:$0xff]
  %v336 = vld [vmem:[%s1 + $0x990] sm:$0xff]
  %v337 = vld [vmem:[%s1 + $0x998] sm:$0xff]
  %v338 = vld [vmem:[%s1 + $0x9a0] sm:$0xff]
  %v339 = vld [vmem:[%s1 + $0x9a8] sm:$0xff]
  %v340 = vld [vmem:[%s1 + $0x9b0] sm:$0xff]
  %v341 = vld [vmem:[%s1 + $0x9b8] sm:$0xff]
  %v342 = vld [vmem:[%s1 + $0x9c0] sm:$0xff]
  %v343 = vld [vmem:[%s1 + $0x9c8] sm:$0xff]
  %v344 = vld [vmem:[%s1 + $0x9d0] sm:$0xff]
  %v345 = vld [vmem:[%s1 + $0x9d8] sm:$0xff]
  %v346 = vld [vmem:[%s1 + $0x9e0] sm:$0xff]
  %v347 = vld [vmem:[%s1 + $0x9e8] sm:$0xff]
  %v348 = vld [vmem:[%s1 + $0x9f0] sm:$0xff]
  %v349 = vld [vmem:[%s1 + $0x9f8] sm:$0xff]
  %v350 = vld [vmem:[%s1 + $0xa00] sm:$0xff]
  %v351 = vld [vmem:[%s1 + $0xa08] sm:$0xff]
  %v352 = vld [vmem:[%s1 + $0xa10] sm:$0xff]
  %v353 = vld [vmem:[%s1 + $0xa18] sm:$0xff]
  %v354 = vld [vmem:[%s1 + $0xa20] sm:$0xff]
  %v355 = vld [vmem:[%s1 + $0xa28] sm:$0xff]
  %v356 = vld [vmem:[%s1 + $0xa30] sm:$0xff]
  %v357 = vld [vmem:[%s1 + $0xa38] sm:$0xff]
  %v358 = vld [vmem:[%s1 + $0xa40] sm:$0xff]
  %v359 = vld [vmem:[%s1 + $0xa48] sm:$0xff]
  %v360 = vld [vmem:[%s1 + $0xa50] sm:$0xff]
  %v361 = vld [vmem:[%s1 + $0xa58] sm:$0xff]
  %v362 = vld [vmem:[%s1 + $0xa60] sm:$0xff]
  %v363 = vld [vmem:[%s1 + $0xa68] sm:$0xff]
  %v364 = vld [vmem:[%s1 + $0xa70] sm:$0xff]
  %v365 = vld [vmem:[%s1 + $0xa78] sm:$0xff]
  %v366 = vld [vmem:[%s1 + $0xa80] sm:$0xff]
  %v367 = vld [vmem:[%s1 + $0xa88] sm:$0xff]
  %v368 = vld [vmem:[%s1 + $0xa90] sm:$0xff]
  %v369 = vld [vmem:[%s1 + $0xa98] sm:$0xff]
  %v370 = vld [vmem:[%s1 + $0xaa0] sm:$0xff]
  %v371 = vld [vmem:[%s1 + $0xaa8] sm:$0xff]
  %v372 = vld [vmem:[%s1 + $0xab0] sm:$0xff]
  %v373 = vld [vmem:[%s1 + $0xab8] sm:$0xff]
  %v374 = vld [vmem:[%s1 + $0xac0] sm:$0xff]
  %v375 = vld [vmem:[%s1 + $0xac8] sm:$0xff]
  %v376 = vld [vmem:[%s1 + $0xad0] sm:$0xff]
  %v377 = vld [vmem:[%s1 + $0xad8] sm:$0xff]
  %v378 = vld [vmem:[%s1 + $0xae0] sm:$0xff]
  %v379 = vld [vmem:[%s1 + $0xae8] sm:$0xff]
  %v380 = vld [vmem:[%s1 + $0xaf0] sm:$0xff]
  %v381 = vld [vmem:[%s1 + $0xaf8] sm:$0xff]
  %v382 = vld [vmem:[%s1 + $0xb00] sm:$0xff]
  %v383 = vld [vmem:[%s1 + $0xb08] sm:$0xff]
  %v384 = vld [vmem:[%s1 + $0xb10] sm:$0xff]
  %v385 = vld [vmem:[%s1 + $0xb18] sm:$0xff]
  %v386 = vld [vmem:[%s1 + $0xb20] sm:$0xff]
  %v387 = vld [vmem:[%s1 + $0xb28] sm:$0xff]
  %v388 = vld [vmem:[%s1 + $0xb30] sm:$0xff]
  %v389 = vld [vmem:[%s1 + $0xb38] sm:$0xff]
  %v390 = vld [vmem:[%s1 + $0xb40] sm:$0xff]
  %v391 = vld [vmem:[%s1 + $0xb48] sm:$0xff]
  %v392 = vld [vmem:[%s1 + $0xb50] sm:$0xff]
  %v393 = vld [vmem:[%s1 + $0xb58] sm:$0xff]
  %v394 = vld [vmem:[%s1 + $0xb60] sm:$0xff]
  %v395 = vld [vmem:[%s1 + $0xb68] sm:$0xff]
  %v396 = vld [vmem:[%s1 + $0xb70] sm:$0xff]
  %v397 = vld [vmem:[%s1 + $0xb78] sm:$0xff]
  %v398 = vld [vmem:[%s1 + $0xb80] sm:$0xff]
  %v399 = vld [vmem:[%s1 + $0xb88] sm:$0xff]
  %v400 = vld [vmem:[%s1 + $0xb90] sm:$0xff]
  %v401 = vld [vmem:[%s1 + $0xb98] sm:$0xff]
  %v402 = vld [vmem:[%s1 + $0xba0] sm:$0xff]
  %v403 = vld [vmem:[%s1 + $0xba8] sm:$0xff]
  %v404 = vld [vmem:[%s1 + $0xbb0] sm:$0xff]
  %v405 = vld [vmem:[%s1 + $0xbb8] sm:$0xff]
  %v406 = vld [vmem:[%s1 + $0xbc0] sm:$0xff]
  %v407 = vld [vmem:[%s1 + $0xbc8] sm:$0xff]
  %v408 = vld [vmem:[%s1 + $0xbd0] sm:$0xff]
  %v409 = vld [vmem:[%s1 + $0xbd8] sm:$0xff]
  %v410 = vld [vmem:[%s1 + $0xbe0] sm:$0xff]
  %v411 = vld [vmem:[%s1 + $0xbe8] sm:$0xff]
  %v412 = vld [vmem:[%s1 + $0xbf0] sm:$0xff]
  %v413 = vld [vmem:[%s1 + $0xbf8] sm:$0xff]
  %v414 = vld [vmem:[%s1 + $0xc00] sm:$0xff]
  %v415 = vld [vmem:[%s1 + $0xc08] sm:$0xff]
  %v416 = vld [vmem:[%s1 + $0xc10] sm:$0xff]
  %v417 = vld [vmem:[%s1 + $0xc18] sm:$0xff]
  %v418 = vld [vmem:[%s1 + $0xc20] sm:$0xff]
  %v419 = vld [vmem:[%s1 + $0xc28] sm:$0xff]
  %v420 = vld [vmem:[%s1 + $0xc30] sm:$0xff]
  %v421 = vld [vmem:[%s1 + $0xc38] sm:$0xff]
  %v422 = vld [vmem:[%s1 + $0xc40] sm:$0xff]
  %v423 = vld [vmem:[%s1 + $0xc48] sm:$0xff]
  %v424 = vld [vmem:[%s1 + $0xc50] sm:$0xff]
  %v425 = vld [vmem:[%s1 + $0xc58] sm:$0xff]
  %v426 = vld [vmem:[%s1 + $0xc60] sm:$0xff]
  %v427 = vld [vmem:[%s1 + $0xc68] sm:$0xff]
  %v428 = vld [vmem:[%s1 + $0xc70] sm:$0xff]
  %v429 = vld [vmem:[%s1 + $0xc78] sm:$0xff]
  %v430 = vld [vmem:[%s1 + $0xc80] sm:$0xff]
  %v431 = vld [vmem:[%s1 + $0xc88] sm:$0xff]
  %v432 = vld [vmem:[%s1 + $0xc90] sm:$0xff]
  %v433 = vld [vmem:[%s1 + $0xc98] sm:$0xff]
  %v434 = vld [vmem:[%s1 + $0xca0] sm:$0xff]
  %v435 = vld [vmem:[%s1 + $0xca8] sm:$0xff]
  %v436 = vld [vmem:[%s1 + $0xcb0] sm:$0xff]
  %v437 = vld [vmem:[%s1 + $0xcb8] sm:$0xff]
  %v438 = vld [vmem:[%s1 + $0xcc0] sm:$0xff]
  %v439 = vld [vmem:[%s1 + $0xcc8] sm:$0xff]
  %v440 = vld [vmem:[%s1 + $0xcd0] sm:$0xff]
  %v441 = vld [vmem:[%s1 + $0xcd8] sm:$0xff]
  %v442 = vld [vmem:[%s1 + $0xce0] sm:$0xff]
  %v443 = vld [vmem:[%s1 + $0xce8] sm:$0xff]
  %v444 = vld [vmem:[%s1 + $0xcf0] sm:$0xff]
  %v445 = vld [vmem:[%s1 + $0xcf8] sm:$0xff]
  %v446 = vld [vmem:[%s1 + $0xd00] sm:$0xff]
  %v447 = vld [vmem:[%s1 + $0xd08] sm:$0xff]
  %v448 = vld [vmem:[%s1 + $0xd10] sm:$0xff]
  %v449 = vld [vmem:[%s1 + $0xd18] sm:$0xff]
  %v450 = vld [vmem:[%s1 + $0xd20] sm:$0xff]
  %v451 = vld [vmem:[%s1 + $0xd28] sm:$0xff]
  %v452 = vld [vmem:[%s1 + $0xd30] sm:$0xff]
  %v453 = vld [vmem:[%s1 + $0xd38] sm:$0xff]
  %v454 = vld [vmem:[%s1 + $0xd40] sm:$0xff]
  %v455 = vld [vmem:[%s1 + $0xd48] sm:$0xff]
  %v456 = vld [vmem:[%s1 + $0xd50] sm:$0xff]
  %v457 = vld [vmem:[%s1 + $0xd58] sm:$0xff]
  %v458 = vld [vmem:[%s1 + $0xd60] sm:$0xff]
  %v459 = vld [vmem:[%s1 + $0xd68] sm:$0xff]
  %v460 = vld [vmem:[%s1 + $0xd70] sm:$0xff]
  %v461 = vld [vmem:[%s1 + $0xd78] sm:$0xff]
  %v462 = vld [vmem:[%s1 + $0xd80] sm:$0xff]
  %v463 = vld [vmem:[%s1 + $0xd88] sm:$0xff]
  %v464 = vld [vmem:[%s1 + $0xd90] sm:$0xff]
  %v465 = vld [vmem:[%s1 + $0xd98] sm:$0xff]
  %v466 = vld [vmem:[%s1 + $0xda0] sm:$0xff]
  %v467 = vld [vmem:[%s1 + $0xda8] sm:$0xff]
  %v468 = vld [vmem:[%s1 + $0xdb0] sm:$0xff]
  %v469 = vld [vmem:[%s1 + $0xdb8] sm:$0xff]
  %v470 = vld [vmem:[%s1 + $0xdc0] sm:$0xff]
  %v471 = vld [vmem:[%s1 + $0xdc8] sm:$0xff]
  %v472 = vld [vmem:[%s1 + $0xdd0] sm:$0xff]
  %v473 = vld [vmem:[%s1 + $0xdd8] sm:$0xff]
  %v474 = vld [vmem:[%s1 + $0xde0] sm:$0xff]
  %v475 = vld [vmem:[%s1 + $0xde8] sm:$0xff]
  %v476 = vld [vmem:[%s1 + $0xdf0] sm:$0xff]
  %v477 = vld [vmem:[%s1 + $0xdf8] sm:$0xff]
  %v478 = vld [vmem:[%s1 + $0xe00] sm:$0xff]
  %v479 = vld [vmem:[%s1 + $0xe08] sm:$0xff]
  %v480 = vld [vmem:[%s1 + $0xe10] sm:$0xff]
  %v481 = vld [vmem:[%s1 + $0xe18] sm:$0xff]
  %v482 = vld [vmem:[%s1 + $0xe20] sm:$0xff]
  %v483 = vld [vmem:[%s1 + $0xe28] sm:$0xff]
  %v484 = vld [vmem:[%s1 + $0xe30] sm:$0xff]
  %v485 = vld [vmem:[%s1 + $0xe38] sm:$0xff]
  %v486 = vld [vmem:[%s1 + $0xe40] sm:$0xff]
  %v487 = vld [vmem:[%s1 + $0xe48] sm:$0xff]
  %v488 = vld [vmem:[%s1 + $0xe50] sm:$0xff]
  %v489 = vld [vmem:[%s1 + $0xe58] sm:$0xff]
  %v490 = vld [vmem:[%s1 + $0xe60] sm:$0xff]
  %v491 = vld [vmem:[%s1 + $0xe68] sm:$0xff]
  %v492 = vld [vmem:[%s1 + $0xe70] sm:$0xff]
  %v493 = vld [vmem:[%s1 + $0xe78] sm:$0xff]
  %v494 = vld [vmem:[%s1 + $0xe80] sm:$0xff]
  %v495 = vld [vmem:[%s1 + $0xe88] sm:$0xff]
  %v496 = vld [vmem:[%s1 + $0xe90] sm:$0xff]
  %v497 = vld [vmem:[%s1 + $0xe98] sm:$0xff]
  %v498 = vld [vmem:[%s1 + $0xea0] sm:$0xff]
  %v499 = vld [vmem:[%s1 + $0xea8] sm:$0xff]
  %v500 = vld [vmem:[%s1 + $0xeb0] sm:$0xff]
  %v501 = vld [vmem:[%s1 + $0xeb8] sm:$0xff]
  %v502 = vld [vmem:[%s1 + $0xec0] sm:$0xff]
  %v503 = vld [vmem:[%s1 + $0xec8] sm:$0xff]
  %v504 = vld [vmem:[%s1 + $0xed0] sm:$0xff]
  %v505 = vld [vmem:[%s1 + $0xed8] sm:$0xff]
  %v506 = vld [vmem:[%s1 + $0xee0] sm:$0xff]
  %v507 = vld [vmem:[%s1 + $0xee8] sm:$0xff]
  %v508 = vld [vmem:[%s1 + $0xef0] sm:$0xff]
  %v509 = vld [vmem:[%s1 + $0xef8] sm:$0xff]
  %v510 = vld [vmem:[%s1 + $0xf00] sm:$0xff]
  %v511 = vld [vmem:[%s1 + $0xf08] sm:$0xff]
  %v512 = vld [vmem:[%s1 + $0xf10] sm:$0xff]
  %v513 = vld [vmem:[%s1 + $0xf18] sm:$0xff]
  %v514 = vld [vmem:[%s1 + $0xf20] sm:$0xff]
  %v515 = vld [vmem:[%s1 + $0xf28] sm:$0xff]
  %v516 = vld [vmem:[%s1 + $0xf30] sm:$0xff]
  %v517 = vld [vmem:[%s1 + $0xf38] sm:$0xff]
  %v518 = vld [vmem:[%s1 + $0xf40] sm:$0xff]
  %v519 = vld [vmem:[%s1 + $0xf48] sm:$0xff]
  %v520 = vld [vmem:[%s1 + $0xf50] sm:$0xff]
  %v521 = vld [vmem:[%s1 + $0xf58] sm:$0xff]
  %v522 = vld [vmem:[%s1 + $0xf60] sm:$0xff]
  %v523 = vld [vmem:[%s1 + $0xf68] sm:$0xff]
  %v524 = vld [vmem:[%s1 + $0xf70] sm:$0xff]
  %v525 = vld [vmem:[%s1 + $0xf78] sm:$0xff]
  %v526 = vld [vmem:[%s1 + $0xf80] sm:$0xff]
  %v527 = vld [vmem:[%s1 + $0xf88] sm:$0xff]
  %v528 = vld [vmem:[%s1 + $0xf90] sm:$0xff]
  %v529 = vld [vmem:[%s1 + $0xf98] sm:$0xff]
  %v530 = vld [vmem:[%s1 + $0xfa0] sm:$0xff]
  %v531 = vld [vmem:[%s1 + $0xfa8] sm:$0xff]
  %v532 = vld [vmem:[%s1 + $0xfb0] sm:$0xff]
  %v533 = vld [vmem:[%s1 + $0xfb8] sm:$0xff]
  %v534 = vld [vmem:[%s1 + $0xfc0] sm:$0xff]
  %v535 = vld [vmem:[%s1 + $0xfc8] sm:$0xff]
  %v536 = vld [vmem:[%s1 + $0xfd0] sm:$0xff]
  %v537 = vld [vmem:[%s1 + $0xfd8] sm:$0xff]
  %v538 = vld [vmem:[%s1 + $0xfe0] sm:$0xff]
  %v539 = vld [vmem:[%s1 + $0xfe8] sm:$0xff]
  %v540 = vld [vmem:[%s1 + $0xff0] sm:$0xff]
  %v541 = vld [vmem:[%s1 + $0xff8] sm:$0xff]
  %v542 = vld [vmem:[%s1 + $0x1000] sm:$0xff]
  %v543 = vld [vmem:[%s1 + $0x1008] sm:$0xff]
  %v544 = vld [vmem:[%s1 + $0x1010] sm:$0xff]
  %v545 = vld [vmem:[%s1 + $0x1018] sm:$0xff]
  %v546 = vld [vmem:[%s1 + $0x1020] sm:$0xff]
  %v547 = vld [vmem:[%s1 + $0x1028] sm:$0xff]
  %v548 = vld [vmem:[%s1 + $0x1030] sm:$0xff]
  %v549 = vld [vmem:[%s1 + $0x1038] sm:$0xff]
  %v550 = vld [vmem:[%s1 + $0x1040] sm:$0xff]
  %v551 = vld [vmem:[%s1 + $0x1048] sm:$0xff]
  %v552 = vld [vmem:[%s1 + $0x1050] sm:$0xff]
  %v553 = vld [vmem:[%s1 + $0x1058] sm:$0xff]
  %v554 = vld [vmem:[%s1 + $0x1060] sm:$0xff]
  %v555 = vld [vmem:[%s1 + $0x1068] sm:$0xff]
  %v556 = vld [vmem:[%s1 + $0x1070] sm:$0xff]
  %v557 = vld [vmem:[%s1 + $0x1078] sm:$0xff]
  %v558 = vld [vmem:[%s1 + $0x1080] sm:$0xff]
  %v559 = vld [vmem:[%s1 + $0x1088] sm:$0xff]
  %v560 = vld [vmem:[%s1 + $0x1090] sm:$0xff]
  %v561 = vld [vmem:[%s1 + $0x1098] sm:$0xff]
  %v562 = vld [vmem:[%s1 + $0x10a0] sm:$0xff]
  %v563 = vld [vmem:[%s1 + $0x10a8] sm:$0xff]
  %v564 = vld [vmem:[%s1 + $0x10b0] sm:$0xff]
  %v565 = vld [vmem:[%s1 + $0x10b8] sm:$0xff]
  %v566 = vld [vmem:[%s1 + $0x10c0] sm:$0xff]
  %v567 = vld [vmem:[%s1 + $0x10c8] sm:$0xff]
  %v568 = vld [vmem:[%s1 + $0x10d0] sm:$0xff]
  %v569 = vld [vmem:[%s1 + $0x10d8] sm:$0xff]
  %v570 = vld [vmem:[%s1 + $0x10e0] sm:$0xff]
  %v571 = vld [vmem:[%s1 + $0x10e8] sm:$0xff]
  %v572 = vld [vmem:[%s1 + $0x10f0] sm:$0xff]
  %v573 = vld [vmem:[%s1 + $0x10f8] sm:$0xff]
  %v574 = vld [vmem:[%s1 + $0x1100] sm:$0xff]
  %v575 = vld [vmem:[%s1 + $0x1108] sm:$0xff]
  %v576 = vld [vmem:[%s1 + $0x1110] sm:$0xff]
  %v577 = vld [vmem:[%s1 + $0x1118] sm:$0xff]
  %v578 = vld [vmem:[%s1 + $0x1120] sm:$0xff]
  %v579 = vld [vmem:[%s1 + $0x1128] sm:$0xff]
  %v580 = vld [vmem:[%s1 + $0x1130] sm:$0xff]
  %v581 = vld [vmem:[%s1 + $0x1138] sm:$0xff]
  %v582 = vld [vmem:[%s1 + $0x1140] sm:$0xff]
  %v583 = vld [vmem:[%s1 + $0x1148] sm:$0xff]
  %v584 = vld [vmem:[%s1 + $0x1150] sm:$0xff]
  %v585 = vld [vmem:[%s1 + $0x1158] sm:$0xff]
  %v586 = vld [vmem:[%s1 + $0x1160] sm:$0xff]
  %v587 = vld [vmem:[%s1 + $0x1168] sm:$0xff]
  %v588 = vld [vmem:[%s1 + $0x1170] sm:$0xff]
  %v589 = vld [vmem:[%s1 + $0x1178] sm:$0xff]
  %v590 = vld [vmem:[%s1 + $0x1180] sm:$0xff]
  %v591 = vld [vmem:[%s1 + $0x1188] sm:$0xff]
  %v592 = vld [vmem:[%s1 + $0x1190] sm:$0xff]
  %v593 = vld [vmem:[%s1 + $0x1198] sm:$0xff]
  %v594 = vld [vmem:[%s1 + $0x11a0] sm:$0xff]
  %v595 = vld [vmem:[%s1 + $0x11a8] sm:$0xff]
  %v596 = vld [vmem:[%s1 + $0x11b0] sm:$0xff]
  %v597 = vld [vmem:[%s1 + $0x11b8] sm:$0xff]
  %v598 = vld [vmem:[%s1 + $0x11c0] sm:$0xff]
  %v599 = vld [vmem:[%s1 + $0x11c8] sm:$0xff]
  %v600 = vld [vmem:[%s1 + $0x11d0] sm:$0xff]
  %v601 = vld [vmem:[%s1 + $0x11d8] sm:$0xff]
  %v602 = vld [vmem:[%s1 + $0x11e0] sm:$0xff]
  %v603 = vld [vmem:[%s1 + $0x11e8] sm:$0xff]
  %v604 = vld [vmem:[%s1 + $0x11f0] sm:$0xff]
  %v605 = vld [vmem:[%s1 + $0x11f8] sm:$0xff]
  %v606 = vld [vmem:[%s1 + $0x1200] sm:$0xff]
  %v607 = vld [vmem:[%s1 + $0x1208] sm:$0xff]
  %v608 = vld [vmem:[%s1 + $0x1210] sm:$0xff]
  %v609 = vld [vmem:[%s1 + $0x1218] sm:$0xff]
  %v610 = vld [vmem:[%s1 + $0x1220] sm:$0xff]
  %v611 = vld [vmem:[%s1 + $0x1228] sm:$0xff]
  %v612 = vld [vmem:[%s1 + $0x1230] sm:$0xff]
  %v613 = vld [vmem:[%s1 + $0x1238] sm:$0xff]
  %v614 = vld [vmem:[%s1 + $0x1240] sm:$0xff]
  %v615 = vld [vmem:[%s1 + $0x1248] sm:$0xff]
  %v616 = vld [vmem:[%s1 + $0x1250] sm:$0xff]
  %v617 = vld [vmem:[%s1 + $0x1258] sm:$0xff]
  %v618 = vld [vmem:[%s1 + $0x1260] sm:$0xff]
  %v619 = vld [vmem:[%s1 + $0x1268] sm:$0xff]
  %v620 = vld [vmem:[%s1 + $0x1270] sm:$0xff]
  %v621 = vld [vmem:[%s1 + $0x1278] sm:$0xff]
  %v622 = vld [vmem:[%s1 + $0x1280] sm:$0xff]
  %v623 = vld [vmem:[%s1 + $0x1288] sm:$0xff]
  %v624 = vld [vmem:[%s1 + $0x1290] sm:$0xff]
  %v625 = vld [vmem:[%s1 + $0x1298] sm:$0xff]
  %v626 = vld [vmem:[%s1 + $0x12a0] sm:$0xff]
  %v627 = vld [vmem:[%s1 + $0x12a8] sm:$0xff]
  %v628 = vld [vmem:[%s1 + $0x12b0] sm:$0xff]
  %v629 = vld [vmem:[%s1 + $0x12b8] sm:$0xff]
  %v630 = vpack.c.bf16 %v38, %v30
  %v631 = vpack.c.bf16 %v39, %v31
  %v632 = vpack.c.bf16 %v40, %v32
  %v633 = vpack.c.bf16 %v41, %v33
  %v634 = vpack.c.bf16 %v42, %v34
  %v635 = vpack.c.bf16 %v43, %v35
  %v636 = vpack.c.bf16 %v44, %v36
  %v637 = vpack.c.bf16 %v45, %v37
  %v638 = vpack.c.bf16 %v54, %v46
  %v639 = vpack.c.bf16 %v55, %v47
  %v640 = vpack.c.bf16 %v56, %v48
  %v641 = vpack.c.bf16 %v57, %v49
  %v642 = vpack.c.bf16 %v58, %v50
  %v643 = vpack.c.bf16 %v59, %v51
  %v644 = vpack.c.bf16 %v60, %v52
  %v645 = vpack.c.bf16 %v61, %v53
  %v646 = vpack.c.bf16 %v70, %v62
  %v647 = vpack.c.bf16 %v71, %v63
  %v648 = vpack.c.bf16 %v72, %v64
  %v649 = vpack.c.bf16 %v73, %v65
  %v650 = vpack.c.bf16 %v74, %v66
  %v651 = vpack.c.bf16 %v75, %v67
  %v652 = vpack.c.bf16 %v76, %v68
  %v653 = vpack.c.bf16 %v77, %v69
  %v654 = vpack.c.bf16 %v86, %v78
  %v655 = vpack.c.bf16 %v87, %v79
  %v656 = vpack.c.bf16 %v88, %v80
  %v657 = vpack.c.bf16 %v89, %v81
  %v658 = vpack.c.bf16 %v90, %v82
  %v659 = vpack.c.bf16 %v91, %v83
  %v660 = vpack.c.bf16 %v92, %v84
  %v661 = vpack.c.bf16 %v93, %v85
  %v662 = vpack.c.bf16 %v102, %v94
  %v663 = vpack.c.bf16 %v103, %v95
  %v664 = vpack.c.bf16 %v104, %v96
  %v665 = vpack.c.bf16 %v105, %v97
  %v666 = vpack.c.bf16 %v106, %v98
  %v667 = vpack.c.bf16 %v107, %v99
  %v668 = vpack.c.bf16 %v108, %v100
  %v669 = vpack.c.bf16 %v109, %v101
  %v670 = vpack.c.bf16 %v118, %v110
  %v671 = vpack.c.bf16 %v119, %v111
  %v672 = vpack.c.bf16 %v120, %v112
  %v673 = vpack.c.bf16 %v121, %v113
  %v674 = vpack.c.bf16 %v122, %v114
  %v675 = vpack.c.bf16 %v123, %v115
  %v676 = vpack.c.bf16 %v124, %v116
  %v677 = vpack.c.bf16 %v125, %v117
  %v678 = vpack.c.bf16 %v134, %v126
  %v679 = vpack.c.bf16 %v135, %v127
  %v680 = vpack.c.bf16 %v136, %v128
  %v681 = vpack.c.bf16 %v137, %v129
  %v682 = vpack.c.bf16 %v138, %v130
  %v683 = vpack.c.bf16 %v139, %v131
  %v684 = vpack.c.bf16 %v140, %v132
  %v685 = vpack.c.bf16 %v141, %v133
  %v686 = vpack.c.bf16 %v150, %v142
  %v687 = vpack.c.bf16 %v151, %v143
  %v688 = vpack.c.bf16 %v152, %v144
  %v689 = vpack.c.bf16 %v153, %v145
  %v690 = vpack.c.bf16 %v154, %v146
  %v691 = vpack.c.bf16 %v155, %v147
  %v692 = vpack.c.bf16 %v156, %v148
  %v693 = vpack.c.bf16 %v157, %v149
  %v694 = vpack.c.bf16 %v166, %v158
  %v695 = vpack.c.bf16 %v167, %v159
  %v696 = vpack.c.bf16 %v168, %v160
  %v697 = vpack.c.bf16 %v169, %v161
  %v698 = vpack.c.bf16 %v170, %v162
  %v699 = vpack.c.bf16 %v171, %v163
  %v700 = vpack.c.bf16 %v172, %v164
  %v701 = vpack.c.bf16 %v173, %v165
  %v702 = vpack.c.bf16 %v182, %v174
  %v703 = vpack.c.bf16 %v183, %v175
  %v704 = vpack.c.bf16 %v184, %v176
  %v705 = vpack.c.bf16 %v185, %v177
  %v706 = vpack.c.bf16 %v186, %v178
  %v707 = vpack.c.bf16 %v187, %v179
  %v708 = vpack.c.bf16 %v188, %v180
  %v709 = vpack.c.bf16 %v189, %v181
  %v710 = vpack.c.bf16 %v198, %v190
  %v711 = vpack.c.bf16 %v199, %v191
  %v712 = vpack.c.bf16 %v200, %v192
  %v713 = vpack.c.bf16 %v201, %v193
  %v714 = vpack.c.bf16 %v202, %v194
  %v715 = vpack.c.bf16 %v203, %v195
  %v716 = vpack.c.bf16 %v204, %v196
  %v717 = vpack.c.bf16 %v205, %v197
  %v718 = vpack.c.bf16 %v214, %v206
  %v719 = vpack.c.bf16 %v215, %v207
  %v720 = vpack.c.bf16 %v216, %v208
  %v721 = vpack.c.bf16 %v217, %v209
  %v722 = vpack.c.bf16 %v218, %v210
  %v723 = vpack.c.bf16 %v219, %v211
  %v724 = vpack.c.bf16 %v220, %v212
  %v725 = vpack.c.bf16 %v221, %v213
  %v726 = vpack.c.bf16 %v230, %v222
  %v727 = vpack.c.bf16 %v231, %v223
  %v728 = vpack.c.bf16 %v232, %v224
  %v729 = vpack.c.bf16 %v233, %v225
  %v730 = vpack.c.bf16 %v234, %v226
  %v731 = vpack.c.bf16 %v235, %v227
  %v732 = vpack.c.bf16 %v236, %v228
  %v733 = vpack.c.bf16 %v237, %v229
  %v734 = vpack.c.bf16 %v246, %v238
  %v735 = vpack.c.bf16 %v247, %v239
  %v736 = vpack.c.bf16 %v248, %v240
  %v737 = vpack.c.bf16 %v249, %v241
  %v738 = vpack.c.bf16 %v250, %v242
  %v739 = vpack.c.bf16 %v251, %v243
  %v740 = vpack.c.bf16 %v252, %v244
  %v741 = vpack.c.bf16 %v253, %v245
  %v742 = vpack.c.bf16 %v262, %v254
  %v743 = vpack.c.bf16 %v263, %v255
  %v744 = vpack.c.bf16 %v264, %v256
  %v745 = vpack.c.bf16 %v265, %v257
  %v746 = vpack.c.bf16 %v266, %v258
  %v747 = vpack.c.bf16 %v267, %v259
  %v748 = vpack.c.bf16 %v268, %v260
  %v749 = vpack.c.bf16 %v269, %v261
  %v750 = vpack.c.bf16 %v278, %v270
  %v751 = vpack.c.bf16 %v279, %v271
  %v752 = vpack.c.bf16 %v280, %v272
  %v753 = vpack.c.bf16 %v281, %v273
  %v754 = vpack.c.bf16 %v282, %v274
  %v755 = vpack.c.bf16 %v283, %v275
  %v756 = vpack.c.bf16 %v284, %v276
  %v757 = vpack.c.bf16 %v285, %v277
  %v758 = vpack.c.bf16 %v294, %v286
  %v759 = vpack.c.bf16 %v295, %v287
  %v760 = vpack.c.bf16 %v296, %v288
  %v761 = vpack.c.bf16 %v297, %v289
  %v762 = vpack.c.bf16 %v298, %v290
  %v763 = vpack.c.bf16 %v299, %v291
  %v764 = vpack.c.bf16 %v300, %v292
  %v765 = vpack.c.bf16 %v301, %v293
  %v766 = vpack.c.bf16 %v310, %v302
  %v767 = vpack.c.bf16 %v311, %v303
  %v768 = vpack.c.bf16 %v312, %v304
  %v769 = vpack.c.bf16 %v313, %v305
  %v770 = vpack.c.bf16 %v314, %v306
  %v771 = vpack.c.bf16 %v315, %v307
  %v772 = vpack.c.bf16 %v316, %v308
  %v773 = vpack.c.bf16 %v317, %v309
  %v774 = vpack.c.bf16 %v326, %v318
  %v775 = vpack.c.bf16 %v327, %v319
  %v776 = vpack.c.bf16 %v328, %v320
  %v777 = vpack.c.bf16 %v329, %v321
  %v778 = vpack.c.bf16 %v330, %v322
  %v779 = vpack.c.bf16 %v331, %v323
  %v780 = vpack.c.bf16 %v332, %v324
  %v781 = vpack.c.bf16 %v333, %v325
  %v782 = vpack.c.bf16 %v342, %v334
  %v783 = vpack.c.bf16 %v343, %v335
  %v784 = vpack.c.bf16 %v344, %v336
  %v785 = vpack.c.bf16 %v345, %v337
  %v786 = vpack.c.bf16 %v346, %v338
  %v787 = vpack.c.bf16 %v347, %v339
  %v788 = vpack.c.bf16 %v348, %v340
  %v789 = vpack.c.bf16 %v349, %v341
  %v790 = vpack.c.bf16 %v358, %v350
  %v791 = vpack.c.bf16 %v359, %v351
  %v792 = vpack.c.bf16 %v360, %v352
  %v793 = vpack.c.bf16 %v361, %v353
  %v794 = vpack.c.bf16 %v362, %v354
  %v795 = vpack.c.bf16 %v363, %v355
  %v796 = vpack.c.bf16 %v364, %v356
  %v797 = vpack.c.bf16 %v365, %v357
  %v798 = vpack.c.bf16 %v374, %v366
  %v799 = vpack.c.bf16 %v375, %v367
  %v800 = vpack.c.bf16 %v376, %v368
  %v801 = vpack.c.bf16 %v377, %v369
  %v802 = vpack.c.bf16 %v378, %v370
  %v803 = vpack.c.bf16 %v379, %v371
  %v804 = vpack.c.bf16 %v380, %v372
  %v805 = vpack.c.bf16 %v381, %v373
  %v806 = vpack.c.bf16 %v390, %v382
  %v807 = vpack.c.bf16 %v391, %v383
  %v808 = vpack.c.bf16 %v392, %v384
  %v809 = vpack.c.bf16 %v393, %v385
  %v810 = vpack.c.bf16 %v394, %v386
  %v811 = vpack.c.bf16 %v395, %v387
  %v812 = vpack.c.bf16 %v396, %v388
  %v813 = vpack.c.bf16 %v397, %v389
  %v814 = vpack.c.bf16 %v406, %v398
  %v815 = vpack.c.bf16 %v407, %v399
  %v816 = vpack.c.bf16 %v408, %v400
  %v817 = vpack.c.bf16 %v409, %v401
  %v818 = vpack.c.bf16 %v410, %v402
  %v819 = vpack.c.bf16 %v411, %v403
  %v820 = vpack.c.bf16 %v412, %v404
  %v821 = vpack.c.bf16 %v413, %v405
  %v822 = vpack.c.bf16 %v422, %v414
  %v823 = vpack.c.bf16 %v423, %v415
  %v824 = vpack.c.bf16 %v424, %v416
  %v825 = vpack.c.bf16 %v425, %v417
  %v826 = vpack.c.bf16 %v426, %v418
  %v827 = vpack.c.bf16 %v427, %v419
  %v828 = vpack.c.bf16 %v428, %v420
  %v829 = vpack.c.bf16 %v429, %v421
  %v830 = vpack.c.bf16 %v438, %v430
  %v831 = vpack.c.bf16 %v439, %v431
  %v832 = vpack.c.bf16 %v440, %v432
  %v833 = vpack.c.bf16 %v441, %v433
  %v834 = vpack.c.bf16 %v442, %v434
  %v835 = vpack.c.bf16 %v443, %v435
  %v836 = vpack.c.bf16 %v444, %v436
  %v837 = vpack.c.bf16 %v445, %v437
  %v838 = vpack.c.bf16 %v454, %v446
  %v839 = vpack.c.bf16 %v455, %v447
  %v840 = vpack.c.bf16 %v456, %v448
  %v841 = vpack.c.bf16 %v457, %v449
  %v842 = vpack.c.bf16 %v458, %v450
  %v843 = vpack.c.bf16 %v459, %v451
  %v844 = vpack.c.bf16 %v460, %v452
  %v845 = vpack.c.bf16 %v461, %v453
  %v846 = vpack.c.bf16 %v470, %v462
  %v847 = vpack.c.bf16 %v471, %v463
  %v848 = vpack.c.bf16 %v472, %v464
  %v849 = vpack.c.bf16 %v473, %v465
  %v850 = vpack.c.bf16 %v474, %v466
  %v851 = vpack.c.bf16 %v475, %v467
  %v852 = vpack.c.bf16 %v476, %v468
  %v853 = vpack.c.bf16 %v477, %v469
  %v854 = vpack.c.bf16 %v486, %v478
  %v855 = vpack.c.bf16 %v487, %v479
  %v856 = vpack.c.bf16 %v488, %v480
  %v857 = vpack.c.bf16 %v489, %v481
  %v858 = vpack.c.bf16 %v490, %v482
  %v859 = vpack.c.bf16 %v491, %v483
  %v860 = vpack.c.bf16 %v492, %v484
  %v861 = vpack.c.bf16 %v493, %v485
  %v862 = vpack.c.bf16 %v502, %v494
  %v863 = vpack.c.bf16 %v503, %v495
  %v864 = vpack.c.bf16 %v504, %v496
  %v865 = vpack.c.bf16 %v505, %v497
  %v866 = vpack.c.bf16 %v506, %v498
  %v867 = vpack.c.bf16 %v507, %v499
  %v868 = vpack.c.bf16 %v508, %v500
  %v869 = vpack.c.bf16 %v509, %v501
  %v870 = vpack.c.bf16 %v518, %v510
  %v871 = vpack.c.bf16 %v519, %v511
  %v872 = vpack.c.bf16 %v520, %v512
  %v873 = vpack.c.bf16 %v521, %v513
  %v874 = vpack.c.bf16 %v522, %v514
  %v875 = vpack.c.bf16 %v523, %v515
  %v876 = vpack.c.bf16 %v524, %v516
  %v877 = vpack.c.bf16 %v525, %v517
  %v878 = vpack.c.bf16 %v534, %v526
  %v879 = vpack.c.bf16 %v535, %v527
  %v880 = vpack.c.bf16 %v536, %v528
  %v881 = vpack.c.bf16 %v537, %v529
  %v882 = vpack.c.bf16 %v538, %v530
  %v883 = vpack.c.bf16 %v539, %v531
  %v884 = vpack.c.bf16 %v540, %v532
  %v885 = vpack.c.bf16 %v541, %v533
  %v886 = vpack.c.bf16 %v550, %v542
  %v887 = vpack.c.bf16 %v551, %v543
  %v888 = vpack.c.bf16 %v552, %v544
  %v889 = vpack.c.bf16 %v553, %v545
  %v890 = vpack.c.bf16 %v554, %v546
  %v891 = vpack.c.bf16 %v555, %v547
  %v892 = vpack.c.bf16 %v556, %v548
  %v893 = vpack.c.bf16 %v557, %v549
  %v894 = vpack.c.bf16 %v566, %v558
  %v895 = vpack.c.bf16 %v567, %v559
  %v896 = vpack.c.bf16 %v568, %v560
  %v897 = vpack.c.bf16 %v569, %v561
  %v898 = vpack.c.bf16 %v570, %v562
  %v899 = vpack.c.bf16 %v571, %v563
  %v900 = vpack.c.bf16 %v572, %v564
  %v901 = vpack.c.bf16 %v573, %v565
  %v902 = vpack.c.bf16 %v582, %v574
  %v903 = vpack.c.bf16 %v583, %v575
  %v904 = vpack.c.bf16 %v584, %v576
  %v905 = vpack.c.bf16 %v585, %v577
  %v906 = vpack.c.bf16 %v586, %v578
  %v907 = vpack.c.bf16 %v587, %v579
  %v908 = vpack.c.bf16 %v588, %v580
  %v909 = vpack.c.bf16 %v589, %v581
  %v910 = vpack.c.bf16 %v598, %v590
  %v911 = vpack.c.bf16 %v599, %v591
  %v912 = vpack.c.bf16 %v600, %v592
  %v913 = vpack.c.bf16 %v601, %v593
  %v914 = vpack.c.bf16 %v602, %v594
  %v915 = vpack.c.bf16 %v603, %v595
  %v916 = vpack.c.bf16 %v604, %v596
  %v917 = vpack.c.bf16 %v605, %v597
  %v918 = vpack.c.bf16 %v614, %v606
  %v919 = vpack.c.bf16 %v615, %v607
  %v920 = vpack.c.bf16 %v616, %v608
  %v921 = vpack.c.bf16 %v617, %v609
  %v922 = vpack.c.bf16 %v618, %v610
  %v923 = vpack.c.bf16 %v619, %v611
  %v924 = vpack.c.bf16 %v620, %v612
  %v925 = vpack.c.bf16 %v621, %v613
  %v926 = vpack.c.bf16 %v622, %v622
  %v927 = vpack.c.bf16 %v623, %v623
  %v928 = vpack.c.bf16 %v624, %v624
  %v929 = vpack.c.bf16 %v625, %v625
  %v930 = vpack.c.bf16 %v626, %v626
  %v931 = vpack.c.bf16 %v627, %v627
  %v932 = vpack.c.bf16 %v628, %v628
  %v933 = vpack.c.bf16 %v629, %v629
  %v934 = vld [vmem:[%s2] sm:$0xff]
  %v936 = vlaneseq
  %v937 = vshrl.u32 %v936, 7
  %v938 = vsub.s32 0, %v937
  %v939 = vrot.slane %v934, %v938
  %v940 = vlaneseq
  %v941 = vshrl.u32 %v940, 7
  %v942 = vsub.s32 1, %v941
  %v943 = vrot.slane %v934, %v942
  %v944 = vlaneseq
  %v945 = vshrl.u32 %v944, 7
  %v946 = vsub.s32 2, %v945
  %v947 = vrot.slane %v934, %v946
  %v948 = vlaneseq
  %v949 = vshrl.u32 %v948, 7
  %v950 = vsub.s32 3, %v949
  %v951 = vrot.slane %v934, %v950
  %v952 = vlaneseq
  %v953 = vshrl.u32 %v952, 7
  %v954 = vsub.s32 4, %v953
  %v955 = vrot.slane %v934, %v954
  %v956 = vlaneseq
  %v957 = vshrl.u32 %v956, 7
  %v958 = vsub.s32 5, %v957
  %v959 = vrot.slane %v934, %v958
  %v960 = vlaneseq
  %v961 = vshrl.u32 %v960, 7
  %v962 = vsub.s32 6, %v961
  %v963 = vrot.slane %v934, %v962
  %v964 = vlaneseq
  %v965 = vshrl.u32 %v964, 7
  %v966 = vsub.s32 7, %v965
  %v967 = vrot.slane %v934, %v966
  %vm976 = vcmask 719872
  %v978 = vsel %vm976, %v29, 0
  %vm980 = vcmask 1043456
  %v982 = vsel %vm980, %v926, 0
  %v985 = vsel %vm980, %v927, 0
  %v988 = vsel %vm980, %v928, 0
  %v991 = vsel %vm980, %v929, 0
  %v994 = vsel %vm980, %v930, 0
  %v997 = vsel %vm980, %v931, 0
  %v1000 = vsel %vm980, %v932, 0
  %v1003 = vsel %vm980, %v933, 0
  %1005 = vmatprep.subr.bf16.mxu0 %v631
  %1006 = vmatpush1.bf16.msra.mxu0 %v630
  %1007 = vmatprep.subr.bf16.mxu0 %v639
  %1008 = vmatpush1.bf16.msra.mxu0 %v638
  %1009 = vmatprep.subr.bf16.mxu0 %v647
  %1010 = vmatpush1.bf16.msra.mxu0 %v646
  %1011 = vmatprep.subr.bf16.mxu0 %v655
  %1012 = vmatpush1.bf16.msra.mxu0 %v654
  %1013 = vmatprep.subr.bf16.mxu0 %v663
  %1014 = vmatpush1.bf16.msra.mxu0 %v662
  %1015 = vmatprep.subr.bf16.mxu0 %v671
  %1016 = vmatpush1.bf16.msra.mxu0 %v670
  %1017 = vmatprep.subr.bf16.mxu0 %v679
  %1018 = vmatpush1.bf16.msra.mxu0 %v678
  %1019 = vmatprep.subr.bf16.mxu0 %v687
  %1020 = vmatpush1.bf16.msra.mxu0 %v686
  %1021 = vmatprep.subr.bf16.mxu0 %v695
  %1022 = vmatpush1.bf16.msra.mxu0 %v694
  %1023 = vmatprep.subr.bf16.mxu0 %v703
  %1024 = vmatpush1.bf16.msra.mxu0 %v702
  %1025 = vmatprep.subr.bf16.mxu0 %v711
  %1026 = vmatpush1.bf16.msra.mxu0 %v710
  %1027 = vmatprep.subr.bf16.mxu0 %v719
  %1028 = vmatpush1.bf16.msra.mxu0 %v718
  %1029 = vmatprep.subr.bf16.mxu0 %v727
  %1030 = vmatpush1.bf16.msra.mxu0 %v726
  %1031 = vmatprep.subr.bf16.mxu0 %v735
  %1032 = vmatpush1.bf16.msra.mxu0 %v734
  %1033 = vmatprep.subr.bf16.mxu0 %v743
  %1034 = vmatpush1.bf16.msra.mxu0 %v742
  %1035 = vmatprep.subr.bf16.mxu0 %v751
  %1036 = vmatpush1.bf16.msra.mxu0 %v750
  %1037 = vmatprep.mubr.bf16.mxu0 %v26
  %1038 = vmatmul.mubr.bf16.gmra.mrb[0].mxu0 %v25
  %v1039 = vpop.f32.mrb[0].mxu0
  %v1040 = vadd.f32 %v939, %v1039
  %v1041 = vpop.f32.mrb[0].mxu0
  %v1042 = vadd.f32 %v943, %v1041
  %v1043 = vpop.f32.mrb[0].mxu0
  %v1044 = vadd.f32 %v939, %v1043
  %v1045 = vpop.f32.mrb[0].mxu0
  %v1046 = vadd.f32 %v943, %v1045
  %1047 = vdwg.mxu0
  %1048 = vmatprep.subr.bf16.mxu0 %v759
  %1049 = vmatpush1.bf16.msra.mxu0 %v758
  %1050 = vmatprep.subr.bf16.mxu0 %v767
  %1051 = vmatpush1.bf16.msra.mxu0 %v766
  %1052 = vmatprep.subr.bf16.mxu0 %v775
  %1053 = vmatpush1.bf16.msra.mxu0 %v774
  %1054 = vmatprep.subr.bf16.mxu0 %v783
  %1055 = vmatpush1.bf16.msra.mxu0 %v782
  %1056 = vmatprep.subr.bf16.mxu0 %v791
  %1057 = vmatpush1.bf16.msra.mxu0 %v790
  %1058 = vmatprep.subr.bf16.mxu0 %v799
  %1059 = vmatpush1.bf16.msra.mxu0 %v798
  %1060 = vmatprep.subr.bf16.mxu0 %v807
  %1061 = vmatpush1.bf16.msra.mxu0 %v806
  %1062 = vmatprep.subr.bf16.mxu0 %v815
  %1063 = vmatpush1.bf16.msra.mxu0 %v814
  %1064 = vmatprep.subr.bf16.mxu0 %v823
  %1065 = vmatpush1.bf16.msra.mxu0 %v822
  %1066 = vmatprep.subr.bf16.mxu0 %v831
  %1067 = vmatpush1.bf16.msra.mxu0 %v830
  %1068 = vmatprep.subr.bf16.mxu0 %v839
  %1069 = vmatpush1.bf16.msra.mxu0 %v838
  %1070 = vmatprep.subr.bf16.mxu0 %v847
  %1071 = vmatpush1.bf16.msra.mxu0 %v846
  %1072 = vmatprep.subr.bf16.mxu0 %v855
  %1073 = vmatpush1.bf16.msra.mxu0 %v854
  %1074 = vmatprep.subr.bf16.mxu0 %v863
  %1075 = vmatpush1.bf16.msra.mxu0 %v862
  %1076 = vmatprep.subr.bf16.mxu0 %v871
  %1077 = vmatpush1.bf16.msra.mxu0 %v870
  %1078 = vmatprep.subr.bf16.mxu0 %v879
  %1079 = vmatpush1.bf16.msra.mxu0 %v878
  %1080 = vmatprep.mubr.bf16.mxu0 %v28
  %1081 = vmatmul.mubr.bf16.gmra.mrb[0].mxu0 %v27
  %v1082 = vpop.f32.mrb[0].mxu0
  %v1083 = vadd.f32 %v1040, %v1082
  %v1084 = vpop.f32.mrb[0].mxu0
  %v1085 = vadd.f32 %v1042, %v1084
  %v1086 = vpop.f32.mrb[0].mxu0
  %v1087 = vadd.f32 %v1044, %v1086
  %v1088 = vpop.f32.mrb[0].mxu0
  %v1089 = vadd.f32 %v1046, %v1088
  %1090 = vdwg.mxu0
  %1091 = vmatprep.subr.bf16.mxu0 %v887
  %1092 = vmatpush1.bf16.msra.mxu0 %v886
  %1093 = vmatprep.subr.bf16.mxu0 %v895
  %1094 = vmatpush1.bf16.msra.mxu0 %v894
  %1095 = vmatprep.subr.bf16.mxu0 %v903
  %1096 = vmatpush1.bf16.msra.mxu0 %v902
  %1097 = vmatprep.subr.bf16.mxu0 %v911
  %1098 = vmatpush1.bf16.msra.mxu0 %v910
  %1099 = vmatprep.subr.bf16.mxu0 %v919
  %1100 = vmatpush1.bf16.msra.mxu0 %v918
  %1101 = vmatprep.subr.bf16.mxu0 %v985
  %1102 = vmatpush1.bf16.msra.mxu0 %v982
  %1103 = vmatprep.subr.bf16.mxu0 0
  %1104 = vmatpush1.bf16.msra.mxu0 0
  %1105 = vmatprep.subr.bf16.mxu0 0
  %1106 = vmatpush1.bf16.msra.mxu0 0
  %1107 = vmatprep.subr.bf16.mxu0 0
  %1108 = vmatpush1.bf16.msra.mxu0 0
  %1109 = vmatprep.subr.bf16.mxu0 0
  %1110 = vmatpush1.bf16.msra.mxu0 0
  %1111 = vmatprep.subr.bf16.mxu0 0
  %1112 = vmatpush1.bf16.msra.mxu0 0
  %1113 = vmatprep.subr.bf16.mxu0 0
  %1114 = vmatpush1.bf16.msra.mxu0 0
  %1115 = vmatprep.subr.bf16.mxu0 0
  %1116 = vmatpush1.bf16.msra.mxu0 0
  %1117 = vmatprep.subr.bf16.mxu0 0
  %1118 = vmatpush1.bf16.msra.mxu0 0
  %1119 = vmatprep.subr.bf16.mxu0 0
  %1120 = vmatpush1.bf16.msra.mxu0 0
  %1121 = vmatprep.subr.bf16.mxu0 0
  %1122 = vmatpush1.bf16.msra.mxu0 0
  %1123 = vmatprep.mubr.bf16.mxu0 0
  %1124 = vmatmul.mubr.bf16.gmra.mrb[0].mxu0 %v978
  %v1125 = vpop.f32.mrb[0].mxu0
  %v1126 = vadd.f32 %v1083, %v1125
  %v1127 = vpop.f32.mrb[0].mxu0
  %v1128 = vadd.f32 %v1085, %v1127
  %v1129 = vpop.f32.mrb[0].mxu0
  %v1130 = vadd.f32 %v1087, %v1129
  %v1131 = vpop.f32.mrb[0].mxu0
  %v1132 = vadd.f32 %v1089, %v1131
  %1133 = vdwg.mxu0
  %1134 = vmatprep.subr.bf16.mxu0 %v633
  %1135 = vmatpush1.bf16.msra.mxu0 %v632
  %1136 = vmatprep.subr.bf16.mxu0 %v641
  %1137 = vmatpush1.bf16.msra.mxu0 %v640
  %1138 = vmatprep.subr.bf16.mxu0 %v649
  %1139 = vmatpush1.bf16.msra.mxu0 %v648
  %1140 = vmatprep.subr.bf16.mxu0 %v657
  %1141 = vmatpush1.bf16.msra.mxu0 %v656
  %1142 = vmatprep.subr.bf16.mxu0 %v665
  %1143 = vmatpush1.bf16.msra.mxu0 %v664
  %1144 = vmatprep.subr.bf16.mxu0 %v673
  %1145 = vmatpush1.bf16.msra.mxu0 %v672
  %1146 = vmatprep.subr.bf16.mxu0 %v681
  %1147 = vmatpush1.bf16.msra.mxu0 %v680
  %1148 = vmatprep.subr.bf16.mxu0 %v689
  %1149 = vmatpush1.bf16.msra.mxu0 %v688
  %1150 = vmatprep.subr.bf16.mxu0 %v697
  %1151 = vmatpush1.bf16.msra.mxu0 %v696
  %1152 = vmatprep.subr.bf16.mxu0 %v705
  %1153 = vmatpush1.bf16.msra.mxu0 %v704
  %1154 = vmatprep.subr.bf16.mxu0 %v713
  %1155 = vmatpush1.bf16.msra.mxu0 %v712
  %1156 = vmatprep.subr.bf16.mxu0 %v721
  %1157 = vmatpush1.bf16.msra.mxu0 %v720
  %1158 = vmatprep.subr.bf16.mxu0 %v729
  %1159 = vmatpush1.bf16.msra.mxu0 %v728
  %1160 = vmatprep.subr.bf16.mxu0 %v737
  %1161 = vmatpush1.bf16.msra.mxu0 %v736
  %1162 = vmatprep.subr.bf16.mxu0 %v745
  %1163 = vmatpush1.bf16.msra.mxu0 %v744
  %1164 = vmatprep.subr.bf16.mxu0 %v753
  %1165 = vmatpush1.bf16.msra.mxu0 %v752
  %1166 = vmatprep.mubr.bf16.mxu0 %v26
  %1167 = vmatmul.mubr.bf16.gmra.mrb[0].mxu0 %v25
  %v1168 = vpop.f32.mrb[0].mxu0
  %v1169 = vadd.f32 %v947, %v1168
  %v1170 = vpop.f32.mrb[0].mxu0
  %v1171 = vadd.f32 %v951, %v1170
  %v1172 = vpop.f32.mrb[0].mxu0
  %v1173 = vadd.f32 %v947, %v1172
  %v1174 = vpop.f32.mrb[0].mxu0
  %v1175 = vadd.f32 %v951, %v1174
  %1176 = vdwg.mxu0
  %1177 = vmatprep.subr.bf16.mxu0 %v761
  %1178 = vmatpush1.bf16.msra.mxu0 %v760
  %1179 = vmatprep.subr.bf16.mxu0 %v769
  %1180 = vmatpush1.bf16.msra.mxu0 %v768
  %1181 = vmatprep.subr.bf16.mxu0 %v777
  %1182 = vmatpush1.bf16.msra.mxu0 %v776
  %1183 = vmatprep.subr.bf16.mxu0 %v785
  %1184 = vmatpush1.bf16.msra.mxu0 %v784
  %1185 = vmatprep.subr.bf16.mxu0 %v793
  %1186 = vmatpush1.bf16.msra.mxu0 %v792
  %1187 = vmatprep.subr.bf16.mxu0 %v801
  %1188 = vmatpush1.bf16.msra.mxu0 %v800
  %1189 = vmatprep.subr.bf16.mxu0 %v809
  %1190 = vmatpush1.bf16.msra.mxu0 %v808
  %1191 = vmatprep.subr.bf16.mxu0 %v817
  %1192 = vmatpush1.bf16.msra.mxu0 %v816
  %1193 = vmatprep.subr.bf16.mxu0 %v825
  %1194 = vmatpush1.bf16.msra.mxu0 %v824
  %1195 = vmatprep.subr.bf16.mxu0 %v833
  %1196 = vmatpush1.bf16.msra.mxu0 %v832
  %1197 = vmatprep.subr.bf16.mxu0 %v841
  %1198 = vmatpush1.bf16.msra.mxu0 %v840
  %1199 = vmatprep.subr.bf16.mxu0 %v849
  %1200 = vmatpush1.bf16.msra.mxu0 %v848
  %1201 = vmatprep.subr.bf16.mxu0 %v857
  %1202 = vmatpush1.bf16.msra.mxu0 %v856
  %1203 = vmatprep.subr.bf16.mxu0 %v865
  %1204 = vmatpush1.bf16.msra.mxu0 %v864
  %1205 = vmatprep.subr.bf16.mxu0 %v873
  %1206 = vmatpush1.bf16.msra.mxu0 %v872
  %1207 = vmatprep.subr.bf16.mxu0 %v881
  %1208 = vmatpush1.bf16.msra.mxu0 %v880
  %1209 = vmatprep.mubr.bf16.mxu0 %v28
  %1210 = vmatmul.mubr.bf16.gmra.mrb[0].mxu0 %v27
  %v1211 = vpop.f32.mrb[0].mxu0
  %v1212 = vadd.f32 %v1169, %v1211
  %v1213 = vpop.f32.mrb[0].mxu0
  %v1214 = vadd.f32 %v1171, %v1213
  %v1215 = vpop.f32.mrb[0].mxu0
  %v1216 = vadd.f32 %v1173, %v1215
  %v1217 = vpop.f32.mrb[0].mxu0
  %v1218 = vadd.f32 %v1175, %v1217
  %1219 = vdwg.mxu0
  %1220 = vmatprep.subr.bf16.mxu0 %v889
  %1221 = vmatpush1.bf16.msra.mxu0 %v888
  %1222 = vmatprep.subr.bf16.mxu0 %v897
  %1223 = vmatpush1.bf16.msra.mxu0 %v896
  %1224 = vmatprep.subr.bf16.mxu0 %v905
  %1225 = vmatpush1.bf16.msra.mxu0 %v904
  %1226 = vmatprep.subr.bf16.mxu0 %v913
  %1227 = vmatpush1.bf16.msra.mxu0 %v912
  %1228 = vmatprep.subr.bf16.mxu0 %v921
  %1229 = vmatpush1.bf16.msra.mxu0 %v920
  %1230 = vmatprep.subr.bf16.mxu0 %v991
  %1231 = vmatpush1.bf16.msra.mxu0 %v988
  %1232 = vmatprep.subr.bf16.mxu0 0
  %1233 = vmatpush1.bf16.msra.mxu0 0
  %1234 = vmatprep.subr.bf16.mxu0 0
  %1235 = vmatpush1.bf16.msra.mxu0 0
  %1236 = vmatprep.subr.bf16.mxu0 0
  %1237 = vmatpush1.bf16.msra.mxu0 0
  %1238 = vmatprep.subr.bf16.mxu0 0
  %1239 = vmatpush1.bf16.msra.mxu0 0
  %1240 = vmatprep.subr.bf16.mxu0 0
  %1241 = vmatpush1.bf16.msra.mxu0 0
  %1242 = vmatprep.subr.bf16.mxu0 0
  %1243 = vmatpush1.bf16.msra.mxu0 0
  %1244 = vmatprep.subr.bf16.mxu0 0
  %1245 = vmatpush1.bf16.msra.mxu0 0
  %1246 = vmatprep.subr.bf16.mxu0 0
  %1247 = vmatpush1.bf16.msra.mxu0 0
  %1248 = vmatprep.subr.bf16.mxu0 0
  %1249 = vmatpush1.bf16.msra.mxu0 0
  %1250 = vmatprep.subr.bf16.mxu0 0
  %1251 = vmatpush1.bf16.msra.mxu0 0
  %1252 = vmatprep.mubr.bf16.mxu0 0
  %1253 = vmatmul.mubr.bf16.gmra.mrb[0].mxu0 %v978
  %v1254 = vpop.f32.mrb[0].mxu0
  %v1255 = vadd.f32 %v1212, %v1254
  %v1256 = vpop.f32.mrb[0].mxu0
  %v1257 = vadd.f32 %v1214, %v1256
  %v1258 = vpop.f32.mrb[0].mxu0
  %v1259 = vadd.f32 %v1216, %v1258
  %v1260 = vpop.f32.mrb[0].mxu0
  %v1261 = vadd.f32 %v1218, %v1260
  %1262 = vdwg.mxu0
  %1263 = vmatprep.subr.bf16.mxu0 %v635
  %1264 = vmatpush1.bf16.msra.mxu0 %v634
  %1265 = vmatprep.subr.bf16.mxu0 %v643
  %1266 = vmatpush1.bf16.msra.mxu0 %v642
  %1267 = vmatprep.subr.bf16.mxu0 %v651
  %1268 = vmatpush1.bf16.msra.mxu0 %v650
  %1269 = vmatprep.subr.bf16.mxu0 %v659
  %1270 = vmatpush1.bf16.msra.mxu0 %v658
  %1271 = vmatprep.subr.bf16.mxu0 %v667
  %1272 = vmatpush1.bf16.msra.mxu0 %v666
  %1273 = vmatprep.subr.bf16.mxu0 %v675
  %1274 = vmatpush1.bf16.msra.mxu0 %v674
  %1275 = vmatprep.subr.bf16.mxu0 %v683
  %1276 = vmatpush1.bf16.msra.mxu0 %v682
  %1277 = vmatprep.subr.bf16.mxu0 %v691
  %1278 = vmatpush1.bf16.msra.mxu0 %v690
  %1279 = vmatprep.subr.bf16.mxu0 %v699
  %1280 = vmatpush1.bf16.msra.mxu0 %v698
  %1281 = vmatprep.subr.bf16.mxu0 %v707
  %1282 = vmatpush1.bf16.msra.mxu0 %v706
  %1283 = vmatprep.subr.bf16.mxu0 %v715
  %1284 = vmatpush1.bf16.msra.mxu0 %v714
  %1285 = vmatprep.subr.bf16.mxu0 %v723
  %1286 = vmatpush1.bf16.msra.mxu0 %v722
  %1287 = vmatprep.subr.bf16.mxu0 %v731
  %1288 = vmatpush1.bf16.msra.mxu0 %v730
  %1289 = vmatprep.subr.bf16.mxu0 %v739
  %1290 = vmatpush1.bf16.msra.mxu0 %v738
  %1291 = vmatprep.subr.bf16.mxu0 %v747
  %1292 = vmatpush1.bf16.msra.mxu0 %v746
  %1293 = vmatprep.subr.bf16.mxu0 %v755
  %1294 = vmatpush1.bf16.msra.mxu0 %v754
  %1295 = vmatprep.mubr.bf16.mxu0 %v26
  %1296 = vmatmul.mubr.bf16.gmra.mrb[0].mxu0 %v25
  %v1297 = vpop.f32.mrb[0].mxu0
  %v1298 = vadd.f32 %v955, %v1297
  %v1299 = vpop.f32.mrb[0].mxu0
  %v1300 = vadd.f32 %v959, %v1299
  %v1301 = vpop.f32.mrb[0].mxu0
  %v1302 = vadd.f32 %v955, %v1301
  %v1303 = vpop.f32.mrb[0].mxu0
  %v1304 = vadd.f32 %v959, %v1303
  %1305 = vdwg.mxu0
  %1306 = vmatprep.subr.bf16.mxu0 %v763
  %1307 = vmatpush1.bf16.msra.mxu0 %v762
  %1308 = vmatprep.subr.bf16.mxu0 %v771
  %1309 = vmatpush1.bf16.msra.mxu0 %v770
  %1310 = vmatprep.subr.bf16.mxu0 %v779
  %1311 = vmatpush1.bf16.msra.mxu0 %v778
  %1312 = vmatprep.subr.bf16.mxu0 %v787
  %1313 = vmatpush1.bf16.msra.mxu0 %v786
  %1314 = vmatprep.subr.bf16.mxu0 %v795
  %1315 = vmatpush1.bf16.msra.mxu0 %v794
  %1316 = vmatprep.subr.bf16.mxu0 %v803
  %1317 = vmatpush1.bf16.msra.mxu0 %v802
  %1318 = vmatprep.subr.bf16.mxu0 %v811
  %1319 = vmatpush1.bf16.msra.mxu0 %v810
  %1320 = vmatprep.subr.bf16.mxu0 %v819
  %1321 = vmatpush1.bf16.msra.mxu0 %v818
  %1322 = vmatprep.subr.bf16.mxu0 %v827
  %1323 = vmatpush1.bf16.msra.mxu0 %v826
  %1324 = vmatprep.subr.bf16.mxu0 %v835
  %1325 = vmatpush1.bf16.msra.mxu0 %v834
  %1326 = vmatprep.subr.bf16.mxu0 %v843
  %1327 = vmatpush1.bf16.msra.mxu0 %v842
  %1328 = vmatprep.subr.bf16.mxu0 %v851
  %1329 = vmatpush1.bf16.msra.mxu0 %v850
  %1330 = vmatprep.subr.bf16.mxu0 %v859
  %1331 = vmatpush1.bf16.msra.mxu0 %v858
  %1332 = vmatprep.subr.bf16.mxu0 %v867
  %1333 = vmatpush1.bf16.msra.mxu0 %v866
  %1334 = vmatprep.subr.bf16.mxu0 %v875
  %1335 = vmatpush1.bf16.msra.mxu0 %v874
  %1336 = vmatprep.subr.bf16.mxu0 %v883
  %1337 = vmatpush1.bf16.msra.mxu0 %v882
  %1338 = vmatprep.mubr.bf16.mxu0 %v28
  %1339 = vmatmul.mubr.bf16.gmra.mrb[0].mxu0 %v27
  %v1340 = vpop.f32.mrb[0].mxu0
  %v1341 = vadd.f32 %v1298, %v1340
  %v1342 = vpop.f32.mrb[0].mxu0
  %v1343 = vadd.f32 %v1300, %v1342
  %v1344 = vpop.f32.mrb[0].mxu0
  %v1345 = vadd.f32 %v1302, %v1344
  %v1346 = vpop.f32.mrb[0].mxu0
  %v1347 = vadd.f32 %v1304, %v1346
  %1348 = vdwg.mxu0
  %1349 = vmatprep.subr.bf16.mxu0 %v891
  %1350 = vmatpush1.bf16.msra.mxu0 %v890
  %1351 = vmatprep.subr.bf16.mxu0 %v899
  %1352 = vmatpush1.bf16.msra.mxu0 %v898
  %1353 = vmatprep.subr.bf16.mxu0 %v907
  %1354 = vmatpush1.bf16.msra.mxu0 %v906
  %1355 = vmatprep.subr.bf16.mxu0 %v915
  %1356 = vmatpush1.bf16.msra.mxu0 %v914
  %1357 = vmatprep.subr.bf16.mxu0 %v923
  %1358 = vmatpush1.bf16.msra.mxu0 %v922
  %1359 = vmatprep.subr.bf16.mxu0 %v997
  %1360 = vmatpush1.bf16.msra.mxu0 %v994
  %1361 = vmatprep.subr.bf16.mxu0 0
  %1362 = vmatpush1.bf16.msra.mxu0 0
  %1363 = vmatprep.subr.bf16.mxu0 0
  %1364 = vmatpush1.bf16.msra.mxu0 0
  %1365 = vmatprep.subr.bf16.mxu0 0
  %1366 = vmatpush1.bf16.msra.mxu0 0
  %1367 = vmatprep.subr.bf16.mxu0 0
  %1368 = vmatpush1.bf16.msra.mxu0 0
  %1369 = vmatprep.subr.bf16.mxu0 0
  %1370 = vmatpush1.bf16.msra.mxu0 0
  %1371 = vmatprep.subr.bf16.mxu0 0
  %1372 = vmatpush1.bf16.msra.mxu0 0
  %1373 = vmatprep.subr.bf16.mxu0 0
  %1374 = vmatpush1.bf16.msra.mxu0 0
  %1375 = vmatprep.subr.bf16.mxu0 0
  %1376 = vmatpush1.bf16.msra.mxu0 0
  %1377 = vmatprep.subr.bf16.mxu0 0
  %1378 = vmatpush1.bf16.msra.mxu0 0
  %1379 = vmatprep.subr.bf16.mxu0 0
  %1380 = vmatpush1.bf16.msra.mxu0 0
  %1381 = vmatprep.mubr.bf16.mxu0 0
  %1382 = vmatmul.mubr.bf16.gmra.mrb[0].mxu0 %v978
  %v1383 = vpop.f32.mrb[0].mxu0
  %v1384 = vadd.f32 %v1341, %v1383
  %v1385 = vpop.f32.mrb[0].mxu0
  %v1386 = vadd.f32 %v1343, %v1385
  %v1387 = vpop.f32.mrb[0].mxu0
  %v1388 = vadd.f32 %v1345, %v1387
  %v1389 = vpop.f32.mrb[0].mxu0
  %v1390 = vadd.f32 %v1347, %v1389
  %1391 = vdwg.mxu0
  %1392 = vmatprep.subr.bf16.mxu0 %v637
  %1393 = vmatpush1.bf16.msra.mxu0 %v636
  %1394 = vmatprep.subr.bf16.mxu0 %v645
  %1395 = vmatpush1.bf16.msra.mxu0 %v644
  %1396 = vmatprep.subr.bf16.mxu0 %v653
  %1397 = vmatpush1.bf16.msra.mxu0 %v652
  %1398 = vmatprep.subr.bf16.mxu0 %v661
  %1399 = vmatpush1.bf16.msra.mxu0 %v660
  %1400 = vmatprep.subr.bf16.mxu0 %v669
  %1401 = vmatpush1.bf16.msra.mxu0 %v668
  %1402 = vmatprep.subr.bf16.mxu0 %v677
  %1403 = vmatpush1.bf16.msra.mxu0 %v676
  %1404 = vmatprep.subr.bf16.mxu0 %v685
  %1405 = vmatpush1.bf16.msra.mxu0 %v684
  %1406 = vmatprep.subr.bf16.mxu0 %v693
  %1407 = vmatpush1.bf16.msra.mxu0 %v692
  %1408 = vmatprep.subr.bf16.mxu0 %v701
  %1409 = vmatpush1.bf16.msra.mxu0 %v700
  %1410 = vmatprep.subr.bf16.mxu0 %v709
  %1411 = vmatpush1.bf16.msra.mxu0 %v708
  %1412 = vmatprep.subr.bf16.mxu0 %v717
  %1413 = vmatpush1.bf16.msra.mxu0 %v716
  %1414 = vmatprep.subr.bf16.mxu0 %v725
  %1415 = vmatpush1.bf16.msra.mxu0 %v724
  %1416 = vmatprep.subr.bf16.mxu0 %v733
  %1417 = vmatpush1.bf16.msra.mxu0 %v732
  %1418 = vmatprep.subr.bf16.mxu0 %v741
  %1419 = vmatpush1.bf16.msra.mxu0 %v740
  %1420 = vmatprep.subr.bf16.mxu0 %v749
  %1421 = vmatpush1.bf16.msra.mxu0 %v748
  %1422 = vmatprep.subr.bf16.mxu0 %v757
  %1423 = vmatpush1.bf16.msra.mxu0 %v756
  %1424 = vmatprep.mubr.bf16.mxu0 %v26
  %1425 = vmatmul.mubr.bf16.gmra.mrb[0].mxu0 %v25
  %v1426 = vpop.f32.mrb[0].mxu0
  %v1427 = vadd.f32 %v963, %v1426
  %v1428 = vpop.f32.mrb[0].mxu0
  %v1429 = vadd.f32 %v967, %v1428
  %v1430 = vpop.f32.mrb[0].mxu0
  %v1431 = vadd.f32 %v963, %v1430
  %v1432 = vpop.f32.mrb[0].mxu0
  %v1433 = vadd.f32 %v967, %v1432
  %1434 = vdwg.mxu0
  %1435 = vmatprep.subr.bf16.mxu0 %v765
  %1436 = vmatpush1.bf16.msra.mxu0 %v764
  %1437 = vmatprep.subr.bf16.mxu0 %v773
  %1438 = vmatpush1.bf16.msra.mxu0 %v772
  %1439 = vmatprep.subr.bf16.mxu0 %v781
  %1440 = vmatpush1.bf16.msra.mxu0 %v780
  %1441 = vmatprep.subr.bf16.mxu0 %v789
  %1442 = vmatpush1.bf16.msra.mxu0 %v788
  %1443 = vmatprep.subr.bf16.mxu0 %v797
  %1444 = vmatpush1.bf16.msra.mxu0 %v796
  %1445 = vmatprep.subr.bf16.mxu0 %v805
  %1446 = vmatpush1.bf16.msra.mxu0 %v804
  %1447 = vmatprep.subr.bf16.mxu0 %v813
  %1448 = vmatpush1.bf16.msra.mxu0 %v812
  %1449 = vmatprep.subr.bf16.mxu0 %v821
  %1450 = vmatpush1.bf16.msra.mxu0 %v820
  %1451 = vmatprep.subr.bf16.mxu0 %v829
  %1452 = vmatpush1.bf16.msra.mxu0 %v828
  %1453 = vmatprep.subr.bf16.mxu0 %v837
  %1454 = vmatpush1.bf16.msra.mxu0 %v836
  %1455 = vmatprep.subr.bf16.mxu0 %v845
  %1456 = vmatpush1.bf16.msra.mxu0 %v844
  %1457 = vmatprep.subr.bf16.mxu0 %v853
  %1458 = vmatpush1.bf16.msra.mxu0 %v852
  %1459 = vmatprep.subr.bf16.mxu0 %v861
  %1460 = vmatpush1.bf16.msra.mxu0 %v860
  %1461 = vmatprep.subr.bf16.mxu0 %v869
  %1462 = vmatpush1.bf16.msra.mxu0 %v868
  %1463 = vmatprep.subr.bf16.mxu0 %v877
  %1464 = vmatpush1.bf16.msra.mxu0 %v876
  %1465 = vmatprep.subr.bf16.mxu0 %v885
  %1466 = vmatpush1.bf16.msra.mxu0 %v884
  %1467 = vmatprep.mubr.bf16.mxu0 %v28
  %1468 = vmatmul.mubr.bf16.gmra.mrb[0].mxu0 %v27
  %v1469 = vpop.f32.mrb[0].mxu0
  %v1470 = vadd.f32 %v1427, %v1469
  %v1471 = vpop.f32.mrb[0].mxu0
  %v1472 = vadd.f32 %v1429, %v1471
  %v1473 = vpop.f32.mrb[0].mxu0
  %v1474 = vadd.f32 %v1431, %v1473
  %v1475 = vpop.f32.mrb[0].mxu0
  %v1476 = vadd.f32 %v1433, %v1475
  %1477 = vdwg.mxu0
  %1478 = vmatprep.subr.bf16.mxu0 %v893
  %1479 = vmatpush1.bf16.msra.mxu0 %v892
  %1480 = vmatprep.subr.bf16.mxu0 %v901
  %1481 = vmatpush1.bf16.msra.mxu0 %v900
  %1482 = vmatprep.subr.bf16.mxu0 %v909
  %1483 = vmatpush1.bf16.msra.mxu0 %v908
  %1484 = vmatprep.subr.bf16.mxu0 %v917
  %1485 = vmatpush1.bf16.msra.mxu0 %v916
  %1486 = vmatprep.subr.bf16.mxu0 %v925
  %1487 = vmatpush1.bf16.msra.mxu0 %v924
  %1488 = vmatprep.subr.bf16.mxu0 %v1003
  %1489 = vmatpush1.bf16.msra.mxu0 %v1000
  %1490 = vmatprep.subr.bf16.mxu0 0
  %1491 = vmatpush1.bf16.msra.mxu0 0
  %1492 = vmatprep.subr.bf16.mxu0 0
  %1493 = vmatpush1.bf16.msra.mxu0 0
  %1494 = vmatprep.subr.bf16.mxu0 0
  %1495 = vmatpush1.bf16.msra.mxu0 0
  %1496 = vmatprep.subr.bf16.mxu0 0
  %1497 = vmatpush1.bf16.msra.mxu0 0
  %1498 = vmatprep.subr.bf16.mxu0 0
  %1499 = vmatpush1.bf16.msra.mxu0 0
  %1500 = vmatprep.subr.bf16.mxu0 0
  %1501 = vmatpush1.bf16.msra.mxu0 0
  %1502 = vmatprep.subr.bf16.mxu0 0
  %1503 = vmatpush1.bf16.msra.mxu0 0
  %1504 = vmatprep.subr.bf16.mxu0 0
  %1505 = vmatpush1.bf16.msra.mxu0 0
  %1506 = vmatprep.subr.bf16.mxu0 0
  %1507 = vmatpush1.bf16.msra.mxu0 0
  %1508 = vmatprep.subr.bf16.mxu0 0
  %1509 = vmatpush1.bf16.msra.mxu0 0
  %1510 = vmatprep.mubr.bf16.mxu0 0
  %1511 = vmatmul.mubr.bf16.gmra.mrb[0].mxu0 %v978
  %v1512 = vpop.f32.mrb[0].mxu0
  %v1513 = vadd.f32 %v1470, %v1512
  %v1514 = vpop.f32.mrb[0].mxu0
  %v1515 = vadd.f32 %v1472, %v1514
  %v1516 = vpop.f32.mrb[0].mxu0
  %v1517 = vadd.f32 %v1474, %v1516
  %v1518 = vpop.f32.mrb[0].mxu0
  %v1519 = vadd.f32 %v1476, %v1518
  %1520 = vdwg.mxu0
  %1521 = vst [vmem:[%s3] sm:$0xff] %v1126
  %1522 = vst [vmem:[%s3 + $0x8] sm:$0xff] %v1128
  %1523 = vst [vmem:[%s3 + $0x10] sm:$0xff] %v1255
  %1524 = vst [vmem:[%s3 + $0x18] sm:$0xff] %v1257
  %1525 = vst [vmem:[%s3 + $0x20] sm:$0xff] %v1384
  %1526 = vst [vmem:[%s3 + $0x28] sm:$0xff] %v1386
  %1527 = vst [vmem:[%s3 + $0x30] sm:$0xff] %v1513
  %1528 = vst [vmem:[%s3 + $0x38] sm:$0xff] %v1515
  %1529 = vst [vmem:[%s3 + $0x40] sm:$0xff] %v1130
  %1530 = vst [vmem:[%s3 + $0x48] sm:$0xff] %v1132
  %1531 = vst [vmem:[%s3 + $0x50] sm:$0xff] %v1259
  %1532 = vst [vmem:[%s3 + $0x58] sm:$0xff] %v1261
  %1533 = vst [vmem:[%s3 + $0x60] sm:$0xff] %v1388
  %1534 = vst [vmem:[%s3 + $0x68] sm:$0xff] %v1390
  %1535 = vst [vmem:[%s3 + $0x70] sm:$0xff] %v1517
  %1536 = vst [vmem:[%s3 + $0x78] sm:$0xff] %v1519
  // Predicated region
  $region14: #{net_forward.23} parent=0 // pred_check
    _
  $region15: #{net_forward.23} parent=0 // pred_check_branch
    %1538 = sbr.rel (0) target = $region17
  $region16: #{net_forward.23} parent=0 // pred_region
    _
  $region17: #{net_forward.23} parent=0 // pred_fallthru
    _
  // Predicated region
  $region18: #{net_forward.23} parent=0 // pred_check
    _
  $region19: #{net_forward.23} parent=0 // pred_check_branch
    %1540 = sbr.rel (0) target = $region21
  $region20: #{net_forward.23} parent=0 // pred_region
    _
  $region21: #{net_forward.23} parent=0 // pred_fallthru
    _

// kernel: net_forward.29
$region0: #{net_forward.29}
  #allocation0 [shape = 'u32[]', space=smem, size = 0x4, offset = 0x4, fixed_abs, tag = 'smem constant byte address 0x4 - core index']
  #allocation1 [shape = 'u32[144,128]{1,0:T(1,128)}', space=vmem, size = 0x12000, scoped, tag = 'internal scratch']
  #allocation2 [shape = 's32[1]{0}', space=sflag, size = 0x4, scoped, tag = 'scoped memory for net_forward.29']
  #allocation3 [shape = 'u8[512]{0}', space=smem, size = 0x200, scoped, tag = 'prefetched SMEM operand 0']
  #allocation4 [shape = 'f32[1,1]{1,0:T(1,128)S(1)}', space=vmem, size = 0x200, scoped, tag = 'scoped memory for net_forward.29']
  %s0 = inlined_call_operand.vmem [shape: s32[2], index: 0, kind: input, shape index: {}]
  %s1 = inlined_call_operand.vmem [shape: f32[2,8,128], index: 1, kind: input, shape index: {}]
  %s2 = inlined_call_operand.vmem [shape: f32[2,37,128], index: 2, kind: input, shape index: {}]
  %s3 = inlined_call_operand.vmem [shape: f32[1,128], index: 3, kind: input, shape index: {}]
  %s4 = inlined_call_operand.<no memory space> [shape: f32[1,1], index: 4, kind: input, shape index: {}]
  %s5 = inlined_call_operand.vmem [shape: f32[2,8,30], index: 5, kind: output, shape index: {}]
  %s6 = sld [smem:[#allocation0]]
  $region49: #{net_forward.29} parent=0
    _
  %s8 = ssub.s32 1, %s6
  %s9 = scalar_select 0, %s8, %s6
  %s10 = sshll.u32 %s0, 4
  %s11 = int_to_ptr.vmem [resolvable:$true] %s10
  %13 = dma.vmem_to_smem %s11, 16, [#allocation3], [#allocation2]
  %v14 = vstv %s4
  %15 = vst [vmem:[#allocation4] sm:$0x1] %v14
  %16 = dma.done [#allocation2], 16
  %17 = sfence
  loop: start=0, step=1, limit=4
  $region2: #{net_forward.29} parent=0 // loop_pre_header
    _
  $region3: #{net_forward.29} parent=0 // loop_header
    %s19 = sphi 0, %s23
    %p20 = scmp.ge.s32.totalorder %s19, 4
    %s29 = sphi 0, %s31
    %s32 = sphi 0, %s29
    %s33 = sphi 0, %s32
    %s49 = sphi 0, %s33
    %s55 = sphi 0, %s57
    %s58 = sphi 0, %s55
    %s59 = sphi 0, %s58
    %s75 = sphi 0, %s59
    %s79 = sphi 0, %s79
    %s81 = sphi 0, %s79
    %s82 = sphi 0, %s81
    %s96 = sphi 0, %s82
    %s100 = sphi 0, %s100
    %s102 = sphi 0, %s100
    %s103 = sphi 0, %s102
    %s117 = sphi 0, %s103
    %s123 = sphi 0, %s125
    %s126 = sphi 0, %s123
    %s127 = sphi 0, %s126
    %s143 = sphi 0, %s127
  $region4: #{net_forward.29} parent=0 // loop_header_branch
    %22 = sbr.rel (%p20) target = $region8
  $region5: #{net_forward.29} parent=0 // loop_body
    %s24 = ssub.s32 %s19, 1
    %s25 = ssub.s32 %s19, 2
    %s26 = sadd.s32 %s19, 1
    %s27 = ssub.s32 %s19, %s26
    %p28 = scmp.eq.s32.totalorder %s27, 0
    %s30 = sadd.s32 %s29, 1
    %s31 = scalar_select %p28, %s29, %s30
    %p34 = pneg %p28
    %p35 = scmp.eq.s32.totalorder %s19, 1
    %p36 = por %p34, %p35
    %p37 = scmp.ne.s32.totalorder %s29, %s32
    %p38 = scmp.eq.s32.totalorder %s19, 0
    %p39 = por %p37, %p38
    %p40 = scmp.ne.s32.totalorder %s29, %s32
    %p41 = scmp.eq.s32.totalorder %s24, 1
    %p42 = por %p40, %p41
    %p43 = scmp.ne.s32.totalorder %s32, %s33
    %p44 = scmp.eq.s32.totalorder %s24, 0
    %p45 = por %p43, %p44
    %p46 = scmp.ne.s32.totalorder %s32, %s33
    %p47 = scmp.eq.s32.totalorder %s25, 1
    %p48 = por %p46, %p47
    %p50 = scmp.ne.s32.totalorder %s33, %s49
    %p51 = scmp.eq.s32.totalorder %s25, 0
    %p52 = por %p50, %p51
    %s53 = ssub.s32 %s19, %s26
    %p54 = scmp.eq.s32.totalorder %s53, 0
    %s56 = sadd.s32 %s55, 1
    %s57 = scalar_select %p54, %s55, %s56
    %p60 = pneg %p54
    %p61 = scmp.eq.s32.totalorder %s19, 1
    %p62 = por %p60, %p61
    %p63 = scmp.ne.s32.totalorder %s55, %s58
    %p64 = scmp.eq.s32.totalorder %s19, 0
    %p65 = por %p63, %p64
    %p66 = scmp.ne.s32.totalorder %s55, %s58
    %p67 = scmp.eq.s32.totalorder %s24, 1
    %p68 = por %p66, %p67
    %p69 = scmp.ne.s32.totalorder %s58, %s59
    %p70 = scmp.eq.s32.totalorder %s24, 0
    %p71 = por %p69, %p70
    %p72 = scmp.ne.s32.totalorder %s58, %s59
    %p73 = scmp.eq.s32.totalorder %s25, 1
    %p74 = por %p72, %p73
    %p76 = scmp.ne.s32.totalorder %s59, %s75
    %p77 = scmp.eq.s32.totalorder %s25, 0
    %p78 = por %p76, %p77
    %s80 = sadd.s32 %s79, 1
    %p83 = scmp.eq.s32.totalorder %s19, 1
    %p84 = scmp.ne.s32.totalorder %s79, %s81
    %p85 = scmp.eq.s32.totalorder %s19, 0
    %p86 = por %p84, %p85
    %p87 = scmp.ne.s32.totalorder %s79, %s81
    %p88 = scmp.eq.s32.totalorder %s24, 1
    %p89 = por %p87, %p88
    %p90 = scmp.ne.s32.totalorder %s81, %s82
    %p91 = scmp.eq.s32.totalorder %s24, 0
    %p92 = por %p90, %p91
    %p93 = scmp.ne.s32.totalorder %s81, %s82
    %p94 = scmp.eq.s32.totalorder %s25, 1
    %p95 = por %p93, %p94
    %p97 = scmp.ne.s32.totalorder %s82, %s96
    %p98 = scmp.eq.s32.totalorder %s25, 0
    %p99 = por %p97, %p98
    %s101 = sadd.s32 %s100, 1
    %p104 = scmp.eq.s32.totalorder %s19, 1
    %p105 = scmp.ne.s32.totalorder %s100, %s102
    %p106 = scmp.eq.s32.totalorder %s19, 0
    %p107 = por %p105, %p106
    %p108 = scmp.ne.s32.totalorder %s100, %s102
    %p109 = scmp.eq.s32.totalorder %s24, 1
    %p110 = por %p108, %p109
    %p111 = scmp.ne.s32.totalorder %s102, %s103
    %p112 = scmp.eq.s32.totalorder %s24, 0
    %p113 = por %p111, %p112
    %p114 = scmp.ne.s32.totalorder %s102, %s103
    %p115 = scmp.eq.s32.totalorder %s25, 1
    %p116 = por %p114, %p115
    %p118 = scmp.ne.s32.totalorder %s103, %s117
    %p119 = scmp.eq.s32.totalorder %s25, 0
    %p120 = por %p118, %p119
    %s121 = ssub.s32 %s19, %s26
    %p122 = scmp.eq.s32.totalorder %s121, 0
    %s124 = sadd.s32 %s123, 1
    %s125 = scalar_select %p122, %s123, %s124
    %p128 = pneg %p122
    %p129 = scmp.eq.s32.totalorder %s19, 1
    %p130 = por %p128, %p129
    %p131 = scmp.ne.s32.totalorder %s123, %s126
    %p132 = scmp.eq.s32.totalorder %s19, 0
    %p133 = por %p131, %p132
    %p134 = scmp.ne.s32.totalorder %s123, %s126
    %p135 = scmp.eq.s32.totalorder %s24, 1
    %p136 = por %p134, %p135
    %p137 = scmp.ne.s32.totalorder %s126, %s127
    %p138 = scmp.eq.s32.totalorder %s24, 0
    %p139 = por %p137, %p138
    %p140 = scmp.ne.s32.totalorder %s126, %s127
    %p141 = scmp.eq.s32.totalorder %s25, 1
    %p142 = por %p140, %p141
    %p144 = scmp.ne.s32.totalorder %s127, %s143
    %p145 = scmp.eq.s32.totalorder %s25, 0
    %p146 = por %p144, %p145
    %p147 = scmp.le.s32.totalorder 1, %s19
    %p148 = scmp.lt.s32.totalorder %s19, 3
    %p149 = pnand %p147, %p148
    %p150 = pneg %p149
    // Predicated region
    $region9: #{net_forward.29} parent=5 // pred_check
      _
    $region10: #{net_forward.29} parent=5 // pred_check_branch
      %152 = sbr.rel (%p149) target = $region12
    $region11: #{net_forward.29} parent=5 // pred_region
      %s153 = ssub.s32 %s19, 1
      // Predicated region
      $region13: #{net_forward.29} parent=11 // pred_check
        %p154 = pneg %p92
      $region14: #{net_forward.29} parent=11 // pred_check_branch
        %156 = sbr.rel (%p154) target = $region16
      $region15: #{net_forward.29} parent=11 // pred_region
        _
      $region16: #{net_forward.29} parent=11 // pred_fallthru
        _
      // Predicated region
      $region17: #{net_forward.29} parent=11 // pred_check
        %p157 = pneg %p113
      $region18: #{net_forward.29} parent=11 // pred_check_branch
        %159 = sbr.rel (%p157) target = $region20
      $region19: #{net_forward.29} parent=11 // pred_region
        _
      $region20: #{net_forward.29} parent=11 // pred_fallthru
        _
    $region12: #{net_forward.29} parent=5 // pred_fallthru
      _
    %p160 = scmp.lt.s32.totalorder %s19, 2
    // Predicated region
    $region21: #{net_forward.29} parent=5 // pred_check
      %p161 = pneg %p160
    $region22: #{net_forward.29} parent=5 // pred_check_branch
      %163 = sbr.rel (%p161) target = $region24
    $region23: #{net_forward.29} parent=5 // pred_region
      // Predicated region
      $region25: #{net_forward.29} parent=23 // pred_check
        %p164 = pneg %p39
      $region26: #{net_forward.29} parent=23 // pred_check_branch
        %166 = sbr.rel (%p164) target = $region28
      $region27: #{net_forward.29} parent=23 // pred_region
        %p167 = scmp.lt.s32.totalorder %s19, 1
        %s168 = scalar_select %p167, %s19, 1
        %s169 = smul.addr %s168, 8
        %s170 = scalar_lea.vmem %s1, %s169
      $region28: #{net_forward.29} parent=23 // pred_fallthru
        _
      // Predicated region
      $region29: #{net_forward.29} parent=23 // pred_check
        %p171 = pneg %p65
      $region30: #{net_forward.29} parent=23 // pred_check_branch
        %173 = sbr.rel (%p171) target = $region32
      $region31: #{net_forward.29} parent=23 // pred_region
        %p174 = scmp.lt.s32.totalorder %s19, 1
        %s175 = scalar_select %p174, %s19, 1
        %s176 = smul.addr %s175, 5
        %s177 = smul.addr %s176, 8
        %s178 = scalar_lea.vmem %s2, %s177
      $region32: #{net_forward.29} parent=23 // pred_fallthru
        _
    $region24: #{net_forward.29} parent=5 // pred_fallthru
      _
    %p179 = scmp.le.s32.totalorder 1, %s19
    %p180 = scmp.lt.s32.totalorder %s19, 3
    %p181 = pnand %p179, %p180
    %p182 = pneg %p181
    // Predicated region
    $region33: #{net_forward.29} parent=5 // pred_check
      _
    $region34: #{net_forward.29} parent=5 // pred_check_branch
      %184 = sbr.rel (%p181) target = $region36
    $region35: #{net_forward.29} parent=5 // pred_region
      %s185 = ssub.s32 %s19, 1
      %p186 = scmp.lt.s32.totalorder %s24, 1
      %s187 = scalar_select %p186, %s24, 1
      %s188 = smul.addr %s187, 8
      %s189 = scalar_lea.vmem %s1, %s188
      %p190 = pneg %p45
      %p191 = pneg %p42
      %p192 = scmp.lt.s32.totalorder %s24, 1
      %s193 = scalar_select %p192, %s24, 1
      %s194 = smul.addr %s193, 5
      %s195 = smul.addr %s194, 8
      %s196 = scalar_lea.vmem %s2, %s195
      %p197 = pneg %p71
      %p198 = pneg %p68
      %p199 = pneg %p92
      %p200 = pneg %p89
      %p201 = pneg %p113
      %p202 = pneg %p110
      %p203 = pneg %p139
      %p204 = pneg %p136
      %p205 = scmp.lt.s32.totalorder %s24, 1
      %s206 = scalar_select %p205, %s24, 1
      %s207 = smul.addr %s206, 8
      %s208 = scalar_lea.vmem %s5, %s207
      %p209 = scmp.lt.s32.totalorder %s24, 1
      %s210 = scalar_select %p209, %s24, 1
      %s211 = smul.addr %s210, 8
      %s212 = scalar_lea.vmem %s1, %s211
      %p213 = scmp.lt.s32.totalorder %s24, 1
      %s214 = scalar_select %p213, %s24, 1
      %s215 = smul.addr %s214, 5
      %s216 = smul.addr %s215, 8
      %s217 = scalar_lea.vmem %s2, %s216
      %p218 = scmp.lt.s32.totalorder %s24, 1
      %s219 = scalar_select %p218, %s24, 1
      %s220 = smul.addr %s219, 8
      %s221 = scalar_lea.vmem %s5, %s220
      %s222 = sld [smem:[#allocation3 + %s24]]
      %v223 = vld [vmem:[%s212] sm:$0xff]
      %v224 = vld [vmem:[%s3] sm:$0x1]
      %v225 = vld [vmem:[%s217] sm:$0xff]
      %v226 = vadd.f32 %v223, %v225
      %v227 = vmax.f32 %v226, 0.0
      %v229 = vlaneseq
      %v230 = vshrl.u32 %v229, 7
      %v231 = vsub.s32 0, %v230
      %v232 = vrot.slane %v224, %v231
      %v234 = vmul.f32 %v227, %v232
      %235 = vadd.xlane.f32.xlu0 %v234
      %v236 = vpop.xlane.xlu0 %235
      %v237 = vld [vmem:[%s217 + $0x1] sm:$0xff]
      %v238 = vadd.f32 %v223, %v237
      %v239 = vmax.f32 %v238, 0.0
      %v240 = vmul.f32 %v239, %v232
      %241 = vadd.xlane.f32.xlu0 %v240
      %v242 = vpop.xlane.xlu0 %241
      %v243 = vld [vmem:[%s217 + $0x2] sm:$0xff]
      %v244 = vadd.f32 %v223, %v243
      %v245 = vmax.f32 %v244, 0.0
      %v246 = vmul.f32 %v245, %v232
      %247 = vadd.xlane.f32.xlu0 %v246
      %v248 = vpop.xlane.xlu0 %247
      %v249 = vld [vmem:[%s217 + $0x3] sm:$0xff]
      %v250 = vadd.f32 %v223, %v249
      %v251 = vmax.f32 %v250, 0.0
      %v252 = vmul.f32 %v251, %v232
      %253 = vadd.xlane.f32.xlu0 %v252
      %v254 = vpop.xlane.xlu0 %253
      %v255 = vld [vmem:[%s217 + $0x4] sm:$0xff]
      %v256 = vadd.f32 %v223, %v255
      %v257 = vmax.f32 %v256, 0.0
      %v258 = vmul.f32 %v257, %v232
      %259 = vadd.xlane.f32.xlu0 %v258
      %v260 = vpop.xlane.xlu0 %259
      %v261 = vld [vmem:[%s217 + $0x5] sm:$0xff]
      %v262 = vadd.f32 %v223, %v261
      %v263 = vmax.f32 %v262, 0.0
      %v264 = vmul.f32 %v263, %v232
      %265 = vadd.xlane.f32.xlu0 %v264
      %v266 = vpop.xlane.xlu0 %265
      %v267 = vld [vmem:[%s217 + $0x6] sm:$0xff]
      %v268 = vadd.f32 %v223, %v267
      %v269 = vmax.f32 %v268, 0.0
      %v270 = vmul.f32 %v269, %v232
      %271 = vadd.xlane.f32.xlu0 %v270
      %v272 = vpop.xlane.xlu0 %271
      %v273 = vld [vmem:[%s217 + $0x7] sm:$0xff]
      %v274 = vadd.f32 %v223, %v273
      %v275 = vmax.f32 %v274, 0.0
      %v276 = vmul.f32 %v275, %v232
      %277 = vadd.xlane.f32.xlu0 %v276
      %v278 = vpop.xlane.xlu0 %277
      %v279 = vld [vmem:[%s217 + $0x8] sm:$0xff]
      %v280 = vadd.f32 %v223, %v279
      %v281 = vmax.f32 %v280, 0.0
      %v282 = vmul.f32 %v281, %v232
      %283 = vadd.xlane.f32.xlu0 %v282
      %v284 = vpop.xlane.xlu0 %283
      %v285 = vld [vmem:[%s217 + $0x9] sm:$0xff]
      %v286 = vadd.f32 %v223, %v285
      %v287 = vmax.f32 %v286, 0.0
      %v288 = vmul.f32 %v287, %v232
      %289 = vadd.xlane.f32.xlu0 %v288
      %v290 = vpop.xlane.xlu0 %289
      %v291 = vld [vmem:[%s217 + $0xa] sm:$0xff]
      %v292 = vadd.f32 %v223, %v291
      %v293 = vmax.f32 %v292, 0.0
      %v294 = vmul.f32 %v293, %v232
      %295 = vadd.xlane.f32.xlu0 %v294
      %v296 = vpop.xlane.xlu0 %295
      %v297 = vld [vmem:[%s217 + $0xb] sm:$0xff]
      %v298 = vadd.f32 %v223, %v297
      %v299 = vmax.f32 %v298, 0.0
      %v300 = vmul.f32 %v299, %v232
      %301 = vadd.xlane.f32.xlu0 %v300
      %v302 = vpop.xlane.xlu0 %301
      %v303 = vld [vmem:[%s217 + $0xc] sm:$0xff]
      %v304 = vadd.f32 %v223, %v303
      %v305 = vmax.f32 %v304, 0.0
      %v306 = vmul.f32 %v305, %v232
      %307 = vadd.xlane.f32.xlu0 %v306
      %v308 = vpop.xlane.xlu0 %307
      %v309 = vld [vmem:[%s217 + $0xd] sm:$0xff]
      %v310 = vadd.f32 %v223, %v309
      %v311 = vmax.f32 %v310, 0.0
      %v312 = vmul.f32 %v311, %v232
      %313 = vadd.xlane.f32.xlu0 %v312
      %v314 = vpop.xlane.xlu0 %313
      %v315 = vld [vmem:[%s217 + $0xe] sm:$0xff]
      %v316 = vadd.f32 %v223, %v315
      %v317 = vmax.f32 %v316, 0.0
      %v318 = vmul.f32 %v317, %v232
      %319 = vadd.xlane.f32.xlu0 %v318
      %v320 = vpop.xlane.xlu0 %319
      %v321 = vld [vmem:[%s217 + $0xf] sm:$0xff]
      %v322 = vadd.f32 %v223, %v321
      %v323 = vmax.f32 %v322, 0.0
      %v324 = vmul.f32 %v323, %v232
      %325 = vadd.xlane.f32.xlu0 %v324
      %v326 = vpop.xlane.xlu0 %325
      %v327 = vld [vmem:[%s217 + $0x10] sm:$0xff]
      %v328 = vadd.f32 %v223, %v327
      %v329 = vmax.f32 %v328, 0.0
      %v330 = vmul.f32 %v329, %v232
      %331 = vadd.xlane.f32.xlu0 %v330
      %v332 = vpop.xlane.xlu0 %331
      %v333 = vld [vmem:[%s217 + $0x11] sm:$0xff]
      %v334 = vadd.f32 %v223, %v333
      %v335 = vmax.f32 %v334, 0.0
      %v336 = vmul.f32 %v335, %v232
      %337 = vadd.xlane.f32.xlu0 %v336
      %v338 = vpop.xlane.xlu0 %337
      %v339 = vld [vmem:[%s217 + $0x12] sm:$0xff]
      %v340 = vadd.f32 %v223, %v339
      %v341 = vmax.f32 %v340, 0.0
      %v342 = vmul.f32 %v341, %v232
      %343 = vadd.xlane.f32.xlu0 %v342
      %v344 = vpop.xlane.xlu0 %343
      %v345 = vld [vmem:[%s217 + $0x13] sm:$0xff]
      %v346 = vadd.f32 %v223, %v345
      %v347 = vmax.f32 %v346, 0.0
      %v348 = vmul.f32 %v347, %v232
      %349 = vadd.xlane.f32.xlu0 %v348
      %v350 = vpop.xlane.xlu0 %349
      %v351 = vld [vmem:[%s217 + $0x14] sm:$0xff]
      %v352 = vadd.f32 %v223, %v351
      %v353 = vmax.f32 %v352, 0.0
      %v354 = vmul.f32 %v353, %v232
      %355 = vadd.xlane.f32.xlu0 %v354
      %v356 = vpop.xlane.xlu0 %355
      %v357 = vld [vmem:[%s217 + $0x15] sm:$0xff]
      %v358 = vadd.f32 %v223, %v357
      %v359 = vmax.f32 %v358, 0.0
      %v360 = vmul.f32 %v359, %v232
      %361 = vadd.xlane.f32.xlu0 %v360
      %v362 = vpop.xlane.xlu0 %361
      %v363 = vld [vmem:[%s217 + $0x16] sm:$0xff]
      %v364 = vadd.f32 %v223, %v363
      %v365 = vmax.f32 %v364, 0.0
      %v366 = vmul.f32 %v365, %v232
      %367 = vadd.xlane.f32.xlu0 %v366
      %v368 = vpop.xlane.xlu0 %367
      %v369 = vld [vmem:[%s217 + $0x17] sm:$0xff]
      %v370 = vadd.f32 %v223, %v369
      %v371 = vmax.f32 %v370, 0.0
      %v372 = vmul.f32 %v371, %v232
      %373 = vadd.xlane.f32.xlu0 %v372
      %v374 = vpop.xlane.xlu0 %373
      %v375 = vld [vmem:[%s217 + $0x18] sm:$0xff]
      %v376 = vadd.f32 %v223, %v375
      %v377 = vmax.f32 %v376, 0.0
      %v378 = vmul.f32 %v377, %v232
      %379 = vadd.xlane.f32.xlu0 %v378
      %v380 = vpop.xlane.xlu0 %379
      %v381 = vld [vmem:[%s217 + $0x19] sm:$0xff]
      %v382 = vadd.f32 %v223, %v381
      %v383 = vmax.f32 %v382, 0.0
      %v384 = vmul.f32 %v383, %v232
      %385 = vadd.xlane.f32.xlu0 %v384
      %v386 = vpop.xlane.xlu0 %385
      %v387 = vld [vmem:[%s217 + $0x1a] sm:$0xff]
      %v388 = vadd.f32 %v223, %v387
      %v389 = vmax.f32 %v388, 0.0
      %v390 = vmul.f32 %v389, %v232
      %391 = vadd.xlane.f32.xlu0 %v390
      %v392 = vpop.xlane.xlu0 %391
      %v393 = vld [vmem:[%s217 + $0x1b] sm:$0xff]
      %v394 = vadd.f32 %v223, %v393
      %v395 = vmax.f32 %v394, 0.0
      %v396 = vmul.f32 %v395, %v232
      %397 = vadd.xlane.f32.xlu0 %v396
      %v398 = vpop.xlane.xlu0 %397
      %v399 = vld [vmem:[%s217 + $0x1c] sm:$0xff]
      %v400 = vadd.f32 %v223, %v399
      %v401 = vmax.f32 %v400, 0.0
      %v402 = vmul.f32 %v401, %v232
      %403 = vadd.xlane.f32.xlu0 %v402
      %v404 = vpop.xlane.xlu0 %403
      %v405 = vld [vmem:[%s217 + $0x1d] sm:$0xff]
      %v406 = vadd.f32 %v223, %v405
      %v407 = vmax.f32 %v406, 0.0
      %v408 = vmul.f32 %v407, %v232
      %409 = vadd.xlane.f32.xlu0 %v408
      %v410 = vpop.xlane.xlu0 %409
      %vm411 = vcmask 7168
      %v412 = vsel %vm411, %v236, %v242
      %vm413 = vcmask 15360
      %v414 = vsel %vm413, %v412, %v248
      %vm415 = vcmask 23552
      %v416 = vsel %vm415, %v414, %v254
      %vm417 = vcmask 31744
      %v418 = vsel %vm417, %v416, %v260
      %vm419 = vcmask 39936
      %v420 = vsel %vm419, %v418, %v266
      %vm421 = vcmask 48128
      %v422 = vsel %vm421, %v420, %v272
      %vm423 = vcmask 56320
      %v424 = vsel %vm423, %v422, %v278
      %vm425 = vcmask 64512
      %v426 = vsel %vm425, %v424, %v284
      %vm427 = vcmask 72704
      %v428 = vsel %vm427, %v426, %v290
      %vm429 = vcmask 80896
      %v430 = vsel %vm429, %v428, %v296
      %vm431 = vcmask 89088
      %v432 = vsel %vm431, %v430, %v302
      %vm433 = vcmask 97280
      %v434 = vsel %vm433, %v432, %v308
      %vm435 = vcmask 105472
      %v436 = vsel %vm435, %v434, %v314
      %vm437 = vcmask 113664
      %v438 = vsel %vm437, %v436, %v320
      %vm439 = vcmask 121856
      %v440 = vsel %vm439, %v438, %v326
      %v441 = vsel %vm411, %v332, %v338
      %v442 = vsel %vm413, %v441, %v344
      %v443 = vsel %vm415, %v442, %v350
      %v444 = vsel %vm417, %v443, %v356
      %v445 = vsel %vm419, %v444, %v362
      %v446 = vsel %vm421, %v445, %v368
      %v447 = vsel %vm423, %v446, %v374
      %v448 = vsel %vm425, %v447, %v380
      %v449 = vsel %vm427, %v448, %v386
      %v450 = vsel %vm429, %v449, %v392
      %v451 = vsel %vm431, %v450, %v398
      %v452 = vsel %vm433, %v451, %v404
      %v453 = vsel %vm435, %v452, %v410
      %455 = vrot.lane.b32.xlu0 %v453, 16
      %v456 = vpop.permute.xlu0 %455
      %vm458 = vcmask 130048
      %v459 = vsel %vm458, %v440, %v456
      %v460 = vld [vmem:[#allocation4] sm:$0x1]
      %v462 = vlaneseq
      %v463 = vshrl.u32 %v462, 7
      %v464 = vsub.s32 0, %v463
      %v465 = vrot.slane %v460, %v464
      %466 = vset.pattern.permute.xlu0 0
      %467 = vperm.xlu0 %466, %v465
      %v468 = vpop.permute.xlu0 %467
      %v470 = vadd.f32 %v459, %v468
      %v471 = vlaneseq
      %v472 = vshrl.u32 %v471, 7
      %v473 = vlaneseq
      %v474 = vand.u32 %v473, 127
      %v475 = vadd.s32 %v472, %v474
      %v476 = vstv %s222
      %vm477 = vcmp.lt.s32.totalorder %v475, %v476
      %v478 = vsel %vm477, 1, 0
      %v479 = vcvt.s32.f32 %v478
      %v480 = vmul.f32 %v470, %v479
      %vm481 = vcmask 244736
      %v482 = vsel %vm481, %v480, -inf
      %483 = vmax.xlane.f32.xlu0 %v482
      %v484 = vpop.xlane.xlu0 %483
      %v485 = vrot.slane %v484, 4
      %v486 = vmax.f32 %v484, %v485
      %v487 = vrot.slane %v486, 2
      %v488 = vmax.f32 %v486, %v487
      %v489 = vrot.slane %v488, 1
      %v490 = vmax.f32 %v488, %v489
      %v491 = vsub.f32 %v480, %v490
      %v492 = vmul.f32 %v491, 1.442695
      %v493 = vpow.pop %v492
      %v494 = vsel %vm481, %v493, 0.0
      %495 = vadd.xlane.f32.xlu0 %v494
      %v496 = vpop.xlane.xlu0 %495
      %v497 = vrot.slane %v496, 4
      %v498 = vadd.f32 %v496, %v497
      %v499 = vrot.slane %v498, 2
      %v500 = vadd.f32 %v498, %v499
      %v501 = vrot.slane %v500, 1
      %v502 = vadd.f32 %v500, %v501
      %v503 = vlog2.pop %v502
      %v504 = vmul.f32 %v503, 0.6931472
      %v505 = vsub.f32 %v491, %v504
      %506 = vst.msk [vmem:[%s221] sm:$0xff] %vm481, %v505
      %p507 = scmp.lt.s32.totalorder %s24, 1
      %s508 = scalar_select %p507, %s24, 1
      %s509 = smul.addr %s508, 8
      %s510 = scalar_lea.vmem %s5, %s509
      // Predicated region
      $region37: #{net_forward.29} parent=35 // pred_check
        %p511 = pneg %p136
      $region38: #{net_forward.29} parent=35 // pred_check_branch
        %513 = sbr.rel (%p511) target = $region40
      $region39: #{net_forward.29} parent=35 // pred_region
        _
      $region40: #{net_forward.29} parent=35 // pred_fallthru
        _
    $region36: #{net_forward.29} parent=5 // pred_fallthru
      _
    %p514 = scmp.le.s32.totalorder 2, %s19
    // Predicated region
    $region41: #{net_forward.29} parent=5 // pred_check
      %p515 = pneg %p514
    $region42: #{net_forward.29} parent=5 // pred_check_branch
      %517 = sbr.rel (%p515) target = $region44
    $region43: #{net_forward.29} parent=5 // pred_region
      %s518 = ssub.s32 %s19, 2
      // Predicated region
      $region45: #{net_forward.29} parent=43 // pred_check
        %p519 = pneg %p142
      $region46: #{net_forward.29} parent=43 // pred_check_branch
        %521 = sbr.rel (%p519) target = $region48
      $region47: #{net_forward.29} parent=43 // pred_region
        %p522 = scmp.lt.s32.totalorder %s25, 1
        %s523 = scalar_select %p522, %s25, 1
        %s524 = smul.addr %s523, 8
        %s525 = scalar_lea.vmem %s5, %s524
      $region48: #{net_forward.29} parent=43 // pred_fallthru
        _
    $region44: #{net_forward.29} parent=5 // pred_fallthru
      _
  $region6: #{net_forward.29} parent=0 // loop_footer
    %s23 = sadd.s32 1, %s19
  $region7: #{net_forward.29} parent=0 // loop_footer_branch
    %18 = sbr.rel target = $region3
  $region8: #{net_forward.29} parent=0 // loop_exit
    _

</llo_original>
